<compile_context>
chip_gen: v7x
topology: tpu7x:2x2x1
jax: 0.10.0
libtpu: 0.0.40
codegen_flags: <defaults>
</compile_context>

<pallas_src>
import functools

import numpy as np

import jax
import jax.numpy as jnp
from jax.experimental import pallas as pl
from jax.experimental.pallas import tpu as pltpu


def _round_up(x, m):
    return (x + m - 1) // m * m


def _full_block(shape):
    nd = len(shape)
    return pl.BlockSpec(shape, lambda i, _nd=nd: (0,) * _nd)


# ----------------------------------------------------------------------------
# Fused per-stage kernel
# ----------------------------------------------------------------------------
def _stage_kernel(x_ref, skip_ref, wt_ref, bt_ref, w1_ref, g1_ref, b1_ref,
                  w2_ref, g2_ref, b2_ref, fold_ref, mask_ref,
                  o_ref,
                  zbuf, z2buf,
                  *, n, h, w, wp, marg, cs, c, cin):
    """One fused UNet-decoder stage (deconv -> concat -> 2x(conv3x3+BN+ReLU)).

    Activations live in space-to-depth (s2d) form on the low-res grid, spatially
    flattened over a zero-padded (h+2, wp) grid.  The merged buffers hold THREE
    x-shifted lane blocks, so a 3x3 conv is 3 matmuls (one per kernel row) with
    K = 3 * block_width, all reading sublane-aligned slices.
    """
    simg = (h + 2) * wp
    ntot = n * simg
    rows = ntot + 2 * marg
    c4 = 4 * c
    k1 = 4 * cin                       # lanes per x-shift block of zbuf
    w1cols = 3 * k1
    w2cols = 3 * c4
    inv_cnt = 1.0 / float(n * h * w * 4)   # == 1 / (N * 2H * 2W)
    zlead = marg + 8                   # sublane-aligned boundary zero region

    # Zero only the margin / boundary rows (guards against stale VMEM reads on
    # invalid output rows); the interior rows are fully overwritten below.
    zbuf[pl.ds(0, zlead), :] = jnp.zeros((zlead, w1cols), zbuf.dtype)
    zbuf[pl.ds(rows - zlead, zlead), :] = jnp.zeros((zlead, w1cols), zbuf.dtype)
    z2buf[pl.ds(0, zlead), :] = jnp.zeros((zlead, w2cols), z2buf.dtype)
    z2buf[pl.ds(rows - zlead, zlead), :] = jnp.zeros((zlead, w2cols), z2buf.dtype)

    mask = mask_ref[...]               # (ntot, 1): 1 at valid pixels, 0 at ring
    fold = fold_ref[...]               # (4c, 4c): sums/broadcasts the 4 blocks

    # ConvTranspose2d(kernel=2, stride=2) == one per-pixel matmul in s2d form,
    # computed directly on the padded rows and masked (the deconv bias must not
    # leak into the conv zero-padding ring).  Conv biases are dropped (BN).
    up = (jnp.dot(x_ref[...], wt_ref[...], preferred_element_type=jnp.float32)
          + bt_ref[...]) * mask
    up = up.astype(zbuf.dtype)
    skip = skip_ref[...]               # pre-padded s2d skip (bf16, zero ring)

    # Build the merged [skip | upsample] buffer with three x-shifted lane
    # blocks: block tx holds the activation shifted by (tx - 1) flat rows.
    for tx in range(3):
        dst = marg + 1 - tx
        zbuf[pl.ds(dst, ntot), tx * k1:tx * k1 + 4 * cs] = skip
        zbuf[pl.ds(dst, ntot), tx * k1 + 4 * cs:(tx + 1) * k1] = up

    def conv3(src_ref, w_ref):
        # 3x3 'same' conv as 3 row-grouped matmuls (K = 3 * block width); all
        # slice starts are static multiples of 8.
        acc = jnp.zeros((ntot, c4), jnp.float32)
        for ty in range(3):
            acc = acc + jnp.dot(
                src_ref[pl.ds(marg + (ty - 1) * wp, ntot), :], w_ref[ty],
                preferred_element_type=jnp.float32)
        return acc

    def bn_scale_shift(acc, g, b):
        # Training-mode BatchNorm folded to a per-channel scale/shift; one-pass
        # masked statistics with a single masked product.
        am = acc * mask
        s1 = jnp.dot(jnp.sum(am, axis=0, keepdims=True), fold,
                     preferred_element_type=jnp.float32)
        s2 = jnp.dot(jnp.sum(am * am, axis=0, keepdims=True), fold,
                     preferred_element_type=jnp.float32)
        mean = s1 * inv_cnt
        var = jnp.maximum(s2 * inv_cnt - mean * mean, 0.0)
        scale = g * jax.lax.rsqrt(var + 1e-5)
        shift = b - mean * scale
        return scale, shift

    # ---- Conv3x3 + BatchNorm + ReLU  (#1) ----------------------------------
    acc1 = conv3(zbuf, w1_ref)
    sc1, sh1 = bn_scale_shift(acc1, g1_ref[...], b1_ref[...])
    y1 = (jnp.maximum(acc1 * sc1 + sh1, 0.0) * mask).astype(z2buf.dtype)
    for tx in range(3):
        z2buf[pl.ds(marg + 1 - tx, ntot), tx * c4:(tx + 1) * c4] = y1

    # ---- Conv3x3 + BatchNorm + ReLU  (#2) ----------------------------------
    acc2 = conv3(z2buf, w2_ref)
    sc2, sh2 = bn_scale_shift(acc2, g2_ref[...], b2_ref[...])
    # Pad-ring rows are discarded by the wrapper, so no trailing mask needed.
    o_ref[...] = jnp.maximum(acc2 * sc2 + sh2, 0.0).astype(o_ref.dtype)


# ----------------------------------------------------------------------------
# Host-side parameter preparation (PyTorch layout -> s2d / tap-grouped layout)
# ----------------------------------------------------------------------------
def _conv3x3_to_s2d(w_torch):
    """(Co, Ci, 3, 3) 'same' conv -> space-to-depth form (9, 4*Ci, 4*Co)."""
    wt = np.asarray(w_torch, np.float32)
    co_, ci_ = wt.shape[0], wt.shape[1]
    out = np.zeros((3, 3, 4 * ci_, 4 * co_), np.float32)
    for ty in range(3):
        for tx in range(3):
            for ay in range(2):
                for ax in range(2):
                    for p in range(2):
                        for q in range(2):
                            dy = 2 * ty + p - ay - 1
                            dx = 2 * tx + q - ax - 1
                            if 0 <= dy <= 2 and 0 <= dx <= 2:
                                out[ty, tx,
                                    (p * 2 + q) * ci_:(p * 2 + q + 1) * ci_,
                                    (ay * 2 + ax) * co_:(ay * 2 + ax + 1) * co_
                                    ] = wt[:, :, dy, dx].T
    return out.reshape(9, 4 * ci_, 4 * co_)


def _prepare_stage(stage_params):
    """Convert one stage's PyTorch-layout parameters to kernel form."""
    wt, bt, convs = stage_params
    assert len(convs) == 2, "kernel specialized to num_conv2d=2"
    cin, c = int(wt.shape[0]), int(wt.shape[1])
    cs = cin - c                      # skip channels after CenterCrop / concat
    (w1, _b1, g1, be1), (w2, _b2, g2, be2) = convs   # conv biases cancelled by BN

    # ConvTranspose2d weight (Cin, C, 2, 2) -> (Cin, (a,b,co)) matmul form.
    wt2 = jnp.transpose(wt, (0, 2, 3, 1)).reshape(cin, 4 * c).astype(jnp.bfloat16)
    bt4 = jnp.tile(bt, 4).reshape(1, 4 * c).astype(jnp.float32)

    # conv1 in s2d form.  Reorder K so the merged buffer lane layout is
    # [skip s2d (4*cs) | upsample s2d (4*c)] -- the concat becomes a lane
    # offset and w1 stays as ONE matrix per tap.
    w1g = _conv3x3_to_s2d(w1)                                  # (9, 4*cin, 4*c)
    rs = [pq * cin + cw for pq in range(4) for cw in range(cs)]
    ru = [pq * cin + cs + cw for pq in range(4) for cw in range(c)]
    w1m = w1g[:, np.asarray(rs + ru), :]
    # Group the 3 x-shift taps of each kernel row along K (K = 3*4*cin).
    w1grp = w1m.reshape(3, 3, 4 * cin, 4 * c).reshape(3, 12 * cin, 4 * c)
    w2g = _conv3x3_to_s2d(w2)                                  # (9, 4*c, 4*c)
    w2grp = w2g.reshape(3, 3, 4 * c, 4 * c).reshape(3, 12 * c, 4 * c)

    def tile4(v):
        return jnp.tile(v, 4).reshape(1, 4 * c).astype(jnp.float32)

    idx = np.arange(4 * c)
    fold = jnp.asarray((idx[:, None] % c) == (idx[None, :] % c), jnp.float32)

    return dict(c=c, cs=cs, cin=cin, wt=wt2, bt=bt4,
                w1=jnp.asarray(w1grp, jnp.bfloat16),
                w2=jnp.asarray(w2grp, jnp.bfloat16),
                g1=tile4(g1), b1=tile4(be1), g2=tile4(g2), b2=tile4(be2),
                fold=fold)


def init_decoder_params(key, in_channels, out_channels, num_conv2d=2, ksize=3):
    """Deterministic synthetic parameters matching the PyTorch module shapes."""
    params = []
    cin = in_channels
    for cout in out_channels:
        key, k1, k2 = jax.random.split(key, 3)
        wt = jax.random.normal(k1, (cin, cout, 2, 2), jnp.float32) * 0.1
        bt = jax.random.normal(k2, (cout,), jnp.float32) * 0.1
        convs = []
        for j in range(num_conv2d):
            ci = cin if j == 0 else cout
            key, k1, k2 = jax.random.split(key, 3)
            wc = jax.random.normal(k1, (cout, ci, ksize, ksize), jnp.float32) * 0.1
            bc = jax.random.normal(k2, (cout,), jnp.float32) * 0.1
            gamma = jnp.ones((cout,), jnp.float32)
            beta = jnp.zeros((cout,), jnp.float32)
            convs.append((wc, bc, gamma, beta))
        params.append((wt, bt, convs))
        cin = cout
    return params


# ----------------------------------------------------------------------------
# Decoder forward (thin XLA glue around the fused per-stage kernel)
# ----------------------------------------------------------------------------
def _space_to_depth(x_nhwc):
    # (N, 2H, 2W, C) -> (N, H, W, 4C); block (a*2+b) holds pixel (2r+a, 2c+b)
    return jnp.concatenate(
        [x_nhwc[:, a::2, b::2, :] for a in range(2) for b in range(2)], axis=-1)


def _pad_flatten(x_nhwc, wp, dtype):
    """Zero-pad to the (h+2, wp) padded grid and flatten rows (host side)."""
    n, h, w, ch = x_nhwc.shape
    xp = jnp.pad(x_nhwc.astype(dtype), ((0, 0), (1, 1), (1, wp - w - 1), (0, 0)))
    return xp.reshape(n * (h + 2) * wp, ch)


def _decoder_stage(x_nhwc, skip_nhwc, kp, *, final):
    """One UpSample block, fully fused into a single pallas_call."""
    n, h, w, cin = x_nhwc.shape
    c, cs = kp["c"], kp["cs"]
    assert cin == kp["cin"] == cs + c

    wp = _round_up(w + 2, 8)          # sublane-aligned padded row stride
    marg = wp                          # margin, multiple of 8, >= wp
    simg = (h + 2) * wp
    ntot = n * simg
    rows = ntot + 2 * marg

    # CenterCrop (torchvision semantics) + space-to-depth + host-side zero pad:
    # the pad ring arrives for free, fused into the input DMA (already bf16).
    h2, w2 = 2 * h, 2 * w
    hs, ws = skip_nhwc.shape[1], skip_nhwc.shape[2]
    top = int(round((hs - h2) / 2.0))
    left = int(round((ws - w2) / 2.0))
    skip = skip_nhwc[:, top:top + h2, left:left + w2, :]
    skip_pad = _pad_flatten(_space_to_depth(skip), wp, jnp.bfloat16)  # (ntot, 4cs)
    x_pad = _pad_flatten(x_nhwc, wp, jnp.bfloat16)                    # (ntot, cin)

    msk = np.zeros((n, h + 2, wp), np.float32)
    msk[:, 1:h + 1, 1:w + 1] = 1.0
    mask = jnp.asarray(msk.reshape(ntot, 1))

    args = (x_pad, skip_pad, kp["wt"], kp["bt"], kp["w1"], kp["g1"], kp["b1"],
            kp["w2"], kp["g2"], kp["b2"], kp["fold"], mask)

    out_dtype = jnp.float32 if final else jnp.bfloat16

    flops = 2 * ntot * (cin * 4 * c + 9 * 4 * cin * 4 * c + 9 * 4 * c * 4 * c)
    bytes_accessed = (sum(int(np.prod(a.shape)) * a.dtype.itemsize for a in args)
                      + ntot * 4 * c * jnp.dtype(out_dtype).itemsize)

    out = pl.pallas_call(
        functools.partial(_stage_kernel, n=n, h=h, w=w, wp=wp, marg=marg,
                          cs=cs, c=c, cin=cin),
        out_shape=jax.ShapeDtypeStruct((ntot, 4 * c), out_dtype),
        grid=(1,),
        in_specs=[_full_block(a.shape) for a in args],
        out_specs=pl.BlockSpec((ntot, 4 * c), lambda i: (0, 0)),
        scratch_shapes=[
            pltpu.VMEM((rows, 12 * cin), jnp.bfloat16),  # merged skip|up, 3 x-shift blocks
            pltpu.VMEM((rows, 12 * c), jnp.bfloat16),    # conv1 output, 3 x-shift blocks
        ],
        compiler_params=pltpu.CompilerParams(
            dimension_semantics=("arbitrary",),
            vmem_limit_bytes=48 * 1024 * 1024),
        cost_estimate=pl.CostEstimate(flops=int(flops), transcendentals=8 * c,
                                      bytes_accessed=int(bytes_accessed)),
    )(*args)

    # depth-to-space + drop the pad ring -> (N, 2H, 2W, C) NHWC (cheap XLA glue)
    o = out.reshape(n, h + 2, wp, 2, 2, c)[:, 1:h + 1, 1:w + 1]
    o = jnp.transpose(o, (0, 1, 3, 2, 4, 5)).reshape(n, h2, w2, c)
    return o


def unet_decoder_forward(x_nchw, down_X_nchw, kernel_params):
    """Equivalent of UNetDecoder.forward(x, down_X). NCHW in, NCHW out."""
    x = jnp.transpose(x_nchw, (0, 2, 3, 1)).astype(jnp.float32)
    skips = [jnp.transpose(d, (0, 2, 3, 1)).astype(jnp.float32)
             for d in down_X_nchw]
    nstage = len(kernel_params)
    for i, kp in enumerate(kernel_params):
        x = _decoder_stage(x, skips[-(i + 1)], kp, final=(i == nstage - 1))
    return jnp.transpose(x, (0, 3, 1, 2))


# ----------------------------------------------------------------------------
# Pure-JAX reference (tolerance-asserted; f32 / HIGHEST precision)
# ----------------------------------------------------------------------------
def _ref_multiconv(x, convs):
    hp = jax.lax.Precision.HIGHEST
    for (wc, bc, g, be) in convs:
        wj = jnp.transpose(jnp.asarray(wc, jnp.float32), (2, 3, 1, 0))  # HWIO
        y = jax.lax.conv_general_dilated(
            x, wj, window_strides=(1, 1), padding=((1, 1), (1, 1)),
            dimension_numbers=('NHWC', 'HWIO', 'NHWC'), precision=hp) + bc
        mean = jnp.mean(y, axis=(0, 1, 2))
        var = jnp.var(y, axis=(0, 1, 2))
        y = (y - mean) * jax.lax.rsqrt(var + 1e-5) * g + be
        x = jnp.maximum(y, 0.0)
    return x


def _ref_stage(x, skip, params):
    wt, bt, convs = params
    n, h, w, _ = x.shape
    c = wt.shape[1]
    up = jnp.einsum('nhwi,ioab->nhawbo', x, jnp.asarray(wt, jnp.float32),
                    precision=jax.lax.Precision.HIGHEST)
    up = up.reshape(n, 2 * h, 2 * w, c) + bt
    h2, w2 = 2 * h, 2 * w
    hs, ws = skip.shape[1], skip.shape[2]
    top = int(round((hs - h2) / 2.0))
    left = int(round((ws - w2) / 2.0))
    sk = skip[:, top:top + h2, left:left + w2, :]
    return _ref_multiconv(jnp.concatenate([sk, up], axis=-1), convs)


def unet_decoder_reference(x_nchw, down_X_nchw, params):
    x = jnp.transpose(x_nchw, (0, 2, 3, 1)).astype(jnp.float32)
    skips = [jnp.transpose(d, (0, 2, 3, 1)).astype(jnp.float32)
             for d in down_X_nchw]
    for i, p in enumerate(params):
        x = _ref_stage(x, skips[-(i + 1)], p)
    return jnp.transpose(x, (0, 3, 1, 2))


# ----------------------------------------------------------------------------
# Demo
# ----------------------------------------------------------------------------
if __name__ == "__main__":
    key = jax.random.PRNGKey(0)
    k_x, k_d0, k_d1, k_p = jax.random.split(key, 4)

    # Encoder with out_channels=[4, 8, 16] on a 16x16 image would produce:
    #   bottleneck x: (2, 16, 4, 4); down_X = [(2, 4, 16, 16), (2, 8, 8, 8)]
    # Decoder: in_channels=16, out_channels=[8, 4].
    x = jax.random.normal(k_x, (2, 16, 4, 4), jnp.float32)
    down_X = [
        jax.random.normal(k_d0, (2, 4, 16, 16), jnp.float32),
        jax.random.normal(k_d1, (2, 8, 8, 8), jnp.float32),
    ]

    params = init_decoder_params(k_p, in_channels=16, out_channels=[8, 4],
                                 num_conv2d=2, ksize=3)
    kparams = [_prepare_stage(p) for p in params]   # one-time host-side prep

    fwd = jax.jit(lambda xx, dd: unet_decoder_forward(xx, dd, kparams))
    out = jax.block_until_ready(fwd(x, down_X))

    assert out.shape == (2, 4, 16, 16), out.shape
    assert bool(jnp.all(jnp.isfinite(out)))

    # Tolerance-asserted pure-JAX reference (bf16 MXU operands vs f32 ref).
    ref = jax.block_until_ready(unet_decoder_reference(x, down_X, params))
    np.testing.assert_allclose(np.asarray(out), np.asarray(ref),
                               rtol=0.1, atol=0.1)

    print("KERNEL_OK")
</pallas_src>

<mosaic_0001>
module attributes {stable_mosaic.version = 11 : i64} {
  func.func @_stage_kernel(%arg0: i32, %arg1: memref<96x16xbf16, #tpu.memory_space<vmem>>, %arg2: memref<96x32xbf16, #tpu.memory_space<vmem>>, %arg3: memref<16x32xbf16, #tpu.memory_space<vmem>>, %arg4: memref<1x32xf32, #tpu.memory_space<vmem>>, %arg5: memref<3x192x32xbf16, #tpu.memory_space<vmem>>, %arg6: memref<1x32xf32, #tpu.memory_space<vmem>>, %arg7: memref<1x32xf32, #tpu.memory_space<vmem>>, %arg8: memref<3x96x32xbf16, #tpu.memory_space<vmem>>, %arg9: memref<1x32xf32, #tpu.memory_space<vmem>>, %arg10: memref<1x32xf32, #tpu.memory_space<vmem>>, %arg11: memref<32x32xf32, #tpu.memory_space<vmem>>, %arg12: memref<96x1xf32, #tpu.memory_space<vmem>>, %arg13: memref<96x32xbf16, #tpu.memory_space<vmem>>, %arg14: memref<112x192xbf16, #tpu.memory_space<vmem>>, %arg15: memref<112x96xbf16, #tpu.memory_space<vmem>>) attributes {dimension_semantics = [#tpu.dimension_semantics<arbitrary>], iteration_bounds = array<i64: 1>, scalar_prefetch = 0 : i64, scratch_operands = 2 : i64, tpu.core_type = #tpu.core_type<tc>, window_params = [{pipeline_mode = #tpu.pipeline_mode<synchronous>, transform_indices = @transform_0, window_bounds = array<i64: 96, 16>}, {pipeline_mode = #tpu.pipeline_mode<synchronous>, transform_indices = @transform_1, window_bounds = array<i64: 96, 32>}, {pipeline_mode = #tpu.pipeline_mode<synchronous>, transform_indices = @transform_2, window_bounds = array<i64: 16, 32>}, {pipeline_mode = #tpu.pipeline_mode<synchronous>, transform_indices = @transform_3, window_bounds = array<i64: 1, 32>}, {pipeline_mode = #tpu.pipeline_mode<synchronous>, transform_indices = @transform_4, window_bounds = array<i64: 3, 192, 32>}, {pipeline_mode = #tpu.pipeline_mode<synchronous>, transform_indices = @transform_5, window_bounds = array<i64: 1, 32>}, {pipeline_mode = #tpu.pipeline_mode<synchronous>, transform_indices = @transform_6, window_bounds = array<i64: 1, 32>}, {pipeline_mode = #tpu.pipeline_mode<synchronous>, transform_indices = @transform_7, window_bounds = array<i64: 3, 96, 32>}, {pipeline_mode = #tpu.pipeline_mode<synchronous>, transform_indices = @transform_8, window_bounds = array<i64: 1, 32>}, {pipeline_mode = #tpu.pipeline_mode<synchronous>, transform_indices = @transform_9, window_bounds = array<i64: 1, 32>}, {pipeline_mode = #tpu.pipeline_mode<synchronous>, transform_indices = @transform_10, window_bounds = array<i64: 32, 32>}, {pipeline_mode = #tpu.pipeline_mode<synchronous>, transform_indices = @transform_11, window_bounds = array<i64: 96, 1>}, {pipeline_mode = #tpu.pipeline_mode<synchronous>, transform_indices = @transform_12, window_bounds = array<i64: 96, 32>}]} {
    %cst = arith.constant 0.000000e+00 : bf16
    %0 = vector.broadcast %cst : bf16 to vector<16x192xbf16>
    %c0 = arith.constant 0 : index
    %c0_0 = arith.constant 0 : index
    %1 = vector.load %arg14[%c0, %c0_0] : memref<112x192xbf16, #tpu.memory_space<vmem>>, vector<16x192xbf16>
    tpu.vector_store %arg14[%c0, %c0_0], %0 {strides = array<i32>} : memref<112x192xbf16, #tpu.memory_space<vmem>>, vector<16x192xbf16>,
    %cst_1 = arith.constant 0.000000e+00 : bf16
    %2 = vector.broadcast %cst_1 : bf16 to vector<16x192xbf16>
    %c96 = arith.constant 96 : index
    %c0_2 = arith.constant 0 : index
    %3 = vector.load %arg14[%c96, %c0_2] : memref<112x192xbf16, #tpu.memory_space<vmem>>, vector<16x192xbf16>
    tpu.vector_store %arg14[%c96, %c0_2], %2 {strides = array<i32>} : memref<112x192xbf16, #tpu.memory_space<vmem>>, vector<16x192xbf16>,
    %cst_3 = arith.constant 0.000000e+00 : bf16
    %4 = vector.broadcast %cst_3 : bf16 to vector<16x96xbf16>
    %c0_4 = arith.constant 0 : index
    %c0_5 = arith.constant 0 : index
    %5 = vector.load %arg15[%c0_4, %c0_5] : memref<112x96xbf16, #tpu.memory_space<vmem>>, vector<16x96xbf16>
    tpu.vector_store %arg15[%c0_4, %c0_5], %4 {strides = array<i32>} : memref<112x96xbf16, #tpu.memory_space<vmem>>, vector<16x96xbf16>,
    %cst_6 = arith.constant 0.000000e+00 : bf16
    %6 = vector.broadcast %cst_6 : bf16 to vector<16x96xbf16>
    %c96_7 = arith.constant 96 : index
    %c0_8 = arith.constant 0 : index
    %7 = vector.load %arg15[%c96_7, %c0_8] : memref<112x96xbf16, #tpu.memory_space<vmem>>, vector<16x96xbf16>
    tpu.vector_store %arg15[%c96_7, %c0_8], %6 {strides = array<i32>} : memref<112x96xbf16, #tpu.memory_space<vmem>>, vector<16x96xbf16>,
    %c0_9 = arith.constant 0 : index
    %c0_10 = arith.constant 0 : index
    %8 = vector.load %arg12[%c0_9, %c0_10] : memref<96x1xf32, #tpu.memory_space<vmem>>, vector<96x1xf32>
    %c0_11 = arith.constant 0 : index
    %c0_12 = arith.constant 0 : index
    %9 = vector.load %arg11[%c0_11, %c0_12] : memref<32x32xf32, #tpu.memory_space<vmem>>, vector<32x32xf32>
    %c0_13 = arith.constant 0 : index
    %c0_14 = arith.constant 0 : index
    %10 = vector.load %arg1[%c0_13, %c0_14] : memref<96x16xbf16, #tpu.memory_space<vmem>>, vector<96x16xbf16>
    %c0_15 = arith.constant 0 : index
    %c0_16 = arith.constant 0 : index
    %11 = vector.load %arg3[%c0_15, %c0_16] : memref<16x32xbf16, #tpu.memory_space<vmem>>, vector<16x32xbf16>
    %cst_17 = arith.constant dense<0.000000e+00> : vector<96x32xf32>
    %12 = tpu.matmul %10, %11, %cst_17 {dimension_numbers = #tpu.dot_dimension_numbers<[1], [0], [0], [1], [0, 0, 1, 1], [], []>} : vector<96x16xbf16>, vector<16x32xbf16>, vector<96x32xf32> -> vector<96x32xf32>
    %c0_18 = arith.constant 0 : index
    %c0_19 = arith.constant 0 : index
    %13 = vector.load %arg4[%c0_18, %c0_19] : memref<1x32xf32, #tpu.memory_space<vmem>>, vector<1x32xf32>
    %14 = vector.broadcast %13 : vector<1x32xf32> to vector<96x32xf32>
    %15 = arith.addf %12, %14 : vector<96x32xf32>
    %16 = vector.broadcast %8 : vector<96x1xf32> to vector<96x32xf32>
    %17 = arith.mulf %15, %16 : vector<96x32xf32>
    %18 = arith.truncf %17 : vector<96x32xf32> to vector<96x32xbf16>
    %c0_20 = arith.constant 0 : index
    %c0_21 = arith.constant 0 : index
    %19 = vector.load %arg2[%c0_20, %c0_21] : memref<96x32xbf16, #tpu.memory_space<vmem>>, vector<96x32xbf16>
    %c9 = arith.constant 9 : index
    %c0_22 = arith.constant 0 : index
    %20 = vector.load %arg14[%c9, %c0_22] : memref<112x192xbf16, #tpu.memory_space<vmem>>, vector<96x32xbf16>
    tpu.vector_store %arg14[%c9, %c0_22], %19 {strides = array<i32>} : memref<112x192xbf16, #tpu.memory_space<vmem>>, vector<96x32xbf16>,
    %c9_23 = arith.constant 9 : index
    %c32 = arith.constant 32 : index
    %21 = vector.load %arg14[%c9_23, %c32] : memref<112x192xbf16, #tpu.memory_space<vmem>>, vector<96x32xbf16>
    tpu.vector_store %arg14[%c9_23, %c32], %18 {strides = array<i32>} : memref<112x192xbf16, #tpu.memory_space<vmem>>, vector<96x32xbf16>,
    %c8 = arith.constant 8 : index
    %c64 = arith.constant 64 : index
    %22 = vector.load %arg14[%c8, %c64] : memref<112x192xbf16, #tpu.memory_space<vmem>>, vector<96x32xbf16>
    tpu.vector_store %arg14[%c8, %c64], %19 {strides = array<i32>} : memref<112x192xbf16, #tpu.memory_space<vmem>>, vector<96x32xbf16>,
    %c8_24 = arith.constant 8 : index
    %c96_25 = arith.constant 96 : index
    %23 = vector.load %arg14[%c8_24, %c96_25] : memref<112x192xbf16, #tpu.memory_space<vmem>>, vector<96x32xbf16>
    tpu.vector_store %arg14[%c8_24, %c96_25], %18 {strides = array<i32>} : memref<112x192xbf16, #tpu.memory_space<vmem>>, vector<96x32xbf16>,
    %c7 = arith.constant 7 : index
    %c128 = arith.constant 128 : index
    %24 = vector.load %arg14[%c7, %c128] : memref<112x192xbf16, #tpu.memory_space<vmem>>, vector<96x32xbf16>
    tpu.vector_store %arg14[%c7, %c128], %19 {strides = array<i32>} : memref<112x192xbf16, #tpu.memory_space<vmem>>, vector<96x32xbf16>,
    %c7_26 = arith.constant 7 : index
    %c160 = arith.constant 160 : index
    %25 = vector.load %arg14[%c7_26, %c160] : memref<112x192xbf16, #tpu.memory_space<vmem>>, vector<96x32xbf16>
    tpu.vector_store %arg14[%c7_26, %c160], %18 {strides = array<i32>} : memref<112x192xbf16, #tpu.memory_space<vmem>>, vector<96x32xbf16>,
    %cst_27 = arith.constant 0.000000e+00 : f32
    %26 = vector.broadcast %cst_27 : f32 to vector<96x32xf32>
    %c0_28 = arith.constant 0 : index
    %c0_29 = arith.constant 0 : index
    %27 = vector.load %arg14[%c0_28, %c0_29] : memref<112x192xbf16, #tpu.memory_space<vmem>>, vector<96x192xbf16>
    %c0_30 = arith.constant 0 : index
    %c0_31 = arith.constant 0 : index
    %c0_32 = arith.constant 0 : index
    %28 = vector.load %arg5[%c0_30, %c0_31, %c0_32] : memref<3x192x32xbf16, #tpu.memory_space<vmem>>, vector<1x192x32xbf16>
    %29 = vector.shape_cast %28 : vector<1x192x32xbf16> to vector<192x32xbf16>
    %cst_33 = arith.constant dense<0.000000e+00> : vector<96x32xf32>
    %30 = tpu.matmul %27, %29, %cst_33 {dimension_numbers = #tpu.dot_dimension_numbers<[1], [0], [0], [1], [0, 0, 1, 1], [], []>} : vector<96x192xbf16>, vector<192x32xbf16>, vector<96x32xf32> -> vector<96x32xf32>
    %31 = arith.addf %26, %30 : vector<96x32xf32>
    %c8_34 = arith.constant 8 : index
    %c0_35 = arith.constant 0 : index
    %32 = vector.load %arg14[%c8_34, %c0_35] : memref<112x192xbf16, #tpu.memory_space<vmem>>, vector<96x192xbf16>
    %c1 = arith.constant 1 : index
    %c0_36 = arith.constant 0 : index
    %c0_37 = arith.constant 0 : index
    %33 = vector.load %arg5[%c1, %c0_36, %c0_37] : memref<3x192x32xbf16, #tpu.memory_space<vmem>>, vector<1x192x32xbf16>
    %34 = vector.shape_cast %33 : vector<1x192x32xbf16> to vector<192x32xbf16>
    %cst_38 = arith.constant dense<0.000000e+00> : vector<96x32xf32>
    %35 = tpu.matmul %32, %34, %cst_38 {dimension_numbers = #tpu.dot_dimension_numbers<[1], [0], [0], [1], [0, 0, 1, 1], [], []>} : vector<96x192xbf16>, vector<192x32xbf16>, vector<96x32xf32> -> vector<96x32xf32>
    %36 = arith.addf %31, %35 : vector<96x32xf32>
    %c16 = arith.constant 16 : index
    %c0_39 = arith.constant 0 : index
    %37 = vector.load %arg14[%c16, %c0_39] : memref<112x192xbf16, #tpu.memory_space<vmem>>, vector<96x192xbf16>
    %c2 = arith.constant 2 : index
    %c0_40 = arith.constant 0 : index
    %c0_41 = arith.constant 0 : index
    %38 = vector.load %arg5[%c2, %c0_40, %c0_41] : memref<3x192x32xbf16, #tpu.memory_space<vmem>>, vector<1x192x32xbf16>
    %39 = vector.shape_cast %38 : vector<1x192x32xbf16> to vector<192x32xbf16>
    %cst_42 = arith.constant dense<0.000000e+00> : vector<96x32xf32>
    %40 = tpu.matmul %37, %39, %cst_42 {dimension_numbers = #tpu.dot_dimension_numbers<[1], [0], [0], [1], [0, 0, 1, 1], [], []>} : vector<96x192xbf16>, vector<192x32xbf16>, vector<96x32xf32> -> vector<96x32xf32>
    %41 = arith.addf %36, %40 : vector<96x32xf32>
    %c0_43 = arith.constant 0 : index
    %c0_44 = arith.constant 0 : index
    %42 = vector.load %arg6[%c0_43, %c0_44] : memref<1x32xf32, #tpu.memory_space<vmem>>, vector<1x32xf32>
    %c0_45 = arith.constant 0 : index
    %c0_46 = arith.constant 0 : index
    %43 = vector.load %arg7[%c0_45, %c0_46] : memref<1x32xf32, #tpu.memory_space<vmem>>, vector<1x32xf32>
    %44 = vector.broadcast %8 : vector<96x1xf32> to vector<96x32xf32>
    %45 = arith.mulf %41, %44 : vector<96x32xf32>
    %cst_47 = arith.constant dense<0.000000e+00> : vector<32xf32>
    %46 = vector.multi_reduction <add>, %45, %cst_47 [0] : vector<96x32xf32> to vector<32xf32>
    %47 = vector.shape_cast %46 : vector<32xf32> to vector<1x32xf32>
    %cst_48 = arith.constant dense<0.000000e+00> : vector<1x32xf32>
    %48 = tpu.matmul %47, %9, %cst_48 {dimension_numbers = #tpu.dot_dimension_numbers<[1], [0], [0], [1], [0, 0, 1, 1], [], []>} : vector<1x32xf32>, vector<32x32xf32>, vector<1x32xf32> -> vector<1x32xf32>
    %49 = arith.mulf %45, %45 : vector<96x32xf32>
    %cst_49 = arith.constant dense<0.000000e+00> : vector<32xf32>
    %50 = vector.multi_reduction <add>, %49, %cst_49 [0] : vector<96x32xf32> to vector<32xf32>
    %51 = vector.shape_cast %50 : vector<32xf32> to vector<1x32xf32>
    %cst_50 = arith.constant dense<0.000000e+00> : vector<1x32xf32>
    %52 = tpu.matmul %51, %9, %cst_50 {dimension_numbers = #tpu.dot_dimension_numbers<[1], [0], [0], [1], [0, 0, 1, 1], [], []>} : vector<1x32xf32>, vector<32x32xf32>, vector<1x32xf32> -> vector<1x32xf32>
    %cst_51 = arith.constant 7.812500e-03 : f32
    %53 = vector.broadcast %cst_51 : f32 to vector<1x32xf32>
    %54 = arith.mulf %48, %53 : vector<1x32xf32>
    %cst_52 = arith.constant 7.812500e-03 : f32
    %55 = vector.broadcast %cst_52 : f32 to vector<1x32xf32>
    %56 = arith.mulf %52, %55 : vector<1x32xf32>
    %57 = arith.mulf %54, %54 : vector<1x32xf32>
    %58 = arith.subf %56, %57 : vector<1x32xf32>
    %cst_53 = arith.constant 0.000000e+00 : f32
    %59 = vector.broadcast %cst_53 : f32 to vector<1x32xf32>
    %60 = arith.maximumf %58, %59 : vector<1x32xf32>
    %cst_54 = arith.constant 9.99999974E-6 : f32
    %61 = vector.broadcast %cst_54 : f32 to vector<1x32xf32>
    %62 = arith.addf %60, %61 : vector<1x32xf32>
    %63 = math.rsqrt %62 : vector<1x32xf32>
    %64 = arith.mulf %42, %63 : vector<1x32xf32>
    %65 = arith.mulf %54, %64 : vector<1x32xf32>
    %66 = arith.subf %43, %65 : vector<1x32xf32>
    %67 = vector.broadcast %64 : vector<1x32xf32> to vector<96x32xf32>
    %68 = arith.mulf %41, %67 : vector<96x32xf32>
    %69 = vector.broadcast %66 : vector<1x32xf32> to vector<96x32xf32>
    %70 = arith.addf %68, %69 : vector<96x32xf32>
    %cst_55 = arith.constant 0.000000e+00 : f32
    %71 = vector.broadcast %cst_55 : f32 to vector<96x32xf32>
    %72 = arith.maximumf %70, %71 : vector<96x32xf32>
    %73 = vector.broadcast %8 : vector<96x1xf32> to vector<96x32xf32>
    %74 = arith.mulf %72, %73 : vector<96x32xf32>
    %75 = arith.truncf %74 : vector<96x32xf32> to vector<96x32xbf16>
    %c9_56 = arith.constant 9 : index
    %c0_57 = arith.constant 0 : index
    %76 = vector.load %arg15[%c9_56, %c0_57] : memref<112x96xbf16, #tpu.memory_space<vmem>>, vector<96x32xbf16>
    tpu.vector_store %arg15[%c9_56, %c0_57], %75 {strides = array<i32>} : memref<112x96xbf16, #tpu.memory_space<vmem>>, vector<96x32xbf16>,
    %c8_58 = arith.constant 8 : index
    %c32_59 = arith.constant 32 : index
    %77 = vector.load %arg15[%c8_58, %c32_59] : memref<112x96xbf16, #tpu.memory_space<vmem>>, vector<96x32xbf16>
    tpu.vector_store %arg15[%c8_58, %c32_59], %75 {strides = array<i32>} : memref<112x96xbf16, #tpu.memory_space<vmem>>, vector<96x32xbf16>,
    %c7_60 = arith.constant 7 : index
    %c64_61 = arith.constant 64 : index
    %78 = vector.load %arg15[%c7_60, %c64_61] : memref<112x96xbf16, #tpu.memory_space<vmem>>, vector<96x32xbf16>
    tpu.vector_store %arg15[%c7_60, %c64_61], %75 {strides = array<i32>} : memref<112x96xbf16, #tpu.memory_space<vmem>>, vector<96x32xbf16>,
    %cst_62 = arith.constant 0.000000e+00 : f32
    %79 = vector.broadcast %cst_62 : f32 to vector<96x32xf32>
    %c0_63 = arith.constant 0 : index
    %c0_64 = arith.constant 0 : index
    %80 = vector.load %arg15[%c0_63, %c0_64] : memref<112x96xbf16, #tpu.memory_space<vmem>>, vector<96x96xbf16>
    %c0_65 = arith.constant 0 : index
    %c0_66 = arith.constant 0 : index
    %c0_67 = arith.constant 0 : index
    %81 = vector.load %arg8[%c0_65, %c0_66, %c0_67] : memref<3x96x32xbf16, #tpu.memory_space<vmem>>, vector<1x96x32xbf16>
    %82 = vector.shape_cast %81 : vector<1x96x32xbf16> to vector<96x32xbf16>
    %cst_68 = arith.constant dense<0.000000e+00> : vector<96x32xf32>
    %83 = tpu.matmul %80, %82, %cst_68 {dimension_numbers = #tpu.dot_dimension_numbers<[1], [0], [0], [1], [0, 0, 1, 1], [], []>} : vector<96x96xbf16>, vector<96x32xbf16>, vector<96x32xf32> -> vector<96x32xf32>
    %84 = arith.addf %79, %83 : vector<96x32xf32>
    %c8_69 = arith.constant 8 : index
    %c0_70 = arith.constant 0 : index
    %85 = vector.load %arg15[%c8_69, %c0_70] : memref<112x96xbf16, #tpu.memory_space<vmem>>, vector<96x96xbf16>
    %c1_71 = arith.constant 1 : index
    %c0_72 = arith.constant 0 : index
    %c0_73 = arith.constant 0 : index
    %86 = vector.load %arg8[%c1_71, %c0_72, %c0_73] : memref<3x96x32xbf16, #tpu.memory_space<vmem>>, vector<1x96x32xbf16>
    %87 = vector.shape_cast %86 : vector<1x96x32xbf16> to vector<96x32xbf16>
    %cst_74 = arith.constant dense<0.000000e+00> : vector<96x32xf32>
    %88 = tpu.matmul %85, %87, %cst_74 {dimension_numbers = #tpu.dot_dimension_numbers<[1], [0], [0], [1], [0, 0, 1, 1], [], []>} : vector<96x96xbf16>, vector<96x32xbf16>, vector<96x32xf32> -> vector<96x32xf32>
    %89 = arith.addf %84, %88 : vector<96x32xf32>
    %c16_75 = arith.constant 16 : index
    %c0_76 = arith.constant 0 : index
    %90 = vector.load %arg15[%c16_75, %c0_76] : memref<112x96xbf16, #tpu.memory_space<vmem>>, vector<96x96xbf16>
    %c2_77 = arith.constant 2 : index
    %c0_78 = arith.constant 0 : index
    %c0_79 = arith.constant 0 : index
    %91 = vector.load %arg8[%c2_77, %c0_78, %c0_79] : memref<3x96x32xbf16, #tpu.memory_space<vmem>>, vector<1x96x32xbf16>
    %92 = vector.shape_cast %91 : vector<1x96x32xbf16> to vector<96x32xbf16>
    %cst_80 = arith.constant dense<0.000000e+00> : vector<96x32xf32>
    %93 = tpu.matmul %90, %92, %cst_80 {dimension_numbers = #tpu.dot_dimension_numbers<[1], [0], [0], [1], [0, 0, 1, 1], [], []>} : vector<96x96xbf16>, vector<96x32xbf16>, vector<96x32xf32> -> vector<96x32xf32>
    %94 = arith.addf %89, %93 : vector<96x32xf32>
    %c0_81 = arith.constant 0 : index
    %c0_82 = arith.constant 0 : index
    %95 = vector.load %arg9[%c0_81, %c0_82] : memref<1x32xf32, #tpu.memory_space<vmem>>, vector<1x32xf32>
    %c0_83 = arith.constant 0 : index
    %c0_84 = arith.constant 0 : index
    %96 = vector.load %arg10[%c0_83, %c0_84] : memref<1x32xf32, #tpu.memory_space<vmem>>, vector<1x32xf32>
    %97 = vector.broadcast %8 : vector<96x1xf32> to vector<96x32xf32>
    %98 = arith.mulf %94, %97 : vector<96x32xf32>
    %cst_85 = arith.constant dense<0.000000e+00> : vector<32xf32>
    %99 = vector.multi_reduction <add>, %98, %cst_85 [0] : vector<96x32xf32> to vector<32xf32>
    %100 = vector.shape_cast %99 : vector<32xf32> to vector<1x32xf32>
    %cst_86 = arith.constant dense<0.000000e+00> : vector<1x32xf32>
    %101 = tpu.matmul %100, %9, %cst_86 {dimension_numbers = #tpu.dot_dimension_numbers<[1], [0], [0], [1], [0, 0, 1, 1], [], []>} : vector<1x32xf32>, vector<32x32xf32>, vector<1x32xf32> -> vector<1x32xf32>
    %102 = arith.mulf %98, %98 : vector<96x32xf32>
    %cst_87 = arith.constant dense<0.000000e+00> : vector<32xf32>
    %103 = vector.multi_reduction <add>, %102, %cst_87 [0] : vector<96x32xf32> to vector<32xf32>
    %104 = vector.shape_cast %103 : vector<32xf32> to vector<1x32xf32>
    %cst_88 = arith.constant dense<0.000000e+00> : vector<1x32xf32>
    %105 = tpu.matmul %104, %9, %cst_88 {dimension_numbers = #tpu.dot_dimension_numbers<[1], [0], [0], [1], [0, 0, 1, 1], [], []>} : vector<1x32xf32>, vector<32x32xf32>, vector<1x32xf32> -> vector<1x32xf32>
    %cst_89 = arith.constant 7.812500e-03 : f32
    %106 = vector.broadcast %cst_89 : f32 to vector<1x32xf32>
    %107 = arith.mulf %101, %106 : vector<1x32xf32>
    %cst_90 = arith.constant 7.812500e-03 : f32
    %108 = vector.broadcast %cst_90 : f32 to vector<1x32xf32>
    %109 = arith.mulf %105, %108 : vector<1x32xf32>
    %110 = arith.mulf %107, %107 : vector<1x32xf32>
    %111 = arith.subf %109, %110 : vector<1x32xf32>
    %cst_91 = arith.constant 0.000000e+00 : f32
    %112 = vector.broadcast %cst_91 : f32 to vector<1x32xf32>
    %113 = arith.maximumf %111, %112 : vector<1x32xf32>
    %cst_92 = arith.constant 9.99999974E-6 : f32
    %114 = vector.broadcast %cst_92 : f32 to vector<1x32xf32>
    %115 = arith.addf %113, %114 : vector<1x32xf32>
    %116 = math.rsqrt %115 : vector<1x32xf32>
    %117 = arith.mulf %95, %116 : vector<1x32xf32>
    %118 = arith.mulf %107, %117 : vector<1x32xf32>
    %119 = arith.subf %96, %118 : vector<1x32xf32>
    %120 = vector.broadcast %117 : vector<1x32xf32> to vector<96x32xf32>
    %121 = arith.mulf %94, %120 : vector<96x32xf32>
    %122 = vector.broadcast %119 : vector<1x32xf32> to vector<96x32xf32>
    %123 = arith.addf %121, %122 : vector<96x32xf32>
    %cst_93 = arith.constant 0.000000e+00 : f32
    %124 = vector.broadcast %cst_93 : f32 to vector<96x32xf32>
    %125 = arith.maximumf %123, %124 : vector<96x32xf32>
    %126 = arith.truncf %125 : vector<96x32xf32> to vector<96x32xbf16>
    %c0_94 = arith.constant 0 : index
    %c0_95 = arith.constant 0 : index
    %127 = vector.load %arg13[%c0_94, %c0_95] : memref<96x32xbf16, #tpu.memory_space<vmem>>, vector<96x32xbf16>
    tpu.vector_store %arg13[%c0_94, %c0_95], %126 {strides = array<i32>} : memref<96x32xbf16, #tpu.memory_space<vmem>>, vector<96x32xbf16>,
    return
  }
  func.func @transform_0(%arg0: i32) -> (i32, i32) {
    %c0_i32 = arith.constant 0 : i32
    %c0_i32_0 = arith.constant 0 : i32
    %c0_i32_1 = arith.constant 0 : i32
    return %c0_i32, %c0_i32_0 : i32, i32
  }
  func.func @transform_1(%arg0: i32) -> (i32, i32) {
    %c0_i32 = arith.constant 0 : i32
    %c0_i32_0 = arith.constant 0 : i32
    %c0_i32_1 = arith.constant 0 : i32
    return %c0_i32, %c0_i32_0 : i32, i32
  }
  func.func @transform_2(%arg0: i32) -> (i32, i32) {
    %c0_i32 = arith.constant 0 : i32
    %c0_i32_0 = arith.constant 0 : i32
    %c0_i32_1 = arith.constant 0 : i32
    return %c0_i32, %c0_i32_0 : i32, i32
  }
  func.func @transform_3(%arg0: i32) -> (i32, i32) {
    %c0_i32 = arith.constant 0 : i32
    %c0_i32_0 = arith.constant 0 : i32
    %c0_i32_1 = arith.constant 0 : i32
    return %c0_i32, %c0_i32_0 : i32, i32
  }
  func.func @transform_4(%arg0: i32) -> (i32, i32, i32) {
    %c0_i32 = arith.constant 0 : i32
    %c0_i32_0 = arith.constant 0 : i32
    %c0_i32_1 = arith.constant 0 : i32
    %c0_i32_2 = arith.constant 0 : i32
    return %c0_i32, %c0_i32_0, %c0_i32_1 : i32, i32, i32
  }
  func.func @transform_5(%arg0: i32) -> (i32, i32) {
    %c0_i32 = arith.constant 0 : i32
    %c0_i32_0 = arith.constant 0 : i32
    %c0_i32_1 = arith.constant 0 : i32
    return %c0_i32, %c0_i32_0 : i32, i32
  }
  func.func @transform_6(%arg0: i32) -> (i32, i32) {
    %c0_i32 = arith.constant 0 : i32
    %c0_i32_0 = arith.constant 0 : i32
    %c0_i32_1 = arith.constant 0 : i32
    return %c0_i32, %c0_i32_0 : i32, i32
  }
  func.func @transform_7(%arg0: i32) -> (i32, i32, i32) {
    %c0_i32 = arith.constant 0 : i32
    %c0_i32_0 = arith.constant 0 : i32
    %c0_i32_1 = arith.constant 0 : i32
    %c0_i32_2 = arith.constant 0 : i32
    return %c0_i32, %c0_i32_0, %c0_i32_1 : i32, i32, i32
  }
  func.func @transform_8(%arg0: i32) -> (i32, i32) {
    %c0_i32 = arith.constant 0 : i32
    %c0_i32_0 = arith.constant 0 : i32
    %c0_i32_1 = arith.constant 0 : i32
    return %c0_i32, %c0_i32_0 : i32, i32
  }
  func.func @transform_9(%arg0: i32) -> (i32, i32) {
    %c0_i32 = arith.constant 0 : i32
    %c0_i32_0 = arith.constant 0 : i32
    %c0_i32_1 = arith.constant 0 : i32
    return %c0_i32, %c0_i32_0 : i32, i32
  }
  func.func @transform_10(%arg0: i32) -> (i32, i32) {
    %c0_i32 = arith.constant 0 : i32
    %c0_i32_0 = arith.constant 0 : i32
    %c0_i32_1 = arith.constant 0 : i32
    return %c0_i32, %c0_i32_0 : i32, i32
  }
  func.func @transform_11(%arg0: i32) -> (i32, i32) {
    %c0_i32 = arith.constant 0 : i32
    %c0_i32_0 = arith.constant 0 : i32
    %c0_i32_1 = arith.constant 0 : i32
    return %c0_i32, %c0_i32_0 : i32, i32
  }
  func.func @transform_12(%arg0: i32) -> (i32, i32) {
    %c0_i32 = arith.constant 0 : i32
    %c0_i32_0 = arith.constant 0 : i32
    %c0_i32_1 = arith.constant 0 : i32
    return %c0_i32, %c0_i32_0 : i32, i32
  }
}

module attributes {stable_mosaic.version = 11 : i64} {
  func.func @_stage_kernel(%arg0: i32, %arg1: memref<320x8xbf16, #tpu.memory_space<vmem>>, %arg2: memref<320x16xbf16, #tpu.memory_space<vmem>>, %arg3: memref<8x16xbf16, #tpu.memory_space<vmem>>, %arg4: memref<1x16xf32, #tpu.memory_space<vmem>>, %arg5: memref<3x96x16xbf16, #tpu.memory_space<vmem>>, %arg6: memref<1x16xf32, #tpu.memory_space<vmem>>, %arg7: memref<1x16xf32, #tpu.memory_space<vmem>>, %arg8: memref<3x48x16xbf16, #tpu.memory_space<vmem>>, %arg9: memref<1x16xf32, #tpu.memory_space<vmem>>, %arg10: memref<1x16xf32, #tpu.memory_space<vmem>>, %arg11: memref<16x16xf32, #tpu.memory_space<vmem>>, %arg12: memref<320x1xf32, #tpu.memory_space<vmem>>, %arg13: memref<320x16xf32, #tpu.memory_space<vmem>>, %arg14: memref<352x96xbf16, #tpu.memory_space<vmem>>, %arg15: memref<352x48xbf16, #tpu.memory_space<vmem>>) attributes {dimension_semantics = [#tpu.dimension_semantics<arbitrary>], iteration_bounds = array<i64: 1>, scalar_prefetch = 0 : i64, scratch_operands = 2 : i64, tpu.core_type = #tpu.core_type<tc>, window_params = [{pipeline_mode = #tpu.pipeline_mode<synchronous>, transform_indices = @transform_0, window_bounds = array<i64: 320, 8>}, {pipeline_mode = #tpu.pipeline_mode<synchronous>, transform_indices = @transform_1, window_bounds = array<i64: 320, 16>}, {pipeline_mode = #tpu.pipeline_mode<synchronous>, transform_indices = @transform_2, window_bounds = array<i64: 8, 16>}, {pipeline_mode = #tpu.pipeline_mode<synchronous>, transform_indices = @transform_3, window_bounds = array<i64: 1, 16>}, {pipeline_mode = #tpu.pipeline_mode<synchronous>, transform_indices = @transform_4, window_bounds = array<i64: 3, 96, 16>}, {pipeline_mode = #tpu.pipeline_mode<synchronous>, transform_indices = @transform_5, window_bounds = array<i64: 1, 16>}, {pipeline_mode = #tpu.pipeline_mode<synchronous>, transform_indices = @transform_6, window_bounds = array<i64: 1, 16>}, {pipeline_mode = #tpu.pipeline_mode<synchronous>, transform_indices = @transform_7, window_bounds = array<i64: 3, 48, 16>}, {pipeline_mode = #tpu.pipeline_mode<synchronous>, transform_indices = @transform_8, window_bounds = array<i64: 1, 16>}, {pipeline_mode = #tpu.pipeline_mode<synchronous>, transform_indices = @transform_9, window_bounds = array<i64: 1, 16>}, {pipeline_mode = #tpu.pipeline_mode<synchronous>, transform_indices = @transform_10, window_bounds = array<i64: 16, 16>}, {pipeline_mode = #tpu.pipeline_mode<synchronous>, transform_indices = @transform_11, window_bounds = array<i64: 320, 1>}, {pipeline_mode = #tpu.pipeline_mode<synchronous>, transform_indices = @transform_12, window_bounds = array<i64: 320, 16>}]} {
    %cst = arith.constant 0.000000e+00 : bf16
    %0 = vector.broadcast %cst : bf16 to vector<24x96xbf16>
    %c0 = arith.constant 0 : index
    %c0_0 = arith.constant 0 : index
    %1 = vector.load %arg14[%c0, %c0_0] : memref<352x96xbf16, #tpu.memory_space<vmem>>, vector<24x96xbf16>
    tpu.vector_store %arg14[%c0, %c0_0], %0 {strides = array<i32>} : memref<352x96xbf16, #tpu.memory_space<vmem>>, vector<24x96xbf16>,
    %cst_1 = arith.constant 0.000000e+00 : bf16
    %2 = vector.broadcast %cst_1 : bf16 to vector<24x96xbf16>
    %c328 = arith.constant 328 : index
    %c0_2 = arith.constant 0 : index
    %3 = vector.load %arg14[%c328, %c0_2] : memref<352x96xbf16, #tpu.memory_space<vmem>>, vector<24x96xbf16>
    tpu.vector_store %arg14[%c328, %c0_2], %2 {strides = array<i32>} : memref<352x96xbf16, #tpu.memory_space<vmem>>, vector<24x96xbf16>,
    %cst_3 = arith.constant 0.000000e+00 : bf16
    %4 = vector.broadcast %cst_3 : bf16 to vector<24x48xbf16>
    %c0_4 = arith.constant 0 : index
    %c0_5 = arith.constant 0 : index
    %5 = vector.load %arg15[%c0_4, %c0_5] : memref<352x48xbf16, #tpu.memory_space<vmem>>, vector<24x48xbf16>
    tpu.vector_store %arg15[%c0_4, %c0_5], %4 {strides = array<i32>} : memref<352x48xbf16, #tpu.memory_space<vmem>>, vector<24x48xbf16>,
    %cst_6 = arith.constant 0.000000e+00 : bf16
    %6 = vector.broadcast %cst_6 : bf16 to vector<24x48xbf16>
    %c328_7 = arith.constant 328 : index
    %c0_8 = arith.constant 0 : index
    %7 = vector.load %arg15[%c328_7, %c0_8] : memref<352x48xbf16, #tpu.memory_space<vmem>>, vector<24x48xbf16>
    tpu.vector_store %arg15[%c328_7, %c0_8], %6 {strides = array<i32>} : memref<352x48xbf16, #tpu.memory_space<vmem>>, vector<24x48xbf16>,
    %c0_9 = arith.constant 0 : index
    %c0_10 = arith.constant 0 : index
    %8 = vector.load %arg12[%c0_9, %c0_10] : memref<320x1xf32, #tpu.memory_space<vmem>>, vector<320x1xf32>
    %c0_11 = arith.constant 0 : index
    %c0_12 = arith.constant 0 : index
    %9 = vector.load %arg11[%c0_11, %c0_12] : memref<16x16xf32, #tpu.memory_space<vmem>>, vector<16x16xf32>
    %c0_13 = arith.constant 0 : index
    %c0_14 = arith.constant 0 : index
    %10 = vector.load %arg1[%c0_13, %c0_14] : memref<320x8xbf16, #tpu.memory_space<vmem>>, vector<320x8xbf16>
    %c0_15 = arith.constant 0 : index
    %c0_16 = arith.constant 0 : index
    %11 = vector.load %arg3[%c0_15, %c0_16] : memref<8x16xbf16, #tpu.memory_space<vmem>>, vector<8x16xbf16>
    %cst_17 = arith.constant dense<0.000000e+00> : vector<320x16xf32>
    %12 = tpu.matmul %10, %11, %cst_17 {dimension_numbers = #tpu.dot_dimension_numbers<[1], [0], [0], [1], [0, 0, 1, 1], [], []>} : vector<320x8xbf16>, vector<8x16xbf16>, vector<320x16xf32> -> vector<320x16xf32>
    %c0_18 = arith.constant 0 : index
    %c0_19 = arith.constant 0 : index
    %13 = vector.load %arg4[%c0_18, %c0_19] : memref<1x16xf32, #tpu.memory_space<vmem>>, vector<1x16xf32>
    %14 = vector.broadcast %13 : vector<1x16xf32> to vector<320x16xf32>
    %15 = arith.addf %12, %14 : vector<320x16xf32>
    %16 = vector.broadcast %8 : vector<320x1xf32> to vector<320x16xf32>
    %17 = arith.mulf %15, %16 : vector<320x16xf32>
    %18 = arith.truncf %17 : vector<320x16xf32> to vector<320x16xbf16>
    %c0_20 = arith.constant 0 : index
    %c0_21 = arith.constant 0 : index
    %19 = vector.load %arg2[%c0_20, %c0_21] : memref<320x16xbf16, #tpu.memory_space<vmem>>, vector<320x16xbf16>
    %c17 = arith.constant 17 : index
    %c0_22 = arith.constant 0 : index
    %20 = vector.load %arg14[%c17, %c0_22] : memref<352x96xbf16, #tpu.memory_space<vmem>>, vector<320x16xbf16>
    tpu.vector_store %arg14[%c17, %c0_22], %19 {strides = array<i32>} : memref<352x96xbf16, #tpu.memory_space<vmem>>, vector<320x16xbf16>,
    %c17_23 = arith.constant 17 : index
    %c16 = arith.constant 16 : index
    %21 = vector.load %arg14[%c17_23, %c16] : memref<352x96xbf16, #tpu.memory_space<vmem>>, vector<320x16xbf16>
    tpu.vector_store %arg14[%c17_23, %c16], %18 {strides = array<i32>} : memref<352x96xbf16, #tpu.memory_space<vmem>>, vector<320x16xbf16>,
    %c16_24 = arith.constant 16 : index
    %c32 = arith.constant 32 : index
    %22 = vector.load %arg14[%c16_24, %c32] : memref<352x96xbf16, #tpu.memory_space<vmem>>, vector<320x16xbf16>
    tpu.vector_store %arg14[%c16_24, %c32], %19 {strides = array<i32>} : memref<352x96xbf16, #tpu.memory_space<vmem>>, vector<320x16xbf16>,
    %c16_25 = arith.constant 16 : index
    %c48 = arith.constant 48 : index
    %23 = vector.load %arg14[%c16_25, %c48] : memref<352x96xbf16, #tpu.memory_space<vmem>>, vector<320x16xbf16>
    tpu.vector_store %arg14[%c16_25, %c48], %18 {strides = array<i32>} : memref<352x96xbf16, #tpu.memory_space<vmem>>, vector<320x16xbf16>,
    %c15 = arith.constant 15 : index
    %c64 = arith.constant 64 : index
    %24 = vector.load %arg14[%c15, %c64] : memref<352x96xbf16, #tpu.memory_space<vmem>>, vector<320x16xbf16>
    tpu.vector_store %arg14[%c15, %c64], %19 {strides = array<i32>} : memref<352x96xbf16, #tpu.memory_space<vmem>>, vector<320x16xbf16>,
    %c15_26 = arith.constant 15 : index
    %c80 = arith.constant 80 : index
    %25 = vector.load %arg14[%c15_26, %c80] : memref<352x96xbf16, #tpu.memory_space<vmem>>, vector<320x16xbf16>
    tpu.vector_store %arg14[%c15_26, %c80], %18 {strides = array<i32>} : memref<352x96xbf16, #tpu.memory_space<vmem>>, vector<320x16xbf16>,
    %cst_27 = arith.constant 0.000000e+00 : f32
    %26 = vector.broadcast %cst_27 : f32 to vector<320x16xf32>
    %c0_28 = arith.constant 0 : index
    %c0_29 = arith.constant 0 : index
    %27 = vector.load %arg14[%c0_28, %c0_29] : memref<352x96xbf16, #tpu.memory_space<vmem>>, vector<320x96xbf16>
    %c0_30 = arith.constant 0 : index
    %c0_31 = arith.constant 0 : index
    %c0_32 = arith.constant 0 : index
    %28 = vector.load %arg5[%c0_30, %c0_31, %c0_32] : memref<3x96x16xbf16, #tpu.memory_space<vmem>>, vector<1x96x16xbf16>
    %29 = vector.shape_cast %28 : vector<1x96x16xbf16> to vector<96x16xbf16>
    %cst_33 = arith.constant dense<0.000000e+00> : vector<320x16xf32>
    %30 = tpu.matmul %27, %29, %cst_33 {dimension_numbers = #tpu.dot_dimension_numbers<[1], [0], [0], [1], [0, 0, 1, 1], [], []>} : vector<320x96xbf16>, vector<96x16xbf16>, vector<320x16xf32> -> vector<320x16xf32>
    %31 = arith.addf %26, %30 : vector<320x16xf32>
    %c16_34 = arith.constant 16 : index
    %c0_35 = arith.constant 0 : index
    %32 = vector.load %arg14[%c16_34, %c0_35] : memref<352x96xbf16, #tpu.memory_space<vmem>>, vector<320x96xbf16>
    %c1 = arith.constant 1 : index
    %c0_36 = arith.constant 0 : index
    %c0_37 = arith.constant 0 : index
    %33 = vector.load %arg5[%c1, %c0_36, %c0_37] : memref<3x96x16xbf16, #tpu.memory_space<vmem>>, vector<1x96x16xbf16>
    %34 = vector.shape_cast %33 : vector<1x96x16xbf16> to vector<96x16xbf16>
    %cst_38 = arith.constant dense<0.000000e+00> : vector<320x16xf32>
    %35 = tpu.matmul %32, %34, %cst_38 {dimension_numbers = #tpu.dot_dimension_numbers<[1], [0], [0], [1], [0, 0, 1, 1], [], []>} : vector<320x96xbf16>, vector<96x16xbf16>, vector<320x16xf32> -> vector<320x16xf32>
    %36 = arith.addf %31, %35 : vector<320x16xf32>
    %c32_39 = arith.constant 32 : index
    %c0_40 = arith.constant 0 : index
    %37 = vector.load %arg14[%c32_39, %c0_40] : memref<352x96xbf16, #tpu.memory_space<vmem>>, vector<320x96xbf16>
    %c2 = arith.constant 2 : index
    %c0_41 = arith.constant 0 : index
    %c0_42 = arith.constant 0 : index
    %38 = vector.load %arg5[%c2, %c0_41, %c0_42] : memref<3x96x16xbf16, #tpu.memory_space<vmem>>, vector<1x96x16xbf16>
    %39 = vector.shape_cast %38 : vector<1x96x16xbf16> to vector<96x16xbf16>
    %cst_43 = arith.constant dense<0.000000e+00> : vector<320x16xf32>
    %40 = tpu.matmul %37, %39, %cst_43 {dimension_numbers = #tpu.dot_dimension_numbers<[1], [0], [0], [1], [0, 0, 1, 1], [], []>} : vector<320x96xbf16>, vector<96x16xbf16>, vector<320x16xf32> -> vector<320x16xf32>
    %41 = arith.addf %36, %40 : vector<320x16xf32>
    %c0_44 = arith.constant 0 : index
    %c0_45 = arith.constant 0 : index
    %42 = vector.load %arg6[%c0_44, %c0_45] : memref<1x16xf32, #tpu.memory_space<vmem>>, vector<1x16xf32>
    %c0_46 = arith.constant 0 : index
    %c0_47 = arith.constant 0 : index
    %43 = vector.load %arg7[%c0_46, %c0_47] : memref<1x16xf32, #tpu.memory_space<vmem>>, vector<1x16xf32>
    %44 = vector.broadcast %8 : vector<320x1xf32> to vector<320x16xf32>
    %45 = arith.mulf %41, %44 : vector<320x16xf32>
    %cst_48 = arith.constant dense<0.000000e+00> : vector<16xf32>
    %46 = vector.multi_reduction <add>, %45, %cst_48 [0] : vector<320x16xf32> to vector<16xf32>
    %47 = vector.shape_cast %46 : vector<16xf32> to vector<1x16xf32>
    %cst_49 = arith.constant dense<0.000000e+00> : vector<1x16xf32>
    %48 = tpu.matmul %47, %9, %cst_49 {dimension_numbers = #tpu.dot_dimension_numbers<[1], [0], [0], [1], [0, 0, 1, 1], [], []>} : vector<1x16xf32>, vector<16x16xf32>, vector<1x16xf32> -> vector<1x16xf32>
    %49 = arith.mulf %45, %45 : vector<320x16xf32>
    %cst_50 = arith.constant dense<0.000000e+00> : vector<16xf32>
    %50 = vector.multi_reduction <add>, %49, %cst_50 [0] : vector<320x16xf32> to vector<16xf32>
    %51 = vector.shape_cast %50 : vector<16xf32> to vector<1x16xf32>
    %cst_51 = arith.constant dense<0.000000e+00> : vector<1x16xf32>
    %52 = tpu.matmul %51, %9, %cst_51 {dimension_numbers = #tpu.dot_dimension_numbers<[1], [0], [0], [1], [0, 0, 1, 1], [], []>} : vector<1x16xf32>, vector<16x16xf32>, vector<1x16xf32> -> vector<1x16xf32>
    %cst_52 = arith.constant 0.001953125 : f32
    %53 = vector.broadcast %cst_52 : f32 to vector<1x16xf32>
    %54 = arith.mulf %48, %53 : vector<1x16xf32>
    %cst_53 = arith.constant 0.001953125 : f32
    %55 = vector.broadcast %cst_53 : f32 to vector<1x16xf32>
    %56 = arith.mulf %52, %55 : vector<1x16xf32>
    %57 = arith.mulf %54, %54 : vector<1x16xf32>
    %58 = arith.subf %56, %57 : vector<1x16xf32>
    %cst_54 = arith.constant 0.000000e+00 : f32
    %59 = vector.broadcast %cst_54 : f32 to vector<1x16xf32>
    %60 = arith.maximumf %58, %59 : vector<1x16xf32>
    %cst_55 = arith.constant 9.99999974E-6 : f32
    %61 = vector.broadcast %cst_55 : f32 to vector<1x16xf32>
    %62 = arith.addf %60, %61 : vector<1x16xf32>
    %63 = math.rsqrt %62 : vector<1x16xf32>
    %64 = arith.mulf %42, %63 : vector<1x16xf32>
    %65 = arith.mulf %54, %64 : vector<1x16xf32>
    %66 = arith.subf %43, %65 : vector<1x16xf32>
    %67 = vector.broadcast %64 : vector<1x16xf32> to vector<320x16xf32>
    %68 = arith.mulf %41, %67 : vector<320x16xf32>
    %69 = vector.broadcast %66 : vector<1x16xf32> to vector<320x16xf32>
    %70 = arith.addf %68, %69 : vector<320x16xf32>
    %cst_56 = arith.constant 0.000000e+00 : f32
    %71 = vector.broadcast %cst_56 : f32 to vector<320x16xf32>
    %72 = arith.maximumf %70, %71 : vector<320x16xf32>
    %73 = vector.broadcast %8 : vector<320x1xf32> to vector<320x16xf32>
    %74 = arith.mulf %72, %73 : vector<320x16xf32>
    %75 = arith.truncf %74 : vector<320x16xf32> to vector<320x16xbf16>
    %c17_57 = arith.constant 17 : index
    %c0_58 = arith.constant 0 : index
    %76 = vector.load %arg15[%c17_57, %c0_58] : memref<352x48xbf16, #tpu.memory_space<vmem>>, vector<320x16xbf16>
    tpu.vector_store %arg15[%c17_57, %c0_58], %75 {strides = array<i32>} : memref<352x48xbf16, #tpu.memory_space<vmem>>, vector<320x16xbf16>,
    %c16_59 = arith.constant 16 : index
    %c16_60 = arith.constant 16 : index
    %77 = vector.load %arg15[%c16_59, %c16_60] : memref<352x48xbf16, #tpu.memory_space<vmem>>, vector<320x16xbf16>
    tpu.vector_store %arg15[%c16_59, %c16_60], %75 {strides = array<i32>} : memref<352x48xbf16, #tpu.memory_space<vmem>>, vector<320x16xbf16>,
    %c15_61 = arith.constant 15 : index
    %c32_62 = arith.constant 32 : index
    %78 = vector.load %arg15[%c15_61, %c32_62] : memref<352x48xbf16, #tpu.memory_space<vmem>>, vector<320x16xbf16>
    tpu.vector_store %arg15[%c15_61, %c32_62], %75 {strides = array<i32>} : memref<352x48xbf16, #tpu.memory_space<vmem>>, vector<320x16xbf16>,
    %cst_63 = arith.constant 0.000000e+00 : f32
    %79 = vector.broadcast %cst_63 : f32 to vector<320x16xf32>
    %c0_64 = arith.constant 0 : index
    %c0_65 = arith.constant 0 : index
    %80 = vector.load %arg15[%c0_64, %c0_65] : memref<352x48xbf16, #tpu.memory_space<vmem>>, vector<320x48xbf16>
    %c0_66 = arith.constant 0 : index
    %c0_67 = arith.constant 0 : index
    %c0_68 = arith.constant 0 : index
    %81 = vector.load %arg8[%c0_66, %c0_67, %c0_68] : memref<3x48x16xbf16, #tpu.memory_space<vmem>>, vector<1x48x16xbf16>
    %82 = vector.shape_cast %81 : vector<1x48x16xbf16> to vector<48x16xbf16>
    %cst_69 = arith.constant dense<0.000000e+00> : vector<320x16xf32>
    %83 = tpu.matmul %80, %82, %cst_69 {dimension_numbers = #tpu.dot_dimension_numbers<[1], [0], [0], [1], [0, 0, 1, 1], [], []>} : vector<320x48xbf16>, vector<48x16xbf16>, vector<320x16xf32> -> vector<320x16xf32>
    %84 = arith.addf %79, %83 : vector<320x16xf32>
    %c16_70 = arith.constant 16 : index
    %c0_71 = arith.constant 0 : index
    %85 = vector.load %arg15[%c16_70, %c0_71] : memref<352x48xbf16, #tpu.memory_space<vmem>>, vector<320x48xbf16>
    %c1_72 = arith.constant 1 : index
    %c0_73 = arith.constant 0 : index
    %c0_74 = arith.constant 0 : index
    %86 = vector.load %arg8[%c1_72, %c0_73, %c0_74] : memref<3x48x16xbf16, #tpu.memory_space<vmem>>, vector<1x48x16xbf16>
    %87 = vector.shape_cast %86 : vector<1x48x16xbf16> to vector<48x16xbf16>
    %cst_75 = arith.constant dense<0.000000e+00> : vector<320x16xf32>
    %88 = tpu.matmul %85, %87, %cst_75 {dimension_numbers = #tpu.dot_dimension_numbers<[1], [0], [0], [1], [0, 0, 1, 1], [], []>} : vector<320x48xbf16>, vector<48x16xbf16>, vector<320x16xf32> -> vector<320x16xf32>
    %89 = arith.addf %84, %88 : vector<320x16xf32>
    %c32_76 = arith.constant 32 : index
    %c0_77 = arith.constant 0 : index
    %90 = vector.load %arg15[%c32_76, %c0_77] : memref<352x48xbf16, #tpu.memory_space<vmem>>, vector<320x48xbf16>
    %c2_78 = arith.constant 2 : index
    %c0_79 = arith.constant 0 : index
    %c0_80 = arith.constant 0 : index
    %91 = vector.load %arg8[%c2_78, %c0_79, %c0_80] : memref<3x48x16xbf16, #tpu.memory_space<vmem>>, vector<1x48x16xbf16>
    %92 = vector.shape_cast %91 : vector<1x48x16xbf16> to vector<48x16xbf16>
    %cst_81 = arith.constant dense<0.000000e+00> : vector<320x16xf32>
    %93 = tpu.matmul %90, %92, %cst_81 {dimension_numbers = #tpu.dot_dimension_numbers<[1], [0], [0], [1], [0, 0, 1, 1], [], []>} : vector<320x48xbf16>, vector<48x16xbf16>, vector<320x16xf32> -> vector<320x16xf32>
    %94 = arith.addf %89, %93 : vector<320x16xf32>
    %c0_82 = arith.constant 0 : index
    %c0_83 = arith.constant 0 : index
    %95 = vector.load %arg9[%c0_82, %c0_83] : memref<1x16xf32, #tpu.memory_space<vmem>>, vector<1x16xf32>
    %c0_84 = arith.constant 0 : index
    %c0_85 = arith.constant 0 : index
    %96 = vector.load %arg10[%c0_84, %c0_85] : memref<1x16xf32, #tpu.memory_space<vmem>>, vector<1x16xf32>
    %97 = vector.broadcast %8 : vector<320x1xf32> to vector<320x16xf32>
    %98 = arith.mulf %94, %97 : vector<320x16xf32>
    %cst_86 = arith.constant dense<0.000000e+00> : vector<16xf32>
    %99 = vector.multi_reduction <add>, %98, %cst_86 [0] : vector<320x16xf32> to vector<16xf32>
    %100 = vector.shape_cast %99 : vector<16xf32> to vector<1x16xf32>
    %cst_87 = arith.constant dense<0.000000e+00> : vector<1x16xf32>
    %101 = tpu.matmul %100, %9, %cst_87 {dimension_numbers = #tpu.dot_dimension_numbers<[1], [0], [0], [1], [0, 0, 1, 1], [], []>} : vector<1x16xf32>, vector<16x16xf32>, vector<1x16xf32> -> vector<1x16xf32>
    %102 = arith.mulf %98, %98 : vector<320x16xf32>
    %cst_88 = arith.constant dense<0.000000e+00> : vector<16xf32>
    %103 = vector.multi_reduction <add>, %102, %cst_88 [0] : vector<320x16xf32> to vector<16xf32>
    %104 = vector.shape_cast %103 : vector<16xf32> to vector<1x16xf32>
    %cst_89 = arith.constant dense<0.000000e+00> : vector<1x16xf32>
    %105 = tpu.matmul %104, %9, %cst_89 {dimension_numbers = #tpu.dot_dimension_numbers<[1], [0], [0], [1], [0, 0, 1, 1], [], []>} : vector<1x16xf32>, vector<16x16xf32>, vector<1x16xf32> -> vector<1x16xf32>
    %cst_90 = arith.constant 0.001953125 : f32
    %106 = vector.broadcast %cst_90 : f32 to vector<1x16xf32>
    %107 = arith.mulf %101, %106 : vector<1x16xf32>
    %cst_91 = arith.constant 0.001953125 : f32
    %108 = vector.broadcast %cst_91 : f32 to vector<1x16xf32>
    %109 = arith.mulf %105, %108 : vector<1x16xf32>
    %110 = arith.mulf %107, %107 : vector<1x16xf32>
    %111 = arith.subf %109, %110 : vector<1x16xf32>
    %cst_92 = arith.constant 0.000000e+00 : f32
    %112 = vector.broadcast %cst_92 : f32 to vector<1x16xf32>
    %113 = arith.maximumf %111, %112 : vector<1x16xf32>
    %cst_93 = arith.constant 9.99999974E-6 : f32
    %114 = vector.broadcast %cst_93 : f32 to vector<1x16xf32>
    %115 = arith.addf %113, %114 : vector<1x16xf32>
    %116 = math.rsqrt %115 : vector<1x16xf32>
    %117 = arith.mulf %95, %116 : vector<1x16xf32>
    %118 = arith.mulf %107, %117 : vector<1x16xf32>
    %119 = arith.subf %96, %118 : vector<1x16xf32>
    %120 = vector.broadcast %117 : vector<1x16xf32> to vector<320x16xf32>
    %121 = arith.mulf %94, %120 : vector<320x16xf32>
    %122 = vector.broadcast %119 : vector<1x16xf32> to vector<320x16xf32>
    %123 = arith.addf %121, %122 : vector<320x16xf32>
    %cst_94 = arith.constant 0.000000e+00 : f32
    %124 = vector.broadcast %cst_94 : f32 to vector<320x16xf32>
    %125 = arith.maximumf %123, %124 : vector<320x16xf32>
    %c0_95 = arith.constant 0 : index
    %c0_96 = arith.constant 0 : index
    %126 = vector.load %arg13[%c0_95, %c0_96] : memref<320x16xf32, #tpu.memory_space<vmem>>, vector<320x16xf32>
    tpu.vector_store %arg13[%c0_95, %c0_96], %125 {strides = array<i32>} : memref<320x16xf32, #tpu.memory_space<vmem>>, vector<320x16xf32>,
    return
  }
  func.func @transform_0(%arg0: i32) -> (i32, i32) {
    %c0_i32 = arith.constant 0 : i32
    %c0_i32_0 = arith.constant 0 : i32
    %c0_i32_1 = arith.constant 0 : i32
    return %c0_i32, %c0_i32_0 : i32, i32
  }
  func.func @transform_1(%arg0: i32) -> (i32, i32) {
    %c0_i32 = arith.constant 0 : i32
    %c0_i32_0 = arith.constant 0 : i32
    %c0_i32_1 = arith.constant 0 : i32
    return %c0_i32, %c0_i32_0 : i32, i32
  }
  func.func @transform_2(%arg0: i32) -> (i32, i32) {
    %c0_i32 = arith.constant 0 : i32
    %c0_i32_0 = arith.constant 0 : i32
    %c0_i32_1 = arith.constant 0 : i32
    return %c0_i32, %c0_i32_0 : i32, i32
  }
  func.func @transform_3(%arg0: i32) -> (i32, i32) {
    %c0_i32 = arith.constant 0 : i32
    %c0_i32_0 = arith.constant 0 : i32
    %c0_i32_1 = arith.constant 0 : i32
    return %c0_i32, %c0_i32_0 : i32, i32
  }
  func.func @transform_4(%arg0: i32) -> (i32, i32, i32) {
    %c0_i32 = arith.constant 0 : i32
    %c0_i32_0 = arith.constant 0 : i32
    %c0_i32_1 = arith.constant 0 : i32
    %c0_i32_2 = arith.constant 0 : i32
    return %c0_i32, %c0_i32_0, %c0_i32_1 : i32, i32, i32
  }
  func.func @transform_5(%arg0: i32) -> (i32, i32) {
    %c0_i32 = arith.constant 0 : i32
    %c0_i32_0 = arith.constant 0 : i32
    %c0_i32_1 = arith.constant 0 : i32
    return %c0_i32, %c0_i32_0 : i32, i32
  }
  func.func @transform_6(%arg0: i32) -> (i32, i32) {
    %c0_i32 = arith.constant 0 : i32
    %c0_i32_0 = arith.constant 0 : i32
    %c0_i32_1 = arith.constant 0 : i32
    return %c0_i32, %c0_i32_0 : i32, i32
  }
  func.func @transform_7(%arg0: i32) -> (i32, i32, i32) {
    %c0_i32 = arith.constant 0 : i32
    %c0_i32_0 = arith.constant 0 : i32
    %c0_i32_1 = arith.constant 0 : i32
    %c0_i32_2 = arith.constant 0 : i32
    return %c0_i32, %c0_i32_0, %c0_i32_1 : i32, i32, i32
  }
  func.func @transform_8(%arg0: i32) -> (i32, i32) {
    %c0_i32 = arith.constant 0 : i32
    %c0_i32_0 = arith.constant 0 : i32
    %c0_i32_1 = arith.constant 0 : i32
    return %c0_i32, %c0_i32_0 : i32, i32
  }
  func.func @transform_9(%arg0: i32) -> (i32, i32) {
    %c0_i32 = arith.constant 0 : i32
    %c0_i32_0 = arith.constant 0 : i32
    %c0_i32_1 = arith.constant 0 : i32
    return %c0_i32, %c0_i32_0 : i32, i32
  }
  func.func @transform_10(%arg0: i32) -> (i32, i32) {
    %c0_i32 = arith.constant 0 : i32
    %c0_i32_0 = arith.constant 0 : i32
    %c0_i32_1 = arith.constant 0 : i32
    return %c0_i32, %c0_i32_0 : i32, i32
  }
  func.func @transform_11(%arg0: i32) -> (i32, i32) {
    %c0_i32 = arith.constant 0 : i32
    %c0_i32_0 = arith.constant 0 : i32
    %c0_i32_1 = arith.constant 0 : i32
    return %c0_i32, %c0_i32_0 : i32, i32
  }
  func.func @transform_12(%arg0: i32) -> (i32, i32) {
    %c0_i32 = arith.constant 0 : i32
    %c0_i32_0 = arith.constant 0 : i32
    %c0_i32_1 = arith.constant 0 : i32
    return %c0_i32, %c0_i32_0 : i32, i32
  }
}

</mosaic_0001>

<llo_original>
// kernel: _lambda_.2
$region0: #{_lambda_.2}
  #allocation0 [shape = 'u32[]', space=smem, size = 0x4, offset = 0x4, fixed_abs, tag = 'smem constant byte address 0x4 - core index']
  #allocation1 [shape = 'u32[144,128]{1,0:T(1,128)}', space=vmem, size = 0x12000, scoped, tag = 'internal scratch']
  #allocation2 [shape = 'bf16[112,192]{1,0:T(16,128)(2,1)}', space=vmem, size = 0xe000, scoped, tag = 'scratch operand']
  #allocation3 [shape = 'bf16[112,96]{1,0:T(16,128)(2,1)}', space=vmem, size = 0x7000, scoped, tag = 'scratch operand']
  %s0 = inlined_call_operand.vmem [shape: bf16[96,16], index: 0, kind: input, shape index: {}]
  %s1 = inlined_call_operand.vmem [shape: bf16[96,32], index: 1, kind: input, shape index: {}]
  %s2 = inlined_call_operand.vmem [shape: bf16[16,32], index: 2, kind: input, shape index: {}]
  %s3 = inlined_call_operand.vmem [shape: f32[1,32], index: 3, kind: input, shape index: {}]
  %s4 = inlined_call_operand.vmem [shape: bf16[3,192,32], index: 4, kind: input, shape index: {}]
  %s5 = inlined_call_operand.vmem [shape: f32[1,32], index: 5, kind: input, shape index: {}, may-alias: {5,8}]
  %s6 = inlined_call_operand.vmem [shape: f32[1,32], index: 6, kind: input, shape index: {}, may-alias: {6,9}]
  %s7 = inlined_call_operand.vmem [shape: bf16[3,96,32], index: 7, kind: input, shape index: {}]
  %s8 = inlined_call_operand.vmem [shape: f32[1,32], index: 8, kind: input, shape index: {}, may-alias: {5,8}]
  %s9 = inlined_call_operand.vmem [shape: f32[1,32], index: 9, kind: input, shape index: {}, may-alias: {6,9}]
  %s10 = inlined_call_operand.vmem [shape: f32[32,32], index: 10, kind: input, shape index: {}]
  %s11 = inlined_call_operand.vmem [shape: f32[96,1], index: 11, kind: input, shape index: {}]
  %s12 = inlined_call_operand.vmem [shape: bf16[96,32], index: 12, kind: output, shape index: {}]
  %s13 = sld [smem:[#allocation0]]
  $region58: #{_lambda_.2} parent=0
    _
  %s15 = ssub.s32 1, %s13
  %s16 = scalar_select 0, %s15, %s13
  // Predicated region
  $region2: #{_lambda_.2} parent=0 // pred_check
    _
  $region3: #{_lambda_.2} parent=0 // pred_check_branch
    %18 = sbr.rel (0) target = $region5
  $region4: #{_lambda_.2} parent=0 // pred_region
    _
  $region5: #{_lambda_.2} parent=0 // pred_fallthru
    _
  // Predicated region
  $region6: #{_lambda_.2} parent=0 // pred_check
    _
  $region7: #{_lambda_.2} parent=0 // pred_check_branch
    %20 = sbr.rel (0) target = $region9
  $region8: #{_lambda_.2} parent=0 // pred_region
    _
  $region9: #{_lambda_.2} parent=0 // pred_fallthru
    _
  // Predicated region
  $region10: #{_lambda_.2} parent=0 // pred_check
    _
  $region11: #{_lambda_.2} parent=0 // pred_check_branch
    %22 = sbr.rel (0) target = $region13
  $region12: #{_lambda_.2} parent=0 // pred_region
    _
  $region13: #{_lambda_.2} parent=0 // pred_fallthru
    _
  // Predicated region
  $region14: #{_lambda_.2} parent=0 // pred_check
    _
  $region15: #{_lambda_.2} parent=0 // pred_check_branch
    %24 = sbr.rel (0) target = $region17
  $region16: #{_lambda_.2} parent=0 // pred_region
    _
  $region17: #{_lambda_.2} parent=0 // pred_fallthru
    _
  // Predicated region
  $region18: #{_lambda_.2} parent=0 // pred_check
    _
  $region19: #{_lambda_.2} parent=0 // pred_check_branch
    %26 = sbr.rel (0) target = $region21
  $region20: #{_lambda_.2} parent=0 // pred_region
    _
  $region21: #{_lambda_.2} parent=0 // pred_fallthru
    _
  // Predicated region
  $region22: #{_lambda_.2} parent=0 // pred_check
    _
  $region23: #{_lambda_.2} parent=0 // pred_check_branch
    %28 = sbr.rel (0) target = $region25
  $region24: #{_lambda_.2} parent=0 // pred_region
    _
  $region25: #{_lambda_.2} parent=0 // pred_fallthru
    _
  // Predicated region
  $region26: #{_lambda_.2} parent=0 // pred_check
    _
  $region27: #{_lambda_.2} parent=0 // pred_check_branch
    %30 = sbr.rel (0) target = $region29
  $region28: #{_lambda_.2} parent=0 // pred_region
    _
  $region29: #{_lambda_.2} parent=0 // pred_fallthru
    _
  // Predicated region
  $region30: #{_lambda_.2} parent=0 // pred_check
    _
  $region31: #{_lambda_.2} parent=0 // pred_check_branch
    %32 = sbr.rel (0) target = $region33
  $region32: #{_lambda_.2} parent=0 // pred_region
    _
  $region33: #{_lambda_.2} parent=0 // pred_fallthru
    _
  // Predicated region
  $region34: #{_lambda_.2} parent=0 // pred_check
    _
  $region35: #{_lambda_.2} parent=0 // pred_check_branch
    %34 = sbr.rel (0) target = $region37
  $region36: #{_lambda_.2} parent=0 // pred_region
    _
  $region37: #{_lambda_.2} parent=0 // pred_fallthru
    _
  // Predicated region
  $region38: #{_lambda_.2} parent=0 // pred_check
    _
  $region39: #{_lambda_.2} parent=0 // pred_check_branch
    %36 = sbr.rel (0) target = $region41
  $region40: #{_lambda_.2} parent=0 // pred_region
    _
  $region41: #{_lambda_.2} parent=0 // pred_fallthru
    _
  // Predicated region
  $region42: #{_lambda_.2} parent=0 // pred_check
    _
  $region43: #{_lambda_.2} parent=0 // pred_check_branch
    %38 = sbr.rel (0) target = $region45
  $region44: #{_lambda_.2} parent=0 // pred_region
    _
  $region45: #{_lambda_.2} parent=0 // pred_fallthru
    _
  // Predicated region
  $region46: #{_lambda_.2} parent=0 // pred_check
    _
  $region47: #{_lambda_.2} parent=0 // pred_check_branch
    %40 = sbr.rel (0) target = $region49
  $region48: #{_lambda_.2} parent=0 // pred_region
    _
  $region49: #{_lambda_.2} parent=0 // pred_fallthru
    _
  %42 = vst [vmem:[#allocation2] sm:$0xff] 0
  %vm43 = vcmask 523264
  %44 = vst.msk [vmem:[#allocation2 + $0x8] sm:$0xff] %vm43, 0
  %45 = vst [vmem:[#allocation2 + $0x60] sm:$0xff] 0
  %46 = vst.msk [vmem:[#allocation2 + $0x68] sm:$0xff] %vm43, 0
  %vm47 = vcmask 785408
  %48 = vst.msk [vmem:[#allocation3] sm:$0xff] %vm47, 0
  %49 = vst.msk [vmem:[#allocation3 + $0x30] sm:$0xff] %vm47, 0
  %v50 = vld [vmem:[%s11] sm:$0xff]
  %v51 = vld [vmem:[%s11 + $0x8] sm:$0xff]
  %v52 = vld [vmem:[%s11 + $0x10] sm:$0xff]
  %v53 = vld [vmem:[%s11 + $0x18] sm:$0xff]
  %v54 = vld [vmem:[%s11 + $0x20] sm:$0xff]
  %v55 = vld [vmem:[%s11 + $0x28] sm:$0xff]
  %v56 = vld [vmem:[%s11 + $0x30] sm:$0xff]
  %v57 = vld [vmem:[%s11 + $0x38] sm:$0xff]
  %v58 = vld [vmem:[%s11 + $0x40] sm:$0xff]
  %v59 = vld [vmem:[%s11 + $0x48] sm:$0xff]
  %v60 = vld [vmem:[%s11 + $0x50] sm:$0xff]
  %v61 = vld [vmem:[%s11 + $0x58] sm:$0xff]
  %v62 = vld [vmem:[%s10] sm:$0xff]
  %v63 = vld [vmem:[%s10 + $0x8] sm:$0xff]
  %v64 = vld [vmem:[%s10 + $0x10] sm:$0xff]
  %v65 = vld [vmem:[%s10 + $0x18] sm:$0xff]
  %v66 = vld [vmem:[%s0] sm:$0xf]
  %v67 = vld [vmem:[%s0 + $0x4] sm:$0xf]
  %v68 = vld [vmem:[%s0 + $0x8] sm:$0xf]
  %v69 = vld [vmem:[%s0 + $0xc] sm:$0xf]
  %v70 = vld [vmem:[%s0 + $0x10] sm:$0xf]
  %v71 = vld [vmem:[%s0 + $0x14] sm:$0xf]
  %v72 = vld [vmem:[%s0 + $0x18] sm:$0xf]
  %v73 = vld [vmem:[%s0 + $0x1c] sm:$0xf]
  %v74 = vld [vmem:[%s0 + $0x20] sm:$0xf]
  %v75 = vld [vmem:[%s0 + $0x24] sm:$0xf]
  %v76 = vld [vmem:[%s0 + $0x28] sm:$0xf]
  %v77 = vld [vmem:[%s0 + $0x2c] sm:$0xf]
  %v78 = vld [vmem:[%s2] sm:$0xf]
  %v79 = vld [vmem:[%s2 + $0x4] sm:$0xf]
  %v80 = vld [vmem:[%s3] sm:$0x1]
  %v82 = vlaneseq
  %v83 = vshrl.u32 %v82, 7
  %v84 = vsub.s32 0, %v83
  %v85 = vrot.slane %v80, %v84
  %v99 = vunpack.c.l.b16 %v66
  %v100 = vunpack.c.l.b16 %v67
  %v101 = vunpack.c.l.b16 %v68
  %v102 = vunpack.c.l.b16 %v69
  %v103 = vunpack.c.l.b16 %v70
  %v104 = vunpack.c.l.b16 %v71
  %v105 = vunpack.c.l.b16 %v72
  %v106 = vunpack.c.l.b16 %v73
  %v107 = vunpack.c.l.b16 %v74
  %v108 = vunpack.c.l.b16 %v75
  %v109 = vunpack.c.l.b16 %v76
  %v110 = vunpack.c.l.b16 %v77
  %v111 = vpack.c.b16 %v100, %v99
  %v112 = vpack.c.b16 %v102, %v101
  %v113 = vpack.c.b16 %v104, %v103
  %v114 = vpack.c.b16 %v106, %v105
  %v115 = vpack.c.b16 %v108, %v107
  %v116 = vpack.c.b16 %v110, %v109
  %v119 = vunpack.c.l.b16 %v78
  %v120 = vunpack.c.l.b16 %v79
  %v121 = vpack.c.b16 %v120, %v119
  %vm123 = vcmask 130048
  %v125 = vsel %vm123, %v111, 0
  %v128 = vsel %vm123, %v112, 0
  %v131 = vsel %vm123, %v113, 0
  %v134 = vsel %vm123, %v114, 0
  %v137 = vsel %vm123, %v115, 0
  %v140 = vsel %vm123, %v116, 0
  %142 = vmatprep.subr.bf16.mxu0 0
  %143 = vmatpush1.bf16.msra.mxu0 %v121
  %144 = vmatprep.subr.bf16.mxu0 0
  %145 = vmatpush1.bf16.msra.mxu0 0
  %146 = vmatprep.subr.bf16.mxu0 0
  %147 = vmatpush1.bf16.msra.mxu0 0
  %148 = vmatprep.subr.bf16.mxu0 0
  %149 = vmatpush1.bf16.msra.mxu0 0
  %150 = vmatprep.subr.bf16.mxu0 0
  %151 = vmatpush1.bf16.msra.mxu0 0
  %152 = vmatprep.subr.bf16.mxu0 0
  %153 = vmatpush1.bf16.msra.mxu0 0
  %154 = vmatprep.subr.bf16.mxu0 0
  %155 = vmatpush1.bf16.msra.mxu0 0
  %156 = vmatprep.subr.bf16.mxu0 0
  %157 = vmatpush1.bf16.msra.mxu0 0
  %158 = vmatprep.subr.bf16.mxu0 0
  %159 = vmatpush1.bf16.msra.mxu0 0
  %160 = vmatprep.subr.bf16.mxu0 0
  %161 = vmatpush1.bf16.msra.mxu0 0
  %162 = vmatprep.subr.bf16.mxu0 0
  %163 = vmatpush1.bf16.msra.mxu0 0
  %164 = vmatprep.subr.bf16.mxu0 0
  %165 = vmatpush1.bf16.msra.mxu0 0
  %166 = vmatprep.subr.bf16.mxu0 0
  %167 = vmatpush1.bf16.msra.mxu0 0
  %168 = vmatprep.subr.bf16.mxu0 0
  %169 = vmatpush1.bf16.msra.mxu0 0
  %170 = vmatprep.subr.bf16.mxu0 0
  %171 = vmatpush1.bf16.msra.mxu0 0
  %172 = vmatprep.subr.bf16.mxu0 0
  %173 = vmatpush1.bf16.msra.mxu0 0
  %174 = vmatprep.mubr.bf16.mxu0 0
  %175 = vmatmul.mubr.bf16.gmra.mrb[0].mxu0 %v125
  %v176 = vpop.f32.mrb[0].mxu0
  %v177 = vadd.f32 %v85, %v176
  %v178 = vpop.f32.mrb[0].mxu0
  %v179 = vpop.f32.mrb[0].mxu0
  %v180 = vadd.f32 %v85, %v179
  %v181 = vpop.f32.mrb[0].mxu0
  %182 = vmatprep.mubr.bf16.mxu0 0
  %183 = vmatmul.mubr.bf16.gmra.mrb[0].mxu0 %v128
  %v184 = vpop.f32.mrb[0].mxu0
  %v185 = vadd.f32 %v85, %v184
  %v186 = vpop.f32.mrb[0].mxu0
  %v187 = vpop.f32.mrb[0].mxu0
  %v188 = vadd.f32 %v85, %v187
  %v189 = vpop.f32.mrb[0].mxu0
  %190 = vmatprep.mubr.bf16.mxu0 0
  %191 = vmatmul.mubr.bf16.gmra.mrb[0].mxu0 %v131
  %v192 = vpop.f32.mrb[0].mxu0
  %v193 = vadd.f32 %v85, %v192
  %v194 = vpop.f32.mrb[0].mxu0
  %v195 = vpop.f32.mrb[0].mxu0
  %v196 = vadd.f32 %v85, %v195
  %v197 = vpop.f32.mrb[0].mxu0
  %198 = vmatprep.mubr.bf16.mxu0 0
  %199 = vmatmul.mubr.bf16.gmra.mrb[0].mxu0 %v134
  %v200 = vpop.f32.mrb[0].mxu0
  %v201 = vadd.f32 %v85, %v200
  %v202 = vpop.f32.mrb[0].mxu0
  %v203 = vpop.f32.mrb[0].mxu0
  %v204 = vadd.f32 %v85, %v203
  %v205 = vpop.f32.mrb[0].mxu0
  %206 = vmatprep.mubr.bf16.mxu0 0
  %207 = vmatmul.mubr.bf16.gmra.mrb[0].mxu0 %v137
  %v208 = vpop.f32.mrb[0].mxu0
  %v209 = vadd.f32 %v85, %v208
  %v210 = vpop.f32.mrb[0].mxu0
  %v211 = vpop.f32.mrb[0].mxu0
  %v212 = vadd.f32 %v85, %v211
  %v213 = vpop.f32.mrb[0].mxu0
  %214 = vmatprep.mubr.bf16.mxu0 0
  %215 = vmatmul.mubr.bf16.gmra.mrb[0].mxu0 %v140
  %v216 = vpop.f32.mrb[0].mxu0
  %v217 = vadd.f32 %v85, %v216
  %v218 = vpop.f32.mrb[0].mxu0
  %v219 = vpop.f32.mrb[0].mxu0
  %v220 = vadd.f32 %v85, %v219
  %v221 = vpop.f32.mrb[0].mxu0
  %222 = vdwg.mxu0
  %224 = vset.pattern.permute.xlu0 0
  %225 = vperm.xlu0 %224, %v50
  %v226 = vpop.permute.xlu0 %225
  %229 = vset.pattern.permute.xlu0 0
  %230 = vperm.xlu0 %229, %v51
  %v231 = vpop.permute.xlu0 %230
  %234 = vset.pattern.permute.xlu0 0
  %235 = vperm.xlu0 %234, %v52
  %v236 = vpop.permute.xlu0 %235
  %239 = vset.pattern.permute.xlu0 0
  %240 = vperm.xlu0 %239, %v53
  %v241 = vpop.permute.xlu0 %240
  %244 = vset.pattern.permute.xlu0 0
  %245 = vperm.xlu0 %244, %v54
  %v246 = vpop.permute.xlu0 %245
  %249 = vset.pattern.permute.xlu0 0
  %250 = vperm.xlu0 %249, %v55
  %v251 = vpop.permute.xlu0 %250
  %254 = vset.pattern.permute.xlu0 0
  %255 = vperm.xlu0 %254, %v56
  %v256 = vpop.permute.xlu0 %255
  %259 = vset.pattern.permute.xlu0 0
  %260 = vperm.xlu0 %259, %v57
  %v261 = vpop.permute.xlu0 %260
  %264 = vset.pattern.permute.xlu0 0
  %265 = vperm.xlu0 %264, %v58
  %v266 = vpop.permute.xlu0 %265
  %269 = vset.pattern.permute.xlu0 0
  %270 = vperm.xlu0 %269, %v59
  %v271 = vpop.permute.xlu0 %270
  %274 = vset.pattern.permute.xlu0 0
  %275 = vperm.xlu0 %274, %v60
  %v276 = vpop.permute.xlu0 %275
  %279 = vset.pattern.permute.xlu0 0
  %280 = vperm.xlu0 %279, %v61
  %v281 = vpop.permute.xlu0 %280
  %v283 = vmul.f32 %v177, %v226
  %v284 = vmul.f32 %v180, %v231
  %v285 = vmul.f32 %v185, %v236
  %v286 = vmul.f32 %v188, %v241
  %v287 = vmul.f32 %v193, %v246
  %v288 = vmul.f32 %v196, %v251
  %v289 = vmul.f32 %v201, %v256
  %v290 = vmul.f32 %v204, %v261
  %v291 = vmul.f32 %v209, %v266
  %v292 = vmul.f32 %v212, %v271
  %v293 = vmul.f32 %v217, %v276
  %v294 = vmul.f32 %v220, %v281
  %v295 = vpack.c.bf16 %v284, %v283
  %v296 = vpack.c.bf16 %v286, %v285
  %v297 = vpack.c.bf16 %v288, %v287
  %v298 = vpack.c.bf16 %v290, %v289
  %v299 = vpack.c.bf16 %v292, %v291
  %v300 = vpack.c.bf16 %v294, %v293
  %v301 = vld [vmem:[%s1] sm:$0xf]
  %v302 = vld [vmem:[%s1 + $0x4] sm:$0xf]
  %v303 = vld [vmem:[%s1 + $0x8] sm:$0xf]
  %v304 = vld [vmem:[%s1 + $0xc] sm:$0xf]
  %v305 = vld [vmem:[%s1 + $0x10] sm:$0xf]
  %v306 = vld [vmem:[%s1 + $0x14] sm:$0xf]
  %v307 = vld [vmem:[%s1 + $0x18] sm:$0xf]
  %v308 = vld [vmem:[%s1 + $0x1c] sm:$0xf]
  %v309 = vld [vmem:[%s1 + $0x20] sm:$0xf]
  %v310 = vld [vmem:[%s1 + $0x24] sm:$0xf]
  %v311 = vld [vmem:[%s1 + $0x28] sm:$0xf]
  %v312 = vld [vmem:[%s1 + $0x2c] sm:$0xf]
  %v325 = vunpack.c.l.b16 %v301
  %v326 = vunpack.c.l.b16 %v302
  %v327 = vunpack.c.l.b16 %v303
  %v328 = vunpack.c.l.b16 %v304
  %v329 = vunpack.c.l.b16 %v305
  %v330 = vunpack.c.l.b16 %v306
  %v331 = vunpack.c.l.b16 %v307
  %v332 = vunpack.c.l.b16 %v308
  %v333 = vunpack.c.l.b16 %v309
  %v334 = vunpack.c.l.b16 %v310
  %v335 = vunpack.c.l.b16 %v311
  %v336 = vunpack.c.l.b16 %v312
  %v337 = vpack.c.b16 %v326, %v325
  %v338 = vpack.c.b16 %v328, %v327
  %v339 = vpack.c.b16 %v330, %v329
  %v340 = vpack.c.b16 %v332, %v331
  %v341 = vpack.c.b16 %v334, %v333
  %v342 = vpack.c.b16 %v336, %v335
  %vm343 = vsmask.f32 4352
  %v345 = vshrl.u32 %v337, 16
  %v347 = vrot.slane %v345, 3
  %v348 = vshll.u32 %v337, 16
  %v350 = vrot.slane %v348, 4
  %v351 = vor.u32 %v347, %v350
  %v353 = vshrl.u32 %v338, 16
  %v355 = vrot.slane %v353, 3
  %v356 = vshll.u32 %v338, 16
  %v358 = vrot.slane %v356, 4
  %v359 = vor.u32 %v355, %v358
  %v360 = vsel %vm343, %v351, %v359
  %v362 = vshrl.u32 %v339, 16
  %v364 = vrot.slane %v362, 3
  %v365 = vshll.u32 %v339, 16
  %v367 = vrot.slane %v365, 4
  %v368 = vor.u32 %v364, %v367
  %v369 = vsel %vm343, %v359, %v368
  %v371 = vshrl.u32 %v340, 16
  %v373 = vrot.slane %v371, 3
  %v374 = vshll.u32 %v340, 16
  %v376 = vrot.slane %v374, 4
  %v377 = vor.u32 %v373, %v376
  %v378 = vsel %vm343, %v368, %v377
  %v380 = vshrl.u32 %v341, 16
  %v382 = vrot.slane %v380, 3
  %v383 = vshll.u32 %v341, 16
  %v385 = vrot.slane %v383, 4
  %v386 = vor.u32 %v382, %v385
  %v387 = vsel %vm343, %v377, %v386
  %v389 = vshrl.u32 %v342, 16
  %v391 = vrot.slane %v389, 3
  %v392 = vshll.u32 %v342, 16
  %v394 = vrot.slane %v392, 4
  %v395 = vor.u32 %v391, %v394
  %v396 = vsel %vm343, %v386, %v395
  %vm404 = vcmask 261124
  %vm405 = vsmask.f32 7954
  %vm406 = vmand %vm404, %vm405
  %v407 = vld [vmem:[#allocation2] sm:$0xf0]
  %v408 = vsel %vm406, %v351, %v407
  %409 = vst [vmem:[#allocation2] sm:$0xf0] %v408
  %vm410 = vcmask 261120
  %411 = vst.msk [vmem:[#allocation2 + $0x10] sm:$0xff] %vm410, %v360
  %412 = vst.msk [vmem:[#allocation2 + $0x20] sm:$0xff] %vm410, %v369
  %413 = vst.msk [vmem:[#allocation2 + $0x30] sm:$0xff] %vm410, %v378
  %414 = vst.msk [vmem:[#allocation2 + $0x40] sm:$0xff] %vm410, %v387
  %415 = vst.msk [vmem:[#allocation2 + $0x50] sm:$0xff] %vm410, %v396
  %vm416 = vcmask 258048
  %vm417 = vmand %vm416, %vm343
  %v418 = vld [vmem:[#allocation2 + $0x60] sm:$0x1f]
  %v419 = vsel %vm417, %v395, %v418
  %420 = vst [vmem:[#allocation2 + $0x60] sm:$0x1f] %v419
  %v422 = vshrl.u32 %v295, 16
  %v424 = vrot.slane %v422, 3
  %v425 = vshll.u32 %v295, 16
  %v427 = vrot.slane %v425, 4
  %v428 = vor.u32 %v424, %v427
  %v430 = vshrl.u32 %v296, 16
  %v432 = vrot.slane %v430, 3
  %v433 = vshll.u32 %v296, 16
  %v435 = vrot.slane %v433, 4
  %v436 = vor.u32 %v432, %v435
  %v437 = vsel %vm343, %v428, %v436
  %v439 = vshrl.u32 %v297, 16
  %v441 = vrot.slane %v439, 3
  %v442 = vshll.u32 %v297, 16
  %v444 = vrot.slane %v442, 4
  %v445 = vor.u32 %v441, %v444
  %v446 = vsel %vm343, %v436, %v445
  %v448 = vshrl.u32 %v298, 16
  %v450 = vrot.slane %v448, 3
  %v451 = vshll.u32 %v298, 16
  %v453 = vrot.slane %v451, 4
  %v454 = vor.u32 %v450, %v453
  %v455 = vsel %vm343, %v445, %v454
  %v457 = vshrl.u32 %v299, 16
  %v459 = vrot.slane %v457, 3
  %v460 = vshll.u32 %v299, 16
  %v462 = vrot.slane %v460, 4
  %v463 = vor.u32 %v459, %v462
  %v464 = vsel %vm343, %v454, %v463
  %v466 = vshrl.u32 %v300, 16
  %v468 = vrot.slane %v466, 3
  %v469 = vshll.u32 %v300, 16
  %v471 = vrot.slane %v469, 4
  %v472 = vor.u32 %v468, %v471
  %v473 = vsel %vm343, %v463, %v472
  %474 = vrot.lane.b32.xlu0 %v428, 32
  %v475 = vpop.permute.xlu0 %474
  %476 = vrot.lane.b32.xlu0 %v437, 32
  %v477 = vpop.permute.xlu0 %476
  %478 = vrot.lane.b32.xlu0 %v446, 32
  %v479 = vpop.permute.xlu0 %478
  %480 = vrot.lane.b32.xlu0 %v455, 32
  %v481 = vpop.permute.xlu0 %480
  %482 = vrot.lane.b32.xlu0 %v464, 32
  %v483 = vpop.permute.xlu0 %482
  %484 = vrot.lane.b32.xlu0 %v473, 32
  %v485 = vpop.permute.xlu0 %484
  %486 = vrot.lane.b32.xlu0 %v472, 32
  %v487 = vpop.permute.xlu0 %486
  %vm495 = vcmask 523524
  %vm496 = vmand %vm495, %vm405
  %v497 = vld [vmem:[#allocation2] sm:$0xf0]
  %v498 = vsel %vm496, %v475, %v497
  %499 = vst [vmem:[#allocation2] sm:$0xf0] %v498
  %vm500 = vcmask 523520
  %501 = vst.msk [vmem:[#allocation2 + $0x10] sm:$0xff] %vm500, %v477
  %502 = vst.msk [vmem:[#allocation2 + $0x20] sm:$0xff] %vm500, %v479
  %503 = vst.msk [vmem:[#allocation2 + $0x30] sm:$0xff] %vm500, %v481
  %504 = vst.msk [vmem:[#allocation2 + $0x40] sm:$0xff] %vm500, %v483
  %505 = vst.msk [vmem:[#allocation2 + $0x50] sm:$0xff] %vm500, %v485
  %vm506 = vcmask 520448
  %vm507 = vmand %vm506, %vm343
  %v508 = vld [vmem:[#allocation2 + $0x60] sm:$0x1f]
  %v509 = vsel %vm507, %v487, %v508
  %510 = vst [vmem:[#allocation2 + $0x60] sm:$0x1f] %v509
  %v511 = vpack.c.b16 %v325, %v325
  %v512 = vpack.c.b16 %v327, %v326
  %v513 = vpack.c.b16 %v329, %v328
  %v514 = vpack.c.b16 %v331, %v330
  %v515 = vpack.c.b16 %v333, %v332
  %v516 = vpack.c.b16 %v335, %v334
  %v517 = vpack.c.b16 %v336, %v336
  %518 = vrot.lane.b32.xlu0 %v511, 64
  %v519 = vpop.permute.xlu0 %518
  %520 = vrot.lane.b32.xlu0 %v512, 64
  %v521 = vpop.permute.xlu0 %520
  %522 = vrot.lane.b32.xlu0 %v513, 64
  %v523 = vpop.permute.xlu0 %522
  %524 = vrot.lane.b32.xlu0 %v514, 64
  %v525 = vpop.permute.xlu0 %524
  %526 = vrot.lane.b32.xlu0 %v515, 64
  %v527 = vpop.permute.xlu0 %526
  %528 = vrot.lane.b32.xlu0 %v516, 64
  %v529 = vpop.permute.xlu0 %528
  %530 = vrot.lane.b32.xlu0 %v517, 64
  %v531 = vpop.permute.xlu0 %530
  %vm539 = vcmask 785924
  %540 = vst.msk [vmem:[#allocation2] sm:$0xf0] %vm539, %v519
  %vm541 = vcmask 785920
  %542 = vst.msk [vmem:[#allocation2 + $0x10] sm:$0xff] %vm541, %v521
  %543 = vst.msk [vmem:[#allocation2 + $0x20] sm:$0xff] %vm541, %v523
  %544 = vst.msk [vmem:[#allocation2 + $0x30] sm:$0xff] %vm541, %v525
  %545 = vst.msk [vmem:[#allocation2 + $0x40] sm:$0xff] %vm541, %v527
  %546 = vst.msk [vmem:[#allocation2 + $0x50] sm:$0xff] %vm541, %v529
  %vm547 = vcmask 781824
  %548 = vst.msk [vmem:[#allocation2 + $0x60] sm:$0xf] %vm547, %v531
  %vm555 = vcmask 1043456
  %v556 = vrot.slane %v295, 4
  %v557 = vrot.slane %v296, 4
  %v558 = vsel %vm555, %v556, %v557
  %v559 = vrot.slane %v297, 4
  %v560 = vsel %vm555, %v557, %v559
  %v561 = vrot.slane %v298, 4
  %v562 = vsel %vm555, %v559, %v561
  %v563 = vrot.slane %v299, 4
  %v564 = vsel %vm555, %v561, %v563
  %v565 = vrot.slane %v300, 4
  %v566 = vsel %vm555, %v563, %v565
  %567 = vrot.lane.b32.xlu0 %v556, 96
  %v568 = vpop.permute.xlu0 %567
  %569 = vrot.lane.b32.xlu0 %v558, 96
  %v570 = vpop.permute.xlu0 %569
  %571 = vrot.lane.b32.xlu0 %v560, 96
  %v572 = vpop.permute.xlu0 %571
  %573 = vrot.lane.b32.xlu0 %v562, 96
  %v574 = vpop.permute.xlu0 %573
  %575 = vrot.lane.b32.xlu0 %v564, 96
  %v576 = vpop.permute.xlu0 %575
  %577 = vrot.lane.b32.xlu0 %v566, 96
  %v578 = vpop.permute.xlu0 %577
  %579 = vrot.lane.b32.xlu0 %v565, 96
  %v580 = vpop.permute.xlu0 %579
  %vm588 = vcmask 1048324
  %589 = vst.msk [vmem:[#allocation2] sm:$0xf0] %vm588, %v568
  %vm590 = vcmask 1048320
  %591 = vst.msk [vmem:[#allocation2 + $0x10] sm:$0xff] %vm590, %v570
  %592 = vst.msk [vmem:[#allocation2 + $0x20] sm:$0xff] %vm590, %v572
  %593 = vst.msk [vmem:[#allocation2 + $0x30] sm:$0xff] %vm590, %v574
  %594 = vst.msk [vmem:[#allocation2 + $0x40] sm:$0xff] %vm590, %v576
  %595 = vst.msk [vmem:[#allocation2 + $0x50] sm:$0xff] %vm590, %v578
  %vm596 = vcmask 1044224
  %597 = vst.msk [vmem:[#allocation2 + $0x60] sm:$0xf] %vm596, %v580
  %vm598 = vsmask.f32 3328
  %v599 = vrot.slane %v345, 4
  %v600 = vrot.slane %v348, 5
  %v601 = vor.u32 %v599, %v600
  %v602 = vrot.slane %v353, 4
  %v603 = vrot.slane %v356, 5
  %v604 = vor.u32 %v602, %v603
  %v605 = vsel %vm598, %v601, %v604
  %v606 = vrot.slane %v362, 4
  %v607 = vrot.slane %v365, 5
  %v608 = vor.u32 %v606, %v607
  %v609 = vsel %vm598, %v604, %v608
  %v610 = vrot.slane %v371, 4
  %v611 = vrot.slane %v374, 5
  %v612 = vor.u32 %v610, %v611
  %v613 = vsel %vm598, %v608, %v612
  %v614 = vrot.slane %v380, 4
  %v615 = vrot.slane %v383, 5
  %v616 = vor.u32 %v614, %v615
  %v617 = vsel %vm598, %v612, %v616
  %v618 = vrot.slane %v389, 4
  %v619 = vrot.slane %v392, 5
  %v620 = vor.u32 %v618, %v619
  %v621 = vsel %vm598, %v616, %v620
  %vm629 = vcmask 261123
  %vm630 = vsmask.f32 7950
  %vm631 = vmand %vm629, %vm630
  %v632 = vld [vmem:[#allocation2 + $0x8] sm:$0xf8]
  %v633 = vsel %vm631, %v601, %v632
  %634 = vst [vmem:[#allocation2 + $0x8] sm:$0xf8] %v633
  %635 = vst.msk [vmem:[#allocation2 + $0x18] sm:$0xff] %vm410, %v605
  %636 = vst.msk [vmem:[#allocation2 + $0x28] sm:$0xff] %vm410, %v609
  %637 = vst.msk [vmem:[#allocation2 + $0x38] sm:$0xff] %vm410, %v613
  %638 = vst.msk [vmem:[#allocation2 + $0x48] sm:$0xff] %vm410, %v617
  %639 = vst.msk [vmem:[#allocation2 + $0x58] sm:$0xff] %vm410, %v621
  %vm640 = vcmask 257024
  %vm641 = vmand %vm640, %vm598
  %v642 = vld [vmem:[#allocation2 + $0x68] sm:$0xf]
  %v643 = vsel %vm641, %v620, %v642
  %644 = vst [vmem:[#allocation2 + $0x68] sm:$0xf] %v643
  %v645 = vrot.slane %v422, 4
  %v646 = vrot.slane %v425, 5
  %v647 = vor.u32 %v645, %v646
  %v648 = vrot.slane %v430, 4
  %v649 = vrot.slane %v433, 5
  %v650 = vor.u32 %v648, %v649
  %v651 = vsel %vm598, %v647, %v650
  %v652 = vrot.slane %v439, 4
  %v653 = vrot.slane %v442, 5
  %v654 = vor.u32 %v652, %v653
  %v655 = vsel %vm598, %v650, %v654
  %v656 = vrot.slane %v448, 4
  %v657 = vrot.slane %v451, 5
  %v658 = vor.u32 %v656, %v657
  %v659 = vsel %vm598, %v654, %v658
  %v660 = vrot.slane %v457, 4
  %v661 = vrot.slane %v460, 5
  %v662 = vor.u32 %v660, %v661
  %v663 = vsel %vm598, %v658, %v662
  %v664 = vrot.slane %v466, 4
  %v665 = vrot.slane %v469, 5
  %v666 = vor.u32 %v664, %v665
  %v667 = vsel %vm598, %v662, %v666
  %668 = vrot.lane.b32.xlu0 %v647, 32
  %v669 = vpop.permute.xlu0 %668
  %670 = vrot.lane.b32.xlu0 %v651, 32
  %v671 = vpop.permute.xlu0 %670
  %672 = vrot.lane.b32.xlu0 %v655, 32
  %v673 = vpop.permute.xlu0 %672
  %674 = vrot.lane.b32.xlu0 %v659, 32
  %v675 = vpop.permute.xlu0 %674
  %676 = vrot.lane.b32.xlu0 %v663, 32
  %v677 = vpop.permute.xlu0 %676
  %678 = vrot.lane.b32.xlu0 %v667, 32
  %v679 = vpop.permute.xlu0 %678
  %680 = vrot.lane.b32.xlu0 %v666, 32
  %v681 = vpop.permute.xlu0 %680
  %vm689 = vcmask 523523
  %vm690 = vmand %vm689, %vm630
  %v691 = vld [vmem:[#allocation2 + $0x8] sm:$0xf8]
  %v692 = vsel %vm690, %v669, %v691
  %693 = vst [vmem:[#allocation2 + $0x8] sm:$0xf8] %v692
  %694 = vst.msk [vmem:[#allocation2 + $0x18] sm:$0xff] %vm500, %v671
  %695 = vst.msk [vmem:[#allocation2 + $0x28] sm:$0xff] %vm500, %v673
  %696 = vst.msk [vmem:[#allocation2 + $0x38] sm:$0xff] %vm500, %v675
  %697 = vst.msk [vmem:[#allocation2 + $0x48] sm:$0xff] %vm500, %v677
  %698 = vst.msk [vmem:[#allocation2 + $0x58] sm:$0xff] %vm500, %v679
  %vm699 = vcmask 519424
  %vm700 = vmand %vm699, %vm598
  %v701 = vld [vmem:[#allocation2 + $0x68] sm:$0xf]
  %v702 = vsel %vm700, %v681, %v701
  %703 = vst [vmem:[#allocation2 + $0x68] sm:$0xf] %v702
  %v704 = vld [vmem:[#allocation2] sm:$0xff]
  %v705 = vld [vmem:[#allocation2 + $0x8] sm:$0xff]
  %v706 = vld [vmem:[#allocation2 + $0x10] sm:$0xff]
  %v707 = vld [vmem:[#allocation2 + $0x18] sm:$0xff]
  %v708 = vld [vmem:[#allocation2 + $0x20] sm:$0xff]
  %v709 = vld [vmem:[#allocation2 + $0x28] sm:$0xff]
  %v710 = vld [vmem:[#allocation2 + $0x30] sm:$0xff]
  %v711 = vld [vmem:[#allocation2 + $0x38] sm:$0xff]
  %v712 = vld [vmem:[#allocation2 + $0x40] sm:$0xff]
  %v713 = vld [vmem:[#allocation2 + $0x48] sm:$0xff]
  %v714 = vld [vmem:[#allocation2 + $0x50] sm:$0xff]
  %v715 = vld [vmem:[#allocation2 + $0x58] sm:$0xff]
  %v716 = vld [vmem:[%s4] sm:$0xf]
  %v717 = vld [vmem:[%s4 + $0x4] sm:$0xf]
  %v718 = vld [vmem:[%s4 + $0x8] sm:$0xf]
  %v719 = vld [vmem:[%s4 + $0xc] sm:$0xf]
  %v720 = vld [vmem:[%s4 + $0x10] sm:$0xf]
  %v721 = vld [vmem:[%s4 + $0x14] sm:$0xf]
  %v722 = vld [vmem:[%s4 + $0x18] sm:$0xf]
  %v723 = vld [vmem:[%s4 + $0x1c] sm:$0xf]
  %v724 = vld [vmem:[%s4 + $0x20] sm:$0xf]
  %v725 = vld [vmem:[%s4 + $0x24] sm:$0xf]
  %v726 = vld [vmem:[%s4 + $0x28] sm:$0xf]
  %v727 = vld [vmem:[%s4 + $0x2c] sm:$0xf]
  %v728 = vld [vmem:[%s4 + $0x30] sm:$0xf]
  %v729 = vld [vmem:[%s4 + $0x34] sm:$0xf]
  %v730 = vld [vmem:[%s4 + $0x38] sm:$0xf]
  %v731 = vld [vmem:[%s4 + $0x3c] sm:$0xf]
  %v732 = vld [vmem:[%s4 + $0x40] sm:$0xf]
  %v733 = vld [vmem:[%s4 + $0x44] sm:$0xf]
  %v734 = vld [vmem:[%s4 + $0x48] sm:$0xf]
  %v735 = vld [vmem:[%s4 + $0x4c] sm:$0xf]
  %v736 = vld [vmem:[%s4 + $0x50] sm:$0xf]
  %v737 = vld [vmem:[%s4 + $0x54] sm:$0xf]
  %v738 = vld [vmem:[%s4 + $0x58] sm:$0xf]
  %v739 = vld [vmem:[%s4 + $0x5c] sm:$0xf]
  %v740 = vld [vmem:[#allocation2] sm:$0xf0]
  %v741 = vld [vmem:[#allocation2 + $0x8] sm:$0xf0]
  %v742 = vld [vmem:[#allocation2 + $0x60] sm:$0xf]
  %v743 = vld [vmem:[#allocation2 + $0x68] sm:$0xf]
  %s744 = scalar_lea.vmem %s4, 96
  %v745 = vld [vmem:[%s744] sm:$0xf]
  %v746 = vld [vmem:[%s744 + $0x4] sm:$0xf]
  %v747 = vld [vmem:[%s744 + $0x8] sm:$0xf]
  %v748 = vld [vmem:[%s744 + $0xc] sm:$0xf]
  %v749 = vld [vmem:[%s744 + $0x10] sm:$0xf]
  %v750 = vld [vmem:[%s744 + $0x14] sm:$0xf]
  %v751 = vld [vmem:[%s744 + $0x18] sm:$0xf]
  %v752 = vld [vmem:[%s744 + $0x1c] sm:$0xf]
  %v753 = vld [vmem:[%s744 + $0x20] sm:$0xf]
  %v754 = vld [vmem:[%s744 + $0x24] sm:$0xf]
  %v755 = vld [vmem:[%s744 + $0x28] sm:$0xf]
  %v756 = vld [vmem:[%s744 + $0x2c] sm:$0xf]
  %v757 = vld [vmem:[%s744 + $0x30] sm:$0xf]
  %v758 = vld [vmem:[%s744 + $0x34] sm:$0xf]
  %v759 = vld [vmem:[%s744 + $0x38] sm:$0xf]
  %v760 = vld [vmem:[%s744 + $0x3c] sm:$0xf]
  %v761 = vld [vmem:[%s744 + $0x40] sm:$0xf]
  %v762 = vld [vmem:[%s744 + $0x44] sm:$0xf]
  %v763 = vld [vmem:[%s744 + $0x48] sm:$0xf]
  %v764 = vld [vmem:[%s744 + $0x4c] sm:$0xf]
  %v765 = vld [vmem:[%s744 + $0x50] sm:$0xf]
  %v766 = vld [vmem:[%s744 + $0x54] sm:$0xf]
  %v767 = vld [vmem:[%s744 + $0x58] sm:$0xf]
  %v768 = vld [vmem:[%s744 + $0x5c] sm:$0xf]
  %v783 = vrot.slane %v740, 4
  %v784 = vrot.slane %v706, 4
  %v785 = vsel %vm555, %v783, %v784
  %v786 = vrot.slane %v741, 4
  %v787 = vrot.slane %v707, 4
  %v788 = vsel %vm555, %v786, %v787
  %v789 = vrot.slane %v708, 4
  %v790 = vsel %vm555, %v784, %v789
  %v791 = vrot.slane %v709, 4
  %v792 = vsel %vm555, %v787, %v791
  %v793 = vrot.slane %v710, 4
  %v794 = vsel %vm555, %v789, %v793
  %v795 = vrot.slane %v711, 4
  %v796 = vsel %vm555, %v791, %v795
  %v797 = vrot.slane %v712, 4
  %v798 = vsel %vm555, %v793, %v797
  %v799 = vrot.slane %v713, 4
  %v800 = vsel %vm555, %v795, %v799
  %v801 = vrot.slane %v714, 4
  %v802 = vsel %vm555, %v797, %v801
  %v803 = vrot.slane %v715, 4
  %v804 = vsel %vm555, %v799, %v803
  %v805 = vrot.slane %v742, 4
  %v806 = vsel %vm555, %v801, %v805
  %v807 = vrot.slane %v743, 4
  %v808 = vsel %vm555, %v803, %v807
  %v839 = vunpack.c.l.b16 %v745
  %v840 = vunpack.c.l.b16 %v746
  %v841 = vunpack.c.l.b16 %v747
  %v842 = vunpack.c.l.b16 %v748
  %v843 = vunpack.c.l.b16 %v749
  %v844 = vunpack.c.l.b16 %v750
  %v845 = vunpack.c.l.b16 %v751
  %v846 = vunpack.c.l.b16 %v752
  %v847 = vunpack.c.l.b16 %v753
  %v848 = vunpack.c.l.b16 %v754
  %v849 = vunpack.c.l.b16 %v755
  %v850 = vunpack.c.l.b16 %v756
  %v851 = vunpack.c.l.b16 %v757
  %v852 = vunpack.c.l.b16 %v758
  %v853 = vunpack.c.l.b16 %v759
  %v854 = vunpack.c.l.b16 %v760
  %v855 = vunpack.c.l.b16 %v761
  %v856 = vunpack.c.l.b16 %v762
  %v857 = vunpack.c.l.b16 %v763
  %v858 = vunpack.c.l.b16 %v764
  %v859 = vunpack.c.l.b16 %v765
  %v860 = vunpack.c.l.b16 %v766
  %v861 = vunpack.c.l.b16 %v767
  %v862 = vunpack.c.l.b16 %v768
  %v863 = vpack.c.b16 %v840, %v839
  %v864 = vpack.c.b16 %v842, %v841
  %v865 = vpack.c.b16 %v844, %v843
  %v866 = vpack.c.b16 %v846, %v845
  %v867 = vpack.c.b16 %v848, %v847
  %v868 = vpack.c.b16 %v850, %v849
  %v869 = vpack.c.b16 %v852, %v851
  %v870 = vpack.c.b16 %v854, %v853
  %v871 = vpack.c.b16 %v856, %v855
  %v872 = vpack.c.b16 %v858, %v857
  %v873 = vpack.c.b16 %v860, %v859
  %v874 = vpack.c.b16 %v862, %v861
  %v888 = vsel %vm43, %v788, 0
  %v891 = vsel %vm43, %v792, 0
  %v894 = vsel %vm43, %v796, 0
  %v897 = vsel %vm43, %v800, 0
  %v900 = vsel %vm43, %v804, 0
  %v903 = vsel %vm43, %v808, 0
  %905 = vmatprep.subr.bf16.mxu0 0
  %906 = vmatpush1.bf16.msra.mxu0 %v863
  %907 = vmatprep.subr.bf16.mxu0 0
  %908 = vmatpush1.bf16.msra.mxu0 %v864
  %909 = vmatprep.subr.bf16.mxu0 0
  %910 = vmatpush1.bf16.msra.mxu0 %v865
  %911 = vmatprep.subr.bf16.mxu0 0
  %912 = vmatpush1.bf16.msra.mxu0 %v866
  %913 = vmatprep.subr.bf16.mxu0 0
  %914 = vmatpush1.bf16.msra.mxu0 %v867
  %915 = vmatprep.subr.bf16.mxu0 0
  %916 = vmatpush1.bf16.msra.mxu0 %v868
  %917 = vmatprep.subr.bf16.mxu0 0
  %918 = vmatpush1.bf16.msra.mxu0 %v869
  %919 = vmatprep.subr.bf16.mxu0 0
  %920 = vmatpush1.bf16.msra.mxu0 %v870
  %921 = vmatprep.subr.bf16.mxu0 0
  %922 = vmatpush1.bf16.msra.mxu0 %v871
  %923 = vmatprep.subr.bf16.mxu0 0
  %924 = vmatpush1.bf16.msra.mxu0 %v872
  %925 = vmatprep.subr.bf16.mxu0 0
  %926 = vmatpush1.bf16.msra.mxu0 %v873
  %927 = vmatprep.subr.bf16.mxu0 0
  %928 = vmatpush1.bf16.msra.mxu0 %v874
  %929 = vmatprep.subr.bf16.mxu0 0
  %930 = vmatpush1.bf16.msra.mxu0 0
  %931 = vmatprep.subr.bf16.mxu0 0
  %932 = vmatpush1.bf16.msra.mxu0 0
  %933 = vmatprep.subr.bf16.mxu0 0
  %934 = vmatpush1.bf16.msra.mxu0 0
  %935 = vmatprep.subr.bf16.mxu0 0
  %936 = vmatpush1.bf16.msra.mxu0 0
  %937 = vmatprep.mubr.bf16.mxu0 %v888
  %938 = vmatmul.mubr.bf16.gmra.mrb[0].mxu0 %v785
  %v939 = vpop.f32.mrb[0].mxu0
  %v940 = vadd.f32 0.0, %v939
  %v941 = vpop.f32.mrb[0].mxu0
  %v942 = vpop.f32.mrb[0].mxu0
  %v943 = vadd.f32 0.0, %v942
  %v944 = vpop.f32.mrb[0].mxu0
  %945 = vmatprep.mubr.bf16.mxu0 %v891
  %946 = vmatmul.mubr.bf16.gmra.mrb[0].mxu0 %v790
  %v947 = vpop.f32.mrb[0].mxu0
  %v948 = vadd.f32 0.0, %v947
  %v949 = vpop.f32.mrb[0].mxu0
  %v950 = vpop.f32.mrb[0].mxu0
  %v951 = vadd.f32 0.0, %v950
  %v952 = vpop.f32.mrb[0].mxu0
  %953 = vmatprep.mubr.bf16.mxu0 %v894
  %954 = vmatmul.mubr.bf16.gmra.mrb[0].mxu0 %v794
  %v955 = vpop.f32.mrb[0].mxu0
  %v956 = vadd.f32 0.0, %v955
  %v957 = vpop.f32.mrb[0].mxu0
  %v958 = vpop.f32.mrb[0].mxu0
  %v959 = vadd.f32 0.0, %v958
  %v960 = vpop.f32.mrb[0].mxu0
  %961 = vmatprep.mubr.bf16.mxu0 %v897
  %962 = vmatmul.mubr.bf16.gmra.mrb[0].mxu0 %v798
  %v963 = vpop.f32.mrb[0].mxu0
  %v964 = vadd.f32 0.0, %v963
  %v965 = vpop.f32.mrb[0].mxu0
  %v966 = vpop.f32.mrb[0].mxu0
  %v967 = vadd.f32 0.0, %v966
  %v968 = vpop.f32.mrb[0].mxu0
  %969 = vmatprep.mubr.bf16.mxu0 %v900
  %970 = vmatmul.mubr.bf16.gmra.mrb[0].mxu0 %v802
  %v971 = vpop.f32.mrb[0].mxu0
  %v972 = vadd.f32 0.0, %v971
  %v973 = vpop.f32.mrb[0].mxu0
  %v974 = vpop.f32.mrb[0].mxu0
  %v975 = vadd.f32 0.0, %v974
  %v976 = vpop.f32.mrb[0].mxu0
  %977 = vmatprep.mubr.bf16.mxu0 %v903
  %978 = vmatmul.mubr.bf16.gmra.mrb[0].mxu0 %v806
  %v979 = vpop.f32.mrb[0].mxu0
  %v980 = vadd.f32 0.0, %v979
  %v981 = vpop.f32.mrb[0].mxu0
  %v982 = vpop.f32.mrb[0].mxu0
  %v983 = vadd.f32 0.0, %v982
  %v984 = vpop.f32.mrb[0].mxu0
  %985 = vdwg.mxu0
  %v1010 = vunpack.c.l.b16 %v716
  %v1011 = vunpack.c.l.b16 %v717
  %v1012 = vunpack.c.l.b16 %v718
  %v1013 = vunpack.c.l.b16 %v719
  %v1014 = vunpack.c.l.b16 %v720
  %v1015 = vunpack.c.l.b16 %v721
  %v1016 = vunpack.c.l.b16 %v722
  %v1017 = vunpack.c.l.b16 %v723
  %v1018 = vunpack.c.l.b16 %v724
  %v1019 = vunpack.c.l.b16 %v725
  %v1020 = vunpack.c.l.b16 %v726
  %v1021 = vunpack.c.l.b16 %v727
  %v1022 = vunpack.c.l.b16 %v728
  %v1023 = vunpack.c.l.b16 %v729
  %v1024 = vunpack.c.l.b16 %v730
  %v1025 = vunpack.c.l.b16 %v731
  %v1026 = vunpack.c.l.b16 %v732
  %v1027 = vunpack.c.l.b16 %v733
  %v1028 = vunpack.c.l.b16 %v734
  %v1029 = vunpack.c.l.b16 %v735
  %v1030 = vunpack.c.l.b16 %v736
  %v1031 = vunpack.c.l.b16 %v737
  %v1032 = vunpack.c.l.b16 %v738
  %v1033 = vunpack.c.l.b16 %v739
  %v1034 = vpack.c.b16 %v1011, %v1010
  %v1035 = vpack.c.b16 %v1013, %v1012
  %v1036 = vpack.c.b16 %v1015, %v1014
  %v1037 = vpack.c.b16 %v1017, %v1016
  %v1038 = vpack.c.b16 %v1019, %v1018
  %v1039 = vpack.c.b16 %v1021, %v1020
  %v1040 = vpack.c.b16 %v1023, %v1022
  %v1041 = vpack.c.b16 %v1025, %v1024
  %v1042 = vpack.c.b16 %v1027, %v1026
  %v1043 = vpack.c.b16 %v1029, %v1028
  %v1044 = vpack.c.b16 %v1031, %v1030
  %v1045 = vpack.c.b16 %v1033, %v1032
  %v1059 = vsel %vm43, %v705, 0
  %v1062 = vsel %vm43, %v707, 0
  %v1065 = vsel %vm43, %v709, 0
  %v1068 = vsel %vm43, %v711, 0
  %v1071 = vsel %vm43, %v713, 0
  %v1074 = vsel %vm43, %v715, 0
  %1076 = vmatprep.subr.bf16.mxu0 0
  %1077 = vmatpush1.bf16.msra.mxu0 %v1034
  %1078 = vmatprep.subr.bf16.mxu0 0
  %1079 = vmatpush1.bf16.msra.mxu0 %v1035
  %1080 = vmatprep.subr.bf16.mxu0 0
  %1081 = vmatpush1.bf16.msra.mxu0 %v1036
  %1082 = vmatprep.subr.bf16.mxu0 0
  %1083 = vmatpush1.bf16.msra.mxu0 %v1037
  %1084 = vmatprep.subr.bf16.mxu0 0
  %1085 = vmatpush1.bf16.msra.mxu0 %v1038
  %1086 = vmatprep.subr.bf16.mxu0 0
  %1087 = vmatpush1.bf16.msra.mxu0 %v1039
  %1088 = vmatprep.subr.bf16.mxu0 0
  %1089 = vmatpush1.bf16.msra.mxu0 %v1040
  %1090 = vmatprep.subr.bf16.mxu0 0
  %1091 = vmatpush1.bf16.msra.mxu0 %v1041
  %1092 = vmatprep.subr.bf16.mxu0 0
  %1093 = vmatpush1.bf16.msra.mxu0 %v1042
  %1094 = vmatprep.subr.bf16.mxu0 0
  %1095 = vmatpush1.bf16.msra.mxu0 %v1043
  %1096 = vmatprep.subr.bf16.mxu0 0
  %1097 = vmatpush1.bf16.msra.mxu0 %v1044
  %1098 = vmatprep.subr.bf16.mxu0 0
  %1099 = vmatpush1.bf16.msra.mxu0 %v1045
  %1100 = vmatprep.subr.bf16.mxu0 0
  %1101 = vmatpush1.bf16.msra.mxu0 0
  %1102 = vmatprep.subr.bf16.mxu0 0
  %1103 = vmatpush1.bf16.msra.mxu0 0
  %1104 = vmatprep.subr.bf16.mxu0 0
  %1105 = vmatpush1.bf16.msra.mxu0 0
  %1106 = vmatprep.subr.bf16.mxu0 0
  %1107 = vmatpush1.bf16.msra.mxu0 0
  %1108 = vmatprep.mubr.bf16.mxu0 %v1059
  %1109 = vmatmul.mubr.bf16.gmra.mrb[0].mxu0 %v704
  %v1110 = vpop.f32.mrb[0].mxu0
  %v1111 = vadd.f32 %v940, %v1110
  %v1112 = vpop.f32.mrb[0].mxu0
  %v1113 = vpop.f32.mrb[0].mxu0
  %v1114 = vadd.f32 %v943, %v1113
  %v1115 = vpop.f32.mrb[0].mxu0
  %1116 = vmatprep.mubr.bf16.mxu0 %v1062
  %1117 = vmatmul.mubr.bf16.gmra.mrb[0].mxu0 %v706
  %v1118 = vpop.f32.mrb[0].mxu0
  %v1119 = vadd.f32 %v948, %v1118
  %v1120 = vpop.f32.mrb[0].mxu0
  %v1121 = vpop.f32.mrb[0].mxu0
  %v1122 = vadd.f32 %v951, %v1121
  %v1123 = vpop.f32.mrb[0].mxu0
  %1124 = vmatprep.mubr.bf16.mxu0 %v1065
  %1125 = vmatmul.mubr.bf16.gmra.mrb[0].mxu0 %v708
  %v1126 = vpop.f32.mrb[0].mxu0
  %v1127 = vadd.f32 %v956, %v1126
  %v1128 = vpop.f32.mrb[0].mxu0
  %v1129 = vpop.f32.mrb[0].mxu0
  %v1130 = vadd.f32 %v959, %v1129
  %v1131 = vpop.f32.mrb[0].mxu0
  %1132 = vmatprep.mubr.bf16.mxu0 %v1068
  %1133 = vmatmul.mubr.bf16.gmra.mrb[0].mxu0 %v710
  %v1134 = vpop.f32.mrb[0].mxu0
  %v1135 = vadd.f32 %v964, %v1134
  %v1136 = vpop.f32.mrb[0].mxu0
  %v1137 = vpop.f32.mrb[0].mxu0
  %v1138 = vadd.f32 %v967, %v1137
  %v1139 = vpop.f32.mrb[0].mxu0
  %1140 = vmatprep.mubr.bf16.mxu0 %v1071
  %1141 = vmatmul.mubr.bf16.gmra.mrb[0].mxu0 %v712
  %v1142 = vpop.f32.mrb[0].mxu0
  %v1143 = vadd.f32 %v972, %v1142
  %v1144 = vpop.f32.mrb[0].mxu0
  %v1145 = vpop.f32.mrb[0].mxu0
  %v1146 = vadd.f32 %v975, %v1145
  %v1147 = vpop.f32.mrb[0].mxu0
  %1148 = vmatprep.mubr.bf16.mxu0 %v1074
  %1149 = vmatmul.mubr.bf16.gmra.mrb[0].mxu0 %v714
  %v1150 = vpop.f32.mrb[0].mxu0
  %v1151 = vadd.f32 %v980, %v1150
  %v1152 = vpop.f32.mrb[0].mxu0
  %v1153 = vpop.f32.mrb[0].mxu0
  %v1154 = vadd.f32 %v983, %v1153
  %v1155 = vpop.f32.mrb[0].mxu0
  %1156 = vdwg.mxu0
  %v1157 = vld [vmem:[#allocation2 + $0x60] sm:$0xff]
  %v1158 = vld [vmem:[#allocation2 + $0x68] sm:$0xff]
  %s1159 = scalar_lea.vmem %s4, 192
  %v1160 = vld [vmem:[%s1159] sm:$0xf]
  %v1161 = vld [vmem:[%s1159 + $0x4] sm:$0xf]
  %v1162 = vld [vmem:[%s1159 + $0x8] sm:$0xf]
  %v1163 = vld [vmem:[%s1159 + $0xc] sm:$0xf]
  %v1164 = vld [vmem:[%s1159 + $0x10] sm:$0xf]
  %v1165 = vld [vmem:[%s1159 + $0x14] sm:$0xf]
  %v1166 = vld [vmem:[%s1159 + $0x18] sm:$0xf]
  %v1167 = vld [vmem:[%s1159 + $0x1c] sm:$0xf]
  %v1168 = vld [vmem:[%s1159 + $0x20] sm:$0xf]
  %v1169 = vld [vmem:[%s1159 + $0x24] sm:$0xf]
  %v1170 = vld [vmem:[%s1159 + $0x28] sm:$0xf]
  %v1171 = vld [vmem:[%s1159 + $0x2c] sm:$0xf]
  %v1172 = vld [vmem:[%s1159 + $0x30] sm:$0xf]
  %v1173 = vld [vmem:[%s1159 + $0x34] sm:$0xf]
  %v1174 = vld [vmem:[%s1159 + $0x38] sm:$0xf]
  %v1175 = vld [vmem:[%s1159 + $0x3c] sm:$0xf]
  %v1176 = vld [vmem:[%s1159 + $0x40] sm:$0xf]
  %v1177 = vld [vmem:[%s1159 + $0x44] sm:$0xf]
  %v1178 = vld [vmem:[%s1159 + $0x48] sm:$0xf]
  %v1179 = vld [vmem:[%s1159 + $0x4c] sm:$0xf]
  %v1180 = vld [vmem:[%s1159 + $0x50] sm:$0xf]
  %v1181 = vld [vmem:[%s1159 + $0x54] sm:$0xf]
  %v1182 = vld [vmem:[%s1159 + $0x58] sm:$0xf]
  %v1183 = vld [vmem:[%s1159 + $0x5c] sm:$0xf]
  %v1208 = vunpack.c.l.b16 %v1160
  %v1209 = vunpack.c.l.b16 %v1161
  %v1210 = vunpack.c.l.b16 %v1162
  %v1211 = vunpack.c.l.b16 %v1163
  %v1212 = vunpack.c.l.b16 %v1164
  %v1213 = vunpack.c.l.b16 %v1165
  %v1214 = vunpack.c.l.b16 %v1166
  %v1215 = vunpack.c.l.b16 %v1167
  %v1216 = vunpack.c.l.b16 %v1168
  %v1217 = vunpack.c.l.b16 %v1169
  %v1218 = vunpack.c.l.b16 %v1170
  %v1219 = vunpack.c.l.b16 %v1171
  %v1220 = vunpack.c.l.b16 %v1172
  %v1221 = vunpack.c.l.b16 %v1173
  %v1222 = vunpack.c.l.b16 %v1174
  %v1223 = vunpack.c.l.b16 %v1175
  %v1224 = vunpack.c.l.b16 %v1176
  %v1225 = vunpack.c.l.b16 %v1177
  %v1226 = vunpack.c.l.b16 %v1178
  %v1227 = vunpack.c.l.b16 %v1179
  %v1228 = vunpack.c.l.b16 %v1180
  %v1229 = vunpack.c.l.b16 %v1181
  %v1230 = vunpack.c.l.b16 %v1182
  %v1231 = vunpack.c.l.b16 %v1183
  %v1232 = vpack.c.b16 %v1209, %v1208
  %v1233 = vpack.c.b16 %v1211, %v1210
  %v1234 = vpack.c.b16 %v1213, %v1212
  %v1235 = vpack.c.b16 %v1215, %v1214
  %v1236 = vpack.c.b16 %v1217, %v1216
  %v1237 = vpack.c.b16 %v1219, %v1218
  %v1238 = vpack.c.b16 %v1221, %v1220
  %v1239 = vpack.c.b16 %v1223, %v1222
  %v1240 = vpack.c.b16 %v1225, %v1224
  %v1241 = vpack.c.b16 %v1227, %v1226
  %v1242 = vpack.c.b16 %v1229, %v1228
  %v1243 = vpack.c.b16 %v1231, %v1230
  %v1257 = vsel %vm43, %v1158, 0
  %1259 = vmatprep.subr.bf16.mxu0 0
  %1260 = vmatpush1.bf16.msra.mxu0 %v1232
  %1261 = vmatprep.subr.bf16.mxu0 0
  %1262 = vmatpush1.bf16.msra.mxu0 %v1233
  %1263 = vmatprep.subr.bf16.mxu0 0
  %1264 = vmatpush1.bf16.msra.mxu0 %v1234
  %1265 = vmatprep.subr.bf16.mxu0 0
  %1266 = vmatpush1.bf16.msra.mxu0 %v1235
  %1267 = vmatprep.subr.bf16.mxu0 0
  %1268 = vmatpush1.bf16.msra.mxu0 %v1236
  %1269 = vmatprep.subr.bf16.mxu0 0
  %1270 = vmatpush1.bf16.msra.mxu0 %v1237
  %1271 = vmatprep.subr.bf16.mxu0 0
  %1272 = vmatpush1.bf16.msra.mxu0 %v1238
  %1273 = vmatprep.subr.bf16.mxu0 0
  %1274 = vmatpush1.bf16.msra.mxu0 %v1239
  %1275 = vmatprep.subr.bf16.mxu0 0
  %1276 = vmatpush1.bf16.msra.mxu0 %v1240
  %1277 = vmatprep.subr.bf16.mxu0 0
  %1278 = vmatpush1.bf16.msra.mxu0 %v1241
  %1279 = vmatprep.subr.bf16.mxu0 0
  %1280 = vmatpush1.bf16.msra.mxu0 %v1242
  %1281 = vmatprep.subr.bf16.mxu0 0
  %1282 = vmatpush1.bf16.msra.mxu0 %v1243
  %1283 = vmatprep.subr.bf16.mxu0 0
  %1284 = vmatpush1.bf16.msra.mxu0 0
  %1285 = vmatprep.subr.bf16.mxu0 0
  %1286 = vmatpush1.bf16.msra.mxu0 0
  %1287 = vmatprep.subr.bf16.mxu0 0
  %1288 = vmatpush1.bf16.msra.mxu0 0
  %1289 = vmatprep.subr.bf16.mxu0 0
  %1290 = vmatpush1.bf16.msra.mxu0 0
  %1291 = vmatprep.mubr.bf16.mxu0 %v1062
  %1292 = vmatmul.mubr.bf16.gmra.mrb[0].mxu0 %v706
  %v1293 = vpop.f32.mrb[0].mxu0
  %v1294 = vadd.f32 0.0, %v1293
  %v1295 = vpop.f32.mrb[0].mxu0
  %v1296 = vpop.f32.mrb[0].mxu0
  %v1297 = vadd.f32 0.0, %v1296
  %v1298 = vpop.f32.mrb[0].mxu0
  %1299 = vmatprep.mubr.bf16.mxu0 %v1065
  %1300 = vmatmul.mubr.bf16.gmra.mrb[0].mxu0 %v708
  %v1301 = vpop.f32.mrb[0].mxu0
  %v1302 = vadd.f32 0.0, %v1301
  %v1303 = vpop.f32.mrb[0].mxu0
  %v1304 = vpop.f32.mrb[0].mxu0
  %v1305 = vadd.f32 0.0, %v1304
  %v1306 = vpop.f32.mrb[0].mxu0
  %1307 = vmatprep.mubr.bf16.mxu0 %v1068
  %1308 = vmatmul.mubr.bf16.gmra.mrb[0].mxu0 %v710
  %v1309 = vpop.f32.mrb[0].mxu0
  %v1310 = vadd.f32 0.0, %v1309
  %v1311 = vpop.f32.mrb[0].mxu0
  %v1312 = vpop.f32.mrb[0].mxu0
  %v1313 = vadd.f32 0.0, %v1312
  %v1314 = vpop.f32.mrb[0].mxu0
  %1315 = vmatprep.mubr.bf16.mxu0 %v1071
  %1316 = vmatmul.mubr.bf16.gmra.mrb[0].mxu0 %v712
  %v1317 = vpop.f32.mrb[0].mxu0
  %v1318 = vadd.f32 0.0, %v1317
  %v1319 = vpop.f32.mrb[0].mxu0
  %v1320 = vpop.f32.mrb[0].mxu0
  %v1321 = vadd.f32 0.0, %v1320
  %v1322 = vpop.f32.mrb[0].mxu0
  %1323 = vmatprep.mubr.bf16.mxu0 %v1074
  %1324 = vmatmul.mubr.bf16.gmra.mrb[0].mxu0 %v714
  %v1325 = vpop.f32.mrb[0].mxu0
  %v1326 = vadd.f32 0.0, %v1325
  %v1327 = vpop.f32.mrb[0].mxu0
  %v1328 = vpop.f32.mrb[0].mxu0
  %v1329 = vadd.f32 0.0, %v1328
  %v1330 = vpop.f32.mrb[0].mxu0
  %1331 = vmatprep.mubr.bf16.mxu0 %v1257
  %1332 = vmatmul.mubr.bf16.gmra.mrb[0].mxu0 %v1157
  %v1333 = vpop.f32.mrb[0].mxu0
  %v1334 = vadd.f32 0.0, %v1333
  %v1335 = vpop.f32.mrb[0].mxu0
  %v1336 = vpop.f32.mrb[0].mxu0
  %v1337 = vadd.f32 0.0, %v1336
  %v1338 = vpop.f32.mrb[0].mxu0
  %1339 = vdwg.mxu0
  %v1340 = vadd.f32 %v1111, %v1294
  %v1341 = vadd.f32 %v1114, %v1297
  %v1342 = vadd.f32 %v1119, %v1302
  %v1343 = vadd.f32 %v1122, %v1305
  %v1344 = vadd.f32 %v1127, %v1310
  %v1345 = vadd.f32 %v1130, %v1313
  %v1346 = vadd.f32 %v1135, %v1318
  %v1347 = vadd.f32 %v1138, %v1321
  %v1348 = vadd.f32 %v1143, %v1326
  %v1349 = vadd.f32 %v1146, %v1329
  %v1350 = vadd.f32 %v1151, %v1334
  %v1351 = vadd.f32 %v1154, %v1337
  %v1352 = vld [vmem:[%s5] sm:$0x1]
  %v1353 = vld [vmem:[%s6] sm:$0x1]
  %v1354 = vmul.f32 %v1340, %v226
  %v1355 = vmul.f32 %v1341, %v231
  %v1356 = vmul.f32 %v1342, %v236
  %v1357 = vmul.f32 %v1343, %v241
  %v1358 = vmul.f32 %v1344, %v246
  %v1359 = vmul.f32 %v1345, %v251
  %v1360 = vmul.f32 %v1346, %v256
  %v1361 = vmul.f32 %v1347, %v261
  %v1362 = vmul.f32 %v1348, %v266
  %v1363 = vmul.f32 %v1349, %v271
  %v1364 = vmul.f32 %v1350, %v276
  %v1365 = vmul.f32 %v1351, %v281
  %v1366 = vsel %vm410, %v1354, 0.0
  %v1367 = vsel %vm410, %v1355, 0.0
  %v1368 = vadd.f32 %v1366, %v1367
  %v1369 = vsel %vm410, %v1356, 0.0
  %v1370 = vadd.f32 %v1368, %v1369
  %v1371 = vsel %vm410, %v1357, 0.0
  %v1372 = vadd.f32 %v1370, %v1371
  %v1373 = vsel %vm410, %v1358, 0.0
  %v1374 = vadd.f32 %v1372, %v1373
  %v1375 = vsel %vm410, %v1359, 0.0
  %v1376 = vadd.f32 %v1374, %v1375
  %v1377 = vsel %vm410, %v1360, 0.0
  %v1378 = vadd.f32 %v1376, %v1377
  %v1379 = vsel %vm410, %v1361, 0.0
  %v1380 = vadd.f32 %v1378, %v1379
  %v1381 = vsel %vm410, %v1362, 0.0
  %v1382 = vadd.f32 %v1380, %v1381
  %v1383 = vsel %vm410, %v1363, 0.0
  %v1384 = vadd.f32 %v1382, %v1383
  %v1385 = vsel %vm410, %v1364, 0.0
  %v1386 = vadd.f32 %v1384, %v1385
  %v1387 = vsel %vm410, %v1365, 0.0
  %v1388 = vadd.f32 %v1386, %v1387
  %v1389 = vrot.slane %v1388, 4
  %v1390 = vadd.f32 %v1388, %v1389
  %v1391 = vrot.slane %v1390, 2
  %v1392 = vadd.f32 %v1390, %v1391
  %v1393 = vrot.slane %v1392, 1
  %v1394 = vadd.f32 %v1392, %v1393
  %v1396 = vsel %vm410, %v1394, 0
  %1398 = vmatprep.subr.mxu0 0.0
  %1399 = vmatpush1.msra.mxu0 %v62
  %1400 = vmatprep.subr.mxu0 0.0
  %1401 = vmatpush1.msra.mxu0 %v63
  %1402 = vmatprep.subr.mxu0 0.0
  %1403 = vmatpush1.msra.mxu0 %v64
  %1404 = vmatprep.subr.mxu0 0.0
  %1405 = vmatpush1.msra.mxu0 %v65
  %1406 = vmatprep.subr.mxu0 0.0
  %1407 = vmatpush1.msra.mxu0 0.0
  %1408 = vmatprep.subr.mxu0 0.0
  %1409 = vmatpush1.msra.mxu0 0.0
  %1410 = vmatprep.subr.mxu0 0.0
  %1411 = vmatpush1.msra.mxu0 0.0
  %1412 = vmatprep.subr.mxu0 0.0
  %1413 = vmatpush1.msra.mxu0 0.0
  %1414 = vmatprep.subr.mxu0 0.0
  %1415 = vmatpush1.msra.mxu0 0.0
  %1416 = vmatprep.subr.mxu0 0.0
  %1417 = vmatpush1.msra.mxu0 0.0
  %1418 = vmatprep.subr.mxu0 0.0
  %1419 = vmatpush1.msra.mxu0 0.0
  %1420 = vmatprep.subr.mxu0 0.0
  %1421 = vmatpush1.msra.mxu0 0.0
  %1422 = vmatprep.subr.mxu0 0.0
  %1423 = vmatpush1.msra.mxu0 0.0
  %1424 = vmatprep.subr.mxu0 0.0
  %1425 = vmatpush1.msra.mxu0 0.0
  %1426 = vmatprep.subr.mxu0 0.0
  %1427 = vmatpush1.msra.mxu0 0.0
  %1428 = vmatprep.subr.mxu0 0.0
  %1429 = vmatpush1.msra.mxu0 0.0
  %1430 = vmatprep.subr.mxu0 0.0
  %1431 = vmatpush1.msra.mxu0 0.0
  %1432 = vmatprep.subr.mxu0 0.0
  %1433 = vmatpush1.msra.mxu0 0.0
  %1434 = vmatprep.subr.mxu0 0.0
  %1435 = vmatpush1.msra.mxu0 0.0
  %1436 = vmatprep.subr.mxu0 0.0
  %1437 = vmatpush1.msra.mxu0 0.0
  %1438 = vmatprep.subr.mxu0 0.0
  %1439 = vmatpush1.msra.mxu0 0.0
  %1440 = vmatprep.subr.mxu0 0.0
  %1441 = vmatpush1.msra.mxu0 0.0
  %1442 = vmatprep.subr.mxu0 0.0
  %1443 = vmatpush1.msra.mxu0 0.0
  %1444 = vmatprep.subr.mxu0 0.0
  %1445 = vmatpush1.msra.mxu0 0.0
  %1446 = vmatprep.subr.mxu0 0.0
  %1447 = vmatpush1.msra.mxu0 0.0
  %1448 = vmatprep.subr.mxu0 0.0
  %1449 = vmatpush1.msra.mxu0 0.0
  %1450 = vmatprep.subr.mxu0 0.0
  %1451 = vmatpush1.msra.mxu0 0.0
  %1452 = vmatprep.subr.mxu0 0.0
  %1453 = vmatpush1.msra.mxu0 0.0
  %1454 = vmatprep.subr.mxu0 0.0
  %1455 = vmatpush1.msra.mxu0 0.0
  %1456 = vmatprep.subr.mxu0 0.0
  %1457 = vmatpush1.msra.mxu0 0.0
  %1458 = vmatprep.subr.mxu0 0.0
  %1459 = vmatpush1.msra.mxu0 0.0
  %1460 = vmatprep.subr.mxu0 0.0
  %1461 = vmatpush1.msra.mxu0 0.0
  %1462 = vmatprep.mubr.f32.mxu0 0.0
  %1463 = vmatmul.mubr.f32.gmra.mrb[0].mxu0 %v1396
  %v1464 = vpop.f32.mrb[0].mxu0
  %v1465 = vadd.f32 0.0, %v1464
  %v1466 = vpop.f32.mrb[0].mxu0
  %1467 = vdwg.mxu0
  %v1468 = vmul.f32 %v1354, %v1354
  %v1469 = vmul.f32 %v1355, %v1355
  %v1470 = vmul.f32 %v1356, %v1356
  %v1471 = vmul.f32 %v1357, %v1357
  %v1472 = vmul.f32 %v1358, %v1358
  %v1473 = vmul.f32 %v1359, %v1359
  %v1474 = vmul.f32 %v1360, %v1360
  %v1475 = vmul.f32 %v1361, %v1361
  %v1476 = vmul.f32 %v1362, %v1362
  %v1477 = vmul.f32 %v1363, %v1363
  %v1478 = vmul.f32 %v1364, %v1364
  %v1479 = vmul.f32 %v1365, %v1365
  %v1480 = vsel %vm410, %v1468, 0.0
  %v1481 = vsel %vm410, %v1469, 0.0
  %v1482 = vadd.f32 %v1480, %v1481
  %v1483 = vsel %vm410, %v1470, 0.0
  %v1484 = vadd.f32 %v1482, %v1483
  %v1485 = vsel %vm410, %v1471, 0.0
  %v1486 = vadd.f32 %v1484, %v1485
  %v1487 = vsel %vm410, %v1472, 0.0
  %v1488 = vadd.f32 %v1486, %v1487
  %v1489 = vsel %vm410, %v1473, 0.0
  %v1490 = vadd.f32 %v1488, %v1489
  %v1491 = vsel %vm410, %v1474, 0.0
  %v1492 = vadd.f32 %v1490, %v1491
  %v1493 = vsel %vm410, %v1475, 0.0
  %v1494 = vadd.f32 %v1492, %v1493
  %v1495 = vsel %vm410, %v1476, 0.0
  %v1496 = vadd.f32 %v1494, %v1495
  %v1497 = vsel %vm410, %v1477, 0.0
  %v1498 = vadd.f32 %v1496, %v1497
  %v1499 = vsel %vm410, %v1478, 0.0
  %v1500 = vadd.f32 %v1498, %v1499
  %v1501 = vsel %vm410, %v1479, 0.0
  %v1502 = vadd.f32 %v1500, %v1501
  %v1503 = vrot.slane %v1502, 4
  %v1504 = vadd.f32 %v1502, %v1503
  %v1505 = vrot.slane %v1504, 2
  %v1506 = vadd.f32 %v1504, %v1505
  %v1507 = vrot.slane %v1506, 1
  %v1508 = vadd.f32 %v1506, %v1507
  %v1510 = vsel %vm410, %v1508, 0
  %1512 = vmatprep.subr.mxu0 0.0
  %1513 = vmatpush1.msra.mxu0 %v62
  %1514 = vmatprep.subr.mxu0 0.0
  %1515 = vmatpush1.msra.mxu0 %v63
  %1516 = vmatprep.subr.mxu0 0.0
  %1517 = vmatpush1.msra.mxu0 %v64
  %1518 = vmatprep.subr.mxu0 0.0
  %1519 = vmatpush1.msra.mxu0 %v65
  %1520 = vmatprep.subr.mxu0 0.0
  %1521 = vmatpush1.msra.mxu0 0.0
  %1522 = vmatprep.subr.mxu0 0.0
  %1523 = vmatpush1.msra.mxu0 0.0
  %1524 = vmatprep.subr.mxu0 0.0
  %1525 = vmatpush1.msra.mxu0 0.0
  %1526 = vmatprep.subr.mxu0 0.0
  %1527 = vmatpush1.msra.mxu0 0.0
  %1528 = vmatprep.subr.mxu0 0.0
  %1529 = vmatpush1.msra.mxu0 0.0
  %1530 = vmatprep.subr.mxu0 0.0
  %1531 = vmatpush1.msra.mxu0 0.0
  %1532 = vmatprep.subr.mxu0 0.0
  %1533 = vmatpush1.msra.mxu0 0.0
  %1534 = vmatprep.subr.mxu0 0.0
  %1535 = vmatpush1.msra.mxu0 0.0
  %1536 = vmatprep.subr.mxu0 0.0
  %1537 = vmatpush1.msra.mxu0 0.0
  %1538 = vmatprep.subr.mxu0 0.0
  %1539 = vmatpush1.msra.mxu0 0.0
  %1540 = vmatprep.subr.mxu0 0.0
  %1541 = vmatpush1.msra.mxu0 0.0
  %1542 = vmatprep.subr.mxu0 0.0
  %1543 = vmatpush1.msra.mxu0 0.0
  %1544 = vmatprep.subr.mxu0 0.0
  %1545 = vmatpush1.msra.mxu0 0.0
  %1546 = vmatprep.subr.mxu0 0.0
  %1547 = vmatpush1.msra.mxu0 0.0
  %1548 = vmatprep.subr.mxu0 0.0
  %1549 = vmatpush1.msra.mxu0 0.0
  %1550 = vmatprep.subr.mxu0 0.0
  %1551 = vmatpush1.msra.mxu0 0.0
  %1552 = vmatprep.subr.mxu0 0.0
  %1553 = vmatpush1.msra.mxu0 0.0
  %1554 = vmatprep.subr.mxu0 0.0
  %1555 = vmatpush1.msra.mxu0 0.0
  %1556 = vmatprep.subr.mxu0 0.0
  %1557 = vmatpush1.msra.mxu0 0.0
  %1558 = vmatprep.subr.mxu0 0.0
  %1559 = vmatpush1.msra.mxu0 0.0
  %1560 = vmatprep.subr.mxu0 0.0
  %1561 = vmatpush1.msra.mxu0 0.0
  %1562 = vmatprep.subr.mxu0 0.0
  %1563 = vmatpush1.msra.mxu0 0.0
  %1564 = vmatprep.subr.mxu0 0.0
  %1565 = vmatpush1.msra.mxu0 0.0
  %1566 = vmatprep.subr.mxu0 0.0
  %1567 = vmatpush1.msra.mxu0 0.0
  %1568 = vmatprep.subr.mxu0 0.0
  %1569 = vmatpush1.msra.mxu0 0.0
  %1570 = vmatprep.subr.mxu0 0.0
  %1571 = vmatpush1.msra.mxu0 0.0
  %1572 = vmatprep.subr.mxu0 0.0
  %1573 = vmatpush1.msra.mxu0 0.0
  %1574 = vmatprep.subr.mxu0 0.0
  %1575 = vmatpush1.msra.mxu0 0.0
  %1576 = vmatprep.mubr.f32.mxu0 0.0
  %1577 = vmatmul.mubr.f32.gmra.mrb[0].mxu0 %v1510
  %v1578 = vpop.f32.mrb[0].mxu0
  %v1579 = vadd.f32 0.0, %v1578
  %v1580 = vpop.f32.mrb[0].mxu0
  %1581 = vdwg.mxu0
  %v1582 = vmul.f32 %v1465, 0.0078125
  %v1583 = vmul.f32 %v1579, 0.0078125
  %v1584 = vmul.f32 %v1582, %v1582
  %v1585 = vsub.f32 %v1583, %v1584
  %v1586 = vmax.f32 %v1585, 0.0
  %v1587 = vadd.f32 %v1586, 1e-05
  %v1588 = vrsqrt.pop %v1587
  %v1589 = vmul.f32 %v1352, %v1588
  %v1590 = vmul.f32 %v1582, %v1589
  %v1591 = vsub.f32 %v1353, %v1590
  %v1593 = vlaneseq
  %v1594 = vshrl.u32 %v1593, 7
  %v1595 = vsub.s32 0, %v1594
  %v1596 = vrot.slane %v1589, %v1595
  %v1598 = vmul.f32 %v1340, %v1596
  %v1599 = vmul.f32 %v1341, %v1596
  %v1600 = vmul.f32 %v1342, %v1596
  %v1601 = vmul.f32 %v1343, %v1596
  %v1602 = vmul.f32 %v1344, %v1596
  %v1603 = vmul.f32 %v1345, %v1596
  %v1604 = vmul.f32 %v1346, %v1596
  %v1605 = vmul.f32 %v1347, %v1596
  %v1606 = vmul.f32 %v1348, %v1596
  %v1607 = vmul.f32 %v1349, %v1596
  %v1608 = vmul.f32 %v1350, %v1596
  %v1609 = vmul.f32 %v1351, %v1596
  %v1611 = vlaneseq
  %v1612 = vshrl.u32 %v1611, 7
  %v1613 = vsub.s32 0, %v1612
  %v1614 = vrot.slane %v1591, %v1613
  %v1616 = vadd.f32 %v1598, %v1614
  %v1617 = vadd.f32 %v1599, %v1614
  %v1618 = vadd.f32 %v1600, %v1614
  %v1619 = vadd.f32 %v1601, %v1614
  %v1620 = vadd.f32 %v1602, %v1614
  %v1621 = vadd.f32 %v1603, %v1614
  %v1622 = vadd.f32 %v1604, %v1614
  %v1623 = vadd.f32 %v1605, %v1614
  %v1624 = vadd.f32 %v1606, %v1614
  %v1625 = vadd.f32 %v1607, %v1614
  %v1626 = vadd.f32 %v1608, %v1614
  %v1627 = vadd.f32 %v1609, %v1614
  %v1628 = vmax.f32 %v1616, 0.0
  %v1629 = vmax.f32 %v1617, 0.0
  %v1630 = vmax.f32 %v1618, 0.0
  %v1631 = vmax.f32 %v1619, 0.0
  %v1632 = vmax.f32 %v1620, 0.0
  %v1633 = vmax.f32 %v1621, 0.0
  %v1634 = vmax.f32 %v1622, 0.0
  %v1635 = vmax.f32 %v1623, 0.0
  %v1636 = vmax.f32 %v1624, 0.0
  %v1637 = vmax.f32 %v1625, 0.0
  %v1638 = vmax.f32 %v1626, 0.0
  %v1639 = vmax.f32 %v1627, 0.0
  %v1640 = vmul.f32 %v1628, %v226
  %v1641 = vmul.f32 %v1629, %v231
  %v1642 = vmul.f32 %v1630, %v236
  %v1643 = vmul.f32 %v1631, %v241
  %v1644 = vmul.f32 %v1632, %v246
  %v1645 = vmul.f32 %v1633, %v251
  %v1646 = vmul.f32 %v1634, %v256
  %v1647 = vmul.f32 %v1635, %v261
  %v1648 = vmul.f32 %v1636, %v266
  %v1649 = vmul.f32 %v1637, %v271
  %v1650 = vmul.f32 %v1638, %v276
  %v1651 = vmul.f32 %v1639, %v281
  %v1652 = vpack.c.bf16 %v1641, %v1640
  %v1653 = vpack.c.bf16 %v1643, %v1642
  %v1654 = vpack.c.bf16 %v1645, %v1644
  %v1655 = vpack.c.bf16 %v1647, %v1646
  %v1656 = vpack.c.bf16 %v1649, %v1648
  %v1657 = vpack.c.bf16 %v1651, %v1650
  %v1659 = vshrl.u32 %v1652, 16
  %v1661 = vrot.slane %v1659, 3
  %v1662 = vshll.u32 %v1652, 16
  %v1664 = vrot.slane %v1662, 4
  %v1665 = vor.u32 %v1661, %v1664
  %v1667 = vshrl.u32 %v1653, 16
  %v1669 = vrot.slane %v1667, 3
  %v1670 = vshll.u32 %v1653, 16
  %v1672 = vrot.slane %v1670, 4
  %v1673 = vor.u32 %v1669, %v1672
  %v1674 = vsel %vm343, %v1665, %v1673
  %v1676 = vshrl.u32 %v1654, 16
  %v1678 = vrot.slane %v1676, 3
  %v1679 = vshll.u32 %v1654, 16
  %v1681 = vrot.slane %v1679, 4
  %v1682 = vor.u32 %v1678, %v1681
  %v1683 = vsel %vm343, %v1673, %v1682
  %v1685 = vshrl.u32 %v1655, 16
  %v1687 = vrot.slane %v1685, 3
  %v1688 = vshll.u32 %v1655, 16
  %v1690 = vrot.slane %v1688, 4
  %v1691 = vor.u32 %v1687, %v1690
  %v1692 = vsel %vm343, %v1682, %v1691
  %v1694 = vshrl.u32 %v1656, 16
  %v1696 = vrot.slane %v1694, 3
  %v1697 = vshll.u32 %v1656, 16
  %v1699 = vrot.slane %v1697, 4
  %v1700 = vor.u32 %v1696, %v1699
  %v1701 = vsel %vm343, %v1691, %v1700
  %v1703 = vshrl.u32 %v1657, 16
  %v1705 = vrot.slane %v1703, 3
  %v1706 = vshll.u32 %v1657, 16
  %v1708 = vrot.slane %v1706, 4
  %v1709 = vor.u32 %v1705, %v1708
  %v1710 = vsel %vm343, %v1700, %v1709
  %v1718 = vld [vmem:[#allocation3] sm:$0xf0]
  %v1719 = vsel %vm406, %v1665, %v1718
  %1720 = vst [vmem:[#allocation3] sm:$0xf0] %v1719
  %1721 = vst.msk [vmem:[#allocation3 + $0x8] sm:$0xff] %vm410, %v1674
  %1722 = vst.msk [vmem:[#allocation3 + $0x10] sm:$0xff] %vm410, %v1683
  %1723 = vst.msk [vmem:[#allocation3 + $0x18] sm:$0xff] %vm410, %v1692
  %1724 = vst.msk [vmem:[#allocation3 + $0x20] sm:$0xff] %vm410, %v1701
  %1725 = vst.msk [vmem:[#allocation3 + $0x28] sm:$0xff] %vm410, %v1710
  %v1726 = vld [vmem:[#allocation3 + $0x30] sm:$0x1f]
  %v1727 = vsel %vm417, %v1709, %v1726
  %1728 = vst [vmem:[#allocation3 + $0x30] sm:$0x1f] %v1727
  %v1735 = vrot.slane %v1652, 4
  %v1736 = vrot.slane %v1653, 4
  %v1737 = vsel %vm555, %v1735, %v1736
  %v1738 = vrot.slane %v1654, 4
  %v1739 = vsel %vm555, %v1736, %v1738
  %v1740 = vrot.slane %v1655, 4
  %v1741 = vsel %vm555, %v1738, %v1740
  %v1742 = vrot.slane %v1656, 4
  %v1743 = vsel %vm555, %v1740, %v1742
  %v1744 = vrot.slane %v1657, 4
  %v1745 = vsel %vm555, %v1742, %v1744
  %1746 = vrot.lane.b32.xlu0 %v1735, 32
  %v1747 = vpop.permute.xlu0 %1746
  %1748 = vrot.lane.b32.xlu0 %v1737, 32
  %v1749 = vpop.permute.xlu0 %1748
  %1750 = vrot.lane.b32.xlu0 %v1739, 32
  %v1751 = vpop.permute.xlu0 %1750
  %1752 = vrot.lane.b32.xlu0 %v1741, 32
  %v1753 = vpop.permute.xlu0 %1752
  %1754 = vrot.lane.b32.xlu0 %v1743, 32
  %v1755 = vpop.permute.xlu0 %1754
  %1756 = vrot.lane.b32.xlu0 %v1745, 32
  %v1757 = vpop.permute.xlu0 %1756
  %1758 = vrot.lane.b32.xlu0 %v1744, 32
  %v1759 = vpop.permute.xlu0 %1758
  %vm1767 = vcmask 523524
  %1768 = vst.msk [vmem:[#allocation3] sm:$0xf0] %vm1767, %v1747
  %1769 = vst.msk [vmem:[#allocation3 + $0x8] sm:$0xff] %vm500, %v1749
  %1770 = vst.msk [vmem:[#allocation3 + $0x10] sm:$0xff] %vm500, %v1751
  %1771 = vst.msk [vmem:[#allocation3 + $0x18] sm:$0xff] %vm500, %v1753
  %1772 = vst.msk [vmem:[#allocation3 + $0x20] sm:$0xff] %vm500, %v1755
  %1773 = vst.msk [vmem:[#allocation3 + $0x28] sm:$0xff] %vm500, %v1757
  %vm1774 = vcmask 519424
  %1775 = vst.msk [vmem:[#allocation3 + $0x30] sm:$0xf] %vm1774, %v1759
  %v1776 = vrot.slane %v1659, 4
  %v1777 = vrot.slane %v1662, 5
  %v1778 = vor.u32 %v1776, %v1777
  %v1779 = vrot.slane %v1667, 4
  %v1780 = vrot.slane %v1670, 5
  %v1781 = vor.u32 %v1779, %v1780
  %v1782 = vsel %vm598, %v1778, %v1781
  %v1783 = vrot.slane %v1676, 4
  %v1784 = vrot.slane %v1679, 5
  %v1785 = vor.u32 %v1783, %v1784
  %v1786 = vsel %vm598, %v1781, %v1785
  %v1787 = vrot.slane %v1685, 4
  %v1788 = vrot.slane %v1688, 5
  %v1789 = vor.u32 %v1787, %v1788
  %v1790 = vsel %vm598, %v1785, %v1789
  %v1791 = vrot.slane %v1694, 4
  %v1792 = vrot.slane %v1697, 5
  %v1793 = vor.u32 %v1791, %v1792
  %v1794 = vsel %vm598, %v1789, %v1793
  %v1795 = vrot.slane %v1703, 4
  %v1796 = vrot.slane %v1706, 5
  %v1797 = vor.u32 %v1795, %v1796
  %v1798 = vsel %vm598, %v1793, %v1797
  %1799 = vrot.lane.b32.xlu0 %v1778, 64
  %v1800 = vpop.permute.xlu0 %1799
  %1801 = vrot.lane.b32.xlu0 %v1782, 64
  %v1802 = vpop.permute.xlu0 %1801
  %1803 = vrot.lane.b32.xlu0 %v1786, 64
  %v1804 = vpop.permute.xlu0 %1803
  %1805 = vrot.lane.b32.xlu0 %v1790, 64
  %v1806 = vpop.permute.xlu0 %1805
  %1807 = vrot.lane.b32.xlu0 %v1794, 64
  %v1808 = vpop.permute.xlu0 %1807
  %1809 = vrot.lane.b32.xlu0 %v1798, 64
  %v1810 = vpop.permute.xlu0 %1809
  %1811 = vrot.lane.b32.xlu0 %v1797, 64
  %v1812 = vpop.permute.xlu0 %1811
  %vm1820 = vcmask 785923
  %vm1821 = vmand %vm1820, %vm630
  %v1822 = vld [vmem:[#allocation3] sm:$0xf8]
  %v1823 = vsel %vm1821, %v1800, %v1822
  %1824 = vst [vmem:[#allocation3] sm:$0xf8] %v1823
  %1825 = vst.msk [vmem:[#allocation3 + $0x8] sm:$0xff] %vm541, %v1802
  %1826 = vst.msk [vmem:[#allocation3 + $0x10] sm:$0xff] %vm541, %v1804
  %1827 = vst.msk [vmem:[#allocation3 + $0x18] sm:$0xff] %vm541, %v1806
  %1828 = vst.msk [vmem:[#allocation3 + $0x20] sm:$0xff] %vm541, %v1808
  %1829 = vst.msk [vmem:[#allocation3 + $0x28] sm:$0xff] %vm541, %v1810
  %vm1830 = vcmask 781824
  %vm1831 = vmand %vm1830, %vm598
  %v1832 = vld [vmem:[#allocation3 + $0x30] sm:$0xf]
  %v1833 = vsel %vm1831, %v1812, %v1832
  %1834 = vst [vmem:[#allocation3 + $0x30] sm:$0xf] %v1833
  %v1835 = vld [vmem:[#allocation3] sm:$0xff]
  %v1836 = vld [vmem:[#allocation3 + $0x8] sm:$0xff]
  %v1837 = vld [vmem:[#allocation3 + $0x10] sm:$0xff]
  %v1838 = vld [vmem:[#allocation3 + $0x18] sm:$0xff]
  %v1839 = vld [vmem:[#allocation3 + $0x20] sm:$0xff]
  %v1840 = vld [vmem:[#allocation3 + $0x28] sm:$0xff]
  %v1841 = vld [vmem:[%s7] sm:$0xf]
  %v1842 = vld [vmem:[%s7 + $0x4] sm:$0xf]
  %v1843 = vld [vmem:[%s7 + $0x8] sm:$0xf]
  %v1844 = vld [vmem:[%s7 + $0xc] sm:$0xf]
  %v1845 = vld [vmem:[%s7 + $0x10] sm:$0xf]
  %v1846 = vld [vmem:[%s7 + $0x14] sm:$0xf]
  %v1847 = vld [vmem:[%s7 + $0x18] sm:$0xf]
  %v1848 = vld [vmem:[%s7 + $0x1c] sm:$0xf]
  %v1849 = vld [vmem:[%s7 + $0x20] sm:$0xf]
  %v1850 = vld [vmem:[%s7 + $0x24] sm:$0xf]
  %v1851 = vld [vmem:[%s7 + $0x28] sm:$0xf]
  %v1852 = vld [vmem:[%s7 + $0x2c] sm:$0xf]
  %v1853 = vld [vmem:[#allocation3] sm:$0xf0]
  %v1854 = vld [vmem:[#allocation3 + $0x30] sm:$0xf]
  %s1855 = scalar_lea.vmem %s7, 48
  %v1856 = vld [vmem:[%s1855] sm:$0xf]
  %v1857 = vld [vmem:[%s1855 + $0x4] sm:$0xf]
  %v1858 = vld [vmem:[%s1855 + $0x8] sm:$0xf]
  %v1859 = vld [vmem:[%s1855 + $0xc] sm:$0xf]
  %v1860 = vld [vmem:[%s1855 + $0x10] sm:$0xf]
  %v1861 = vld [vmem:[%s1855 + $0x14] sm:$0xf]
  %v1862 = vld [vmem:[%s1855 + $0x18] sm:$0xf]
  %v1863 = vld [vmem:[%s1855 + $0x1c] sm:$0xf]
  %v1864 = vld [vmem:[%s1855 + $0x20] sm:$0xf]
  %v1865 = vld [vmem:[%s1855 + $0x24] sm:$0xf]
  %v1866 = vld [vmem:[%s1855 + $0x28] sm:$0xf]
  %v1867 = vld [vmem:[%s1855 + $0x2c] sm:$0xf]
  %v1875 = vrot.slane %v1853, 4
  %v1876 = vrot.slane %v1836, 4
  %v1877 = vsel %vm555, %v1875, %v1876
  %v1878 = vrot.slane %v1837, 4
  %v1879 = vsel %vm555, %v1876, %v1878
  %v1880 = vrot.slane %v1838, 4
  %v1881 = vsel %vm555, %v1878, %v1880
  %v1882 = vrot.slane %v1839, 4
  %v1883 = vsel %vm555, %v1880, %v1882
  %v1884 = vrot.slane %v1840, 4
  %v1885 = vsel %vm555, %v1882, %v1884
  %v1886 = vrot.slane %v1854, 4
  %v1887 = vsel %vm555, %v1884, %v1886
  %v1900 = vunpack.c.l.b16 %v1856
  %v1901 = vunpack.c.l.b16 %v1857
  %v1902 = vunpack.c.l.b16 %v1858
  %v1903 = vunpack.c.l.b16 %v1859
  %v1904 = vunpack.c.l.b16 %v1860
  %v1905 = vunpack.c.l.b16 %v1861
  %v1906 = vunpack.c.l.b16 %v1862
  %v1907 = vunpack.c.l.b16 %v1863
  %v1908 = vunpack.c.l.b16 %v1864
  %v1909 = vunpack.c.l.b16 %v1865
  %v1910 = vunpack.c.l.b16 %v1866
  %v1911 = vunpack.c.l.b16 %v1867
  %v1912 = vpack.c.b16 %v1901, %v1900
  %v1913 = vpack.c.b16 %v1903, %v1902
  %v1914 = vpack.c.b16 %v1905, %v1904
  %v1915 = vpack.c.b16 %v1907, %v1906
  %v1916 = vpack.c.b16 %v1909, %v1908
  %v1917 = vpack.c.b16 %v1911, %v1910
  %v1925 = vsel %vm47, %v1877, 0
  %v1928 = vsel %vm47, %v1879, 0
  %v1931 = vsel %vm47, %v1881, 0
  %v1934 = vsel %vm47, %v1883, 0
  %v1937 = vsel %vm47, %v1885, 0
  %v1940 = vsel %vm47, %v1887, 0
  %1942 = vmatprep.subr.bf16.mxu0 0
  %1943 = vmatpush1.bf16.msra.mxu0 %v1912
  %1944 = vmatprep.subr.bf16.mxu0 0
  %1945 = vmatpush1.bf16.msra.mxu0 %v1913
  %1946 = vmatprep.subr.bf16.mxu0 0
  %1947 = vmatpush1.bf16.msra.mxu0 %v1914
  %1948 = vmatprep.subr.bf16.mxu0 0
  %1949 = vmatpush1.bf16.msra.mxu0 %v1915
  %1950 = vmatprep.subr.bf16.mxu0 0
  %1951 = vmatpush1.bf16.msra.mxu0 %v1916
  %1952 = vmatprep.subr.bf16.mxu0 0
  %1953 = vmatpush1.bf16.msra.mxu0 %v1917
  %1954 = vmatprep.subr.bf16.mxu0 0
  %1955 = vmatpush1.bf16.msra.mxu0 0
  %1956 = vmatprep.subr.bf16.mxu0 0
  %1957 = vmatpush1.bf16.msra.mxu0 0
  %1958 = vmatprep.subr.bf16.mxu0 0
  %1959 = vmatpush1.bf16.msra.mxu0 0
  %1960 = vmatprep.subr.bf16.mxu0 0
  %1961 = vmatpush1.bf16.msra.mxu0 0
  %1962 = vmatprep.subr.bf16.mxu0 0
  %1963 = vmatpush1.bf16.msra.mxu0 0
  %1964 = vmatprep.subr.bf16.mxu0 0
  %1965 = vmatpush1.bf16.msra.mxu0 0
  %1966 = vmatprep.subr.bf16.mxu0 0
  %1967 = vmatpush1.bf16.msra.mxu0 0
  %1968 = vmatprep.subr.bf16.mxu0 0
  %1969 = vmatpush1.bf16.msra.mxu0 0
  %1970 = vmatprep.subr.bf16.mxu0 0
  %1971 = vmatpush1.bf16.msra.mxu0 0
  %1972 = vmatprep.subr.bf16.mxu0 0
  %1973 = vmatpush1.bf16.msra.mxu0 0
  %1974 = vmatprep.mubr.bf16.mxu0 0
  %1975 = vmatmul.mubr.bf16.gmra.mrb[0].mxu0 %v1925
  %v1976 = vpop.f32.mrb[0].mxu0
  %v1977 = vadd.f32 0.0, %v1976
  %v1978 = vpop.f32.mrb[0].mxu0
  %v1979 = vpop.f32.mrb[0].mxu0
  %v1980 = vadd.f32 0.0, %v1979
  %v1981 = vpop.f32.mrb[0].mxu0
  %1982 = vmatprep.mubr.bf16.mxu0 0
  %1983 = vmatmul.mubr.bf16.gmra.mrb[0].mxu0 %v1928
  %v1984 = vpop.f32.mrb[0].mxu0
  %v1985 = vadd.f32 0.0, %v1984
  %v1986 = vpop.f32.mrb[0].mxu0
  %v1987 = vpop.f32.mrb[0].mxu0
  %v1988 = vadd.f32 0.0, %v1987
  %v1989 = vpop.f32.mrb[0].mxu0
  %1990 = vmatprep.mubr.bf16.mxu0 0
  %1991 = vmatmul.mubr.bf16.gmra.mrb[0].mxu0 %v1931
  %v1992 = vpop.f32.mrb[0].mxu0
  %v1993 = vadd.f32 0.0, %v1992
  %v1994 = vpop.f32.mrb[0].mxu0
  %v1995 = vpop.f32.mrb[0].mxu0
  %v1996 = vadd.f32 0.0, %v1995
  %v1997 = vpop.f32.mrb[0].mxu0
  %1998 = vmatprep.mubr.bf16.mxu0 0
  %1999 = vmatmul.mubr.bf16.gmra.mrb[0].mxu0 %v1934
  %v2000 = vpop.f32.mrb[0].mxu0
  %v2001 = vadd.f32 0.0, %v2000
  %v2002 = vpop.f32.mrb[0].mxu0
  %v2003 = vpop.f32.mrb[0].mxu0
  %v2004 = vadd.f32 0.0, %v2003
  %v2005 = vpop.f32.mrb[0].mxu0
  %2006 = vmatprep.mubr.bf16.mxu0 0
  %2007 = vmatmul.mubr.bf16.gmra.mrb[0].mxu0 %v1937
  %v2008 = vpop.f32.mrb[0].mxu0
  %v2009 = vadd.f32 0.0, %v2008
  %v2010 = vpop.f32.mrb[0].mxu0
  %v2011 = vpop.f32.mrb[0].mxu0
  %v2012 = vadd.f32 0.0, %v2011
  %v2013 = vpop.f32.mrb[0].mxu0
  %2014 = vmatprep.mubr.bf16.mxu0 0
  %2015 = vmatmul.mubr.bf16.gmra.mrb[0].mxu0 %v1940
  %v2016 = vpop.f32.mrb[0].mxu0
  %v2017 = vadd.f32 0.0, %v2016
  %v2018 = vpop.f32.mrb[0].mxu0
  %v2019 = vpop.f32.mrb[0].mxu0
  %v2020 = vadd.f32 0.0, %v2019
  %v2021 = vpop.f32.mrb[0].mxu0
  %2022 = vdwg.mxu0
  %v2035 = vunpack.c.l.b16 %v1841
  %v2036 = vunpack.c.l.b16 %v1842
  %v2037 = vunpack.c.l.b16 %v1843
  %v2038 = vunpack.c.l.b16 %v1844
  %v2039 = vunpack.c.l.b16 %v1845
  %v2040 = vunpack.c.l.b16 %v1846
  %v2041 = vunpack.c.l.b16 %v1847
  %v2042 = vunpack.c.l.b16 %v1848
  %v2043 = vunpack.c.l.b16 %v1849
  %v2044 = vunpack.c.l.b16 %v1850
  %v2045 = vunpack.c.l.b16 %v1851
  %v2046 = vunpack.c.l.b16 %v1852
  %v2047 = vpack.c.b16 %v2036, %v2035
  %v2048 = vpack.c.b16 %v2038, %v2037
  %v2049 = vpack.c.b16 %v2040, %v2039
  %v2050 = vpack.c.b16 %v2042, %v2041
  %v2051 = vpack.c.b16 %v2044, %v2043
  %v2052 = vpack.c.b16 %v2046, %v2045
  %v2060 = vsel %vm47, %v1835, 0
  %v2063 = vsel %vm47, %v1836, 0
  %v2066 = vsel %vm47, %v1837, 0
  %v2069 = vsel %vm47, %v1838, 0
  %v2072 = vsel %vm47, %v1839, 0
  %v2075 = vsel %vm47, %v1840, 0
  %2077 = vmatprep.subr.bf16.mxu0 0
  %2078 = vmatpush1.bf16.msra.mxu0 %v2047
  %2079 = vmatprep.subr.bf16.mxu0 0
  %2080 = vmatpush1.bf16.msra.mxu0 %v2048
  %2081 = vmatprep.subr.bf16.mxu0 0
  %2082 = vmatpush1.bf16.msra.mxu0 %v2049
  %2083 = vmatprep.subr.bf16.mxu0 0
  %2084 = vmatpush1.bf16.msra.mxu0 %v2050
  %2085 = vmatprep.subr.bf16.mxu0 0
  %2086 = vmatpush1.bf16.msra.mxu0 %v2051
  %2087 = vmatprep.subr.bf16.mxu0 0
  %2088 = vmatpush1.bf16.msra.mxu0 %v2052
  %2089 = vmatprep.subr.bf16.mxu0 0
  %2090 = vmatpush1.bf16.msra.mxu0 0
  %2091 = vmatprep.subr.bf16.mxu0 0
  %2092 = vmatpush1.bf16.msra.mxu0 0
  %2093 = vmatprep.subr.bf16.mxu0 0
  %2094 = vmatpush1.bf16.msra.mxu0 0
  %2095 = vmatprep.subr.bf16.mxu0 0
  %2096 = vmatpush1.bf16.msra.mxu0 0
  %2097 = vmatprep.subr.bf16.mxu0 0
  %2098 = vmatpush1.bf16.msra.mxu0 0
  %2099 = vmatprep.subr.bf16.mxu0 0
  %2100 = vmatpush1.bf16.msra.mxu0 0
  %2101 = vmatprep.subr.bf16.mxu0 0
  %2102 = vmatpush1.bf16.msra.mxu0 0
  %2103 = vmatprep.subr.bf16.mxu0 0
  %2104 = vmatpush1.bf16.msra.mxu0 0
  %2105 = vmatprep.subr.bf16.mxu0 0
  %2106 = vmatpush1.bf16.msra.mxu0 0
  %2107 = vmatprep.subr.bf16.mxu0 0
  %2108 = vmatpush1.bf16.msra.mxu0 0
  %2109 = vmatprep.mubr.bf16.mxu0 0
  %2110 = vmatmul.mubr.bf16.gmra.mrb[0].mxu0 %v2060
  %v2111 = vpop.f32.mrb[0].mxu0
  %v2112 = vadd.f32 %v1977, %v2111
  %v2113 = vpop.f32.mrb[0].mxu0
  %v2114 = vpop.f32.mrb[0].mxu0
  %v2115 = vadd.f32 %v1980, %v2114
  %v2116 = vpop.f32.mrb[0].mxu0
  %2117 = vmatprep.mubr.bf16.mxu0 0
  %2118 = vmatmul.mubr.bf16.gmra.mrb[0].mxu0 %v2063
  %v2119 = vpop.f32.mrb[0].mxu0
  %v2120 = vadd.f32 %v1985, %v2119
  %v2121 = vpop.f32.mrb[0].mxu0
  %v2122 = vpop.f32.mrb[0].mxu0
  %v2123 = vadd.f32 %v1988, %v2122
  %v2124 = vpop.f32.mrb[0].mxu0
  %2125 = vmatprep.mubr.bf16.mxu0 0
  %2126 = vmatmul.mubr.bf16.gmra.mrb[0].mxu0 %v2066
  %v2127 = vpop.f32.mrb[0].mxu0
  %v2128 = vadd.f32 %v1993, %v2127
  %v2129 = vpop.f32.mrb[0].mxu0
  %v2130 = vpop.f32.mrb[0].mxu0
  %v2131 = vadd.f32 %v1996, %v2130
  %v2132 = vpop.f32.mrb[0].mxu0
  %2133 = vmatprep.mubr.bf16.mxu0 0
  %2134 = vmatmul.mubr.bf16.gmra.mrb[0].mxu0 %v2069
  %v2135 = vpop.f32.mrb[0].mxu0
  %v2136 = vadd.f32 %v2001, %v2135
  %v2137 = vpop.f32.mrb[0].mxu0
  %v2138 = vpop.f32.mrb[0].mxu0
  %v2139 = vadd.f32 %v2004, %v2138
  %v2140 = vpop.f32.mrb[0].mxu0
  %2141 = vmatprep.mubr.bf16.mxu0 0
  %2142 = vmatmul.mubr.bf16.gmra.mrb[0].mxu0 %v2072
  %v2143 = vpop.f32.mrb[0].mxu0
  %v2144 = vadd.f32 %v2009, %v2143
  %v2145 = vpop.f32.mrb[0].mxu0
  %v2146 = vpop.f32.mrb[0].mxu0
  %v2147 = vadd.f32 %v2012, %v2146
  %v2148 = vpop.f32.mrb[0].mxu0
  %2149 = vmatprep.mubr.bf16.mxu0 0
  %2150 = vmatmul.mubr.bf16.gmra.mrb[0].mxu0 %v2075
  %v2151 = vpop.f32.mrb[0].mxu0
  %v2152 = vadd.f32 %v2017, %v2151
  %v2153 = vpop.f32.mrb[0].mxu0
  %v2154 = vpop.f32.mrb[0].mxu0
  %v2155 = vadd.f32 %v2020, %v2154
  %v2156 = vpop.f32.mrb[0].mxu0
  %2157 = vdwg.mxu0
  %v2158 = vld [vmem:[#allocation3 + $0x30] sm:$0xff]
  %s2159 = scalar_lea.vmem %s7, 96
  %v2160 = vld [vmem:[%s2159] sm:$0xf]
  %v2161 = vld [vmem:[%s2159 + $0x4] sm:$0xf]
  %v2162 = vld [vmem:[%s2159 + $0x8] sm:$0xf]
  %v2163 = vld [vmem:[%s2159 + $0xc] sm:$0xf]
  %v2164 = vld [vmem:[%s2159 + $0x10] sm:$0xf]
  %v2165 = vld [vmem:[%s2159 + $0x14] sm:$0xf]
  %v2166 = vld [vmem:[%s2159 + $0x18] sm:$0xf]
  %v2167 = vld [vmem:[%s2159 + $0x1c] sm:$0xf]
  %v2168 = vld [vmem:[%s2159 + $0x20] sm:$0xf]
  %v2169 = vld [vmem:[%s2159 + $0x24] sm:$0xf]
  %v2170 = vld [vmem:[%s2159 + $0x28] sm:$0xf]
  %v2171 = vld [vmem:[%s2159 + $0x2c] sm:$0xf]
  %v2184 = vunpack.c.l.b16 %v2160
  %v2185 = vunpack.c.l.b16 %v2161
  %v2186 = vunpack.c.l.b16 %v2162
  %v2187 = vunpack.c.l.b16 %v2163
  %v2188 = vunpack.c.l.b16 %v2164
  %v2189 = vunpack.c.l.b16 %v2165
  %v2190 = vunpack.c.l.b16 %v2166
  %v2191 = vunpack.c.l.b16 %v2167
  %v2192 = vunpack.c.l.b16 %v2168
  %v2193 = vunpack.c.l.b16 %v2169
  %v2194 = vunpack.c.l.b16 %v2170
  %v2195 = vunpack.c.l.b16 %v2171
  %v2196 = vpack.c.b16 %v2185, %v2184
  %v2197 = vpack.c.b16 %v2187, %v2186
  %v2198 = vpack.c.b16 %v2189, %v2188
  %v2199 = vpack.c.b16 %v2191, %v2190
  %v2200 = vpack.c.b16 %v2193, %v2192
  %v2201 = vpack.c.b16 %v2195, %v2194
  %v2209 = vsel %vm47, %v2158, 0
  %2211 = vmatprep.subr.bf16.mxu0 0
  %2212 = vmatpush1.bf16.msra.mxu0 %v2196
  %2213 = vmatprep.subr.bf16.mxu0 0
  %2214 = vmatpush1.bf16.msra.mxu0 %v2197
  %2215 = vmatprep.subr.bf16.mxu0 0
  %2216 = vmatpush1.bf16.msra.mxu0 %v2198
  %2217 = vmatprep.subr.bf16.mxu0 0
  %2218 = vmatpush1.bf16.msra.mxu0 %v2199
  %2219 = vmatprep.subr.bf16.mxu0 0
  %2220 = vmatpush1.bf16.msra.mxu0 %v2200
  %2221 = vmatprep.subr.bf16.mxu0 0
  %2222 = vmatpush1.bf16.msra.mxu0 %v2201
  %2223 = vmatprep.subr.bf16.mxu0 0
  %2224 = vmatpush1.bf16.msra.mxu0 0
  %2225 = vmatprep.subr.bf16.mxu0 0
  %2226 = vmatpush1.bf16.msra.mxu0 0
  %2227 = vmatprep.subr.bf16.mxu0 0
  %2228 = vmatpush1.bf16.msra.mxu0 0
  %2229 = vmatprep.subr.bf16.mxu0 0
  %2230 = vmatpush1.bf16.msra.mxu0 0
  %2231 = vmatprep.subr.bf16.mxu0 0
  %2232 = vmatpush1.bf16.msra.mxu0 0
  %2233 = vmatprep.subr.bf16.mxu0 0
  %2234 = vmatpush1.bf16.msra.mxu0 0
  %2235 = vmatprep.subr.bf16.mxu0 0
  %2236 = vmatpush1.bf16.msra.mxu0 0
  %2237 = vmatprep.subr.bf16.mxu0 0
  %2238 = vmatpush1.bf16.msra.mxu0 0
  %2239 = vmatprep.subr.bf16.mxu0 0
  %2240 = vmatpush1.bf16.msra.mxu0 0
  %2241 = vmatprep.subr.bf16.mxu0 0
  %2242 = vmatpush1.bf16.msra.mxu0 0
  %2243 = vmatprep.mubr.bf16.mxu0 0
  %2244 = vmatmul.mubr.bf16.gmra.mrb[0].mxu0 %v2063
  %v2245 = vpop.f32.mrb[0].mxu0
  %v2246 = vadd.f32 0.0, %v2245
  %v2247 = vpop.f32.mrb[0].mxu0
  %v2248 = vpop.f32.mrb[0].mxu0
  %v2249 = vadd.f32 0.0, %v2248
  %v2250 = vpop.f32.mrb[0].mxu0
  %2251 = vmatprep.mubr.bf16.mxu0 0
  %2252 = vmatmul.mubr.bf16.gmra.mrb[0].mxu0 %v2066
  %v2253 = vpop.f32.mrb[0].mxu0
  %v2254 = vadd.f32 0.0, %v2253
  %v2255 = vpop.f32.mrb[0].mxu0
  %v2256 = vpop.f32.mrb[0].mxu0
  %v2257 = vadd.f32 0.0, %v2256
  %v2258 = vpop.f32.mrb[0].mxu0
  %2259 = vmatprep.mubr.bf16.mxu0 0
  %2260 = vmatmul.mubr.bf16.gmra.mrb[0].mxu0 %v2069
  %v2261 = vpop.f32.mrb[0].mxu0
  %v2262 = vadd.f32 0.0, %v2261
  %v2263 = vpop.f32.mrb[0].mxu0
  %v2264 = vpop.f32.mrb[0].mxu0
  %v2265 = vadd.f32 0.0, %v2264
  %v2266 = vpop.f32.mrb[0].mxu0
  %2267 = vmatprep.mubr.bf16.mxu0 0
  %2268 = vmatmul.mubr.bf16.gmra.mrb[0].mxu0 %v2072
  %v2269 = vpop.f32.mrb[0].mxu0
  %v2270 = vadd.f32 0.0, %v2269
  %v2271 = vpop.f32.mrb[0].mxu0
  %v2272 = vpop.f32.mrb[0].mxu0
  %v2273 = vadd.f32 0.0, %v2272
  %v2274 = vpop.f32.mrb[0].mxu0
  %2275 = vmatprep.mubr.bf16.mxu0 0
  %2276 = vmatmul.mubr.bf16.gmra.mrb[0].mxu0 %v2075
  %v2277 = vpop.f32.mrb[0].mxu0
  %v2278 = vadd.f32 0.0, %v2277
  %v2279 = vpop.f32.mrb[0].mxu0
  %v2280 = vpop.f32.mrb[0].mxu0
  %v2281 = vadd.f32 0.0, %v2280
  %v2282 = vpop.f32.mrb[0].mxu0
  %2283 = vmatprep.mubr.bf16.mxu0 0
  %2284 = vmatmul.mubr.bf16.gmra.mrb[0].mxu0 %v2209
  %v2285 = vpop.f32.mrb[0].mxu0
  %v2286 = vadd.f32 0.0, %v2285
  %v2287 = vpop.f32.mrb[0].mxu0
  %v2288 = vpop.f32.mrb[0].mxu0
  %v2289 = vadd.f32 0.0, %v2288
  %v2290 = vpop.f32.mrb[0].mxu0
  %2291 = vdwg.mxu0
  %v2292 = vadd.f32 %v2112, %v2246
  %v2293 = vadd.f32 %v2115, %v2249
  %v2294 = vadd.f32 %v2120, %v2254
  %v2295 = vadd.f32 %v2123, %v2257
  %v2296 = vadd.f32 %v2128, %v2262
  %v2297 = vadd.f32 %v2131, %v2265
  %v2298 = vadd.f32 %v2136, %v2270
  %v2299 = vadd.f32 %v2139, %v2273
  %v2300 = vadd.f32 %v2144, %v2278
  %v2301 = vadd.f32 %v2147, %v2281
  %v2302 = vadd.f32 %v2152, %v2286
  %v2303 = vadd.f32 %v2155, %v2289
  %v2304 = vld [vmem:[%s8] sm:$0x1]
  %v2305 = vld [vmem:[%s9] sm:$0x1]
  %v2306 = vmul.f32 %v2292, %v226
  %v2307 = vmul.f32 %v2293, %v231
  %v2308 = vmul.f32 %v2294, %v236
  %v2309 = vmul.f32 %v2295, %v241
  %v2310 = vmul.f32 %v2296, %v246
  %v2311 = vmul.f32 %v2297, %v251
  %v2312 = vmul.f32 %v2298, %v256
  %v2313 = vmul.f32 %v2299, %v261
  %v2314 = vmul.f32 %v2300, %v266
  %v2315 = vmul.f32 %v2301, %v271
  %v2316 = vmul.f32 %v2302, %v276
  %v2317 = vmul.f32 %v2303, %v281
  %v2318 = vsel %vm410, %v2306, 0.0
  %v2319 = vsel %vm410, %v2307, 0.0
  %v2320 = vadd.f32 %v2318, %v2319
  %v2321 = vsel %vm410, %v2308, 0.0
  %v2322 = vadd.f32 %v2320, %v2321
  %v2323 = vsel %vm410, %v2309, 0.0
  %v2324 = vadd.f32 %v2322, %v2323
  %v2325 = vsel %vm410, %v2310, 0.0
  %v2326 = vadd.f32 %v2324, %v2325
  %v2327 = vsel %vm410, %v2311, 0.0
  %v2328 = vadd.f32 %v2326, %v2327
  %v2329 = vsel %vm410, %v2312, 0.0
  %v2330 = vadd.f32 %v2328, %v2329
  %v2331 = vsel %vm410, %v2313, 0.0
  %v2332 = vadd.f32 %v2330, %v2331
  %v2333 = vsel %vm410, %v2314, 0.0
  %v2334 = vadd.f32 %v2332, %v2333
  %v2335 = vsel %vm410, %v2315, 0.0
  %v2336 = vadd.f32 %v2334, %v2335
  %v2337 = vsel %vm410, %v2316, 0.0
  %v2338 = vadd.f32 %v2336, %v2337
  %v2339 = vsel %vm410, %v2317, 0.0
  %v2340 = vadd.f32 %v2338, %v2339
  %v2341 = vrot.slane %v2340, 4
  %v2342 = vadd.f32 %v2340, %v2341
  %v2343 = vrot.slane %v2342, 2
  %v2344 = vadd.f32 %v2342, %v2343
  %v2345 = vrot.slane %v2344, 1
  %v2346 = vadd.f32 %v2344, %v2345
  %v2348 = vsel %vm410, %v2346, 0
  %2350 = vmatprep.subr.mxu0 0.0
  %2351 = vmatpush1.msra.mxu0 %v62
  %2352 = vmatprep.subr.mxu0 0.0
  %2353 = vmatpush1.msra.mxu0 %v63
  %2354 = vmatprep.subr.mxu0 0.0
  %2355 = vmatpush1.msra.mxu0 %v64
  %2356 = vmatprep.subr.mxu0 0.0
  %2357 = vmatpush1.msra.mxu0 %v65
  %2358 = vmatprep.subr.mxu0 0.0
  %2359 = vmatpush1.msra.mxu0 0.0
  %2360 = vmatprep.subr.mxu0 0.0
  %2361 = vmatpush1.msra.mxu0 0.0
  %2362 = vmatprep.subr.mxu0 0.0
  %2363 = vmatpush1.msra.mxu0 0.0
  %2364 = vmatprep.subr.mxu0 0.0
  %2365 = vmatpush1.msra.mxu0 0.0
  %2366 = vmatprep.subr.mxu0 0.0
  %2367 = vmatpush1.msra.mxu0 0.0
  %2368 = vmatprep.subr.mxu0 0.0
  %2369 = vmatpush1.msra.mxu0 0.0
  %2370 = vmatprep.subr.mxu0 0.0
  %2371 = vmatpush1.msra.mxu0 0.0
  %2372 = vmatprep.subr.mxu0 0.0
  %2373 = vmatpush1.msra.mxu0 0.0
  %2374 = vmatprep.subr.mxu0 0.0
  %2375 = vmatpush1.msra.mxu0 0.0
  %2376 = vmatprep.subr.mxu0 0.0
  %2377 = vmatpush1.msra.mxu0 0.0
  %2378 = vmatprep.subr.mxu0 0.0
  %2379 = vmatpush1.msra.mxu0 0.0
  %2380 = vmatprep.subr.mxu0 0.0
  %2381 = vmatpush1.msra.mxu0 0.0
  %2382 = vmatprep.subr.mxu0 0.0
  %2383 = vmatpush1.msra.mxu0 0.0
  %2384 = vmatprep.subr.mxu0 0.0
  %2385 = vmatpush1.msra.mxu0 0.0
  %2386 = vmatprep.subr.mxu0 0.0
  %2387 = vmatpush1.msra.mxu0 0.0
  %2388 = vmatprep.subr.mxu0 0.0
  %2389 = vmatpush1.msra.mxu0 0.0
  %2390 = vmatprep.subr.mxu0 0.0
  %2391 = vmatpush1.msra.mxu0 0.0
  %2392 = vmatprep.subr.mxu0 0.0
  %2393 = vmatpush1.msra.mxu0 0.0
  %2394 = vmatprep.subr.mxu0 0.0
  %2395 = vmatpush1.msra.mxu0 0.0
  %2396 = vmatprep.subr.mxu0 0.0
  %2397 = vmatpush1.msra.mxu0 0.0
  %2398 = vmatprep.subr.mxu0 0.0
  %2399 = vmatpush1.msra.mxu0 0.0
  %2400 = vmatprep.subr.mxu0 0.0
  %2401 = vmatpush1.msra.mxu0 0.0
  %2402 = vmatprep.subr.mxu0 0.0
  %2403 = vmatpush1.msra.mxu0 0.0
  %2404 = vmatprep.subr.mxu0 0.0
  %2405 = vmatpush1.msra.mxu0 0.0
  %2406 = vmatprep.subr.mxu0 0.0
  %2407 = vmatpush1.msra.mxu0 0.0
  %2408 = vmatprep.subr.mxu0 0.0
  %2409 = vmatpush1.msra.mxu0 0.0
  %2410 = vmatprep.subr.mxu0 0.0
  %2411 = vmatpush1.msra.mxu0 0.0
  %2412 = vmatprep.subr.mxu0 0.0
  %2413 = vmatpush1.msra.mxu0 0.0
  %2414 = vmatprep.mubr.f32.mxu0 0.0
  %2415 = vmatmul.mubr.f32.gmra.mrb[0].mxu0 %v2348
  %v2416 = vpop.f32.mrb[0].mxu0
  %v2417 = vadd.f32 0.0, %v2416
  %v2418 = vpop.f32.mrb[0].mxu0
  %2419 = vdwg.mxu0
  %v2420 = vmul.f32 %v2306, %v2306
  %v2421 = vmul.f32 %v2307, %v2307
  %v2422 = vmul.f32 %v2308, %v2308
  %v2423 = vmul.f32 %v2309, %v2309
  %v2424 = vmul.f32 %v2310, %v2310
  %v2425 = vmul.f32 %v2311, %v2311
  %v2426 = vmul.f32 %v2312, %v2312
  %v2427 = vmul.f32 %v2313, %v2313
  %v2428 = vmul.f32 %v2314, %v2314
  %v2429 = vmul.f32 %v2315, %v2315
  %v2430 = vmul.f32 %v2316, %v2316
  %v2431 = vmul.f32 %v2317, %v2317
  %v2432 = vsel %vm410, %v2420, 0.0
  %v2433 = vsel %vm410, %v2421, 0.0
  %v2434 = vadd.f32 %v2432, %v2433
  %v2435 = vsel %vm410, %v2422, 0.0
  %v2436 = vadd.f32 %v2434, %v2435
  %v2437 = vsel %vm410, %v2423, 0.0
  %v2438 = vadd.f32 %v2436, %v2437
  %v2439 = vsel %vm410, %v2424, 0.0
  %v2440 = vadd.f32 %v2438, %v2439
  %v2441 = vsel %vm410, %v2425, 0.0
  %v2442 = vadd.f32 %v2440, %v2441
  %v2443 = vsel %vm410, %v2426, 0.0
  %v2444 = vadd.f32 %v2442, %v2443
  %v2445 = vsel %vm410, %v2427, 0.0
  %v2446 = vadd.f32 %v2444, %v2445
  %v2447 = vsel %vm410, %v2428, 0.0
  %v2448 = vadd.f32 %v2446, %v2447
  %v2449 = vsel %vm410, %v2429, 0.0
  %v2450 = vadd.f32 %v2448, %v2449
  %v2451 = vsel %vm410, %v2430, 0.0
  %v2452 = vadd.f32 %v2450, %v2451
  %v2453 = vsel %vm410, %v2431, 0.0
  %v2454 = vadd.f32 %v2452, %v2453
  %v2455 = vrot.slane %v2454, 4
  %v2456 = vadd.f32 %v2454, %v2455
  %v2457 = vrot.slane %v2456, 2
  %v2458 = vadd.f32 %v2456, %v2457
  %v2459 = vrot.slane %v2458, 1
  %v2460 = vadd.f32 %v2458, %v2459
  %v2462 = vsel %vm410, %v2460, 0
  %2464 = vmatprep.subr.mxu0 0.0
  %2465 = vmatpush1.msra.mxu0 %v62
  %2466 = vmatprep.subr.mxu0 0.0
  %2467 = vmatpush1.msra.mxu0 %v63
  %2468 = vmatprep.subr.mxu0 0.0
  %2469 = vmatpush1.msra.mxu0 %v64
  %2470 = vmatprep.subr.mxu0 0.0
  %2471 = vmatpush1.msra.mxu0 %v65
  %2472 = vmatprep.subr.mxu0 0.0
  %2473 = vmatpush1.msra.mxu0 0.0
  %2474 = vmatprep.subr.mxu0 0.0
  %2475 = vmatpush1.msra.mxu0 0.0
  %2476 = vmatprep.subr.mxu0 0.0
  %2477 = vmatpush1.msra.mxu0 0.0
  %2478 = vmatprep.subr.mxu0 0.0
  %2479 = vmatpush1.msra.mxu0 0.0
  %2480 = vmatprep.subr.mxu0 0.0
  %2481 = vmatpush1.msra.mxu0 0.0
  %2482 = vmatprep.subr.mxu0 0.0
  %2483 = vmatpush1.msra.mxu0 0.0
  %2484 = vmatprep.subr.mxu0 0.0
  %2485 = vmatpush1.msra.mxu0 0.0
  %2486 = vmatprep.subr.mxu0 0.0
  %2487 = vmatpush1.msra.mxu0 0.0
  %2488 = vmatprep.subr.mxu0 0.0
  %2489 = vmatpush1.msra.mxu0 0.0
  %2490 = vmatprep.subr.mxu0 0.0
  %2491 = vmatpush1.msra.mxu0 0.0
  %2492 = vmatprep.subr.mxu0 0.0
  %2493 = vmatpush1.msra.mxu0 0.0
  %2494 = vmatprep.subr.mxu0 0.0
  %2495 = vmatpush1.msra.mxu0 0.0
  %2496 = vmatprep.subr.mxu0 0.0
  %2497 = vmatpush1.msra.mxu0 0.0
  %2498 = vmatprep.subr.mxu0 0.0
  %2499 = vmatpush1.msra.mxu0 0.0
  %2500 = vmatprep.subr.mxu0 0.0
  %2501 = vmatpush1.msra.mxu0 0.0
  %2502 = vmatprep.subr.mxu0 0.0
  %2503 = vmatpush1.msra.mxu0 0.0
  %2504 = vmatprep.subr.mxu0 0.0
  %2505 = vmatpush1.msra.mxu0 0.0
  %2506 = vmatprep.subr.mxu0 0.0
  %2507 = vmatpush1.msra.mxu0 0.0
  %2508 = vmatprep.subr.mxu0 0.0
  %2509 = vmatpush1.msra.mxu0 0.0
  %2510 = vmatprep.subr.mxu0 0.0
  %2511 = vmatpush1.msra.mxu0 0.0
  %2512 = vmatprep.subr.mxu0 0.0
  %2513 = vmatpush1.msra.mxu0 0.0
  %2514 = vmatprep.subr.mxu0 0.0
  %2515 = vmatpush1.msra.mxu0 0.0
  %2516 = vmatprep.subr.mxu0 0.0
  %2517 = vmatpush1.msra.mxu0 0.0
  %2518 = vmatprep.subr.mxu0 0.0
  %2519 = vmatpush1.msra.mxu0 0.0
  %2520 = vmatprep.subr.mxu0 0.0
  %2521 = vmatpush1.msra.mxu0 0.0
  %2522 = vmatprep.subr.mxu0 0.0
  %2523 = vmatpush1.msra.mxu0 0.0
  %2524 = vmatprep.subr.mxu0 0.0
  %2525 = vmatpush1.msra.mxu0 0.0
  %2526 = vmatprep.subr.mxu0 0.0
  %2527 = vmatpush1.msra.mxu0 0.0
  %2528 = vmatprep.mubr.f32.mxu0 0.0
  %2529 = vmatmul.mubr.f32.gmra.mrb[0].mxu0 %v2462
  %v2530 = vpop.f32.mrb[0].mxu0
  %v2531 = vadd.f32 0.0, %v2530
  %v2532 = vpop.f32.mrb[0].mxu0
  %2533 = vdwg.mxu0
  %v2534 = vmul.f32 %v2417, 0.0078125
  %v2535 = vmul.f32 %v2531, 0.0078125
  %v2536 = vmul.f32 %v2534, %v2534
  %v2537 = vsub.f32 %v2535, %v2536
  %v2538 = vmax.f32 %v2537, 0.0
  %v2539 = vadd.f32 %v2538, 1e-05
  %v2540 = vrsqrt.pop %v2539
  %v2541 = vmul.f32 %v2304, %v2540
  %v2542 = vmul.f32 %v2534, %v2541
  %v2543 = vsub.f32 %v2305, %v2542
  %v2545 = vlaneseq
  %v2546 = vshrl.u32 %v2545, 7
  %v2547 = vsub.s32 0, %v2546
  %v2548 = vrot.slane %v2541, %v2547
  %v2550 = vmul.f32 %v2292, %v2548
  %v2551 = vmul.f32 %v2293, %v2548
  %v2552 = vmul.f32 %v2294, %v2548
  %v2553 = vmul.f32 %v2295, %v2548
  %v2554 = vmul.f32 %v2296, %v2548
  %v2555 = vmul.f32 %v2297, %v2548
  %v2556 = vmul.f32 %v2298, %v2548
  %v2557 = vmul.f32 %v2299, %v2548
  %v2558 = vmul.f32 %v2300, %v2548
  %v2559 = vmul.f32 %v2301, %v2548
  %v2560 = vmul.f32 %v2302, %v2548
  %v2561 = vmul.f32 %v2303, %v2548
  %v2563 = vlaneseq
  %v2564 = vshrl.u32 %v2563, 7
  %v2565 = vsub.s32 0, %v2564
  %v2566 = vrot.slane %v2543, %v2565
  %v2568 = vadd.f32 %v2550, %v2566
  %v2569 = vadd.f32 %v2551, %v2566
  %v2570 = vadd.f32 %v2552, %v2566
  %v2571 = vadd.f32 %v2553, %v2566
  %v2572 = vadd.f32 %v2554, %v2566
  %v2573 = vadd.f32 %v2555, %v2566
  %v2574 = vadd.f32 %v2556, %v2566
  %v2575 = vadd.f32 %v2557, %v2566
  %v2576 = vadd.f32 %v2558, %v2566
  %v2577 = vadd.f32 %v2559, %v2566
  %v2578 = vadd.f32 %v2560, %v2566
  %v2579 = vadd.f32 %v2561, %v2566
  %v2580 = vmax.f32 %v2568, 0.0
  %v2581 = vmax.f32 %v2569, 0.0
  %v2582 = vmax.f32 %v2570, 0.0
  %v2583 = vmax.f32 %v2571, 0.0
  %v2584 = vmax.f32 %v2572, 0.0
  %v2585 = vmax.f32 %v2573, 0.0
  %v2586 = vmax.f32 %v2574, 0.0
  %v2587 = vmax.f32 %v2575, 0.0
  %v2588 = vmax.f32 %v2576, 0.0
  %v2589 = vmax.f32 %v2577, 0.0
  %v2590 = vmax.f32 %v2578, 0.0
  %v2591 = vmax.f32 %v2579, 0.0
  %v2592 = vpack.c.bf16 %v2581, %v2580
  %v2593 = vpack.c.bf16 %v2583, %v2582
  %v2594 = vpack.c.bf16 %v2585, %v2584
  %v2595 = vpack.c.bf16 %v2587, %v2586
  %v2596 = vpack.c.bf16 %v2589, %v2588
  %v2597 = vpack.c.bf16 %v2591, %v2590
  %v2604 = vunpack.c.l.b16 %v2592
  %v2605 = vunpack.c.h.b16 %v2592
  %v2606 = vunpack.c.l.b16 %v2593
  %v2607 = vunpack.c.h.b16 %v2593
  %v2608 = vunpack.c.l.b16 %v2594
  %v2609 = vunpack.c.h.b16 %v2594
  %v2610 = vunpack.c.l.b16 %v2595
  %v2611 = vunpack.c.h.b16 %v2595
  %v2612 = vunpack.c.l.b16 %v2596
  %v2613 = vunpack.c.h.b16 %v2596
  %v2614 = vunpack.c.l.b16 %v2597
  %v2615 = vunpack.c.h.b16 %v2597
  %v2616 = vpack.c.b16 %v2604, %v2604
  %v2617 = vpack.c.b16 %v2605, %v2605
  %v2618 = vpack.c.b16 %v2606, %v2606
  %v2619 = vpack.c.b16 %v2607, %v2607
  %v2620 = vpack.c.b16 %v2608, %v2608
  %v2621 = vpack.c.b16 %v2609, %v2609
  %v2622 = vpack.c.b16 %v2610, %v2610
  %v2623 = vpack.c.b16 %v2611, %v2611
  %v2624 = vpack.c.b16 %v2612, %v2612
  %v2625 = vpack.c.b16 %v2613, %v2613
  %v2626 = vpack.c.b16 %v2614, %v2614
  %v2627 = vpack.c.b16 %v2615, %v2615
  %vm2640 = vcmask 257024
  %2641 = vst.msk [vmem:[%s12] sm:$0xf] %vm2640, %v2616
  %2642 = vst.msk [vmem:[%s12 + $0x4] sm:$0xf] %vm2640, %v2617
  %2643 = vst.msk [vmem:[%s12 + $0x8] sm:$0xf] %vm2640, %v2618
  %2644 = vst.msk [vmem:[%s12 + $0xc] sm:$0xf] %vm2640, %v2619
  %2645 = vst.msk [vmem:[%s12 + $0x10] sm:$0xf] %vm2640, %v2620
  %2646 = vst.msk [vmem:[%s12 + $0x14] sm:$0xf] %vm2640, %v2621
  %2647 = vst.msk [vmem:[%s12 + $0x18] sm:$0xf] %vm2640, %v2622
  %2648 = vst.msk [vmem:[%s12 + $0x1c] sm:$0xf] %vm2640, %v2623
  %2649 = vst.msk [vmem:[%s12 + $0x20] sm:$0xf] %vm2640, %v2624
  %2650 = vst.msk [vmem:[%s12 + $0x24] sm:$0xf] %vm2640, %v2625
  %2651 = vst.msk [vmem:[%s12 + $0x28] sm:$0xf] %vm2640, %v2626
  %2652 = vst.msk [vmem:[%s12 + $0x2c] sm:$0xf] %vm2640, %v2627
  // Predicated region
  $region50: #{_lambda_.2} parent=0 // pred_check
    _
  $region51: #{_lambda_.2} parent=0 // pred_check_branch
    %2654 = sbr.rel (0) target = $region53
  $region52: #{_lambda_.2} parent=0 // pred_region
    _
  $region53: #{_lambda_.2} parent=0 // pred_fallthru
    _
  // Predicated region
  $region54: #{_lambda_.2} parent=0 // pred_check
    _
  $region55: #{_lambda_.2} parent=0 // pred_check_branch
    %2656 = sbr.rel (0) target = $region57
  $region56: #{_lambda_.2} parent=0 // pred_region
    _
  $region57: #{_lambda_.2} parent=0 // pred_fallthru
    _

// kernel: _lambda_.3
$region0: #{_lambda_.3}
  #allocation0 [shape = 'u32[]', space=smem, size = 0x4, offset = 0x4, fixed_abs, tag = 'smem constant byte address 0x4 - core index']
  #allocation1 [shape = 'u32[144,128]{1,0:T(1,128)}', space=vmem, size = 0x12000, scoped, tag = 'internal scratch']
  #allocation2 [shape = 'bf16[352,96]{1,0:T(16,128)(2,1)}', space=vmem, size = 0x16000, scoped, tag = 'scratch operand']
  #allocation3 [shape = 'bf16[352,48]{1,0:T(16,128)(2,1)}', space=vmem, size = 0x16000, scoped, tag = 'scratch operand']
  %s0 = inlined_call_operand.vmem [shape: bf16[320,8], index: 0, kind: input, shape index: {}]
  %s1 = inlined_call_operand.vmem [shape: bf16[320,16], index: 1, kind: input, shape index: {}]
  %s2 = inlined_call_operand.vmem [shape: bf16[8,16], index: 2, kind: input, shape index: {}]
  %s3 = inlined_call_operand.vmem [shape: f32[1,16], index: 3, kind: input, shape index: {}]
  %s4 = inlined_call_operand.vmem [shape: bf16[3,96,16], index: 4, kind: input, shape index: {}]
  %s5 = inlined_call_operand.vmem [shape: f32[1,16], index: 5, kind: input, shape index: {}, may-alias: {5,8}]
  %s6 = inlined_call_operand.vmem [shape: f32[1,16], index: 6, kind: input, shape index: {}, may-alias: {6,9}]
  %s7 = inlined_call_operand.vmem [shape: bf16[3,48,16], index: 7, kind: input, shape index: {}]
  %s8 = inlined_call_operand.vmem [shape: f32[1,16], index: 8, kind: input, shape index: {}, may-alias: {5,8}]
  %s9 = inlined_call_operand.vmem [shape: f32[1,16], index: 9, kind: input, shape index: {}, may-alias: {6,9}]
  %s10 = inlined_call_operand.vmem [shape: f32[16,16], index: 10, kind: input, shape index: {}]
  %s11 = inlined_call_operand.vmem [shape: f32[320,1], index: 11, kind: input, shape index: {}]
  %s12 = inlined_call_operand.vmem [shape: f32[320,16], index: 12, kind: output, shape index: {}]
  %s13 = sld [smem:[#allocation0]]
  $region58: #{_lambda_.3} parent=0
    _
  %s15 = ssub.s32 1, %s13
  %s16 = scalar_select 0, %s15, %s13
  // Predicated region
  $region2: #{_lambda_.3} parent=0 // pred_check
    _
  $region3: #{_lambda_.3} parent=0 // pred_check_branch
    %18 = sbr.rel (0) target = $region5
  $region4: #{_lambda_.3} parent=0 // pred_region
    _
  $region5: #{_lambda_.3} parent=0 // pred_fallthru
    _
  // Predicated region
  $region6: #{_lambda_.3} parent=0 // pred_check
    _
  $region7: #{_lambda_.3} parent=0 // pred_check_branch
    %20 = sbr.rel (0) target = $region9
  $region8: #{_lambda_.3} parent=0 // pred_region
    _
  $region9: #{_lambda_.3} parent=0 // pred_fallthru
    _
  // Predicated region
  $region10: #{_lambda_.3} parent=0 // pred_check
    _
  $region11: #{_lambda_.3} parent=0 // pred_check_branch
    %22 = sbr.rel (0) target = $region13
  $region12: #{_lambda_.3} parent=0 // pred_region
    _
  $region13: #{_lambda_.3} parent=0 // pred_fallthru
    _
  // Predicated region
  $region14: #{_lambda_.3} parent=0 // pred_check
    _
  $region15: #{_lambda_.3} parent=0 // pred_check_branch
    %24 = sbr.rel (0) target = $region17
  $region16: #{_lambda_.3} parent=0 // pred_region
    _
  $region17: #{_lambda_.3} parent=0 // pred_fallthru
    _
  // Predicated region
  $region18: #{_lambda_.3} parent=0 // pred_check
    _
  $region19: #{_lambda_.3} parent=0 // pred_check_branch
    %26 = sbr.rel (0) target = $region21
  $region20: #{_lambda_.3} parent=0 // pred_region
    _
  $region21: #{_lambda_.3} parent=0 // pred_fallthru
    _
  // Predicated region
  $region22: #{_lambda_.3} parent=0 // pred_check
    _
  $region23: #{_lambda_.3} parent=0 // pred_check_branch
    %28 = sbr.rel (0) target = $region25
  $region24: #{_lambda_.3} parent=0 // pred_region
    _
  $region25: #{_lambda_.3} parent=0 // pred_fallthru
    _
  // Predicated region
  $region26: #{_lambda_.3} parent=0 // pred_check
    _
  $region27: #{_lambda_.3} parent=0 // pred_check_branch
    %30 = sbr.rel (0) target = $region29
  $region28: #{_lambda_.3} parent=0 // pred_region
    _
  $region29: #{_lambda_.3} parent=0 // pred_fallthru
    _
  // Predicated region
  $region30: #{_lambda_.3} parent=0 // pred_check
    _
  $region31: #{_lambda_.3} parent=0 // pred_check_branch
    %32 = sbr.rel (0) target = $region33
  $region32: #{_lambda_.3} parent=0 // pred_region
    _
  $region33: #{_lambda_.3} parent=0 // pred_fallthru
    _
  // Predicated region
  $region34: #{_lambda_.3} parent=0 // pred_check
    _
  $region35: #{_lambda_.3} parent=0 // pred_check_branch
    %34 = sbr.rel (0) target = $region37
  $region36: #{_lambda_.3} parent=0 // pred_region
    _
  $region37: #{_lambda_.3} parent=0 // pred_fallthru
    _
  // Predicated region
  $region38: #{_lambda_.3} parent=0 // pred_check
    _
  $region39: #{_lambda_.3} parent=0 // pred_check_branch
    %36 = sbr.rel (0) target = $region41
  $region40: #{_lambda_.3} parent=0 // pred_region
    _
  $region41: #{_lambda_.3} parent=0 // pred_fallthru
    _
  // Predicated region
  $region42: #{_lambda_.3} parent=0 // pred_check
    _
  $region43: #{_lambda_.3} parent=0 // pred_check_branch
    %38 = sbr.rel (0) target = $region45
  $region44: #{_lambda_.3} parent=0 // pred_region
    _
  $region45: #{_lambda_.3} parent=0 // pred_fallthru
    _
  // Predicated region
  $region46: #{_lambda_.3} parent=0 // pred_check
    _
  $region47: #{_lambda_.3} parent=0 // pred_check_branch
    %40 = sbr.rel (0) target = $region49
  $region48: #{_lambda_.3} parent=0 // pred_region
    _
  $region49: #{_lambda_.3} parent=0 // pred_fallthru
    _
  %vm42 = vcmask 785408
  %43 = vst.msk [vmem:[#allocation2] sm:$0xff] %vm42, 0
  %vm44 = vcmask 781312
  %45 = vst.msk [vmem:[#allocation2 + $0x8] sm:$0xf] %vm44, 0
  %vm46 = vcmask 785412
  %47 = vst.msk [vmem:[#allocation2 + $0xa0] sm:$0xf0] %vm46, 0
  %48 = vst.msk [vmem:[#allocation2 + $0xa8] sm:$0xff] %vm42, 0
  %vm49 = vcmask 392192
  %50 = vst.msk [vmem:[#allocation3] sm:$0xff] %vm49, 0
  %vm51 = vcmask 388096
  %52 = vst.msk [vmem:[#allocation3 + $0x8] sm:$0xf] %vm51, 0
  %vm53 = vcmask 392196
  %54 = vst.msk [vmem:[#allocation3 + $0xa0] sm:$0xf0] %vm53, 0
  %55 = vst.msk [vmem:[#allocation3 + $0xa8] sm:$0xff] %vm49, 0
  %v56 = vld [vmem:[%s11] sm:$0xff]
  %v57 = vld [vmem:[%s11 + $0x8] sm:$0xff]
  %v58 = vld [vmem:[%s11 + $0x10] sm:$0xff]
  %v59 = vld [vmem:[%s11 + $0x18] sm:$0xff]
  %v60 = vld [vmem:[%s11 + $0x20] sm:$0xff]
  %v61 = vld [vmem:[%s11 + $0x28] sm:$0xff]
  %v62 = vld [vmem:[%s11 + $0x30] sm:$0xff]
  %v63 = vld [vmem:[%s11 + $0x38] sm:$0xff]
  %v64 = vld [vmem:[%s11 + $0x40] sm:$0xff]
  %v65 = vld [vmem:[%s11 + $0x48] sm:$0xff]
  %v66 = vld [vmem:[%s11 + $0x50] sm:$0xff]
  %v67 = vld [vmem:[%s11 + $0x58] sm:$0xff]
  %v68 = vld [vmem:[%s11 + $0x60] sm:$0xff]
  %v69 = vld [vmem:[%s11 + $0x68] sm:$0xff]
  %v70 = vld [vmem:[%s11 + $0x70] sm:$0xff]
  %v71 = vld [vmem:[%s11 + $0x78] sm:$0xff]
  %v72 = vld [vmem:[%s11 + $0x80] sm:$0xff]
  %v73 = vld [vmem:[%s11 + $0x88] sm:$0xff]
  %v74 = vld [vmem:[%s11 + $0x90] sm:$0xff]
  %v75 = vld [vmem:[%s11 + $0x98] sm:$0xff]
  %v76 = vld [vmem:[%s11 + $0xa0] sm:$0xff]
  %v77 = vld [vmem:[%s11 + $0xa8] sm:$0xff]
  %v78 = vld [vmem:[%s11 + $0xb0] sm:$0xff]
  %v79 = vld [vmem:[%s11 + $0xb8] sm:$0xff]
  %v80 = vld [vmem:[%s11 + $0xc0] sm:$0xff]
  %v81 = vld [vmem:[%s11 + $0xc8] sm:$0xff]
  %v82 = vld [vmem:[%s11 + $0xd0] sm:$0xff]
  %v83 = vld [vmem:[%s11 + $0xd8] sm:$0xff]
  %v84 = vld [vmem:[%s11 + $0xe0] sm:$0xff]
  %v85 = vld [vmem:[%s11 + $0xe8] sm:$0xff]
  %v86 = vld [vmem:[%s11 + $0xf0] sm:$0xff]
  %v87 = vld [vmem:[%s11 + $0xf8] sm:$0xff]
  %v88 = vld [vmem:[%s11 + $0x100] sm:$0xff]
  %v89 = vld [vmem:[%s11 + $0x108] sm:$0xff]
  %v90 = vld [vmem:[%s11 + $0x110] sm:$0xff]
  %v91 = vld [vmem:[%s11 + $0x118] sm:$0xff]
  %v92 = vld [vmem:[%s11 + $0x120] sm:$0xff]
  %v93 = vld [vmem:[%s11 + $0x128] sm:$0xff]
  %v94 = vld [vmem:[%s11 + $0x130] sm:$0xff]
  %v95 = vld [vmem:[%s11 + $0x138] sm:$0xff]
  %v96 = vld [vmem:[%s10] sm:$0xff]
  %v97 = vld [vmem:[%s10 + $0x8] sm:$0xff]
  %v98 = vld [vmem:[%s0] sm:$0xf]
  %v99 = vld [vmem:[%s0 + $0x4] sm:$0xf]
  %v100 = vld [vmem:[%s0 + $0x8] sm:$0xf]
  %v101 = vld [vmem:[%s0 + $0xc] sm:$0xf]
  %v102 = vld [vmem:[%s0 + $0x10] sm:$0xf]
  %v103 = vld [vmem:[%s0 + $0x14] sm:$0xf]
  %v104 = vld [vmem:[%s0 + $0x18] sm:$0xf]
  %v105 = vld [vmem:[%s0 + $0x1c] sm:$0xf]
  %v106 = vld [vmem:[%s0 + $0x20] sm:$0xf]
  %v107 = vld [vmem:[%s0 + $0x24] sm:$0xf]
  %v108 = vld [vmem:[%s0 + $0x28] sm:$0xf]
  %v109 = vld [vmem:[%s0 + $0x2c] sm:$0xf]
  %v110 = vld [vmem:[%s0 + $0x30] sm:$0xf]
  %v111 = vld [vmem:[%s0 + $0x34] sm:$0xf]
  %v112 = vld [vmem:[%s0 + $0x38] sm:$0xf]
  %v113 = vld [vmem:[%s0 + $0x3c] sm:$0xf]
  %v114 = vld [vmem:[%s0 + $0x40] sm:$0xf]
  %v115 = vld [vmem:[%s0 + $0x44] sm:$0xf]
  %v116 = vld [vmem:[%s0 + $0x48] sm:$0xf]
  %v117 = vld [vmem:[%s0 + $0x4c] sm:$0xf]
  %v118 = vld [vmem:[%s0 + $0x50] sm:$0xf]
  %v119 = vld [vmem:[%s0 + $0x54] sm:$0xf]
  %v120 = vld [vmem:[%s0 + $0x58] sm:$0xf]
  %v121 = vld [vmem:[%s0 + $0x5c] sm:$0xf]
  %v122 = vld [vmem:[%s0 + $0x60] sm:$0xf]
  %v123 = vld [vmem:[%s0 + $0x64] sm:$0xf]
  %v124 = vld [vmem:[%s0 + $0x68] sm:$0xf]
  %v125 = vld [vmem:[%s0 + $0x6c] sm:$0xf]
  %v126 = vld [vmem:[%s0 + $0x70] sm:$0xf]
  %v127 = vld [vmem:[%s0 + $0x74] sm:$0xf]
  %v128 = vld [vmem:[%s0 + $0x78] sm:$0xf]
  %v129 = vld [vmem:[%s0 + $0x7c] sm:$0xf]
  %v130 = vld [vmem:[%s0 + $0x80] sm:$0xf]
  %v131 = vld [vmem:[%s0 + $0x84] sm:$0xf]
  %v132 = vld [vmem:[%s0 + $0x88] sm:$0xf]
  %v133 = vld [vmem:[%s0 + $0x8c] sm:$0xf]
  %v134 = vld [vmem:[%s0 + $0x90] sm:$0xf]
  %v135 = vld [vmem:[%s0 + $0x94] sm:$0xf]
  %v136 = vld [vmem:[%s0 + $0x98] sm:$0xf]
  %v137 = vld [vmem:[%s0 + $0x9c] sm:$0xf]
  %v138 = vld [vmem:[%s2] sm:$0xf]
  %v139 = vld [vmem:[%s3] sm:$0x1]
  %v141 = vlaneseq
  %v142 = vshrl.u32 %v141, 7
  %v143 = vsub.s32 0, %v142
  %v144 = vrot.slane %v139, %v143
  %v186 = vunpack.c.l.b16 %v98
  %v187 = vunpack.c.l.b16 %v99
  %v188 = vunpack.c.l.b16 %v100
  %v189 = vunpack.c.l.b16 %v101
  %v190 = vunpack.c.l.b16 %v102
  %v191 = vunpack.c.l.b16 %v103
  %v192 = vunpack.c.l.b16 %v104
  %v193 = vunpack.c.l.b16 %v105
  %v194 = vunpack.c.l.b16 %v106
  %v195 = vunpack.c.l.b16 %v107
  %v196 = vunpack.c.l.b16 %v108
  %v197 = vunpack.c.l.b16 %v109
  %v198 = vunpack.c.l.b16 %v110
  %v199 = vunpack.c.l.b16 %v111
  %v200 = vunpack.c.l.b16 %v112
  %v201 = vunpack.c.l.b16 %v113
  %v202 = vunpack.c.l.b16 %v114
  %v203 = vunpack.c.l.b16 %v115
  %v204 = vunpack.c.l.b16 %v116
  %v205 = vunpack.c.l.b16 %v117
  %v206 = vunpack.c.l.b16 %v118
  %v207 = vunpack.c.l.b16 %v119
  %v208 = vunpack.c.l.b16 %v120
  %v209 = vunpack.c.l.b16 %v121
  %v210 = vunpack.c.l.b16 %v122
  %v211 = vunpack.c.l.b16 %v123
  %v212 = vunpack.c.l.b16 %v124
  %v213 = vunpack.c.l.b16 %v125
  %v214 = vunpack.c.l.b16 %v126
  %v215 = vunpack.c.l.b16 %v127
  %v216 = vunpack.c.l.b16 %v128
  %v217 = vunpack.c.l.b16 %v129
  %v218 = vunpack.c.l.b16 %v130
  %v219 = vunpack.c.l.b16 %v131
  %v220 = vunpack.c.l.b16 %v132
  %v221 = vunpack.c.l.b16 %v133
  %v222 = vunpack.c.l.b16 %v134
  %v223 = vunpack.c.l.b16 %v135
  %v224 = vunpack.c.l.b16 %v136
  %v225 = vunpack.c.l.b16 %v137
  %v226 = vpack.c.b16 %v187, %v186
  %v227 = vpack.c.b16 %v189, %v188
  %v228 = vpack.c.b16 %v191, %v190
  %v229 = vpack.c.b16 %v193, %v192
  %v230 = vpack.c.b16 %v195, %v194
  %v231 = vpack.c.b16 %v197, %v196
  %v232 = vpack.c.b16 %v199, %v198
  %v233 = vpack.c.b16 %v201, %v200
  %v234 = vpack.c.b16 %v203, %v202
  %v235 = vpack.c.b16 %v205, %v204
  %v236 = vpack.c.b16 %v207, %v206
  %v237 = vpack.c.b16 %v209, %v208
  %v238 = vpack.c.b16 %v211, %v210
  %v239 = vpack.c.b16 %v213, %v212
  %v240 = vpack.c.b16 %v215, %v214
  %v241 = vpack.c.b16 %v217, %v216
  %v242 = vpack.c.b16 %v219, %v218
  %v243 = vpack.c.b16 %v221, %v220
  %v244 = vpack.c.b16 %v223, %v222
  %v245 = vpack.c.b16 %v225, %v224
  %vm246 = vcmask 64512
  %v248 = vsel %vm246, %v226, 0
  %v251 = vsel %vm246, %v227, 0
  %v254 = vsel %vm246, %v228, 0
  %v257 = vsel %vm246, %v229, 0
  %v260 = vsel %vm246, %v230, 0
  %v263 = vsel %vm246, %v231, 0
  %v266 = vsel %vm246, %v232, 0
  %v269 = vsel %vm246, %v233, 0
  %v272 = vsel %vm246, %v234, 0
  %v275 = vsel %vm246, %v235, 0
  %v278 = vsel %vm246, %v236, 0
  %v281 = vsel %vm246, %v237, 0
  %v284 = vsel %vm246, %v238, 0
  %v287 = vsel %vm246, %v239, 0
  %v290 = vsel %vm246, %v240, 0
  %v293 = vsel %vm246, %v241, 0
  %v296 = vsel %vm246, %v242, 0
  %v299 = vsel %vm246, %v243, 0
  %v302 = vsel %vm246, %v244, 0
  %v305 = vsel %vm246, %v245, 0
  %vm307 = vcmask 1043456
  %v309 = vsel %vm307, %v138, 0
  %311 = vmatprep.subr.bf16.mxu0 0
  %312 = vmatpush1.bf16.msra.mxu0 %v309
  %313 = vmatprep.subr.bf16.mxu0 0
  %314 = vmatpush1.bf16.msra.mxu0 0
  %315 = vmatprep.subr.bf16.mxu0 0
  %316 = vmatpush1.bf16.msra.mxu0 0
  %317 = vmatprep.subr.bf16.mxu0 0
  %318 = vmatpush1.bf16.msra.mxu0 0
  %319 = vmatprep.subr.bf16.mxu0 0
  %320 = vmatpush1.bf16.msra.mxu0 0
  %321 = vmatprep.subr.bf16.mxu0 0
  %322 = vmatpush1.bf16.msra.mxu0 0
  %323 = vmatprep.subr.bf16.mxu0 0
  %324 = vmatpush1.bf16.msra.mxu0 0
  %325 = vmatprep.subr.bf16.mxu0 0
  %326 = vmatpush1.bf16.msra.mxu0 0
  %327 = vmatprep.subr.bf16.mxu0 0
  %328 = vmatpush1.bf16.msra.mxu0 0
  %329 = vmatprep.subr.bf16.mxu0 0
  %330 = vmatpush1.bf16.msra.mxu0 0
  %331 = vmatprep.subr.bf16.mxu0 0
  %332 = vmatpush1.bf16.msra.mxu0 0
  %333 = vmatprep.subr.bf16.mxu0 0
  %334 = vmatpush1.bf16.msra.mxu0 0
  %335 = vmatprep.subr.bf16.mxu0 0
  %336 = vmatpush1.bf16.msra.mxu0 0
  %337 = vmatprep.subr.bf16.mxu0 0
  %338 = vmatpush1.bf16.msra.mxu0 0
  %339 = vmatprep.subr.bf16.mxu0 0
  %340 = vmatpush1.bf16.msra.mxu0 0
  %341 = vmatprep.subr.bf16.mxu0 0
  %342 = vmatpush1.bf16.msra.mxu0 0
  %343 = vmatprep.mubr.bf16.mxu0 0
  %344 = vmatmul.mubr.bf16.gmra.mrb[0].mxu0 %v248
  %v345 = vpop.f32.mrb[0].mxu0
  %v346 = vadd.f32 %v144, %v345
  %v347 = vpop.f32.mrb[0].mxu0
  %v348 = vpop.f32.mrb[0].mxu0
  %v349 = vadd.f32 %v144, %v348
  %v350 = vpop.f32.mrb[0].mxu0
  %351 = vmatprep.mubr.bf16.mxu0 0
  %352 = vmatmul.mubr.bf16.gmra.mrb[0].mxu0 %v251
  %v353 = vpop.f32.mrb[0].mxu0
  %v354 = vadd.f32 %v144, %v353
  %v355 = vpop.f32.mrb[0].mxu0
  %v356 = vpop.f32.mrb[0].mxu0
  %v357 = vadd.f32 %v144, %v356
  %v358 = vpop.f32.mrb[0].mxu0
  %359 = vmatprep.mubr.bf16.mxu0 0
  %360 = vmatmul.mubr.bf16.gmra.mrb[0].mxu0 %v254
  %v361 = vpop.f32.mrb[0].mxu0
  %v362 = vadd.f32 %v144, %v361
  %v363 = vpop.f32.mrb[0].mxu0
  %v364 = vpop.f32.mrb[0].mxu0
  %v365 = vadd.f32 %v144, %v364
  %v366 = vpop.f32.mrb[0].mxu0
  %367 = vmatprep.mubr.bf16.mxu0 0
  %368 = vmatmul.mubr.bf16.gmra.mrb[0].mxu0 %v257
  %v369 = vpop.f32.mrb[0].mxu0
  %v370 = vadd.f32 %v144, %v369
  %v371 = vpop.f32.mrb[0].mxu0
  %v372 = vpop.f32.mrb[0].mxu0
  %v373 = vadd.f32 %v144, %v372
  %v374 = vpop.f32.mrb[0].mxu0
  %375 = vmatprep.mubr.bf16.mxu0 0
  %376 = vmatmul.mubr.bf16.gmra.mrb[0].mxu0 %v260
  %v377 = vpop.f32.mrb[0].mxu0
  %v378 = vadd.f32 %v144, %v377
  %v379 = vpop.f32.mrb[0].mxu0
  %v380 = vpop.f32.mrb[0].mxu0
  %v381 = vadd.f32 %v144, %v380
  %v382 = vpop.f32.mrb[0].mxu0
  %383 = vmatprep.mubr.bf16.mxu0 0
  %384 = vmatmul.mubr.bf16.gmra.mrb[0].mxu0 %v263
  %v385 = vpop.f32.mrb[0].mxu0
  %v386 = vadd.f32 %v144, %v385
  %v387 = vpop.f32.mrb[0].mxu0
  %v388 = vpop.f32.mrb[0].mxu0
  %v389 = vadd.f32 %v144, %v388
  %v390 = vpop.f32.mrb[0].mxu0
  %391 = vmatprep.mubr.bf16.mxu0 0
  %392 = vmatmul.mubr.bf16.gmra.mrb[0].mxu0 %v266
  %v393 = vpop.f32.mrb[0].mxu0
  %v394 = vadd.f32 %v144, %v393
  %v395 = vpop.f32.mrb[0].mxu0
  %v396 = vpop.f32.mrb[0].mxu0
  %v397 = vadd.f32 %v144, %v396
  %v398 = vpop.f32.mrb[0].mxu0
  %399 = vmatprep.mubr.bf16.mxu0 0
  %400 = vmatmul.mubr.bf16.gmra.mrb[0].mxu0 %v269
  %v401 = vpop.f32.mrb[0].mxu0
  %v402 = vadd.f32 %v144, %v401
  %v403 = vpop.f32.mrb[0].mxu0
  %v404 = vpop.f32.mrb[0].mxu0
  %v405 = vadd.f32 %v144, %v404
  %v406 = vpop.f32.mrb[0].mxu0
  %407 = vmatprep.mubr.bf16.mxu0 0
  %408 = vmatmul.mubr.bf16.gmra.mrb[0].mxu0 %v272
  %v409 = vpop.f32.mrb[0].mxu0
  %v410 = vadd.f32 %v144, %v409
  %v411 = vpop.f32.mrb[0].mxu0
  %v412 = vpop.f32.mrb[0].mxu0
  %v413 = vadd.f32 %v144, %v412
  %v414 = vpop.f32.mrb[0].mxu0
  %415 = vmatprep.mubr.bf16.mxu0 0
  %416 = vmatmul.mubr.bf16.gmra.mrb[0].mxu0 %v275
  %v417 = vpop.f32.mrb[0].mxu0
  %v418 = vadd.f32 %v144, %v417
  %v419 = vpop.f32.mrb[0].mxu0
  %v420 = vpop.f32.mrb[0].mxu0
  %v421 = vadd.f32 %v144, %v420
  %v422 = vpop.f32.mrb[0].mxu0
  %423 = vmatprep.mubr.bf16.mxu0 0
  %424 = vmatmul.mubr.bf16.gmra.mrb[0].mxu0 %v278
  %v425 = vpop.f32.mrb[0].mxu0
  %v426 = vadd.f32 %v144, %v425
  %v427 = vpop.f32.mrb[0].mxu0
  %v428 = vpop.f32.mrb[0].mxu0
  %v429 = vadd.f32 %v144, %v428
  %v430 = vpop.f32.mrb[0].mxu0
  %431 = vmatprep.mubr.bf16.mxu0 0
  %432 = vmatmul.mubr.bf16.gmra.mrb[0].mxu0 %v281
  %v433 = vpop.f32.mrb[0].mxu0
  %v434 = vadd.f32 %v144, %v433
  %v435 = vpop.f32.mrb[0].mxu0
  %v436 = vpop.f32.mrb[0].mxu0
  %v437 = vadd.f32 %v144, %v436
  %v438 = vpop.f32.mrb[0].mxu0
  %439 = vmatprep.mubr.bf16.mxu0 0
  %440 = vmatmul.mubr.bf16.gmra.mrb[0].mxu0 %v284
  %v441 = vpop.f32.mrb[0].mxu0
  %v442 = vadd.f32 %v144, %v441
  %v443 = vpop.f32.mrb[0].mxu0
  %v444 = vpop.f32.mrb[0].mxu0
  %v445 = vadd.f32 %v144, %v444
  %v446 = vpop.f32.mrb[0].mxu0
  %447 = vmatprep.mubr.bf16.mxu0 0
  %448 = vmatmul.mubr.bf16.gmra.mrb[0].mxu0 %v287
  %v449 = vpop.f32.mrb[0].mxu0
  %v450 = vadd.f32 %v144, %v449
  %v451 = vpop.f32.mrb[0].mxu0
  %v452 = vpop.f32.mrb[0].mxu0
  %v453 = vadd.f32 %v144, %v452
  %v454 = vpop.f32.mrb[0].mxu0
  %455 = vmatprep.mubr.bf16.mxu0 0
  %456 = vmatmul.mubr.bf16.gmra.mrb[0].mxu0 %v290
  %v457 = vpop.f32.mrb[0].mxu0
  %v458 = vadd.f32 %v144, %v457
  %v459 = vpop.f32.mrb[0].mxu0
  %v460 = vpop.f32.mrb[0].mxu0
  %v461 = vadd.f32 %v144, %v460
  %v462 = vpop.f32.mrb[0].mxu0
  %463 = vmatprep.mubr.bf16.mxu0 0
  %464 = vmatmul.mubr.bf16.gmra.mrb[0].mxu0 %v293
  %v465 = vpop.f32.mrb[0].mxu0
  %v466 = vadd.f32 %v144, %v465
  %v467 = vpop.f32.mrb[0].mxu0
  %v468 = vpop.f32.mrb[0].mxu0
  %v469 = vadd.f32 %v144, %v468
  %v470 = vpop.f32.mrb[0].mxu0
  %471 = vmatprep.mubr.bf16.mxu0 0
  %472 = vmatmul.mubr.bf16.gmra.mrb[0].mxu0 %v296
  %v473 = vpop.f32.mrb[0].mxu0
  %v474 = vadd.f32 %v144, %v473
  %v475 = vpop.f32.mrb[0].mxu0
  %v476 = vpop.f32.mrb[0].mxu0
  %v477 = vadd.f32 %v144, %v476
  %v478 = vpop.f32.mrb[0].mxu0
  %479 = vmatprep.mubr.bf16.mxu0 0
  %480 = vmatmul.mubr.bf16.gmra.mrb[0].mxu0 %v299
  %v481 = vpop.f32.mrb[0].mxu0
  %v482 = vadd.f32 %v144, %v481
  %v483 = vpop.f32.mrb[0].mxu0
  %v484 = vpop.f32.mrb[0].mxu0
  %v485 = vadd.f32 %v144, %v484
  %v486 = vpop.f32.mrb[0].mxu0
  %487 = vmatprep.mubr.bf16.mxu0 0
  %488 = vmatmul.mubr.bf16.gmra.mrb[0].mxu0 %v302
  %v489 = vpop.f32.mrb[0].mxu0
  %v490 = vadd.f32 %v144, %v489
  %v491 = vpop.f32.mrb[0].mxu0
  %v492 = vpop.f32.mrb[0].mxu0
  %v493 = vadd.f32 %v144, %v492
  %v494 = vpop.f32.mrb[0].mxu0
  %495 = vmatprep.mubr.bf16.mxu0 0
  %496 = vmatmul.mubr.bf16.gmra.mrb[0].mxu0 %v305
  %v497 = vpop.f32.mrb[0].mxu0
  %v498 = vadd.f32 %v144, %v497
  %v499 = vpop.f32.mrb[0].mxu0
  %v500 = vpop.f32.mrb[0].mxu0
  %v501 = vadd.f32 %v144, %v500
  %v502 = vpop.f32.mrb[0].mxu0
  %503 = vdwg.mxu0
  %505 = vset.pattern.permute.xlu0 0
  %506 = vperm.xlu0 %505, %v56
  %v507 = vpop.permute.xlu0 %506
  %510 = vset.pattern.permute.xlu0 0
  %511 = vperm.xlu0 %510, %v57
  %v512 = vpop.permute.xlu0 %511
  %515 = vset.pattern.permute.xlu0 0
  %516 = vperm.xlu0 %515, %v58
  %v517 = vpop.permute.xlu0 %516
  %520 = vset.pattern.permute.xlu0 0
  %521 = vperm.xlu0 %520, %v59
  %v522 = vpop.permute.xlu0 %521
  %525 = vset.pattern.permute.xlu0 0
  %526 = vperm.xlu0 %525, %v60
  %v527 = vpop.permute.xlu0 %526
  %530 = vset.pattern.permute.xlu0 0
  %531 = vperm.xlu0 %530, %v61
  %v532 = vpop.permute.xlu0 %531
  %535 = vset.pattern.permute.xlu0 0
  %536 = vperm.xlu0 %535, %v62
  %v537 = vpop.permute.xlu0 %536
  %540 = vset.pattern.permute.xlu0 0
  %541 = vperm.xlu0 %540, %v63
  %v542 = vpop.permute.xlu0 %541
  %545 = vset.pattern.permute.xlu0 0
  %546 = vperm.xlu0 %545, %v64
  %v547 = vpop.permute.xlu0 %546
  %550 = vset.pattern.permute.xlu0 0
  %551 = vperm.xlu0 %550, %v65
  %v552 = vpop.permute.xlu0 %551
  %555 = vset.pattern.permute.xlu0 0
  %556 = vperm.xlu0 %555, %v66
  %v557 = vpop.permute.xlu0 %556
  %560 = vset.pattern.permute.xlu0 0
  %561 = vperm.xlu0 %560, %v67
  %v562 = vpop.permute.xlu0 %561
  %565 = vset.pattern.permute.xlu0 0
  %566 = vperm.xlu0 %565, %v68
  %v567 = vpop.permute.xlu0 %566
  %570 = vset.pattern.permute.xlu0 0
  %571 = vperm.xlu0 %570, %v69
  %v572 = vpop.permute.xlu0 %571
  %575 = vset.pattern.permute.xlu0 0
  %576 = vperm.xlu0 %575, %v70
  %v577 = vpop.permute.xlu0 %576
  %580 = vset.pattern.permute.xlu0 0
  %581 = vperm.xlu0 %580, %v71
  %v582 = vpop.permute.xlu0 %581
  %585 = vset.pattern.permute.xlu0 0
  %586 = vperm.xlu0 %585, %v72
  %v587 = vpop.permute.xlu0 %586
  %590 = vset.pattern.permute.xlu0 0
  %591 = vperm.xlu0 %590, %v73
  %v592 = vpop.permute.xlu0 %591
  %595 = vset.pattern.permute.xlu0 0
  %596 = vperm.xlu0 %595, %v74
  %v597 = vpop.permute.xlu0 %596
  %600 = vset.pattern.permute.xlu0 0
  %601 = vperm.xlu0 %600, %v75
  %v602 = vpop.permute.xlu0 %601
  %605 = vset.pattern.permute.xlu0 0
  %606 = vperm.xlu0 %605, %v76
  %v607 = vpop.permute.xlu0 %606
  %610 = vset.pattern.permute.xlu0 0
  %611 = vperm.xlu0 %610, %v77
  %v612 = vpop.permute.xlu0 %611
  %615 = vset.pattern.permute.xlu0 0
  %616 = vperm.xlu0 %615, %v78
  %v617 = vpop.permute.xlu0 %616
  %620 = vset.pattern.permute.xlu0 0
  %621 = vperm.xlu0 %620, %v79
  %v622 = vpop.permute.xlu0 %621
  %625 = vset.pattern.permute.xlu0 0
  %626 = vperm.xlu0 %625, %v80
  %v627 = vpop.permute.xlu0 %626
  %630 = vset.pattern.permute.xlu0 0
  %631 = vperm.xlu0 %630, %v81
  %v632 = vpop.permute.xlu0 %631
  %635 = vset.pattern.permute.xlu0 0
  %636 = vperm.xlu0 %635, %v82
  %v637 = vpop.permute.xlu0 %636
  %640 = vset.pattern.permute.xlu0 0
  %641 = vperm.xlu0 %640, %v83
  %v642 = vpop.permute.xlu0 %641
  %645 = vset.pattern.permute.xlu0 0
  %646 = vperm.xlu0 %645, %v84
  %v647 = vpop.permute.xlu0 %646
  %650 = vset.pattern.permute.xlu0 0
  %651 = vperm.xlu0 %650, %v85
  %v652 = vpop.permute.xlu0 %651
  %655 = vset.pattern.permute.xlu0 0
  %656 = vperm.xlu0 %655, %v86
  %v657 = vpop.permute.xlu0 %656
  %660 = vset.pattern.permute.xlu0 0
  %661 = vperm.xlu0 %660, %v87
  %v662 = vpop.permute.xlu0 %661
  %665 = vset.pattern.permute.xlu0 0
  %666 = vperm.xlu0 %665, %v88
  %v667 = vpop.permute.xlu0 %666
  %670 = vset.pattern.permute.xlu0 0
  %671 = vperm.xlu0 %670, %v89
  %v672 = vpop.permute.xlu0 %671
  %675 = vset.pattern.permute.xlu0 0
  %676 = vperm.xlu0 %675, %v90
  %v677 = vpop.permute.xlu0 %676
  %680 = vset.pattern.permute.xlu0 0
  %681 = vperm.xlu0 %680, %v91
  %v682 = vpop.permute.xlu0 %681
  %685 = vset.pattern.permute.xlu0 0
  %686 = vperm.xlu0 %685, %v92
  %v687 = vpop.permute.xlu0 %686
  %690 = vset.pattern.permute.xlu0 0
  %691 = vperm.xlu0 %690, %v93
  %v692 = vpop.permute.xlu0 %691
  %695 = vset.pattern.permute.xlu0 0
  %696 = vperm.xlu0 %695, %v94
  %v697 = vpop.permute.xlu0 %696
  %700 = vset.pattern.permute.xlu0 0
  %701 = vperm.xlu0 %700, %v95
  %v702 = vpop.permute.xlu0 %701
  %v704 = vmul.f32 %v346, %v507
  %v705 = vmul.f32 %v349, %v512
  %v706 = vmul.f32 %v354, %v517
  %v707 = vmul.f32 %v357, %v522
  %v708 = vmul.f32 %v362, %v527
  %v709 = vmul.f32 %v365, %v532
  %v710 = vmul.f32 %v370, %v537
  %v711 = vmul.f32 %v373, %v542
  %v712 = vmul.f32 %v378, %v547
  %v713 = vmul.f32 %v381, %v552
  %v714 = vmul.f32 %v386, %v557
  %v715 = vmul.f32 %v389, %v562
  %v716 = vmul.f32 %v394, %v567
  %v717 = vmul.f32 %v397, %v572
  %v718 = vmul.f32 %v402, %v577
  %v719 = vmul.f32 %v405, %v582
  %v720 = vmul.f32 %v410, %v587
  %v721 = vmul.f32 %v413, %v592
  %v722 = vmul.f32 %v418, %v597
  %v723 = vmul.f32 %v421, %v602
  %v724 = vmul.f32 %v426, %v607
  %v725 = vmul.f32 %v429, %v612
  %v726 = vmul.f32 %v434, %v617
  %v727 = vmul.f32 %v437, %v622
  %v728 = vmul.f32 %v442, %v627
  %v729 = vmul.f32 %v445, %v632
  %v730 = vmul.f32 %v450, %v637
  %v731 = vmul.f32 %v453, %v642
  %v732 = vmul.f32 %v458, %v647
  %v733 = vmul.f32 %v461, %v652
  %v734 = vmul.f32 %v466, %v657
  %v735 = vmul.f32 %v469, %v662
  %v736 = vmul.f32 %v474, %v667
  %v737 = vmul.f32 %v477, %v672
  %v738 = vmul.f32 %v482, %v677
  %v739 = vmul.f32 %v485, %v682
  %v740 = vmul.f32 %v490, %v687
  %v741 = vmul.f32 %v493, %v692
  %v742 = vmul.f32 %v498, %v697
  %v743 = vmul.f32 %v501, %v702
  %v744 = vpack.c.bf16 %v705, %v704
  %v745 = vpack.c.bf16 %v707, %v706
  %v746 = vpack.c.bf16 %v709, %v708
  %v747 = vpack.c.bf16 %v711, %v710
  %v748 = vpack.c.bf16 %v713, %v712
  %v749 = vpack.c.bf16 %v715, %v714
  %v750 = vpack.c.bf16 %v717, %v716
  %v751 = vpack.c.bf16 %v719, %v718
  %v752 = vpack.c.bf16 %v721, %v720
  %v753 = vpack.c.bf16 %v723, %v722
  %v754 = vpack.c.bf16 %v725, %v724
  %v755 = vpack.c.bf16 %v727, %v726
  %v756 = vpack.c.bf16 %v729, %v728
  %v757 = vpack.c.bf16 %v731, %v730
  %v758 = vpack.c.bf16 %v733, %v732
  %v759 = vpack.c.bf16 %v735, %v734
  %v760 = vpack.c.bf16 %v737, %v736
  %v761 = vpack.c.bf16 %v739, %v738
  %v762 = vpack.c.bf16 %v741, %v740
  %v763 = vpack.c.bf16 %v743, %v742
  %v764 = vld [vmem:[%s1] sm:$0xf]
  %v765 = vld [vmem:[%s1 + $0x4] sm:$0xf]
  %v766 = vld [vmem:[%s1 + $0x8] sm:$0xf]
  %v767 = vld [vmem:[%s1 + $0xc] sm:$0xf]
  %v768 = vld [vmem:[%s1 + $0x10] sm:$0xf]
  %v769 = vld [vmem:[%s1 + $0x14] sm:$0xf]
  %v770 = vld [vmem:[%s1 + $0x18] sm:$0xf]
  %v771 = vld [vmem:[%s1 + $0x1c] sm:$0xf]
  %v772 = vld [vmem:[%s1 + $0x20] sm:$0xf]
  %v773 = vld [vmem:[%s1 + $0x24] sm:$0xf]
  %v774 = vld [vmem:[%s1 + $0x28] sm:$0xf]
  %v775 = vld [vmem:[%s1 + $0x2c] sm:$0xf]
  %v776 = vld [vmem:[%s1 + $0x30] sm:$0xf]
  %v777 = vld [vmem:[%s1 + $0x34] sm:$0xf]
  %v778 = vld [vmem:[%s1 + $0x38] sm:$0xf]
  %v779 = vld [vmem:[%s1 + $0x3c] sm:$0xf]
  %v780 = vld [vmem:[%s1 + $0x40] sm:$0xf]
  %v781 = vld [vmem:[%s1 + $0x44] sm:$0xf]
  %v782 = vld [vmem:[%s1 + $0x48] sm:$0xf]
  %v783 = vld [vmem:[%s1 + $0x4c] sm:$0xf]
  %v784 = vld [vmem:[%s1 + $0x50] sm:$0xf]
  %v785 = vld [vmem:[%s1 + $0x54] sm:$0xf]
  %v786 = vld [vmem:[%s1 + $0x58] sm:$0xf]
  %v787 = vld [vmem:[%s1 + $0x5c] sm:$0xf]
  %v788 = vld [vmem:[%s1 + $0x60] sm:$0xf]
  %v789 = vld [vmem:[%s1 + $0x64] sm:$0xf]
  %v790 = vld [vmem:[%s1 + $0x68] sm:$0xf]
  %v791 = vld [vmem:[%s1 + $0x6c] sm:$0xf]
  %v792 = vld [vmem:[%s1 + $0x70] sm:$0xf]
  %v793 = vld [vmem:[%s1 + $0x74] sm:$0xf]
  %v794 = vld [vmem:[%s1 + $0x78] sm:$0xf]
  %v795 = vld [vmem:[%s1 + $0x7c] sm:$0xf]
  %v796 = vld [vmem:[%s1 + $0x80] sm:$0xf]
  %v797 = vld [vmem:[%s1 + $0x84] sm:$0xf]
  %v798 = vld [vmem:[%s1 + $0x88] sm:$0xf]
  %v799 = vld [vmem:[%s1 + $0x8c] sm:$0xf]
  %v800 = vld [vmem:[%s1 + $0x90] sm:$0xf]
  %v801 = vld [vmem:[%s1 + $0x94] sm:$0xf]
  %v802 = vld [vmem:[%s1 + $0x98] sm:$0xf]
  %v803 = vld [vmem:[%s1 + $0x9c] sm:$0xf]
  %v844 = vunpack.c.l.b16 %v764
  %v845 = vunpack.c.l.b16 %v765
  %v846 = vunpack.c.l.b16 %v766
  %v847 = vunpack.c.l.b16 %v767
  %v848 = vunpack.c.l.b16 %v768
  %v849 = vunpack.c.l.b16 %v769
  %v850 = vunpack.c.l.b16 %v770
  %v851 = vunpack.c.l.b16 %v771
  %v852 = vunpack.c.l.b16 %v772
  %v853 = vunpack.c.l.b16 %v773
  %v854 = vunpack.c.l.b16 %v774
  %v855 = vunpack.c.l.b16 %v775
  %v856 = vunpack.c.l.b16 %v776
  %v857 = vunpack.c.l.b16 %v777
  %v858 = vunpack.c.l.b16 %v778
  %v859 = vunpack.c.l.b16 %v779
  %v860 = vunpack.c.l.b16 %v780
  %v861 = vunpack.c.l.b16 %v781
  %v862 = vunpack.c.l.b16 %v782
  %v863 = vunpack.c.l.b16 %v783
  %v864 = vunpack.c.l.b16 %v784
  %v865 = vunpack.c.l.b16 %v785
  %v866 = vunpack.c.l.b16 %v786
  %v867 = vunpack.c.l.b16 %v787
  %v868 = vunpack.c.l.b16 %v788
  %v869 = vunpack.c.l.b16 %v789
  %v870 = vunpack.c.l.b16 %v790
  %v871 = vunpack.c.l.b16 %v791
  %v872 = vunpack.c.l.b16 %v792
  %v873 = vunpack.c.l.b16 %v793
  %v874 = vunpack.c.l.b16 %v794
  %v875 = vunpack.c.l.b16 %v795
  %v876 = vunpack.c.l.b16 %v796
  %v877 = vunpack.c.l.b16 %v797
  %v878 = vunpack.c.l.b16 %v798
  %v879 = vunpack.c.l.b16 %v799
  %v880 = vunpack.c.l.b16 %v800
  %v881 = vunpack.c.l.b16 %v801
  %v882 = vunpack.c.l.b16 %v802
  %v883 = vunpack.c.l.b16 %v803
  %v884 = vpack.c.b16 %v845, %v844
  %v885 = vpack.c.b16 %v847, %v846
  %v886 = vpack.c.b16 %v849, %v848
  %v887 = vpack.c.b16 %v851, %v850
  %v888 = vpack.c.b16 %v853, %v852
  %v889 = vpack.c.b16 %v855, %v854
  %v890 = vpack.c.b16 %v857, %v856
  %v891 = vpack.c.b16 %v859, %v858
  %v892 = vpack.c.b16 %v861, %v860
  %v893 = vpack.c.b16 %v863, %v862
  %v894 = vpack.c.b16 %v865, %v864
  %v895 = vpack.c.b16 %v867, %v866
  %v896 = vpack.c.b16 %v869, %v868
  %v897 = vpack.c.b16 %v871, %v870
  %v898 = vpack.c.b16 %v873, %v872
  %v899 = vpack.c.b16 %v875, %v874
  %v900 = vpack.c.b16 %v877, %v876
  %v901 = vpack.c.b16 %v879, %v878
  %v902 = vpack.c.b16 %v881, %v880
  %v903 = vpack.c.b16 %v883, %v882
  %vm904 = vsmask.f32 256
  %v906 = vshrl.u32 %v884, 16
  %v908 = vrot.slane %v906, 7
  %v909 = vshll.u32 %v884, 16
  %v911 = vor.u32 %v908, %v909
  %v913 = vshrl.u32 %v885, 16
  %v915 = vrot.slane %v913, 7
  %v916 = vshll.u32 %v885, 16
  %v918 = vor.u32 %v915, %v916
  %v919 = vsel %vm904, %v908, %v918
  %v921 = vshrl.u32 %v886, 16
  %v923 = vrot.slane %v921, 7
  %v924 = vshll.u32 %v886, 16
  %v926 = vor.u32 %v923, %v924
  %v927 = vsel %vm904, %v915, %v926
  %v929 = vshrl.u32 %v887, 16
  %v931 = vrot.slane %v929, 7
  %v932 = vshll.u32 %v887, 16
  %v934 = vor.u32 %v931, %v932
  %v935 = vsel %vm904, %v923, %v934
  %v937 = vshrl.u32 %v888, 16
  %v939 = vrot.slane %v937, 7
  %v940 = vshll.u32 %v888, 16
  %v942 = vor.u32 %v939, %v940
  %v943 = vsel %vm904, %v931, %v942
  %v945 = vshrl.u32 %v889, 16
  %v947 = vrot.slane %v945, 7
  %v948 = vshll.u32 %v889, 16
  %v950 = vor.u32 %v947, %v948
  %v951 = vsel %vm904, %v939, %v950
  %v953 = vshrl.u32 %v890, 16
  %v955 = vrot.slane %v953, 7
  %v956 = vshll.u32 %v890, 16
  %v958 = vor.u32 %v955, %v956
  %v959 = vsel %vm904, %v947, %v958
  %v961 = vshrl.u32 %v891, 16
  %v963 = vrot.slane %v961, 7
  %v964 = vshll.u32 %v891, 16
  %v966 = vor.u32 %v963, %v964
  %v967 = vsel %vm904, %v955, %v966
  %v969 = vshrl.u32 %v892, 16
  %v971 = vrot.slane %v969, 7
  %v972 = vshll.u32 %v892, 16
  %v974 = vor.u32 %v971, %v972
  %v975 = vsel %vm904, %v963, %v974
  %v977 = vshrl.u32 %v893, 16
  %v979 = vrot.slane %v977, 7
  %v980 = vshll.u32 %v893, 16
  %v982 = vor.u32 %v979, %v980
  %v983 = vsel %vm904, %v971, %v982
  %v985 = vshrl.u32 %v894, 16
  %v987 = vrot.slane %v985, 7
  %v988 = vshll.u32 %v894, 16
  %v990 = vor.u32 %v987, %v988
  %v991 = vsel %vm904, %v979, %v990
  %v993 = vshrl.u32 %v895, 16
  %v995 = vrot.slane %v993, 7
  %v996 = vshll.u32 %v895, 16
  %v998 = vor.u32 %v995, %v996
  %v999 = vsel %vm904, %v987, %v998
  %v1001 = vshrl.u32 %v896, 16
  %v1003 = vrot.slane %v1001, 7
  %v1004 = vshll.u32 %v896, 16
  %v1006 = vor.u32 %v1003, %v1004
  %v1007 = vsel %vm904, %v995, %v1006
  %v1009 = vshrl.u32 %v897, 16
  %v1011 = vrot.slane %v1009, 7
  %v1012 = vshll.u32 %v897, 16
  %v1014 = vor.u32 %v1011, %v1012
  %v1015 = vsel %vm904, %v1003, %v1014
  %v1017 = vshrl.u32 %v898, 16
  %v1019 = vrot.slane %v1017, 7
  %v1020 = vshll.u32 %v898, 16
  %v1022 = vor.u32 %v1019, %v1020
  %v1023 = vsel %vm904, %v1011, %v1022
  %v1025 = vshrl.u32 %v899, 16
  %v1027 = vrot.slane %v1025, 7
  %v1028 = vshll.u32 %v899, 16
  %v1030 = vor.u32 %v1027, %v1028
  %v1031 = vsel %vm904, %v1019, %v1030
  %v1033 = vshrl.u32 %v900, 16
  %v1035 = vrot.slane %v1033, 7
  %v1036 = vshll.u32 %v900, 16
  %v1038 = vor.u32 %v1035, %v1036
  %v1039 = vsel %vm904, %v1027, %v1038
  %v1041 = vshrl.u32 %v901, 16
  %v1043 = vrot.slane %v1041, 7
  %v1044 = vshll.u32 %v901, 16
  %v1046 = vor.u32 %v1043, %v1044
  %v1047 = vsel %vm904, %v1035, %v1046
  %v1049 = vshrl.u32 %v902, 16
  %v1051 = vrot.slane %v1049, 7
  %v1052 = vshll.u32 %v902, 16
  %v1054 = vor.u32 %v1051, %v1052
  %v1055 = vsel %vm904, %v1043, %v1054
  %v1057 = vshrl.u32 %v903, 16
  %v1059 = vrot.slane %v1057, 7
  %v1060 = vshll.u32 %v903, 16
  %v1062 = vor.u32 %v1059, %v1060
  %v1063 = vsel %vm904, %v1051, %v1062
  %vm1085 = vcmask 130048
  %vm1086 = vsmask.f32 7938
  %vm1087 = vmand %vm1085, %vm1086
  %v1088 = vld [vmem:[#allocation2 + $0x8] sm:$0xff]
  %v1089 = vsel %vm1087, %v911, %v1088
  %1090 = vst [vmem:[#allocation2 + $0x8] sm:$0xff] %v1089
  %vm1091 = vcmask 130048
  %1092 = vst.msk [vmem:[#allocation2 + $0x10] sm:$0xff] %vm1091, %v919
  %1093 = vst.msk [vmem:[#allocation2 + $0x18] sm:$0xff] %vm1091, %v927
  %1094 = vst.msk [vmem:[#allocation2 + $0x20] sm:$0xff] %vm1091, %v935
  %1095 = vst.msk [vmem:[#allocation2 + $0x28] sm:$0xff] %vm1091, %v943
  %1096 = vst.msk [vmem:[#allocation2 + $0x30] sm:$0xff] %vm1091, %v951
  %1097 = vst.msk [vmem:[#allocation2 + $0x38] sm:$0xff] %vm1091, %v959
  %1098 = vst.msk [vmem:[#allocation2 + $0x40] sm:$0xff] %vm1091, %v967
  %1099 = vst.msk [vmem:[#allocation2 + $0x48] sm:$0xff] %vm1091, %v975
  %1100 = vst.msk [vmem:[#allocation2 + $0x50] sm:$0xff] %vm1091, %v983
  %1101 = vst.msk [vmem:[#allocation2 + $0x58] sm:$0xff] %vm1091, %v991
  %1102 = vst.msk [vmem:[#allocation2 + $0x60] sm:$0xff] %vm1091, %v999
  %1103 = vst.msk [vmem:[#allocation2 + $0x68] sm:$0xff] %vm1091, %v1007
  %1104 = vst.msk [vmem:[#allocation2 + $0x70] sm:$0xff] %vm1091, %v1015
  %1105 = vst.msk [vmem:[#allocation2 + $0x78] sm:$0xff] %vm1091, %v1023
  %1106 = vst.msk [vmem:[#allocation2 + $0x80] sm:$0xff] %vm1091, %v1031
  %1107 = vst.msk [vmem:[#allocation2 + $0x88] sm:$0xff] %vm1091, %v1039
  %1108 = vst.msk [vmem:[#allocation2 + $0x90] sm:$0xff] %vm1091, %v1047
  %1109 = vst.msk [vmem:[#allocation2 + $0x98] sm:$0xff] %vm1091, %v1055
  %1110 = vst.msk [vmem:[#allocation2 + $0xa0] sm:$0xff] %vm1091, %v1063
  %vm1111 = vcmask 122880
  %vm1112 = vmand %vm1111, %vm904
  %v1113 = vld [vmem:[#allocation2 + $0xa8] sm:$0x1]
  %v1114 = vsel %vm1112, %v1059, %v1113
  %1115 = vst [vmem:[#allocation2 + $0xa8] sm:$0x1] %v1114
  %v1117 = vshrl.u32 %v744, 16
  %v1119 = vrot.slane %v1117, 7
  %v1120 = vshll.u32 %v744, 16
  %v1122 = vor.u32 %v1119, %v1120
  %v1124 = vshrl.u32 %v745, 16
  %v1126 = vrot.slane %v1124, 7
  %v1127 = vshll.u32 %v745, 16
  %v1129 = vor.u32 %v1126, %v1127
  %v1130 = vsel %vm904, %v1119, %v1129
  %v1132 = vshrl.u32 %v746, 16
  %v1134 = vrot.slane %v1132, 7
  %v1135 = vshll.u32 %v746, 16
  %v1137 = vor.u32 %v1134, %v1135
  %v1138 = vsel %vm904, %v1126, %v1137
  %v1140 = vshrl.u32 %v747, 16
  %v1142 = vrot.slane %v1140, 7
  %v1143 = vshll.u32 %v747, 16
  %v1145 = vor.u32 %v1142, %v1143
  %v1146 = vsel %vm904, %v1134, %v1145
  %v1148 = vshrl.u32 %v748, 16
  %v1150 = vrot.slane %v1148, 7
  %v1151 = vshll.u32 %v748, 16
  %v1153 = vor.u32 %v1150, %v1151
  %v1154 = vsel %vm904, %v1142, %v1153
  %v1156 = vshrl.u32 %v749, 16
  %v1158 = vrot.slane %v1156, 7
  %v1159 = vshll.u32 %v749, 16
  %v1161 = vor.u32 %v1158, %v1159
  %v1162 = vsel %vm904, %v1150, %v1161
  %v1164 = vshrl.u32 %v750, 16
  %v1166 = vrot.slane %v1164, 7
  %v1167 = vshll.u32 %v750, 16
  %v1169 = vor.u32 %v1166, %v1167
  %v1170 = vsel %vm904, %v1158, %v1169
  %v1172 = vshrl.u32 %v751, 16
  %v1174 = vrot.slane %v1172, 7
  %v1175 = vshll.u32 %v751, 16
  %v1177 = vor.u32 %v1174, %v1175
  %v1178 = vsel %vm904, %v1166, %v1177
  %v1180 = vshrl.u32 %v752, 16
  %v1182 = vrot.slane %v1180, 7
  %v1183 = vshll.u32 %v752, 16
  %v1185 = vor.u32 %v1182, %v1183
  %v1186 = vsel %vm904, %v1174, %v1185
  %v1188 = vshrl.u32 %v753, 16
  %v1190 = vrot.slane %v1188, 7
  %v1191 = vshll.u32 %v753, 16
  %v1193 = vor.u32 %v1190, %v1191
  %v1194 = vsel %vm904, %v1182, %v1193
  %v1196 = vshrl.u32 %v754, 16
  %v1198 = vrot.slane %v1196, 7
  %v1199 = vshll.u32 %v754, 16
  %v1201 = vor.u32 %v1198, %v1199
  %v1202 = vsel %vm904, %v1190, %v1201
  %v1204 = vshrl.u32 %v755, 16
  %v1206 = vrot.slane %v1204, 7
  %v1207 = vshll.u32 %v755, 16
  %v1209 = vor.u32 %v1206, %v1207
  %v1210 = vsel %vm904, %v1198, %v1209
  %v1212 = vshrl.u32 %v756, 16
  %v1214 = vrot.slane %v1212, 7
  %v1215 = vshll.u32 %v756, 16
  %v1217 = vor.u32 %v1214, %v1215
  %v1218 = vsel %vm904, %v1206, %v1217
  %v1220 = vshrl.u32 %v757, 16
  %v1222 = vrot.slane %v1220, 7
  %v1223 = vshll.u32 %v757, 16
  %v1225 = vor.u32 %v1222, %v1223
  %v1226 = vsel %vm904, %v1214, %v1225
  %v1228 = vshrl.u32 %v758, 16
  %v1230 = vrot.slane %v1228, 7
  %v1231 = vshll.u32 %v758, 16
  %v1233 = vor.u32 %v1230, %v1231
  %v1234 = vsel %vm904, %v1222, %v1233
  %v1236 = vshrl.u32 %v759, 16
  %v1238 = vrot.slane %v1236, 7
  %v1239 = vshll.u32 %v759, 16
  %v1241 = vor.u32 %v1238, %v1239
  %v1242 = vsel %vm904, %v1230, %v1241
  %v1244 = vshrl.u32 %v760, 16
  %v1246 = vrot.slane %v1244, 7
  %v1247 = vshll.u32 %v760, 16
  %v1249 = vor.u32 %v1246, %v1247
  %v1250 = vsel %vm904, %v1238, %v1249
  %v1252 = vshrl.u32 %v761, 16
  %v1254 = vrot.slane %v1252, 7
  %v1255 = vshll.u32 %v761, 16
  %v1257 = vor.u32 %v1254, %v1255
  %v1258 = vsel %vm904, %v1246, %v1257
  %v1260 = vshrl.u32 %v762, 16
  %v1262 = vrot.slane %v1260, 7
  %v1263 = vshll.u32 %v762, 16
  %v1265 = vor.u32 %v1262, %v1263
  %v1266 = vsel %vm904, %v1254, %v1265
  %v1268 = vshrl.u32 %v763, 16
  %v1270 = vrot.slane %v1268, 7
  %v1271 = vshll.u32 %v763, 16
  %v1273 = vor.u32 %v1270, %v1271
  %v1274 = vsel %vm904, %v1262, %v1273
  %1275 = vrot.lane.b32.xlu0 %v1122, 16
  %v1276 = vpop.permute.xlu0 %1275
  %1277 = vrot.lane.b32.xlu0 %v1130, 16
  %v1278 = vpop.permute.xlu0 %1277
  %1279 = vrot.lane.b32.xlu0 %v1138, 16
  %v1280 = vpop.permute.xlu0 %1279
  %1281 = vrot.lane.b32.xlu0 %v1146, 16
  %v1282 = vpop.permute.xlu0 %1281
  %1283 = vrot.lane.b32.xlu0 %v1154, 16
  %v1284 = vpop.permute.xlu0 %1283
  %1285 = vrot.lane.b32.xlu0 %v1162, 16
  %v1286 = vpop.permute.xlu0 %1285
  %1287 = vrot.lane.b32.xlu0 %v1170, 16
  %v1288 = vpop.permute.xlu0 %1287
  %1289 = vrot.lane.b32.xlu0 %v1178, 16
  %v1290 = vpop.permute.xlu0 %1289
  %1291 = vrot.lane.b32.xlu0 %v1186, 16
  %v1292 = vpop.permute.xlu0 %1291
  %1293 = vrot.lane.b32.xlu0 %v1194, 16
  %v1294 = vpop.permute.xlu0 %1293
  %1295 = vrot.lane.b32.xlu0 %v1202, 16
  %v1296 = vpop.permute.xlu0 %1295
  %1297 = vrot.lane.b32.xlu0 %v1210, 16
  %v1298 = vpop.permute.xlu0 %1297
  %1299 = vrot.lane.b32.xlu0 %v1218, 16
  %v1300 = vpop.permute.xlu0 %1299
  %1301 = vrot.lane.b32.xlu0 %v1226, 16
  %v1302 = vpop.permute.xlu0 %1301
  %1303 = vrot.lane.b32.xlu0 %v1234, 16
  %v1304 = vpop.permute.xlu0 %1303
  %1305 = vrot.lane.b32.xlu0 %v1242, 16
  %v1306 = vpop.permute.xlu0 %1305
  %1307 = vrot.lane.b32.xlu0 %v1250, 16
  %v1308 = vpop.permute.xlu0 %1307
  %1309 = vrot.lane.b32.xlu0 %v1258, 16
  %v1310 = vpop.permute.xlu0 %1309
  %1311 = vrot.lane.b32.xlu0 %v1266, 16
  %v1312 = vpop.permute.xlu0 %1311
  %1313 = vrot.lane.b32.xlu0 %v1274, 16
  %v1314 = vpop.permute.xlu0 %1313
  %1315 = vrot.lane.b32.xlu0 %v1270, 16
  %v1316 = vpop.permute.xlu0 %1315
  %vm1338 = vcmask 261248
  %vm1339 = vmand %vm1338, %vm1086
  %v1340 = vld [vmem:[#allocation2 + $0x8] sm:$0xff]
  %v1341 = vsel %vm1339, %v1276, %v1340
  %1342 = vst [vmem:[#allocation2 + $0x8] sm:$0xff] %v1341
  %vm1343 = vcmask 261248
  %1344 = vst.msk [vmem:[#allocation2 + $0x10] sm:$0xff] %vm1343, %v1278
  %1345 = vst.msk [vmem:[#allocation2 + $0x18] sm:$0xff] %vm1343, %v1280
  %1346 = vst.msk [vmem:[#allocation2 + $0x20] sm:$0xff] %vm1343, %v1282
  %1347 = vst.msk [vmem:[#allocation2 + $0x28] sm:$0xff] %vm1343, %v1284
  %1348 = vst.msk [vmem:[#allocation2 + $0x30] sm:$0xff] %vm1343, %v1286
  %1349 = vst.msk [vmem:[#allocation2 + $0x38] sm:$0xff] %vm1343, %v1288
  %1350 = vst.msk [vmem:[#allocation2 + $0x40] sm:$0xff] %vm1343, %v1290
  %1351 = vst.msk [vmem:[#allocation2 + $0x48] sm:$0xff] %vm1343, %v1292
  %1352 = vst.msk [vmem:[#allocation2 + $0x50] sm:$0xff] %vm1343, %v1294
  %1353 = vst.msk [vmem:[#allocation2 + $0x58] sm:$0xff] %vm1343, %v1296
  %1354 = vst.msk [vmem:[#allocation2 + $0x60] sm:$0xff] %vm1343, %v1298
  %1355 = vst.msk [vmem:[#allocation2 + $0x68] sm:$0xff] %vm1343, %v1300
  %1356 = vst.msk [vmem:[#allocation2 + $0x70] sm:$0xff] %vm1343, %v1302
  %1357 = vst.msk [vmem:[#allocation2 + $0x78] sm:$0xff] %vm1343, %v1304
  %1358 = vst.msk [vmem:[#allocation2 + $0x80] sm:$0xff] %vm1343, %v1306
  %1359 = vst.msk [vmem:[#allocation2 + $0x88] sm:$0xff] %vm1343, %v1308
  %1360 = vst.msk [vmem:[#allocation2 + $0x90] sm:$0xff] %vm1343, %v1310
  %1361 = vst.msk [vmem:[#allocation2 + $0x98] sm:$0xff] %vm1343, %v1312
  %1362 = vst.msk [vmem:[#allocation2 + $0xa0] sm:$0xff] %vm1343, %v1314
  %vm1363 = vcmask 254080
  %vm1364 = vmand %vm1363, %vm904
  %v1365 = vld [vmem:[#allocation2 + $0xa8] sm:$0x1]
  %v1366 = vsel %vm1364, %v1316, %v1365
  %1367 = vst [vmem:[#allocation2 + $0xa8] sm:$0x1] %v1366
  %1368 = vrot.lane.b32.xlu0 %v884, 32
  %v1369 = vpop.permute.xlu0 %1368
  %1370 = vrot.lane.b32.xlu0 %v885, 32
  %v1371 = vpop.permute.xlu0 %1370
  %1372 = vrot.lane.b32.xlu0 %v886, 32
  %v1373 = vpop.permute.xlu0 %1372
  %1374 = vrot.lane.b32.xlu0 %v887, 32
  %v1375 = vpop.permute.xlu0 %1374
  %1376 = vrot.lane.b32.xlu0 %v888, 32
  %v1377 = vpop.permute.xlu0 %1376
  %1378 = vrot.lane.b32.xlu0 %v889, 32
  %v1379 = vpop.permute.xlu0 %1378
  %1380 = vrot.lane.b32.xlu0 %v890, 32
  %v1381 = vpop.permute.xlu0 %1380
  %1382 = vrot.lane.b32.xlu0 %v891, 32
  %v1383 = vpop.permute.xlu0 %1382
  %1384 = vrot.lane.b32.xlu0 %v892, 32
  %v1385 = vpop.permute.xlu0 %1384
  %1386 = vrot.lane.b32.xlu0 %v893, 32
  %v1387 = vpop.permute.xlu0 %1386
  %1388 = vrot.lane.b32.xlu0 %v894, 32
  %v1389 = vpop.permute.xlu0 %1388
  %1390 = vrot.lane.b32.xlu0 %v895, 32
  %v1391 = vpop.permute.xlu0 %1390
  %1392 = vrot.lane.b32.xlu0 %v896, 32
  %v1393 = vpop.permute.xlu0 %1392
  %1394 = vrot.lane.b32.xlu0 %v897, 32
  %v1395 = vpop.permute.xlu0 %1394
  %1396 = vrot.lane.b32.xlu0 %v898, 32
  %v1397 = vpop.permute.xlu0 %1396
  %1398 = vrot.lane.b32.xlu0 %v899, 32
  %v1399 = vpop.permute.xlu0 %1398
  %1400 = vrot.lane.b32.xlu0 %v900, 32
  %v1401 = vpop.permute.xlu0 %1400
  %1402 = vrot.lane.b32.xlu0 %v901, 32
  %v1403 = vpop.permute.xlu0 %1402
  %1404 = vrot.lane.b32.xlu0 %v902, 32
  %v1405 = vpop.permute.xlu0 %1404
  %1406 = vrot.lane.b32.xlu0 %v903, 32
  %v1407 = vpop.permute.xlu0 %1406
  %vm1428 = vcmask 392448
  %1429 = vst.msk [vmem:[#allocation2 + $0x8] sm:$0xff] %vm1428, %v1369
  %1430 = vst.msk [vmem:[#allocation2 + $0x10] sm:$0xff] %vm1428, %v1371
  %1431 = vst.msk [vmem:[#allocation2 + $0x18] sm:$0xff] %vm1428, %v1373
  %1432 = vst.msk [vmem:[#allocation2 + $0x20] sm:$0xff] %vm1428, %v1375
  %1433 = vst.msk [vmem:[#allocation2 + $0x28] sm:$0xff] %vm1428, %v1377
  %1434 = vst.msk [vmem:[#allocation2 + $0x30] sm:$0xff] %vm1428, %v1379
  %1435 = vst.msk [vmem:[#allocation2 + $0x38] sm:$0xff] %vm1428, %v1381
  %1436 = vst.msk [vmem:[#allocation2 + $0x40] sm:$0xff] %vm1428, %v1383
  %1437 = vst.msk [vmem:[#allocation2 + $0x48] sm:$0xff] %vm1428, %v1385
  %1438 = vst.msk [vmem:[#allocation2 + $0x50] sm:$0xff] %vm1428, %v1387
  %1439 = vst.msk [vmem:[#allocation2 + $0x58] sm:$0xff] %vm1428, %v1389
  %1440 = vst.msk [vmem:[#allocation2 + $0x60] sm:$0xff] %vm1428, %v1391
  %1441 = vst.msk [vmem:[#allocation2 + $0x68] sm:$0xff] %vm1428, %v1393
  %1442 = vst.msk [vmem:[#allocation2 + $0x70] sm:$0xff] %vm1428, %v1395
  %1443 = vst.msk [vmem:[#allocation2 + $0x78] sm:$0xff] %vm1428, %v1397
  %1444 = vst.msk [vmem:[#allocation2 + $0x80] sm:$0xff] %vm1428, %v1399
  %1445 = vst.msk [vmem:[#allocation2 + $0x88] sm:$0xff] %vm1428, %v1401
  %1446 = vst.msk [vmem:[#allocation2 + $0x90] sm:$0xff] %vm1428, %v1403
  %1447 = vst.msk [vmem:[#allocation2 + $0x98] sm:$0xff] %vm1428, %v1405
  %1448 = vst.msk [vmem:[#allocation2 + $0xa0] sm:$0xff] %vm1428, %v1407
  %1469 = vrot.lane.b32.xlu0 %v744, 48
  %v1470 = vpop.permute.xlu0 %1469
  %1471 = vrot.lane.b32.xlu0 %v745, 48
  %v1472 = vpop.permute.xlu0 %1471
  %1473 = vrot.lane.b32.xlu0 %v746, 48
  %v1474 = vpop.permute.xlu0 %1473
  %1475 = vrot.lane.b32.xlu0 %v747, 48
  %v1476 = vpop.permute.xlu0 %1475
  %1477 = vrot.lane.b32.xlu0 %v748, 48
  %v1478 = vpop.permute.xlu0 %1477
  %1479 = vrot.lane.b32.xlu0 %v749, 48
  %v1480 = vpop.permute.xlu0 %1479
  %1481 = vrot.lane.b32.xlu0 %v750, 48
  %v1482 = vpop.permute.xlu0 %1481
  %1483 = vrot.lane.b32.xlu0 %v751, 48
  %v1484 = vpop.permute.xlu0 %1483
  %1485 = vrot.lane.b32.xlu0 %v752, 48
  %v1486 = vpop.permute.xlu0 %1485
  %1487 = vrot.lane.b32.xlu0 %v753, 48
  %v1488 = vpop.permute.xlu0 %1487
  %1489 = vrot.lane.b32.xlu0 %v754, 48
  %v1490 = vpop.permute.xlu0 %1489
  %1491 = vrot.lane.b32.xlu0 %v755, 48
  %v1492 = vpop.permute.xlu0 %1491
  %1493 = vrot.lane.b32.xlu0 %v756, 48
  %v1494 = vpop.permute.xlu0 %1493
  %1495 = vrot.lane.b32.xlu0 %v757, 48
  %v1496 = vpop.permute.xlu0 %1495
  %1497 = vrot.lane.b32.xlu0 %v758, 48
  %v1498 = vpop.permute.xlu0 %1497
  %1499 = vrot.lane.b32.xlu0 %v759, 48
  %v1500 = vpop.permute.xlu0 %1499
  %1501 = vrot.lane.b32.xlu0 %v760, 48
  %v1502 = vpop.permute.xlu0 %1501
  %1503 = vrot.lane.b32.xlu0 %v761, 48
  %v1504 = vpop.permute.xlu0 %1503
  %1505 = vrot.lane.b32.xlu0 %v762, 48
  %v1506 = vpop.permute.xlu0 %1505
  %1507 = vrot.lane.b32.xlu0 %v763, 48
  %v1508 = vpop.permute.xlu0 %1507
  %vm1529 = vcmask 523648
  %1530 = vst.msk [vmem:[#allocation2 + $0x8] sm:$0xff] %vm1529, %v1470
  %1531 = vst.msk [vmem:[#allocation2 + $0x10] sm:$0xff] %vm1529, %v1472
  %1532 = vst.msk [vmem:[#allocation2 + $0x18] sm:$0xff] %vm1529, %v1474
  %1533 = vst.msk [vmem:[#allocation2 + $0x20] sm:$0xff] %vm1529, %v1476
  %1534 = vst.msk [vmem:[#allocation2 + $0x28] sm:$0xff] %vm1529, %v1478
  %1535 = vst.msk [vmem:[#allocation2 + $0x30] sm:$0xff] %vm1529, %v1480
  %1536 = vst.msk [vmem:[#allocation2 + $0x38] sm:$0xff] %vm1529, %v1482
  %1537 = vst.msk [vmem:[#allocation2 + $0x40] sm:$0xff] %vm1529, %v1484
  %1538 = vst.msk [vmem:[#allocation2 + $0x48] sm:$0xff] %vm1529, %v1486
  %1539 = vst.msk [vmem:[#allocation2 + $0x50] sm:$0xff] %vm1529, %v1488
  %1540 = vst.msk [vmem:[#allocation2 + $0x58] sm:$0xff] %vm1529, %v1490
  %1541 = vst.msk [vmem:[#allocation2 + $0x60] sm:$0xff] %vm1529, %v1492
  %1542 = vst.msk [vmem:[#allocation2 + $0x68] sm:$0xff] %vm1529, %v1494
  %1543 = vst.msk [vmem:[#allocation2 + $0x70] sm:$0xff] %vm1529, %v1496
  %1544 = vst.msk [vmem:[#allocation2 + $0x78] sm:$0xff] %vm1529, %v1498
  %1545 = vst.msk [vmem:[#allocation2 + $0x80] sm:$0xff] %vm1529, %v1500
  %1546 = vst.msk [vmem:[#allocation2 + $0x88] sm:$0xff] %vm1529, %v1502
  %1547 = vst.msk [vmem:[#allocation2 + $0x90] sm:$0xff] %vm1529, %v1504
  %1548 = vst.msk [vmem:[#allocation2 + $0x98] sm:$0xff] %vm1529, %v1506
  %1549 = vst.msk [vmem:[#allocation2 + $0xa0] sm:$0xff] %vm1529, %v1508
  %vm1550 = vsmask.f32 7424
  %v1551 = vrot.slane %v909, 1
  %v1552 = vor.u32 %v906, %v1551
  %v1553 = vrot.slane %v916, 1
  %v1554 = vsel %vm1550, %v1552, %v1553
  %v1555 = vor.u32 %v913, %v1553
  %v1556 = vrot.slane %v924, 1
  %v1557 = vsel %vm1550, %v1555, %v1556
  %v1558 = vor.u32 %v921, %v1556
  %v1559 = vrot.slane %v932, 1
  %v1560 = vsel %vm1550, %v1558, %v1559
  %v1561 = vor.u32 %v929, %v1559
  %v1562 = vrot.slane %v940, 1
  %v1563 = vsel %vm1550, %v1561, %v1562
  %v1564 = vor.u32 %v937, %v1562
  %v1565 = vrot.slane %v948, 1
  %v1566 = vsel %vm1550, %v1564, %v1565
  %v1567 = vor.u32 %v945, %v1565
  %v1568 = vrot.slane %v956, 1
  %v1569 = vsel %vm1550, %v1567, %v1568
  %v1570 = vor.u32 %v953, %v1568
  %v1571 = vrot.slane %v964, 1
  %v1572 = vsel %vm1550, %v1570, %v1571
  %v1573 = vor.u32 %v961, %v1571
  %v1574 = vrot.slane %v972, 1
  %v1575 = vsel %vm1550, %v1573, %v1574
  %v1576 = vor.u32 %v969, %v1574
  %v1577 = vrot.slane %v980, 1
  %v1578 = vsel %vm1550, %v1576, %v1577
  %v1579 = vor.u32 %v977, %v1577
  %v1580 = vrot.slane %v988, 1
  %v1581 = vsel %vm1550, %v1579, %v1580
  %v1582 = vor.u32 %v985, %v1580
  %v1583 = vrot.slane %v996, 1
  %v1584 = vsel %vm1550, %v1582, %v1583
  %v1585 = vor.u32 %v993, %v1583
  %v1586 = vrot.slane %v1004, 1
  %v1587 = vsel %vm1550, %v1585, %v1586
  %v1588 = vor.u32 %v1001, %v1586
  %v1589 = vrot.slane %v1012, 1
  %v1590 = vsel %vm1550, %v1588, %v1589
  %v1591 = vor.u32 %v1009, %v1589
  %v1592 = vrot.slane %v1020, 1
  %v1593 = vsel %vm1550, %v1591, %v1592
  %v1594 = vor.u32 %v1017, %v1592
  %v1595 = vrot.slane %v1028, 1
  %v1596 = vsel %vm1550, %v1594, %v1595
  %v1597 = vor.u32 %v1025, %v1595
  %v1598 = vrot.slane %v1036, 1
  %v1599 = vsel %vm1550, %v1597, %v1598
  %v1600 = vor.u32 %v1033, %v1598
  %v1601 = vrot.slane %v1044, 1
  %v1602 = vsel %vm1550, %v1600, %v1601
  %v1603 = vor.u32 %v1041, %v1601
  %v1604 = vrot.slane %v1052, 1
  %v1605 = vsel %vm1550, %v1603, %v1604
  %v1606 = vor.u32 %v1049, %v1604
  %v1607 = vrot.slane %v1060, 1
  %v1608 = vsel %vm1550, %v1606, %v1607
  %v1609 = vor.u32 %v1057, %v1607
  %1610 = vrot.lane.b32.xlu0 %v1551, 64
  %v1611 = vpop.permute.xlu0 %1610
  %1612 = vrot.lane.b32.xlu0 %v1554, 64
  %v1613 = vpop.permute.xlu0 %1612
  %1614 = vrot.lane.b32.xlu0 %v1557, 64
  %v1615 = vpop.permute.xlu0 %1614
  %1616 = vrot.lane.b32.xlu0 %v1560, 64
  %v1617 = vpop.permute.xlu0 %1616
  %1618 = vrot.lane.b32.xlu0 %v1563, 64
  %v1619 = vpop.permute.xlu0 %1618
  %1620 = vrot.lane.b32.xlu0 %v1566, 64
  %v1621 = vpop.permute.xlu0 %1620
  %1622 = vrot.lane.b32.xlu0 %v1569, 64
  %v1623 = vpop.permute.xlu0 %1622
  %1624 = vrot.lane.b32.xlu0 %v1572, 64
  %v1625 = vpop.permute.xlu0 %1624
  %1626 = vrot.lane.b32.xlu0 %v1575, 64
  %v1627 = vpop.permute.xlu0 %1626
  %1628 = vrot.lane.b32.xlu0 %v1578, 64
  %v1629 = vpop.permute.xlu0 %1628
  %1630 = vrot.lane.b32.xlu0 %v1581, 64
  %v1631 = vpop.permute.xlu0 %1630
  %1632 = vrot.lane.b32.xlu0 %v1584, 64
  %v1633 = vpop.permute.xlu0 %1632
  %1634 = vrot.lane.b32.xlu0 %v1587, 64
  %v1635 = vpop.permute.xlu0 %1634
  %1636 = vrot.lane.b32.xlu0 %v1590, 64
  %v1637 = vpop.permute.xlu0 %1636
  %1638 = vrot.lane.b32.xlu0 %v1593, 64
  %v1639 = vpop.permute.xlu0 %1638
  %1640 = vrot.lane.b32.xlu0 %v1596, 64
  %v1641 = vpop.permute.xlu0 %1640
  %1642 = vrot.lane.b32.xlu0 %v1599, 64
  %v1643 = vpop.permute.xlu0 %1642
  %1644 = vrot.lane.b32.xlu0 %v1602, 64
  %v1645 = vpop.permute.xlu0 %1644
  %1646 = vrot.lane.b32.xlu0 %v1605, 64
  %v1647 = vpop.permute.xlu0 %1646
  %1648 = vrot.lane.b32.xlu0 %v1608, 64
  %v1649 = vpop.permute.xlu0 %1648
  %1650 = vrot.lane.b32.xlu0 %v1609, 64
  %v1651 = vpop.permute.xlu0 %1650
  %vm1673 = vcmask 654855
  %vm1674 = vsmask.f32 7966
  %vm1675 = vmand %vm1673, %vm1674
  %v1676 = vld [vmem:[#allocation2] sm:$0x80]
  %v1677 = vsel %vm1675, %v1611, %v1676
  %1678 = vst [vmem:[#allocation2] sm:$0x80] %v1677
  %vm1679 = vcmask 654848
  %1680 = vst.msk [vmem:[#allocation2 + $0x8] sm:$0xff] %vm1679, %v1613
  %1681 = vst.msk [vmem:[#allocation2 + $0x10] sm:$0xff] %vm1679, %v1615
  %1682 = vst.msk [vmem:[#allocation2 + $0x18] sm:$0xff] %vm1679, %v1617
  %1683 = vst.msk [vmem:[#allocation2 + $0x20] sm:$0xff] %vm1679, %v1619
  %1684 = vst.msk [vmem:[#allocation2 + $0x28] sm:$0xff] %vm1679, %v1621
  %1685 = vst.msk [vmem:[#allocation2 + $0x30] sm:$0xff] %vm1679, %v1623
  %1686 = vst.msk [vmem:[#allocation2 + $0x38] sm:$0xff] %vm1679, %v1625
  %1687 = vst.msk [vmem:[#allocation2 + $0x40] sm:$0xff] %vm1679, %v1627
  %1688 = vst.msk [vmem:[#allocation2 + $0x48] sm:$0xff] %vm1679, %v1629
  %1689 = vst.msk [vmem:[#allocation2 + $0x50] sm:$0xff] %vm1679, %v1631
  %1690 = vst.msk [vmem:[#allocation2 + $0x58] sm:$0xff] %vm1679, %v1633
  %1691 = vst.msk [vmem:[#allocation2 + $0x60] sm:$0xff] %vm1679, %v1635
  %1692 = vst.msk [vmem:[#allocation2 + $0x68] sm:$0xff] %vm1679, %v1637
  %1693 = vst.msk [vmem:[#allocation2 + $0x70] sm:$0xff] %vm1679, %v1639
  %1694 = vst.msk [vmem:[#allocation2 + $0x78] sm:$0xff] %vm1679, %v1641
  %1695 = vst.msk [vmem:[#allocation2 + $0x80] sm:$0xff] %vm1679, %v1643
  %1696 = vst.msk [vmem:[#allocation2 + $0x88] sm:$0xff] %vm1679, %v1645
  %1697 = vst.msk [vmem:[#allocation2 + $0x90] sm:$0xff] %vm1679, %v1647
  %1698 = vst.msk [vmem:[#allocation2 + $0x98] sm:$0xff] %vm1679, %v1649
  %vm1699 = vcmask 654848
  %vm1700 = vmand %vm1699, %vm1550
  %v1701 = vld [vmem:[#allocation2 + $0xa0] sm:$0xff]
  %v1702 = vsel %vm1700, %v1651, %v1701
  %1703 = vst [vmem:[#allocation2 + $0xa0] sm:$0xff] %v1702
  %v1704 = vrot.slane %v1120, 1
  %v1705 = vor.u32 %v1117, %v1704
  %v1706 = vrot.slane %v1127, 1
  %v1707 = vsel %vm1550, %v1705, %v1706
  %v1708 = vor.u32 %v1124, %v1706
  %v1709 = vrot.slane %v1135, 1
  %v1710 = vsel %vm1550, %v1708, %v1709
  %v1711 = vor.u32 %v1132, %v1709
  %v1712 = vrot.slane %v1143, 1
  %v1713 = vsel %vm1550, %v1711, %v1712
  %v1714 = vor.u32 %v1140, %v1712
  %v1715 = vrot.slane %v1151, 1
  %v1716 = vsel %vm1550, %v1714, %v1715
  %v1717 = vor.u32 %v1148, %v1715
  %v1718 = vrot.slane %v1159, 1
  %v1719 = vsel %vm1550, %v1717, %v1718
  %v1720 = vor.u32 %v1156, %v1718
  %v1721 = vrot.slane %v1167, 1
  %v1722 = vsel %vm1550, %v1720, %v1721
  %v1723 = vor.u32 %v1164, %v1721
  %v1724 = vrot.slane %v1175, 1
  %v1725 = vsel %vm1550, %v1723, %v1724
  %v1726 = vor.u32 %v1172, %v1724
  %v1727 = vrot.slane %v1183, 1
  %v1728 = vsel %vm1550, %v1726, %v1727
  %v1729 = vor.u32 %v1180, %v1727
  %v1730 = vrot.slane %v1191, 1
  %v1731 = vsel %vm1550, %v1729, %v1730
  %v1732 = vor.u32 %v1188, %v1730
  %v1733 = vrot.slane %v1199, 1
  %v1734 = vsel %vm1550, %v1732, %v1733
  %v1735 = vor.u32 %v1196, %v1733
  %v1736 = vrot.slane %v1207, 1
  %v1737 = vsel %vm1550, %v1735, %v1736
  %v1738 = vor.u32 %v1204, %v1736
  %v1739 = vrot.slane %v1215, 1
  %v1740 = vsel %vm1550, %v1738, %v1739
  %v1741 = vor.u32 %v1212, %v1739
  %v1742 = vrot.slane %v1223, 1
  %v1743 = vsel %vm1550, %v1741, %v1742
  %v1744 = vor.u32 %v1220, %v1742
  %v1745 = vrot.slane %v1231, 1
  %v1746 = vsel %vm1550, %v1744, %v1745
  %v1747 = vor.u32 %v1228, %v1745
  %v1748 = vrot.slane %v1239, 1
  %v1749 = vsel %vm1550, %v1747, %v1748
  %v1750 = vor.u32 %v1236, %v1748
  %v1751 = vrot.slane %v1247, 1
  %v1752 = vsel %vm1550, %v1750, %v1751
  %v1753 = vor.u32 %v1244, %v1751
  %v1754 = vrot.slane %v1255, 1
  %v1755 = vsel %vm1550, %v1753, %v1754
  %v1756 = vor.u32 %v1252, %v1754
  %v1757 = vrot.slane %v1263, 1
  %v1758 = vsel %vm1550, %v1756, %v1757
  %v1759 = vor.u32 %v1260, %v1757
  %v1760 = vrot.slane %v1271, 1
  %v1761 = vsel %vm1550, %v1759, %v1760
  %v1762 = vor.u32 %v1268, %v1760
  %1763 = vrot.lane.b32.xlu0 %v1704, 80
  %v1764 = vpop.permute.xlu0 %1763
  %1765 = vrot.lane.b32.xlu0 %v1707, 80
  %v1766 = vpop.permute.xlu0 %1765
  %1767 = vrot.lane.b32.xlu0 %v1710, 80
  %v1768 = vpop.permute.xlu0 %1767
  %1769 = vrot.lane.b32.xlu0 %v1713, 80
  %v1770 = vpop.permute.xlu0 %1769
  %1771 = vrot.lane.b32.xlu0 %v1716, 80
  %v1772 = vpop.permute.xlu0 %1771
  %1773 = vrot.lane.b32.xlu0 %v1719, 80
  %v1774 = vpop.permute.xlu0 %1773
  %1775 = vrot.lane.b32.xlu0 %v1722, 80
  %v1776 = vpop.permute.xlu0 %1775
  %1777 = vrot.lane.b32.xlu0 %v1725, 80
  %v1778 = vpop.permute.xlu0 %1777
  %1779 = vrot.lane.b32.xlu0 %v1728, 80
  %v1780 = vpop.permute.xlu0 %1779
  %1781 = vrot.lane.b32.xlu0 %v1731, 80
  %v1782 = vpop.permute.xlu0 %1781
  %1783 = vrot.lane.b32.xlu0 %v1734, 80
  %v1784 = vpop.permute.xlu0 %1783
  %1785 = vrot.lane.b32.xlu0 %v1737, 80
  %v1786 = vpop.permute.xlu0 %1785
  %1787 = vrot.lane.b32.xlu0 %v1740, 80
  %v1788 = vpop.permute.xlu0 %1787
  %1789 = vrot.lane.b32.xlu0 %v1743, 80
  %v1790 = vpop.permute.xlu0 %1789
  %1791 = vrot.lane.b32.xlu0 %v1746, 80
  %v1792 = vpop.permute.xlu0 %1791
  %1793 = vrot.lane.b32.xlu0 %v1749, 80
  %v1794 = vpop.permute.xlu0 %1793
  %1795 = vrot.lane.b32.xlu0 %v1752, 80
  %v1796 = vpop.permute.xlu0 %1795
  %1797 = vrot.lane.b32.xlu0 %v1755, 80
  %v1798 = vpop.permute.xlu0 %1797
  %1799 = vrot.lane.b32.xlu0 %v1758, 80
  %v1800 = vpop.permute.xlu0 %1799
  %1801 = vrot.lane.b32.xlu0 %v1761, 80
  %v1802 = vpop.permute.xlu0 %1801
  %1803 = vrot.lane.b32.xlu0 %v1762, 80
  %v1804 = vpop.permute.xlu0 %1803
  %vm1826 = vcmask 786055
  %vm1827 = vmand %vm1826, %vm1674
  %v1828 = vld [vmem:[#allocation2] sm:$0x80]
  %v1829 = vsel %vm1827, %v1764, %v1828
  %1830 = vst [vmem:[#allocation2] sm:$0x80] %v1829
  %vm1831 = vcmask 786048
  %1832 = vst.msk [vmem:[#allocation2 + $0x8] sm:$0xff] %vm1831, %v1766
  %1833 = vst.msk [vmem:[#allocation2 + $0x10] sm:$0xff] %vm1831, %v1768
  %1834 = vst.msk [vmem:[#allocation2 + $0x18] sm:$0xff] %vm1831, %v1770
  %1835 = vst.msk [vmem:[#allocation2 + $0x20] sm:$0xff] %vm1831, %v1772
  %1836 = vst.msk [vmem:[#allocation2 + $0x28] sm:$0xff] %vm1831, %v1774
  %1837 = vst.msk [vmem:[#allocation2 + $0x30] sm:$0xff] %vm1831, %v1776
  %1838 = vst.msk [vmem:[#allocation2 + $0x38] sm:$0xff] %vm1831, %v1778
  %1839 = vst.msk [vmem:[#allocation2 + $0x40] sm:$0xff] %vm1831, %v1780
  %1840 = vst.msk [vmem:[#allocation2 + $0x48] sm:$0xff] %vm1831, %v1782
  %1841 = vst.msk [vmem:[#allocation2 + $0x50] sm:$0xff] %vm1831, %v1784
  %1842 = vst.msk [vmem:[#allocation2 + $0x58] sm:$0xff] %vm1831, %v1786
  %1843 = vst.msk [vmem:[#allocation2 + $0x60] sm:$0xff] %vm1831, %v1788
  %1844 = vst.msk [vmem:[#allocation2 + $0x68] sm:$0xff] %vm1831, %v1790
  %1845 = vst.msk [vmem:[#allocation2 + $0x70] sm:$0xff] %vm1831, %v1792
  %1846 = vst.msk [vmem:[#allocation2 + $0x78] sm:$0xff] %vm1831, %v1794
  %1847 = vst.msk [vmem:[#allocation2 + $0x80] sm:$0xff] %vm1831, %v1796
  %1848 = vst.msk [vmem:[#allocation2 + $0x88] sm:$0xff] %vm1831, %v1798
  %1849 = vst.msk [vmem:[#allocation2 + $0x90] sm:$0xff] %vm1831, %v1800
  %1850 = vst.msk [vmem:[#allocation2 + $0x98] sm:$0xff] %vm1831, %v1802
  %vm1851 = vcmask 786048
  %vm1852 = vmand %vm1851, %vm1550
  %v1853 = vld [vmem:[#allocation2 + $0xa0] sm:$0xff]
  %v1854 = vsel %vm1852, %v1804, %v1853
  %1855 = vst [vmem:[#allocation2 + $0xa0] sm:$0xff] %v1854
  %v1856 = vld [vmem:[#allocation2] sm:$0xff]
  %v1857 = vld [vmem:[#allocation2 + $0x8] sm:$0xff]
  %v1858 = vld [vmem:[#allocation2 + $0x10] sm:$0xff]
  %v1859 = vld [vmem:[#allocation2 + $0x18] sm:$0xff]
  %v1860 = vld [vmem:[#allocation2 + $0x20] sm:$0xff]
  %v1861 = vld [vmem:[#allocation2 + $0x28] sm:$0xff]
  %v1862 = vld [vmem:[#allocation2 + $0x30] sm:$0xff]
  %v1863 = vld [vmem:[#allocation2 + $0x38] sm:$0xff]
  %v1864 = vld [vmem:[#allocation2 + $0x40] sm:$0xff]
  %v1865 = vld [vmem:[#allocation2 + $0x48] sm:$0xff]
  %v1866 = vld [vmem:[#allocation2 + $0x50] sm:$0xff]
  %v1867 = vld [vmem:[#allocation2 + $0x58] sm:$0xff]
  %v1868 = vld [vmem:[#allocation2 + $0x60] sm:$0xff]
  %v1869 = vld [vmem:[#allocation2 + $0x68] sm:$0xff]
  %v1870 = vld [vmem:[#allocation2 + $0x70] sm:$0xff]
  %v1871 = vld [vmem:[#allocation2 + $0x78] sm:$0xff]
  %v1872 = vld [vmem:[#allocation2 + $0x80] sm:$0xff]
  %v1873 = vld [vmem:[#allocation2 + $0x88] sm:$0xff]
  %v1874 = vld [vmem:[#allocation2 + $0x90] sm:$0xff]
  %v1875 = vld [vmem:[#allocation2 + $0x98] sm:$0xff]
  %v1876 = vld [vmem:[%s4] sm:$0xf]
  %v1877 = vld [vmem:[%s4 + $0x4] sm:$0xf]
  %v1878 = vld [vmem:[%s4 + $0x8] sm:$0xf]
  %v1879 = vld [vmem:[%s4 + $0xc] sm:$0xf]
  %v1880 = vld [vmem:[%s4 + $0x10] sm:$0xf]
  %v1881 = vld [vmem:[%s4 + $0x14] sm:$0xf]
  %v1882 = vld [vmem:[%s4 + $0x18] sm:$0xf]
  %v1883 = vld [vmem:[%s4 + $0x1c] sm:$0xf]
  %v1884 = vld [vmem:[%s4 + $0x20] sm:$0xf]
  %v1885 = vld [vmem:[%s4 + $0x24] sm:$0xf]
  %v1886 = vld [vmem:[%s4 + $0x28] sm:$0xf]
  %v1887 = vld [vmem:[%s4 + $0x2c] sm:$0xf]
  %v1888 = vld [vmem:[#allocation2 + $0xa0] sm:$0xff]
  %s1889 = scalar_lea.vmem %s4, 48
  %v1890 = vld [vmem:[%s1889] sm:$0xf]
  %v1891 = vld [vmem:[%s1889 + $0x4] sm:$0xf]
  %v1892 = vld [vmem:[%s1889 + $0x8] sm:$0xf]
  %v1893 = vld [vmem:[%s1889 + $0xc] sm:$0xf]
  %v1894 = vld [vmem:[%s1889 + $0x10] sm:$0xf]
  %v1895 = vld [vmem:[%s1889 + $0x14] sm:$0xf]
  %v1896 = vld [vmem:[%s1889 + $0x18] sm:$0xf]
  %v1897 = vld [vmem:[%s1889 + $0x1c] sm:$0xf]
  %v1898 = vld [vmem:[%s1889 + $0x20] sm:$0xf]
  %v1899 = vld [vmem:[%s1889 + $0x24] sm:$0xf]
  %v1900 = vld [vmem:[%s1889 + $0x28] sm:$0xf]
  %v1901 = vld [vmem:[%s1889 + $0x2c] sm:$0xf]
  %v1914 = vunpack.c.l.b16 %v1890
  %v1915 = vunpack.c.l.b16 %v1891
  %v1916 = vunpack.c.l.b16 %v1892
  %v1917 = vunpack.c.l.b16 %v1893
  %v1918 = vunpack.c.l.b16 %v1894
  %v1919 = vunpack.c.l.b16 %v1895
  %v1920 = vunpack.c.l.b16 %v1896
  %v1921 = vunpack.c.l.b16 %v1897
  %v1922 = vunpack.c.l.b16 %v1898
  %v1923 = vunpack.c.l.b16 %v1899
  %v1924 = vunpack.c.l.b16 %v1900
  %v1925 = vunpack.c.l.b16 %v1901
  %v1926 = vpack.c.b16 %v1915, %v1914
  %v1927 = vpack.c.b16 %v1917, %v1916
  %v1928 = vpack.c.b16 %v1919, %v1918
  %v1929 = vpack.c.b16 %v1921, %v1920
  %v1930 = vpack.c.b16 %v1923, %v1922
  %v1931 = vpack.c.b16 %v1925, %v1924
  %v1939 = vsel %vm42, %v1857, 0
  %v1942 = vsel %vm42, %v1858, 0
  %v1945 = vsel %vm42, %v1859, 0
  %v1948 = vsel %vm42, %v1860, 0
  %v1951 = vsel %vm42, %v1861, 0
  %v1954 = vsel %vm42, %v1862, 0
  %v1957 = vsel %vm42, %v1863, 0
  %v1960 = vsel %vm42, %v1864, 0
  %v1963 = vsel %vm42, %v1865, 0
  %v1966 = vsel %vm42, %v1866, 0
  %v1969 = vsel %vm42, %v1867, 0
  %v1972 = vsel %vm42, %v1868, 0
  %v1975 = vsel %vm42, %v1869, 0
  %v1978 = vsel %vm42, %v1870, 0
  %v1981 = vsel %vm42, %v1871, 0
  %v1984 = vsel %vm42, %v1872, 0
  %v1987 = vsel %vm42, %v1873, 0
  %v1990 = vsel %vm42, %v1874, 0
  %v1993 = vsel %vm42, %v1875, 0
  %v1996 = vsel %vm42, %v1888, 0
  %1998 = vmatprep.subr.bf16.mxu0 0
  %1999 = vmatpush1.bf16.msra.mxu0 %v1926
  %2000 = vmatprep.subr.bf16.mxu0 0
  %2001 = vmatpush1.bf16.msra.mxu0 %v1927
  %2002 = vmatprep.subr.bf16.mxu0 0
  %2003 = vmatpush1.bf16.msra.mxu0 %v1928
  %2004 = vmatprep.subr.bf16.mxu0 0
  %2005 = vmatpush1.bf16.msra.mxu0 %v1929
  %2006 = vmatprep.subr.bf16.mxu0 0
  %2007 = vmatpush1.bf16.msra.mxu0 %v1930
  %2008 = vmatprep.subr.bf16.mxu0 0
  %2009 = vmatpush1.bf16.msra.mxu0 %v1931
  %2010 = vmatprep.subr.bf16.mxu0 0
  %2011 = vmatpush1.bf16.msra.mxu0 0
  %2012 = vmatprep.subr.bf16.mxu0 0
  %2013 = vmatpush1.bf16.msra.mxu0 0
  %2014 = vmatprep.subr.bf16.mxu0 0
  %2015 = vmatpush1.bf16.msra.mxu0 0
  %2016 = vmatprep.subr.bf16.mxu0 0
  %2017 = vmatpush1.bf16.msra.mxu0 0
  %2018 = vmatprep.subr.bf16.mxu0 0
  %2019 = vmatpush1.bf16.msra.mxu0 0
  %2020 = vmatprep.subr.bf16.mxu0 0
  %2021 = vmatpush1.bf16.msra.mxu0 0
  %2022 = vmatprep.subr.bf16.mxu0 0
  %2023 = vmatpush1.bf16.msra.mxu0 0
  %2024 = vmatprep.subr.bf16.mxu0 0
  %2025 = vmatpush1.bf16.msra.mxu0 0
  %2026 = vmatprep.subr.bf16.mxu0 0
  %2027 = vmatpush1.bf16.msra.mxu0 0
  %2028 = vmatprep.subr.bf16.mxu0 0
  %2029 = vmatpush1.bf16.msra.mxu0 0
  %2030 = vmatprep.mubr.bf16.mxu0 0
  %2031 = vmatmul.mubr.bf16.gmra.mrb[0].mxu0 %v1939
  %v2032 = vpop.f32.mrb[0].mxu0
  %v2033 = vadd.f32 0.0, %v2032
  %v2034 = vpop.f32.mrb[0].mxu0
  %v2035 = vpop.f32.mrb[0].mxu0
  %v2036 = vadd.f32 0.0, %v2035
  %v2037 = vpop.f32.mrb[0].mxu0
  %2038 = vmatprep.mubr.bf16.mxu0 0
  %2039 = vmatmul.mubr.bf16.gmra.mrb[0].mxu0 %v1942
  %v2040 = vpop.f32.mrb[0].mxu0
  %v2041 = vadd.f32 0.0, %v2040
  %v2042 = vpop.f32.mrb[0].mxu0
  %v2043 = vpop.f32.mrb[0].mxu0
  %v2044 = vadd.f32 0.0, %v2043
  %v2045 = vpop.f32.mrb[0].mxu0
  %2046 = vmatprep.mubr.bf16.mxu0 0
  %2047 = vmatmul.mubr.bf16.gmra.mrb[0].mxu0 %v1945
  %v2048 = vpop.f32.mrb[0].mxu0
  %v2049 = vadd.f32 0.0, %v2048
  %v2050 = vpop.f32.mrb[0].mxu0
  %v2051 = vpop.f32.mrb[0].mxu0
  %v2052 = vadd.f32 0.0, %v2051
  %v2053 = vpop.f32.mrb[0].mxu0
  %2054 = vmatprep.mubr.bf16.mxu0 0
  %2055 = vmatmul.mubr.bf16.gmra.mrb[0].mxu0 %v1948
  %v2056 = vpop.f32.mrb[0].mxu0
  %v2057 = vadd.f32 0.0, %v2056
  %v2058 = vpop.f32.mrb[0].mxu0
  %v2059 = vpop.f32.mrb[0].mxu0
  %v2060 = vadd.f32 0.0, %v2059
  %v2061 = vpop.f32.mrb[0].mxu0
  %2062 = vmatprep.mubr.bf16.mxu0 0
  %2063 = vmatmul.mubr.bf16.gmra.mrb[0].mxu0 %v1951
  %v2064 = vpop.f32.mrb[0].mxu0
  %v2065 = vadd.f32 0.0, %v2064
  %v2066 = vpop.f32.mrb[0].mxu0
  %v2067 = vpop.f32.mrb[0].mxu0
  %v2068 = vadd.f32 0.0, %v2067
  %v2069 = vpop.f32.mrb[0].mxu0
  %2070 = vmatprep.mubr.bf16.mxu0 0
  %2071 = vmatmul.mubr.bf16.gmra.mrb[0].mxu0 %v1954
  %v2072 = vpop.f32.mrb[0].mxu0
  %v2073 = vadd.f32 0.0, %v2072
  %v2074 = vpop.f32.mrb[0].mxu0
  %v2075 = vpop.f32.mrb[0].mxu0
  %v2076 = vadd.f32 0.0, %v2075
  %v2077 = vpop.f32.mrb[0].mxu0
  %2078 = vmatprep.mubr.bf16.mxu0 0
  %2079 = vmatmul.mubr.bf16.gmra.mrb[0].mxu0 %v1957
  %v2080 = vpop.f32.mrb[0].mxu0
  %v2081 = vadd.f32 0.0, %v2080
  %v2082 = vpop.f32.mrb[0].mxu0
  %v2083 = vpop.f32.mrb[0].mxu0
  %v2084 = vadd.f32 0.0, %v2083
  %v2085 = vpop.f32.mrb[0].mxu0
  %2086 = vmatprep.mubr.bf16.mxu0 0
  %2087 = vmatmul.mubr.bf16.gmra.mrb[0].mxu0 %v1960
  %v2088 = vpop.f32.mrb[0].mxu0
  %v2089 = vadd.f32 0.0, %v2088
  %v2090 = vpop.f32.mrb[0].mxu0
  %v2091 = vpop.f32.mrb[0].mxu0
  %v2092 = vadd.f32 0.0, %v2091
  %v2093 = vpop.f32.mrb[0].mxu0
  %2094 = vmatprep.mubr.bf16.mxu0 0
  %2095 = vmatmul.mubr.bf16.gmra.mrb[0].mxu0 %v1963
  %v2096 = vpop.f32.mrb[0].mxu0
  %v2097 = vadd.f32 0.0, %v2096
  %v2098 = vpop.f32.mrb[0].mxu0
  %v2099 = vpop.f32.mrb[0].mxu0
  %v2100 = vadd.f32 0.0, %v2099
  %v2101 = vpop.f32.mrb[0].mxu0
  %2102 = vmatprep.mubr.bf16.mxu0 0
  %2103 = vmatmul.mubr.bf16.gmra.mrb[0].mxu0 %v1966
  %v2104 = vpop.f32.mrb[0].mxu0
  %v2105 = vadd.f32 0.0, %v2104
  %v2106 = vpop.f32.mrb[0].mxu0
  %v2107 = vpop.f32.mrb[0].mxu0
  %v2108 = vadd.f32 0.0, %v2107
  %v2109 = vpop.f32.mrb[0].mxu0
  %2110 = vmatprep.mubr.bf16.mxu0 0
  %2111 = vmatmul.mubr.bf16.gmra.mrb[0].mxu0 %v1969
  %v2112 = vpop.f32.mrb[0].mxu0
  %v2113 = vadd.f32 0.0, %v2112
  %v2114 = vpop.f32.mrb[0].mxu0
  %v2115 = vpop.f32.mrb[0].mxu0
  %v2116 = vadd.f32 0.0, %v2115
  %v2117 = vpop.f32.mrb[0].mxu0
  %2118 = vmatprep.mubr.bf16.mxu0 0
  %2119 = vmatmul.mubr.bf16.gmra.mrb[0].mxu0 %v1972
  %v2120 = vpop.f32.mrb[0].mxu0
  %v2121 = vadd.f32 0.0, %v2120
  %v2122 = vpop.f32.mrb[0].mxu0
  %v2123 = vpop.f32.mrb[0].mxu0
  %v2124 = vadd.f32 0.0, %v2123
  %v2125 = vpop.f32.mrb[0].mxu0
  %2126 = vmatprep.mubr.bf16.mxu0 0
  %2127 = vmatmul.mubr.bf16.gmra.mrb[0].mxu0 %v1975
  %v2128 = vpop.f32.mrb[0].mxu0
  %v2129 = vadd.f32 0.0, %v2128
  %v2130 = vpop.f32.mrb[0].mxu0
  %v2131 = vpop.f32.mrb[0].mxu0
  %v2132 = vadd.f32 0.0, %v2131
  %v2133 = vpop.f32.mrb[0].mxu0
  %2134 = vmatprep.mubr.bf16.mxu0 0
  %2135 = vmatmul.mubr.bf16.gmra.mrb[0].mxu0 %v1978
  %v2136 = vpop.f32.mrb[0].mxu0
  %v2137 = vadd.f32 0.0, %v2136
  %v2138 = vpop.f32.mrb[0].mxu0
  %v2139 = vpop.f32.mrb[0].mxu0
  %v2140 = vadd.f32 0.0, %v2139
  %v2141 = vpop.f32.mrb[0].mxu0
  %2142 = vmatprep.mubr.bf16.mxu0 0
  %2143 = vmatmul.mubr.bf16.gmra.mrb[0].mxu0 %v1981
  %v2144 = vpop.f32.mrb[0].mxu0
  %v2145 = vadd.f32 0.0, %v2144
  %v2146 = vpop.f32.mrb[0].mxu0
  %v2147 = vpop.f32.mrb[0].mxu0
  %v2148 = vadd.f32 0.0, %v2147
  %v2149 = vpop.f32.mrb[0].mxu0
  %2150 = vmatprep.mubr.bf16.mxu0 0
  %2151 = vmatmul.mubr.bf16.gmra.mrb[0].mxu0 %v1984
  %v2152 = vpop.f32.mrb[0].mxu0
  %v2153 = vadd.f32 0.0, %v2152
  %v2154 = vpop.f32.mrb[0].mxu0
  %v2155 = vpop.f32.mrb[0].mxu0
  %v2156 = vadd.f32 0.0, %v2155
  %v2157 = vpop.f32.mrb[0].mxu0
  %2158 = vmatprep.mubr.bf16.mxu0 0
  %2159 = vmatmul.mubr.bf16.gmra.mrb[0].mxu0 %v1987
  %v2160 = vpop.f32.mrb[0].mxu0
  %v2161 = vadd.f32 0.0, %v2160
  %v2162 = vpop.f32.mrb[0].mxu0
  %v2163 = vpop.f32.mrb[0].mxu0
  %v2164 = vadd.f32 0.0, %v2163
  %v2165 = vpop.f32.mrb[0].mxu0
  %2166 = vmatprep.mubr.bf16.mxu0 0
  %2167 = vmatmul.mubr.bf16.gmra.mrb[0].mxu0 %v1990
  %v2168 = vpop.f32.mrb[0].mxu0
  %v2169 = vadd.f32 0.0, %v2168
  %v2170 = vpop.f32.mrb[0].mxu0
  %v2171 = vpop.f32.mrb[0].mxu0
  %v2172 = vadd.f32 0.0, %v2171
  %v2173 = vpop.f32.mrb[0].mxu0
  %2174 = vmatprep.mubr.bf16.mxu0 0
  %2175 = vmatmul.mubr.bf16.gmra.mrb[0].mxu0 %v1993
  %v2176 = vpop.f32.mrb[0].mxu0
  %v2177 = vadd.f32 0.0, %v2176
  %v2178 = vpop.f32.mrb[0].mxu0
  %v2179 = vpop.f32.mrb[0].mxu0
  %v2180 = vadd.f32 0.0, %v2179
  %v2181 = vpop.f32.mrb[0].mxu0
  %2182 = vmatprep.mubr.bf16.mxu0 0
  %2183 = vmatmul.mubr.bf16.gmra.mrb[0].mxu0 %v1996
  %v2184 = vpop.f32.mrb[0].mxu0
  %v2185 = vadd.f32 0.0, %v2184
  %v2186 = vpop.f32.mrb[0].mxu0
  %v2187 = vpop.f32.mrb[0].mxu0
  %v2188 = vadd.f32 0.0, %v2187
  %v2189 = vpop.f32.mrb[0].mxu0
  %2190 = vdwg.mxu0
  %v2203 = vunpack.c.l.b16 %v1876
  %v2204 = vunpack.c.l.b16 %v1877
  %v2205 = vunpack.c.l.b16 %v1878
  %v2206 = vunpack.c.l.b16 %v1879
  %v2207 = vunpack.c.l.b16 %v1880
  %v2208 = vunpack.c.l.b16 %v1881
  %v2209 = vunpack.c.l.b16 %v1882
  %v2210 = vunpack.c.l.b16 %v1883
  %v2211 = vunpack.c.l.b16 %v1884
  %v2212 = vunpack.c.l.b16 %v1885
  %v2213 = vunpack.c.l.b16 %v1886
  %v2214 = vunpack.c.l.b16 %v1887
  %v2215 = vpack.c.b16 %v2204, %v2203
  %v2216 = vpack.c.b16 %v2206, %v2205
  %v2217 = vpack.c.b16 %v2208, %v2207
  %v2218 = vpack.c.b16 %v2210, %v2209
  %v2219 = vpack.c.b16 %v2212, %v2211
  %v2220 = vpack.c.b16 %v2214, %v2213
  %v2228 = vsel %vm42, %v1856, 0
  %2230 = vmatprep.subr.bf16.mxu0 0
  %2231 = vmatpush1.bf16.msra.mxu0 %v2215
  %2232 = vmatprep.subr.bf16.mxu0 0
  %2233 = vmatpush1.bf16.msra.mxu0 %v2216
  %2234 = vmatprep.subr.bf16.mxu0 0
  %2235 = vmatpush1.bf16.msra.mxu0 %v2217
  %2236 = vmatprep.subr.bf16.mxu0 0
  %2237 = vmatpush1.bf16.msra.mxu0 %v2218
  %2238 = vmatprep.subr.bf16.mxu0 0
  %2239 = vmatpush1.bf16.msra.mxu0 %v2219
  %2240 = vmatprep.subr.bf16.mxu0 0
  %2241 = vmatpush1.bf16.msra.mxu0 %v2220
  %2242 = vmatprep.subr.bf16.mxu0 0
  %2243 = vmatpush1.bf16.msra.mxu0 0
  %2244 = vmatprep.subr.bf16.mxu0 0
  %2245 = vmatpush1.bf16.msra.mxu0 0
  %2246 = vmatprep.subr.bf16.mxu0 0
  %2247 = vmatpush1.bf16.msra.mxu0 0
  %2248 = vmatprep.subr.bf16.mxu0 0
  %2249 = vmatpush1.bf16.msra.mxu0 0
  %2250 = vmatprep.subr.bf16.mxu0 0
  %2251 = vmatpush1.bf16.msra.mxu0 0
  %2252 = vmatprep.subr.bf16.mxu0 0
  %2253 = vmatpush1.bf16.msra.mxu0 0
  %2254 = vmatprep.subr.bf16.mxu0 0
  %2255 = vmatpush1.bf16.msra.mxu0 0
  %2256 = vmatprep.subr.bf16.mxu0 0
  %2257 = vmatpush1.bf16.msra.mxu0 0
  %2258 = vmatprep.subr.bf16.mxu0 0
  %2259 = vmatpush1.bf16.msra.mxu0 0
  %2260 = vmatprep.subr.bf16.mxu0 0
  %2261 = vmatpush1.bf16.msra.mxu0 0
  %2262 = vmatprep.mubr.bf16.mxu0 0
  %2263 = vmatmul.mubr.bf16.gmra.mrb[0].mxu0 %v2228
  %v2264 = vpop.f32.mrb[0].mxu0
  %v2265 = vadd.f32 %v2033, %v2264
  %v2266 = vpop.f32.mrb[0].mxu0
  %v2267 = vpop.f32.mrb[0].mxu0
  %v2268 = vadd.f32 %v2036, %v2267
  %v2269 = vpop.f32.mrb[0].mxu0
  %2270 = vmatprep.mubr.bf16.mxu0 0
  %2271 = vmatmul.mubr.bf16.gmra.mrb[0].mxu0 %v1939
  %v2272 = vpop.f32.mrb[0].mxu0
  %v2273 = vadd.f32 %v2041, %v2272
  %v2274 = vpop.f32.mrb[0].mxu0
  %v2275 = vpop.f32.mrb[0].mxu0
  %v2276 = vadd.f32 %v2044, %v2275
  %v2277 = vpop.f32.mrb[0].mxu0
  %2278 = vmatprep.mubr.bf16.mxu0 0
  %2279 = vmatmul.mubr.bf16.gmra.mrb[0].mxu0 %v1942
  %v2280 = vpop.f32.mrb[0].mxu0
  %v2281 = vadd.f32 %v2049, %v2280
  %v2282 = vpop.f32.mrb[0].mxu0
  %v2283 = vpop.f32.mrb[0].mxu0
  %v2284 = vadd.f32 %v2052, %v2283
  %v2285 = vpop.f32.mrb[0].mxu0
  %2286 = vmatprep.mubr.bf16.mxu0 0
  %2287 = vmatmul.mubr.bf16.gmra.mrb[0].mxu0 %v1945
  %v2288 = vpop.f32.mrb[0].mxu0
  %v2289 = vadd.f32 %v2057, %v2288
  %v2290 = vpop.f32.mrb[0].mxu0
  %v2291 = vpop.f32.mrb[0].mxu0
  %v2292 = vadd.f32 %v2060, %v2291
  %v2293 = vpop.f32.mrb[0].mxu0
  %2294 = vmatprep.mubr.bf16.mxu0 0
  %2295 = vmatmul.mubr.bf16.gmra.mrb[0].mxu0 %v1948
  %v2296 = vpop.f32.mrb[0].mxu0
  %v2297 = vadd.f32 %v2065, %v2296
  %v2298 = vpop.f32.mrb[0].mxu0
  %v2299 = vpop.f32.mrb[0].mxu0
  %v2300 = vadd.f32 %v2068, %v2299
  %v2301 = vpop.f32.mrb[0].mxu0
  %2302 = vmatprep.mubr.bf16.mxu0 0
  %2303 = vmatmul.mubr.bf16.gmra.mrb[0].mxu0 %v1951
  %v2304 = vpop.f32.mrb[0].mxu0
  %v2305 = vadd.f32 %v2073, %v2304
  %v2306 = vpop.f32.mrb[0].mxu0
  %v2307 = vpop.f32.mrb[0].mxu0
  %v2308 = vadd.f32 %v2076, %v2307
  %v2309 = vpop.f32.mrb[0].mxu0
  %2310 = vmatprep.mubr.bf16.mxu0 0
  %2311 = vmatmul.mubr.bf16.gmra.mrb[0].mxu0 %v1954
  %v2312 = vpop.f32.mrb[0].mxu0
  %v2313 = vadd.f32 %v2081, %v2312
  %v2314 = vpop.f32.mrb[0].mxu0
  %v2315 = vpop.f32.mrb[0].mxu0
  %v2316 = vadd.f32 %v2084, %v2315
  %v2317 = vpop.f32.mrb[0].mxu0
  %2318 = vmatprep.mubr.bf16.mxu0 0
  %2319 = vmatmul.mubr.bf16.gmra.mrb[0].mxu0 %v1957
  %v2320 = vpop.f32.mrb[0].mxu0
  %v2321 = vadd.f32 %v2089, %v2320
  %v2322 = vpop.f32.mrb[0].mxu0
  %v2323 = vpop.f32.mrb[0].mxu0
  %v2324 = vadd.f32 %v2092, %v2323
  %v2325 = vpop.f32.mrb[0].mxu0
  %2326 = vmatprep.mubr.bf16.mxu0 0
  %2327 = vmatmul.mubr.bf16.gmra.mrb[0].mxu0 %v1960
  %v2328 = vpop.f32.mrb[0].mxu0
  %v2329 = vadd.f32 %v2097, %v2328
  %v2330 = vpop.f32.mrb[0].mxu0
  %v2331 = vpop.f32.mrb[0].mxu0
  %v2332 = vadd.f32 %v2100, %v2331
  %v2333 = vpop.f32.mrb[0].mxu0
  %2334 = vmatprep.mubr.bf16.mxu0 0
  %2335 = vmatmul.mubr.bf16.gmra.mrb[0].mxu0 %v1963
  %v2336 = vpop.f32.mrb[0].mxu0
  %v2337 = vadd.f32 %v2105, %v2336
  %v2338 = vpop.f32.mrb[0].mxu0
  %v2339 = vpop.f32.mrb[0].mxu0
  %v2340 = vadd.f32 %v2108, %v2339
  %v2341 = vpop.f32.mrb[0].mxu0
  %2342 = vmatprep.mubr.bf16.mxu0 0
  %2343 = vmatmul.mubr.bf16.gmra.mrb[0].mxu0 %v1966
  %v2344 = vpop.f32.mrb[0].mxu0
  %v2345 = vadd.f32 %v2113, %v2344
  %v2346 = vpop.f32.mrb[0].mxu0
  %v2347 = vpop.f32.mrb[0].mxu0
  %v2348 = vadd.f32 %v2116, %v2347
  %v2349 = vpop.f32.mrb[0].mxu0
  %2350 = vmatprep.mubr.bf16.mxu0 0
  %2351 = vmatmul.mubr.bf16.gmra.mrb[0].mxu0 %v1969
  %v2352 = vpop.f32.mrb[0].mxu0
  %v2353 = vadd.f32 %v2121, %v2352
  %v2354 = vpop.f32.mrb[0].mxu0
  %v2355 = vpop.f32.mrb[0].mxu0
  %v2356 = vadd.f32 %v2124, %v2355
  %v2357 = vpop.f32.mrb[0].mxu0
  %2358 = vmatprep.mubr.bf16.mxu0 0
  %2359 = vmatmul.mubr.bf16.gmra.mrb[0].mxu0 %v1972
  %v2360 = vpop.f32.mrb[0].mxu0
  %v2361 = vadd.f32 %v2129, %v2360
  %v2362 = vpop.f32.mrb[0].mxu0
  %v2363 = vpop.f32.mrb[0].mxu0
  %v2364 = vadd.f32 %v2132, %v2363
  %v2365 = vpop.f32.mrb[0].mxu0
  %2366 = vmatprep.mubr.bf16.mxu0 0
  %2367 = vmatmul.mubr.bf16.gmra.mrb[0].mxu0 %v1975
  %v2368 = vpop.f32.mrb[0].mxu0
  %v2369 = vadd.f32 %v2137, %v2368
  %v2370 = vpop.f32.mrb[0].mxu0
  %v2371 = vpop.f32.mrb[0].mxu0
  %v2372 = vadd.f32 %v2140, %v2371
  %v2373 = vpop.f32.mrb[0].mxu0
  %2374 = vmatprep.mubr.bf16.mxu0 0
  %2375 = vmatmul.mubr.bf16.gmra.mrb[0].mxu0 %v1978
  %v2376 = vpop.f32.mrb[0].mxu0
  %v2377 = vadd.f32 %v2145, %v2376
  %v2378 = vpop.f32.mrb[0].mxu0
  %v2379 = vpop.f32.mrb[0].mxu0
  %v2380 = vadd.f32 %v2148, %v2379
  %v2381 = vpop.f32.mrb[0].mxu0
  %2382 = vmatprep.mubr.bf16.mxu0 0
  %2383 = vmatmul.mubr.bf16.gmra.mrb[0].mxu0 %v1981
  %v2384 = vpop.f32.mrb[0].mxu0
  %v2385 = vadd.f32 %v2153, %v2384
  %v2386 = vpop.f32.mrb[0].mxu0
  %v2387 = vpop.f32.mrb[0].mxu0
  %v2388 = vadd.f32 %v2156, %v2387
  %v2389 = vpop.f32.mrb[0].mxu0
  %2390 = vmatprep.mubr.bf16.mxu0 0
  %2391 = vmatmul.mubr.bf16.gmra.mrb[0].mxu0 %v1984
  %v2392 = vpop.f32.mrb[0].mxu0
  %v2393 = vadd.f32 %v2161, %v2392
  %v2394 = vpop.f32.mrb[0].mxu0
  %v2395 = vpop.f32.mrb[0].mxu0
  %v2396 = vadd.f32 %v2164, %v2395
  %v2397 = vpop.f32.mrb[0].mxu0
  %2398 = vmatprep.mubr.bf16.mxu0 0
  %2399 = vmatmul.mubr.bf16.gmra.mrb[0].mxu0 %v1987
  %v2400 = vpop.f32.mrb[0].mxu0
  %v2401 = vadd.f32 %v2169, %v2400
  %v2402 = vpop.f32.mrb[0].mxu0
  %v2403 = vpop.f32.mrb[0].mxu0
  %v2404 = vadd.f32 %v2172, %v2403
  %v2405 = vpop.f32.mrb[0].mxu0
  %2406 = vmatprep.mubr.bf16.mxu0 0
  %2407 = vmatmul.mubr.bf16.gmra.mrb[0].mxu0 %v1990
  %v2408 = vpop.f32.mrb[0].mxu0
  %v2409 = vadd.f32 %v2177, %v2408
  %v2410 = vpop.f32.mrb[0].mxu0
  %v2411 = vpop.f32.mrb[0].mxu0
  %v2412 = vadd.f32 %v2180, %v2411
  %v2413 = vpop.f32.mrb[0].mxu0
  %2414 = vmatprep.mubr.bf16.mxu0 0
  %2415 = vmatmul.mubr.bf16.gmra.mrb[0].mxu0 %v1993
  %v2416 = vpop.f32.mrb[0].mxu0
  %v2417 = vadd.f32 %v2185, %v2416
  %v2418 = vpop.f32.mrb[0].mxu0
  %v2419 = vpop.f32.mrb[0].mxu0
  %v2420 = vadd.f32 %v2188, %v2419
  %v2421 = vpop.f32.mrb[0].mxu0
  %2422 = vdwg.mxu0
  %v2423 = vld [vmem:[#allocation2 + $0x10] sm:$0xff]
  %v2424 = vld [vmem:[#allocation2 + $0x18] sm:$0xff]
  %v2425 = vld [vmem:[#allocation2 + $0x20] sm:$0xff]
  %v2426 = vld [vmem:[#allocation2 + $0x28] sm:$0xff]
  %v2427 = vld [vmem:[#allocation2 + $0x30] sm:$0xff]
  %v2428 = vld [vmem:[#allocation2 + $0x38] sm:$0xff]
  %v2429 = vld [vmem:[#allocation2 + $0x40] sm:$0xff]
  %v2430 = vld [vmem:[#allocation2 + $0x48] sm:$0xff]
  %v2431 = vld [vmem:[#allocation2 + $0x50] sm:$0xff]
  %v2432 = vld [vmem:[#allocation2 + $0x58] sm:$0xff]
  %v2433 = vld [vmem:[#allocation2 + $0x60] sm:$0xff]
  %v2434 = vld [vmem:[#allocation2 + $0x68] sm:$0xff]
  %v2435 = vld [vmem:[#allocation2 + $0x70] sm:$0xff]
  %v2436 = vld [vmem:[#allocation2 + $0x78] sm:$0xff]
  %v2437 = vld [vmem:[#allocation2 + $0x80] sm:$0xff]
  %v2438 = vld [vmem:[#allocation2 + $0x88] sm:$0xff]
  %v2439 = vld [vmem:[#allocation2 + $0x90] sm:$0xff]
  %v2440 = vld [vmem:[#allocation2 + $0x98] sm:$0xff]
  %v2441 = vld [vmem:[#allocation2 + $0xa0] sm:$0xff]
  %v2442 = vld [vmem:[#allocation2 + $0xa8] sm:$0xff]
  %s2443 = scalar_lea.vmem %s4, 96
  %v2444 = vld [vmem:[%s2443] sm:$0xf]
  %v2445 = vld [vmem:[%s2443 + $0x4] sm:$0xf]
  %v2446 = vld [vmem:[%s2443 + $0x8] sm:$0xf]
  %v2447 = vld [vmem:[%s2443 + $0xc] sm:$0xf]
  %v2448 = vld [vmem:[%s2443 + $0x10] sm:$0xf]
  %v2449 = vld [vmem:[%s2443 + $0x14] sm:$0xf]
  %v2450 = vld [vmem:[%s2443 + $0x18] sm:$0xf]
  %v2451 = vld [vmem:[%s2443 + $0x1c] sm:$0xf]
  %v2452 = vld [vmem:[%s2443 + $0x20] sm:$0xf]
  %v2453 = vld [vmem:[%s2443 + $0x24] sm:$0xf]
  %v2454 = vld [vmem:[%s2443 + $0x28] sm:$0xf]
  %v2455 = vld [vmem:[%s2443 + $0x2c] sm:$0xf]
  %v2468 = vunpack.c.l.b16 %v2444
  %v2469 = vunpack.c.l.b16 %v2445
  %v2470 = vunpack.c.l.b16 %v2446
  %v2471 = vunpack.c.l.b16 %v2447
  %v2472 = vunpack.c.l.b16 %v2448
  %v2473 = vunpack.c.l.b16 %v2449
  %v2474 = vunpack.c.l.b16 %v2450
  %v2475 = vunpack.c.l.b16 %v2451
  %v2476 = vunpack.c.l.b16 %v2452
  %v2477 = vunpack.c.l.b16 %v2453
  %v2478 = vunpack.c.l.b16 %v2454
  %v2479 = vunpack.c.l.b16 %v2455
  %v2480 = vpack.c.b16 %v2469, %v2468
  %v2481 = vpack.c.b16 %v2471, %v2470
  %v2482 = vpack.c.b16 %v2473, %v2472
  %v2483 = vpack.c.b16 %v2475, %v2474
  %v2484 = vpack.c.b16 %v2477, %v2476
  %v2485 = vpack.c.b16 %v2479, %v2478
  %v2493 = vsel %vm42, %v2423, 0
  %v2496 = vsel %vm42, %v2424, 0
  %v2499 = vsel %vm42, %v2425, 0
  %v2502 = vsel %vm42, %v2426, 0
  %v2505 = vsel %vm42, %v2427, 0
  %v2508 = vsel %vm42, %v2428, 0
  %v2511 = vsel %vm42, %v2429, 0
  %v2514 = vsel %vm42, %v2430, 0
  %v2517 = vsel %vm42, %v2431, 0
  %v2520 = vsel %vm42, %v2432, 0
  %v2523 = vsel %vm42, %v2433, 0
  %v2526 = vsel %vm42, %v2434, 0
  %v2529 = vsel %vm42, %v2435, 0
  %v2532 = vsel %vm42, %v2436, 0
  %v2535 = vsel %vm42, %v2437, 0
  %v2538 = vsel %vm42, %v2438, 0
  %v2541 = vsel %vm42, %v2439, 0
  %v2544 = vsel %vm42, %v2440, 0
  %v2547 = vsel %vm42, %v2441, 0
  %v2550 = vsel %vm42, %v2442, 0
  %2552 = vmatprep.subr.bf16.mxu0 0
  %2553 = vmatpush1.bf16.msra.mxu0 %v2480
  %2554 = vmatprep.subr.bf16.mxu0 0
  %2555 = vmatpush1.bf16.msra.mxu0 %v2481
  %2556 = vmatprep.subr.bf16.mxu0 0
  %2557 = vmatpush1.bf16.msra.mxu0 %v2482
  %2558 = vmatprep.subr.bf16.mxu0 0
  %2559 = vmatpush1.bf16.msra.mxu0 %v2483
  %2560 = vmatprep.subr.bf16.mxu0 0
  %2561 = vmatpush1.bf16.msra.mxu0 %v2484
  %2562 = vmatprep.subr.bf16.mxu0 0
  %2563 = vmatpush1.bf16.msra.mxu0 %v2485
  %2564 = vmatprep.subr.bf16.mxu0 0
  %2565 = vmatpush1.bf16.msra.mxu0 0
  %2566 = vmatprep.subr.bf16.mxu0 0
  %2567 = vmatpush1.bf16.msra.mxu0 0
  %2568 = vmatprep.subr.bf16.mxu0 0
  %2569 = vmatpush1.bf16.msra.mxu0 0
  %2570 = vmatprep.subr.bf16.mxu0 0
  %2571 = vmatpush1.bf16.msra.mxu0 0
  %2572 = vmatprep.subr.bf16.mxu0 0
  %2573 = vmatpush1.bf16.msra.mxu0 0
  %2574 = vmatprep.subr.bf16.mxu0 0
  %2575 = vmatpush1.bf16.msra.mxu0 0
  %2576 = vmatprep.subr.bf16.mxu0 0
  %2577 = vmatpush1.bf16.msra.mxu0 0
  %2578 = vmatprep.subr.bf16.mxu0 0
  %2579 = vmatpush1.bf16.msra.mxu0 0
  %2580 = vmatprep.subr.bf16.mxu0 0
  %2581 = vmatpush1.bf16.msra.mxu0 0
  %2582 = vmatprep.subr.bf16.mxu0 0
  %2583 = vmatpush1.bf16.msra.mxu0 0
  %2584 = vmatprep.mubr.bf16.mxu0 0
  %2585 = vmatmul.mubr.bf16.gmra.mrb[0].mxu0 %v2493
  %v2586 = vpop.f32.mrb[0].mxu0
  %v2587 = vadd.f32 0.0, %v2586
  %v2588 = vpop.f32.mrb[0].mxu0
  %v2589 = vpop.f32.mrb[0].mxu0
  %v2590 = vadd.f32 0.0, %v2589
  %v2591 = vpop.f32.mrb[0].mxu0
  %2592 = vmatprep.mubr.bf16.mxu0 0
  %2593 = vmatmul.mubr.bf16.gmra.mrb[0].mxu0 %v2496
  %v2594 = vpop.f32.mrb[0].mxu0
  %v2595 = vadd.f32 0.0, %v2594
  %v2596 = vpop.f32.mrb[0].mxu0
  %v2597 = vpop.f32.mrb[0].mxu0
  %v2598 = vadd.f32 0.0, %v2597
  %v2599 = vpop.f32.mrb[0].mxu0
  %2600 = vmatprep.mubr.bf16.mxu0 0
  %2601 = vmatmul.mubr.bf16.gmra.mrb[0].mxu0 %v2499
  %v2602 = vpop.f32.mrb[0].mxu0
  %v2603 = vadd.f32 0.0, %v2602
  %v2604 = vpop.f32.mrb[0].mxu0
  %v2605 = vpop.f32.mrb[0].mxu0
  %v2606 = vadd.f32 0.0, %v2605
  %v2607 = vpop.f32.mrb[0].mxu0
  %2608 = vmatprep.mubr.bf16.mxu0 0
  %2609 = vmatmul.mubr.bf16.gmra.mrb[0].mxu0 %v2502
  %v2610 = vpop.f32.mrb[0].mxu0
  %v2611 = vadd.f32 0.0, %v2610
  %v2612 = vpop.f32.mrb[0].mxu0
  %v2613 = vpop.f32.mrb[0].mxu0
  %v2614 = vadd.f32 0.0, %v2613
  %v2615 = vpop.f32.mrb[0].mxu0
  %2616 = vmatprep.mubr.bf16.mxu0 0
  %2617 = vmatmul.mubr.bf16.gmra.mrb[0].mxu0 %v2505
  %v2618 = vpop.f32.mrb[0].mxu0
  %v2619 = vadd.f32 0.0, %v2618
  %v2620 = vpop.f32.mrb[0].mxu0
  %v2621 = vpop.f32.mrb[0].mxu0
  %v2622 = vadd.f32 0.0, %v2621
  %v2623 = vpop.f32.mrb[0].mxu0
  %2624 = vmatprep.mubr.bf16.mxu0 0
  %2625 = vmatmul.mubr.bf16.gmra.mrb[0].mxu0 %v2508
  %v2626 = vpop.f32.mrb[0].mxu0
  %v2627 = vadd.f32 0.0, %v2626
  %v2628 = vpop.f32.mrb[0].mxu0
  %v2629 = vpop.f32.mrb[0].mxu0
  %v2630 = vadd.f32 0.0, %v2629
  %v2631 = vpop.f32.mrb[0].mxu0
  %2632 = vmatprep.mubr.bf16.mxu0 0
  %2633 = vmatmul.mubr.bf16.gmra.mrb[0].mxu0 %v2511
  %v2634 = vpop.f32.mrb[0].mxu0
  %v2635 = vadd.f32 0.0, %v2634
  %v2636 = vpop.f32.mrb[0].mxu0
  %v2637 = vpop.f32.mrb[0].mxu0
  %v2638 = vadd.f32 0.0, %v2637
  %v2639 = vpop.f32.mrb[0].mxu0
  %2640 = vmatprep.mubr.bf16.mxu0 0
  %2641 = vmatmul.mubr.bf16.gmra.mrb[0].mxu0 %v2514
  %v2642 = vpop.f32.mrb[0].mxu0
  %v2643 = vadd.f32 0.0, %v2642
  %v2644 = vpop.f32.mrb[0].mxu0
  %v2645 = vpop.f32.mrb[0].mxu0
  %v2646 = vadd.f32 0.0, %v2645
  %v2647 = vpop.f32.mrb[0].mxu0
  %2648 = vmatprep.mubr.bf16.mxu0 0
  %2649 = vmatmul.mubr.bf16.gmra.mrb[0].mxu0 %v2517
  %v2650 = vpop.f32.mrb[0].mxu0
  %v2651 = vadd.f32 0.0, %v2650
  %v2652 = vpop.f32.mrb[0].mxu0
  %v2653 = vpop.f32.mrb[0].mxu0
  %v2654 = vadd.f32 0.0, %v2653
  %v2655 = vpop.f32.mrb[0].mxu0
  %2656 = vmatprep.mubr.bf16.mxu0 0
  %2657 = vmatmul.mubr.bf16.gmra.mrb[0].mxu0 %v2520
  %v2658 = vpop.f32.mrb[0].mxu0
  %v2659 = vadd.f32 0.0, %v2658
  %v2660 = vpop.f32.mrb[0].mxu0
  %v2661 = vpop.f32.mrb[0].mxu0
  %v2662 = vadd.f32 0.0, %v2661
  %v2663 = vpop.f32.mrb[0].mxu0
  %2664 = vmatprep.mubr.bf16.mxu0 0
  %2665 = vmatmul.mubr.bf16.gmra.mrb[0].mxu0 %v2523
  %v2666 = vpop.f32.mrb[0].mxu0
  %v2667 = vadd.f32 0.0, %v2666
  %v2668 = vpop.f32.mrb[0].mxu0
  %v2669 = vpop.f32.mrb[0].mxu0
  %v2670 = vadd.f32 0.0, %v2669
  %v2671 = vpop.f32.mrb[0].mxu0
  %2672 = vmatprep.mubr.bf16.mxu0 0
  %2673 = vmatmul.mubr.bf16.gmra.mrb[0].mxu0 %v2526
  %v2674 = vpop.f32.mrb[0].mxu0
  %v2675 = vadd.f32 0.0, %v2674
  %v2676 = vpop.f32.mrb[0].mxu0
  %v2677 = vpop.f32.mrb[0].mxu0
  %v2678 = vadd.f32 0.0, %v2677
  %v2679 = vpop.f32.mrb[0].mxu0
  %2680 = vmatprep.mubr.bf16.mxu0 0
  %2681 = vmatmul.mubr.bf16.gmra.mrb[0].mxu0 %v2529
  %v2682 = vpop.f32.mrb[0].mxu0
  %v2683 = vadd.f32 0.0, %v2682
  %v2684 = vpop.f32.mrb[0].mxu0
  %v2685 = vpop.f32.mrb[0].mxu0
  %v2686 = vadd.f32 0.0, %v2685
  %v2687 = vpop.f32.mrb[0].mxu0
  %2688 = vmatprep.mubr.bf16.mxu0 0
  %2689 = vmatmul.mubr.bf16.gmra.mrb[0].mxu0 %v2532
  %v2690 = vpop.f32.mrb[0].mxu0
  %v2691 = vadd.f32 0.0, %v2690
  %v2692 = vpop.f32.mrb[0].mxu0
  %v2693 = vpop.f32.mrb[0].mxu0
  %v2694 = vadd.f32 0.0, %v2693
  %v2695 = vpop.f32.mrb[0].mxu0
  %2696 = vmatprep.mubr.bf16.mxu0 0
  %2697 = vmatmul.mubr.bf16.gmra.mrb[0].mxu0 %v2535
  %v2698 = vpop.f32.mrb[0].mxu0
  %v2699 = vadd.f32 0.0, %v2698
  %v2700 = vpop.f32.mrb[0].mxu0
  %v2701 = vpop.f32.mrb[0].mxu0
  %v2702 = vadd.f32 0.0, %v2701
  %v2703 = vpop.f32.mrb[0].mxu0
  %2704 = vmatprep.mubr.bf16.mxu0 0
  %2705 = vmatmul.mubr.bf16.gmra.mrb[0].mxu0 %v2538
  %v2706 = vpop.f32.mrb[0].mxu0
  %v2707 = vadd.f32 0.0, %v2706
  %v2708 = vpop.f32.mrb[0].mxu0
  %v2709 = vpop.f32.mrb[0].mxu0
  %v2710 = vadd.f32 0.0, %v2709
  %v2711 = vpop.f32.mrb[0].mxu0
  %2712 = vmatprep.mubr.bf16.mxu0 0
  %2713 = vmatmul.mubr.bf16.gmra.mrb[0].mxu0 %v2541
  %v2714 = vpop.f32.mrb[0].mxu0
  %v2715 = vadd.f32 0.0, %v2714
  %v2716 = vpop.f32.mrb[0].mxu0
  %v2717 = vpop.f32.mrb[0].mxu0
  %v2718 = vadd.f32 0.0, %v2717
  %v2719 = vpop.f32.mrb[0].mxu0
  %2720 = vmatprep.mubr.bf16.mxu0 0
  %2721 = vmatmul.mubr.bf16.gmra.mrb[0].mxu0 %v2544
  %v2722 = vpop.f32.mrb[0].mxu0
  %v2723 = vadd.f32 0.0, %v2722
  %v2724 = vpop.f32.mrb[0].mxu0
  %v2725 = vpop.f32.mrb[0].mxu0
  %v2726 = vadd.f32 0.0, %v2725
  %v2727 = vpop.f32.mrb[0].mxu0
  %2728 = vmatprep.mubr.bf16.mxu0 0
  %2729 = vmatmul.mubr.bf16.gmra.mrb[0].mxu0 %v2547
  %v2730 = vpop.f32.mrb[0].mxu0
  %v2731 = vadd.f32 0.0, %v2730
  %v2732 = vpop.f32.mrb[0].mxu0
  %v2733 = vpop.f32.mrb[0].mxu0
  %v2734 = vadd.f32 0.0, %v2733
  %v2735 = vpop.f32.mrb[0].mxu0
  %2736 = vmatprep.mubr.bf16.mxu0 0
  %2737 = vmatmul.mubr.bf16.gmra.mrb[0].mxu0 %v2550
  %v2738 = vpop.f32.mrb[0].mxu0
  %v2739 = vadd.f32 0.0, %v2738
  %v2740 = vpop.f32.mrb[0].mxu0
  %v2741 = vpop.f32.mrb[0].mxu0
  %v2742 = vadd.f32 0.0, %v2741
  %v2743 = vpop.f32.mrb[0].mxu0
  %2744 = vdwg.mxu0
  %v2745 = vadd.f32 %v2265, %v2587
  %v2746 = vadd.f32 %v2268, %v2590
  %v2747 = vadd.f32 %v2273, %v2595
  %v2748 = vadd.f32 %v2276, %v2598
  %v2749 = vadd.f32 %v2281, %v2603
  %v2750 = vadd.f32 %v2284, %v2606
  %v2751 = vadd.f32 %v2289, %v2611
  %v2752 = vadd.f32 %v2292, %v2614
  %v2753 = vadd.f32 %v2297, %v2619
  %v2754 = vadd.f32 %v2300, %v2622
  %v2755 = vadd.f32 %v2305, %v2627
  %v2756 = vadd.f32 %v2308, %v2630
  %v2757 = vadd.f32 %v2313, %v2635
  %v2758 = vadd.f32 %v2316, %v2638
  %v2759 = vadd.f32 %v2321, %v2643
  %v2760 = vadd.f32 %v2324, %v2646
  %v2761 = vadd.f32 %v2329, %v2651
  %v2762 = vadd.f32 %v2332, %v2654
  %v2763 = vadd.f32 %v2337, %v2659
  %v2764 = vadd.f32 %v2340, %v2662
  %v2765 = vadd.f32 %v2345, %v2667
  %v2766 = vadd.f32 %v2348, %v2670
  %v2767 = vadd.f32 %v2353, %v2675
  %v2768 = vadd.f32 %v2356, %v2678
  %v2769 = vadd.f32 %v2361, %v2683
  %v2770 = vadd.f32 %v2364, %v2686
  %v2771 = vadd.f32 %v2369, %v2691
  %v2772 = vadd.f32 %v2372, %v2694
  %v2773 = vadd.f32 %v2377, %v2699
  %v2774 = vadd.f32 %v2380, %v2702
  %v2775 = vadd.f32 %v2385, %v2707
  %v2776 = vadd.f32 %v2388, %v2710
  %v2777 = vadd.f32 %v2393, %v2715
  %v2778 = vadd.f32 %v2396, %v2718
  %v2779 = vadd.f32 %v2401, %v2723
  %v2780 = vadd.f32 %v2404, %v2726
  %v2781 = vadd.f32 %v2409, %v2731
  %v2782 = vadd.f32 %v2412, %v2734
  %v2783 = vadd.f32 %v2417, %v2739
  %v2784 = vadd.f32 %v2420, %v2742
  %v2785 = vld [vmem:[%s5] sm:$0x1]
  %v2786 = vld [vmem:[%s6] sm:$0x1]
  %v2787 = vmul.f32 %v2745, %v507
  %v2788 = vmul.f32 %v2746, %v512
  %v2789 = vmul.f32 %v2747, %v517
  %v2790 = vmul.f32 %v2748, %v522
  %v2791 = vmul.f32 %v2749, %v527
  %v2792 = vmul.f32 %v2750, %v532
  %v2793 = vmul.f32 %v2751, %v537
  %v2794 = vmul.f32 %v2752, %v542
  %v2795 = vmul.f32 %v2753, %v547
  %v2796 = vmul.f32 %v2754, %v552
  %v2797 = vmul.f32 %v2755, %v557
  %v2798 = vmul.f32 %v2756, %v562
  %v2799 = vmul.f32 %v2757, %v567
  %v2800 = vmul.f32 %v2758, %v572
  %v2801 = vmul.f32 %v2759, %v577
  %v2802 = vmul.f32 %v2760, %v582
  %v2803 = vmul.f32 %v2761, %v587
  %v2804 = vmul.f32 %v2762, %v592
  %v2805 = vmul.f32 %v2763, %v597
  %v2806 = vmul.f32 %v2764, %v602
  %v2807 = vmul.f32 %v2765, %v607
  %v2808 = vmul.f32 %v2766, %v612
  %v2809 = vmul.f32 %v2767, %v617
  %v2810 = vmul.f32 %v2768, %v622
  %v2811 = vmul.f32 %v2769, %v627
  %v2812 = vmul.f32 %v2770, %v632
  %v2813 = vmul.f32 %v2771, %v637
  %v2814 = vmul.f32 %v2772, %v642
  %v2815 = vmul.f32 %v2773, %v647
  %v2816 = vmul.f32 %v2774, %v652
  %v2817 = vmul.f32 %v2775, %v657
  %v2818 = vmul.f32 %v2776, %v662
  %v2819 = vmul.f32 %v2777, %v667
  %v2820 = vmul.f32 %v2778, %v672
  %v2821 = vmul.f32 %v2779, %v677
  %v2822 = vmul.f32 %v2780, %v682
  %v2823 = vmul.f32 %v2781, %v687
  %v2824 = vmul.f32 %v2782, %v692
  %v2825 = vmul.f32 %v2783, %v697
  %v2826 = vmul.f32 %v2784, %v702
  %v2827 = vsel %vm1091, %v2787, 0.0
  %v2828 = vsel %vm1091, %v2788, 0.0
  %v2829 = vadd.f32 %v2827, %v2828
  %v2830 = vsel %vm1091, %v2789, 0.0
  %v2831 = vadd.f32 %v2829, %v2830
  %v2832 = vsel %vm1091, %v2790, 0.0
  %v2833 = vadd.f32 %v2831, %v2832
  %v2834 = vsel %vm1091, %v2791, 0.0
  %v2835 = vadd.f32 %v2833, %v2834
  %v2836 = vsel %vm1091, %v2792, 0.0
  %v2837 = vadd.f32 %v2835, %v2836
  %v2838 = vsel %vm1091, %v2793, 0.0
  %v2839 = vadd.f32 %v2837, %v2838
  %v2840 = vsel %vm1091, %v2794, 0.0
  %v2841 = vadd.f32 %v2839, %v2840
  %v2842 = vsel %vm1091, %v2795, 0.0
  %v2843 = vadd.f32 %v2841, %v2842
  %v2844 = vsel %vm1091, %v2796, 0.0
  %v2845 = vadd.f32 %v2843, %v2844
  %v2846 = vsel %vm1091, %v2797, 0.0
  %v2847 = vadd.f32 %v2845, %v2846
  %v2848 = vsel %vm1091, %v2798, 0.0
  %v2849 = vadd.f32 %v2847, %v2848
  %v2850 = vsel %vm1091, %v2799, 0.0
  %v2851 = vadd.f32 %v2849, %v2850
  %v2852 = vsel %vm1091, %v2800, 0.0
  %v2853 = vadd.f32 %v2851, %v2852
  %v2854 = vsel %vm1091, %v2801, 0.0
  %v2855 = vadd.f32 %v2853, %v2854
  %v2856 = vsel %vm1091, %v2802, 0.0
  %v2857 = vadd.f32 %v2855, %v2856
  %v2858 = vsel %vm1091, %v2803, 0.0
  %v2859 = vadd.f32 %v2857, %v2858
  %v2860 = vsel %vm1091, %v2804, 0.0
  %v2861 = vadd.f32 %v2859, %v2860
  %v2862 = vsel %vm1091, %v2805, 0.0
  %v2863 = vadd.f32 %v2861, %v2862
  %v2864 = vsel %vm1091, %v2806, 0.0
  %v2865 = vadd.f32 %v2863, %v2864
  %v2866 = vsel %vm1091, %v2807, 0.0
  %v2867 = vadd.f32 %v2865, %v2866
  %v2868 = vsel %vm1091, %v2808, 0.0
  %v2869 = vadd.f32 %v2867, %v2868
  %v2870 = vsel %vm1091, %v2809, 0.0
  %v2871 = vadd.f32 %v2869, %v2870
  %v2872 = vsel %vm1091, %v2810, 0.0
  %v2873 = vadd.f32 %v2871, %v2872
  %v2874 = vsel %vm1091, %v2811, 0.0
  %v2875 = vadd.f32 %v2873, %v2874
  %v2876 = vsel %vm1091, %v2812, 0.0
  %v2877 = vadd.f32 %v2875, %v2876
  %v2878 = vsel %vm1091, %v2813, 0.0
  %v2879 = vadd.f32 %v2877, %v2878
  %v2880 = vsel %vm1091, %v2814, 0.0
  %v2881 = vadd.f32 %v2879, %v2880
  %v2882 = vsel %vm1091, %v2815, 0.0
  %v2883 = vadd.f32 %v2881, %v2882
  %v2884 = vsel %vm1091, %v2816, 0.0
  %v2885 = vadd.f32 %v2883, %v2884
  %v2886 = vsel %vm1091, %v2817, 0.0
  %v2887 = vadd.f32 %v2885, %v2886
  %v2888 = vsel %vm1091, %v2818, 0.0
  %v2889 = vadd.f32 %v2887, %v2888
  %v2890 = vsel %vm1091, %v2819, 0.0
  %v2891 = vadd.f32 %v2889, %v2890
  %v2892 = vsel %vm1091, %v2820, 0.0
  %v2893 = vadd.f32 %v2891, %v2892
  %v2894 = vsel %vm1091, %v2821, 0.0
  %v2895 = vadd.f32 %v2893, %v2894
  %v2896 = vsel %vm1091, %v2822, 0.0
  %v2897 = vadd.f32 %v2895, %v2896
  %v2898 = vsel %vm1091, %v2823, 0.0
  %v2899 = vadd.f32 %v2897, %v2898
  %v2900 = vsel %vm1091, %v2824, 0.0
  %v2901 = vadd.f32 %v2899, %v2900
  %v2902 = vsel %vm1091, %v2825, 0.0
  %v2903 = vadd.f32 %v2901, %v2902
  %v2904 = vsel %vm1091, %v2826, 0.0
  %v2905 = vadd.f32 %v2903, %v2904
  %v2906 = vrot.slane %v2905, 4
  %v2907 = vadd.f32 %v2905, %v2906
  %v2908 = vrot.slane %v2907, 2
  %v2909 = vadd.f32 %v2907, %v2908
  %v2910 = vrot.slane %v2909, 1
  %v2911 = vadd.f32 %v2909, %v2910
  %v2913 = vsel %vm1091, %v2911, 0
  %2915 = vmatprep.subr.mxu0 0.0
  %2916 = vmatpush1.msra.mxu0 %v96
  %2917 = vmatprep.subr.mxu0 0.0
  %2918 = vmatpush1.msra.mxu0 %v97
  %2919 = vmatprep.subr.mxu0 0.0
  %2920 = vmatpush1.msra.mxu0 0.0
  %2921 = vmatprep.subr.mxu0 0.0
  %2922 = vmatpush1.msra.mxu0 0.0
  %2923 = vmatprep.subr.mxu0 0.0
  %2924 = vmatpush1.msra.mxu0 0.0
  %2925 = vmatprep.subr.mxu0 0.0
  %2926 = vmatpush1.msra.mxu0 0.0
  %2927 = vmatprep.subr.mxu0 0.0
  %2928 = vmatpush1.msra.mxu0 0.0
  %2929 = vmatprep.subr.mxu0 0.0
  %2930 = vmatpush1.msra.mxu0 0.0
  %2931 = vmatprep.subr.mxu0 0.0
  %2932 = vmatpush1.msra.mxu0 0.0
  %2933 = vmatprep.subr.mxu0 0.0
  %2934 = vmatpush1.msra.mxu0 0.0
  %2935 = vmatprep.subr.mxu0 0.0
  %2936 = vmatpush1.msra.mxu0 0.0
  %2937 = vmatprep.subr.mxu0 0.0
  %2938 = vmatpush1.msra.mxu0 0.0
  %2939 = vmatprep.subr.mxu0 0.0
  %2940 = vmatpush1.msra.mxu0 0.0
  %2941 = vmatprep.subr.mxu0 0.0
  %2942 = vmatpush1.msra.mxu0 0.0
  %2943 = vmatprep.subr.mxu0 0.0
  %2944 = vmatpush1.msra.mxu0 0.0
  %2945 = vmatprep.subr.mxu0 0.0
  %2946 = vmatpush1.msra.mxu0 0.0
  %2947 = vmatprep.subr.mxu0 0.0
  %2948 = vmatpush1.msra.mxu0 0.0
  %2949 = vmatprep.subr.mxu0 0.0
  %2950 = vmatpush1.msra.mxu0 0.0
  %2951 = vmatprep.subr.mxu0 0.0
  %2952 = vmatpush1.msra.mxu0 0.0
  %2953 = vmatprep.subr.mxu0 0.0
  %2954 = vmatpush1.msra.mxu0 0.0
  %2955 = vmatprep.subr.mxu0 0.0
  %2956 = vmatpush1.msra.mxu0 0.0
  %2957 = vmatprep.subr.mxu0 0.0
  %2958 = vmatpush1.msra.mxu0 0.0
  %2959 = vmatprep.subr.mxu0 0.0
  %2960 = vmatpush1.msra.mxu0 0.0
  %2961 = vmatprep.subr.mxu0 0.0
  %2962 = vmatpush1.msra.mxu0 0.0
  %2963 = vmatprep.subr.mxu0 0.0
  %2964 = vmatpush1.msra.mxu0 0.0
  %2965 = vmatprep.subr.mxu0 0.0
  %2966 = vmatpush1.msra.mxu0 0.0
  %2967 = vmatprep.subr.mxu0 0.0
  %2968 = vmatpush1.msra.mxu0 0.0
  %2969 = vmatprep.subr.mxu0 0.0
  %2970 = vmatpush1.msra.mxu0 0.0
  %2971 = vmatprep.subr.mxu0 0.0
  %2972 = vmatpush1.msra.mxu0 0.0
  %2973 = vmatprep.subr.mxu0 0.0
  %2974 = vmatpush1.msra.mxu0 0.0
  %2975 = vmatprep.subr.mxu0 0.0
  %2976 = vmatpush1.msra.mxu0 0.0
  %2977 = vmatprep.subr.mxu0 0.0
  %2978 = vmatpush1.msra.mxu0 0.0
  %2979 = vmatprep.mubr.f32.mxu0 0.0
  %2980 = vmatmul.mubr.f32.gmra.mrb[0].mxu0 %v2913
  %v2981 = vpop.f32.mrb[0].mxu0
  %v2982 = vadd.f32 0.0, %v2981
  %v2983 = vpop.f32.mrb[0].mxu0
  %2984 = vdwg.mxu0
  %v2985 = vmul.f32 %v2787, %v2787
  %v2986 = vmul.f32 %v2788, %v2788
  %v2987 = vmul.f32 %v2789, %v2789
  %v2988 = vmul.f32 %v2790, %v2790
  %v2989 = vmul.f32 %v2791, %v2791
  %v2990 = vmul.f32 %v2792, %v2792
  %v2991 = vmul.f32 %v2793, %v2793
  %v2992 = vmul.f32 %v2794, %v2794
  %v2993 = vmul.f32 %v2795, %v2795
  %v2994 = vmul.f32 %v2796, %v2796
  %v2995 = vmul.f32 %v2797, %v2797
  %v2996 = vmul.f32 %v2798, %v2798
  %v2997 = vmul.f32 %v2799, %v2799
  %v2998 = vmul.f32 %v2800, %v2800
  %v2999 = vmul.f32 %v2801, %v2801
  %v3000 = vmul.f32 %v2802, %v2802
  %v3001 = vmul.f32 %v2803, %v2803
  %v3002 = vmul.f32 %v2804, %v2804
  %v3003 = vmul.f32 %v2805, %v2805
  %v3004 = vmul.f32 %v2806, %v2806
  %v3005 = vmul.f32 %v2807, %v2807
  %v3006 = vmul.f32 %v2808, %v2808
  %v3007 = vmul.f32 %v2809, %v2809
  %v3008 = vmul.f32 %v2810, %v2810
  %v3009 = vmul.f32 %v2811, %v2811
  %v3010 = vmul.f32 %v2812, %v2812
  %v3011 = vmul.f32 %v2813, %v2813
  %v3012 = vmul.f32 %v2814, %v2814
  %v3013 = vmul.f32 %v2815, %v2815
  %v3014 = vmul.f32 %v2816, %v2816
  %v3015 = vmul.f32 %v2817, %v2817
  %v3016 = vmul.f32 %v2818, %v2818
  %v3017 = vmul.f32 %v2819, %v2819
  %v3018 = vmul.f32 %v2820, %v2820
  %v3019 = vmul.f32 %v2821, %v2821
  %v3020 = vmul.f32 %v2822, %v2822
  %v3021 = vmul.f32 %v2823, %v2823
  %v3022 = vmul.f32 %v2824, %v2824
  %v3023 = vmul.f32 %v2825, %v2825
  %v3024 = vmul.f32 %v2826, %v2826
  %v3025 = vsel %vm1091, %v2985, 0.0
  %v3026 = vsel %vm1091, %v2986, 0.0
  %v3027 = vadd.f32 %v3025, %v3026
  %v3028 = vsel %vm1091, %v2987, 0.0
  %v3029 = vadd.f32 %v3027, %v3028
  %v3030 = vsel %vm1091, %v2988, 0.0
  %v3031 = vadd.f32 %v3029, %v3030
  %v3032 = vsel %vm1091, %v2989, 0.0
  %v3033 = vadd.f32 %v3031, %v3032
  %v3034 = vsel %vm1091, %v2990, 0.0
  %v3035 = vadd.f32 %v3033, %v3034
  %v3036 = vsel %vm1091, %v2991, 0.0
  %v3037 = vadd.f32 %v3035, %v3036
  %v3038 = vsel %vm1091, %v2992, 0.0
  %v3039 = vadd.f32 %v3037, %v3038
  %v3040 = vsel %vm1091, %v2993, 0.0
  %v3041 = vadd.f32 %v3039, %v3040
  %v3042 = vsel %vm1091, %v2994, 0.0
  %v3043 = vadd.f32 %v3041, %v3042
  %v3044 = vsel %vm1091, %v2995, 0.0
  %v3045 = vadd.f32 %v3043, %v3044
  %v3046 = vsel %vm1091, %v2996, 0.0
  %v3047 = vadd.f32 %v3045, %v3046
  %v3048 = vsel %vm1091, %v2997, 0.0
  %v3049 = vadd.f32 %v3047, %v3048
  %v3050 = vsel %vm1091, %v2998, 0.0
  %v3051 = vadd.f32 %v3049, %v3050
  %v3052 = vsel %vm1091, %v2999, 0.0
  %v3053 = vadd.f32 %v3051, %v3052
  %v3054 = vsel %vm1091, %v3000, 0.0
  %v3055 = vadd.f32 %v3053, %v3054
  %v3056 = vsel %vm1091, %v3001, 0.0
  %v3057 = vadd.f32 %v3055, %v3056
  %v3058 = vsel %vm1091, %v3002, 0.0
  %v3059 = vadd.f32 %v3057, %v3058
  %v3060 = vsel %vm1091, %v3003, 0.0
  %v3061 = vadd.f32 %v3059, %v3060
  %v3062 = vsel %vm1091, %v3004, 0.0
  %v3063 = vadd.f32 %v3061, %v3062
  %v3064 = vsel %vm1091, %v3005, 0.0
  %v3065 = vadd.f32 %v3063, %v3064
  %v3066 = vsel %vm1091, %v3006, 0.0
  %v3067 = vadd.f32 %v3065, %v3066
  %v3068 = vsel %vm1091, %v3007, 0.0
  %v3069 = vadd.f32 %v3067, %v3068
  %v3070 = vsel %vm1091, %v3008, 0.0
  %v3071 = vadd.f32 %v3069, %v3070
  %v3072 = vsel %vm1091, %v3009, 0.0
  %v3073 = vadd.f32 %v3071, %v3072
  %v3074 = vsel %vm1091, %v3010, 0.0
  %v3075 = vadd.f32 %v3073, %v3074
  %v3076 = vsel %vm1091, %v3011, 0.0
  %v3077 = vadd.f32 %v3075, %v3076
  %v3078 = vsel %vm1091, %v3012, 0.0
  %v3079 = vadd.f32 %v3077, %v3078
  %v3080 = vsel %vm1091, %v3013, 0.0
  %v3081 = vadd.f32 %v3079, %v3080
  %v3082 = vsel %vm1091, %v3014, 0.0
  %v3083 = vadd.f32 %v3081, %v3082
  %v3084 = vsel %vm1091, %v3015, 0.0
  %v3085 = vadd.f32 %v3083, %v3084
  %v3086 = vsel %vm1091, %v3016, 0.0
  %v3087 = vadd.f32 %v3085, %v3086
  %v3088 = vsel %vm1091, %v3017, 0.0
  %v3089 = vadd.f32 %v3087, %v3088
  %v3090 = vsel %vm1091, %v3018, 0.0
  %v3091 = vadd.f32 %v3089, %v3090
  %v3092 = vsel %vm1091, %v3019, 0.0
  %v3093 = vadd.f32 %v3091, %v3092
  %v3094 = vsel %vm1091, %v3020, 0.0
  %v3095 = vadd.f32 %v3093, %v3094
  %v3096 = vsel %vm1091, %v3021, 0.0
  %v3097 = vadd.f32 %v3095, %v3096
  %v3098 = vsel %vm1091, %v3022, 0.0
  %v3099 = vadd.f32 %v3097, %v3098
  %v3100 = vsel %vm1091, %v3023, 0.0
  %v3101 = vadd.f32 %v3099, %v3100
  %v3102 = vsel %vm1091, %v3024, 0.0
  %v3103 = vadd.f32 %v3101, %v3102
  %v3104 = vrot.slane %v3103, 4
  %v3105 = vadd.f32 %v3103, %v3104
  %v3106 = vrot.slane %v3105, 2
  %v3107 = vadd.f32 %v3105, %v3106
  %v3108 = vrot.slane %v3107, 1
  %v3109 = vadd.f32 %v3107, %v3108
  %v3111 = vsel %vm1091, %v3109, 0
  %3113 = vmatprep.subr.mxu0 0.0
  %3114 = vmatpush1.msra.mxu0 %v96
  %3115 = vmatprep.subr.mxu0 0.0
  %3116 = vmatpush1.msra.mxu0 %v97
  %3117 = vmatprep.subr.mxu0 0.0
  %3118 = vmatpush1.msra.mxu0 0.0
  %3119 = vmatprep.subr.mxu0 0.0
  %3120 = vmatpush1.msra.mxu0 0.0
  %3121 = vmatprep.subr.mxu0 0.0
  %3122 = vmatpush1.msra.mxu0 0.0
  %3123 = vmatprep.subr.mxu0 0.0
  %3124 = vmatpush1.msra.mxu0 0.0
  %3125 = vmatprep.subr.mxu0 0.0
  %3126 = vmatpush1.msra.mxu0 0.0
  %3127 = vmatprep.subr.mxu0 0.0
  %3128 = vmatpush1.msra.mxu0 0.0
  %3129 = vmatprep.subr.mxu0 0.0
  %3130 = vmatpush1.msra.mxu0 0.0
  %3131 = vmatprep.subr.mxu0 0.0
  %3132 = vmatpush1.msra.mxu0 0.0
  %3133 = vmatprep.subr.mxu0 0.0
  %3134 = vmatpush1.msra.mxu0 0.0
  %3135 = vmatprep.subr.mxu0 0.0
  %3136 = vmatpush1.msra.mxu0 0.0
  %3137 = vmatprep.subr.mxu0 0.0
  %3138 = vmatpush1.msra.mxu0 0.0
  %3139 = vmatprep.subr.mxu0 0.0
  %3140 = vmatpush1.msra.mxu0 0.0
  %3141 = vmatprep.subr.mxu0 0.0
  %3142 = vmatpush1.msra.mxu0 0.0
  %3143 = vmatprep.subr.mxu0 0.0
  %3144 = vmatpush1.msra.mxu0 0.0
  %3145 = vmatprep.subr.mxu0 0.0
  %3146 = vmatpush1.msra.mxu0 0.0
  %3147 = vmatprep.subr.mxu0 0.0
  %3148 = vmatpush1.msra.mxu0 0.0
  %3149 = vmatprep.subr.mxu0 0.0
  %3150 = vmatpush1.msra.mxu0 0.0
  %3151 = vmatprep.subr.mxu0 0.0
  %3152 = vmatpush1.msra.mxu0 0.0
  %3153 = vmatprep.subr.mxu0 0.0
  %3154 = vmatpush1.msra.mxu0 0.0
  %3155 = vmatprep.subr.mxu0 0.0
  %3156 = vmatpush1.msra.mxu0 0.0
  %3157 = vmatprep.subr.mxu0 0.0
  %3158 = vmatpush1.msra.mxu0 0.0
  %3159 = vmatprep.subr.mxu0 0.0
  %3160 = vmatpush1.msra.mxu0 0.0
  %3161 = vmatprep.subr.mxu0 0.0
  %3162 = vmatpush1.msra.mxu0 0.0
  %3163 = vmatprep.subr.mxu0 0.0
  %3164 = vmatpush1.msra.mxu0 0.0
  %3165 = vmatprep.subr.mxu0 0.0
  %3166 = vmatpush1.msra.mxu0 0.0
  %3167 = vmatprep.subr.mxu0 0.0
  %3168 = vmatpush1.msra.mxu0 0.0
  %3169 = vmatprep.subr.mxu0 0.0
  %3170 = vmatpush1.msra.mxu0 0.0
  %3171 = vmatprep.subr.mxu0 0.0
  %3172 = vmatpush1.msra.mxu0 0.0
  %3173 = vmatprep.subr.mxu0 0.0
  %3174 = vmatpush1.msra.mxu0 0.0
  %3175 = vmatprep.subr.mxu0 0.0
  %3176 = vmatpush1.msra.mxu0 0.0
  %3177 = vmatprep.mubr.f32.mxu0 0.0
  %3178 = vmatmul.mubr.f32.gmra.mrb[0].mxu0 %v3111
  %v3179 = vpop.f32.mrb[0].mxu0
  %v3180 = vadd.f32 0.0, %v3179
  %v3181 = vpop.f32.mrb[0].mxu0
  %3182 = vdwg.mxu0
  %v3183 = vmul.f32 %v2982, 0.001953125
  %v3184 = vmul.f32 %v3180, 0.001953125
  %v3185 = vmul.f32 %v3183, %v3183
  %v3186 = vsub.f32 %v3184, %v3185
  %v3187 = vmax.f32 %v3186, 0.0
  %v3188 = vadd.f32 %v3187, 1e-05
  %v3189 = vrsqrt.pop %v3188
  %v3190 = vmul.f32 %v2785, %v3189
  %v3191 = vmul.f32 %v3183, %v3190
  %v3192 = vsub.f32 %v2786, %v3191
  %v3194 = vlaneseq
  %v3195 = vshrl.u32 %v3194, 7
  %v3196 = vsub.s32 0, %v3195
  %v3197 = vrot.slane %v3190, %v3196
  %v3199 = vmul.f32 %v2745, %v3197
  %v3200 = vmul.f32 %v2746, %v3197
  %v3201 = vmul.f32 %v2747, %v3197
  %v3202 = vmul.f32 %v2748, %v3197
  %v3203 = vmul.f32 %v2749, %v3197
  %v3204 = vmul.f32 %v2750, %v3197
  %v3205 = vmul.f32 %v2751, %v3197
  %v3206 = vmul.f32 %v2752, %v3197
  %v3207 = vmul.f32 %v2753, %v3197
  %v3208 = vmul.f32 %v2754, %v3197
  %v3209 = vmul.f32 %v2755, %v3197
  %v3210 = vmul.f32 %v2756, %v3197
  %v3211 = vmul.f32 %v2757, %v3197
  %v3212 = vmul.f32 %v2758, %v3197
  %v3213 = vmul.f32 %v2759, %v3197
  %v3214 = vmul.f32 %v2760, %v3197
  %v3215 = vmul.f32 %v2761, %v3197
  %v3216 = vmul.f32 %v2762, %v3197
  %v3217 = vmul.f32 %v2763, %v3197
  %v3218 = vmul.f32 %v2764, %v3197
  %v3219 = vmul.f32 %v2765, %v3197
  %v3220 = vmul.f32 %v2766, %v3197
  %v3221 = vmul.f32 %v2767, %v3197
  %v3222 = vmul.f32 %v2768, %v3197
  %v3223 = vmul.f32 %v2769, %v3197
  %v3224 = vmul.f32 %v2770, %v3197
  %v3225 = vmul.f32 %v2771, %v3197
  %v3226 = vmul.f32 %v2772, %v3197
  %v3227 = vmul.f32 %v2773, %v3197
  %v3228 = vmul.f32 %v2774, %v3197
  %v3229 = vmul.f32 %v2775, %v3197
  %v3230 = vmul.f32 %v2776, %v3197
  %v3231 = vmul.f32 %v2777, %v3197
  %v3232 = vmul.f32 %v2778, %v3197
  %v3233 = vmul.f32 %v2779, %v3197
  %v3234 = vmul.f32 %v2780, %v3197
  %v3235 = vmul.f32 %v2781, %v3197
  %v3236 = vmul.f32 %v2782, %v3197
  %v3237 = vmul.f32 %v2783, %v3197
  %v3238 = vmul.f32 %v2784, %v3197
  %v3240 = vlaneseq
  %v3241 = vshrl.u32 %v3240, 7
  %v3242 = vsub.s32 0, %v3241
  %v3243 = vrot.slane %v3192, %v3242
  %v3245 = vadd.f32 %v3199, %v3243
  %v3246 = vadd.f32 %v3200, %v3243
  %v3247 = vadd.f32 %v3201, %v3243
  %v3248 = vadd.f32 %v3202, %v3243
  %v3249 = vadd.f32 %v3203, %v3243
  %v3250 = vadd.f32 %v3204, %v3243
  %v3251 = vadd.f32 %v3205, %v3243
  %v3252 = vadd.f32 %v3206, %v3243
  %v3253 = vadd.f32 %v3207, %v3243
  %v3254 = vadd.f32 %v3208, %v3243
  %v3255 = vadd.f32 %v3209, %v3243
  %v3256 = vadd.f32 %v3210, %v3243
  %v3257 = vadd.f32 %v3211, %v3243
  %v3258 = vadd.f32 %v3212, %v3243
  %v3259 = vadd.f32 %v3213, %v3243
  %v3260 = vadd.f32 %v3214, %v3243
  %v3261 = vadd.f32 %v3215, %v3243
  %v3262 = vadd.f32 %v3216, %v3243
  %v3263 = vadd.f32 %v3217, %v3243
  %v3264 = vadd.f32 %v3218, %v3243
  %v3265 = vadd.f32 %v3219, %v3243
  %v3266 = vadd.f32 %v3220, %v3243
  %v3267 = vadd.f32 %v3221, %v3243
  %v3268 = vadd.f32 %v3222, %v3243
  %v3269 = vadd.f32 %v3223, %v3243
  %v3270 = vadd.f32 %v3224, %v3243
  %v3271 = vadd.f32 %v3225, %v3243
  %v3272 = vadd.f32 %v3226, %v3243
  %v3273 = vadd.f32 %v3227, %v3243
  %v3274 = vadd.f32 %v3228, %v3243
  %v3275 = vadd.f32 %v3229, %v3243
  %v3276 = vadd.f32 %v3230, %v3243
  %v3277 = vadd.f32 %v3231, %v3243
  %v3278 = vadd.f32 %v3232, %v3243
  %v3279 = vadd.f32 %v3233, %v3243
  %v3280 = vadd.f32 %v3234, %v3243
  %v3281 = vadd.f32 %v3235, %v3243
  %v3282 = vadd.f32 %v3236, %v3243
  %v3283 = vadd.f32 %v3237, %v3243
  %v3284 = vadd.f32 %v3238, %v3243
  %v3285 = vmax.f32 %v3245, 0.0
  %v3286 = vmax.f32 %v3246, 0.0
  %v3287 = vmax.f32 %v3247, 0.0
  %v3288 = vmax.f32 %v3248, 0.0
  %v3289 = vmax.f32 %v3249, 0.0
  %v3290 = vmax.f32 %v3250, 0.0
  %v3291 = vmax.f32 %v3251, 0.0
  %v3292 = vmax.f32 %v3252, 0.0
  %v3293 = vmax.f32 %v3253, 0.0
  %v3294 = vmax.f32 %v3254, 0.0
  %v3295 = vmax.f32 %v3255, 0.0
  %v3296 = vmax.f32 %v3256, 0.0
  %v3297 = vmax.f32 %v3257, 0.0
  %v3298 = vmax.f32 %v3258, 0.0
  %v3299 = vmax.f32 %v3259, 0.0
  %v3300 = vmax.f32 %v3260, 0.0
  %v3301 = vmax.f32 %v3261, 0.0
  %v3302 = vmax.f32 %v3262, 0.0
  %v3303 = vmax.f32 %v3263, 0.0
  %v3304 = vmax.f32 %v3264, 0.0
  %v3305 = vmax.f32 %v3265, 0.0
  %v3306 = vmax.f32 %v3266, 0.0
  %v3307 = vmax.f32 %v3267, 0.0
  %v3308 = vmax.f32 %v3268, 0.0
  %v3309 = vmax.f32 %v3269, 0.0
  %v3310 = vmax.f32 %v3270, 0.0
  %v3311 = vmax.f32 %v3271, 0.0
  %v3312 = vmax.f32 %v3272, 0.0
  %v3313 = vmax.f32 %v3273, 0.0
  %v3314 = vmax.f32 %v3274, 0.0
  %v3315 = vmax.f32 %v3275, 0.0
  %v3316 = vmax.f32 %v3276, 0.0
  %v3317 = vmax.f32 %v3277, 0.0
  %v3318 = vmax.f32 %v3278, 0.0
  %v3319 = vmax.f32 %v3279, 0.0
  %v3320 = vmax.f32 %v3280, 0.0
  %v3321 = vmax.f32 %v3281, 0.0
  %v3322 = vmax.f32 %v3282, 0.0
  %v3323 = vmax.f32 %v3283, 0.0
  %v3324 = vmax.f32 %v3284, 0.0
  %v3325 = vmul.f32 %v3285, %v507
  %v3326 = vmul.f32 %v3286, %v512
  %v3327 = vmul.f32 %v3287, %v517
  %v3328 = vmul.f32 %v3288, %v522
  %v3329 = vmul.f32 %v3289, %v527
  %v3330 = vmul.f32 %v3290, %v532
  %v3331 = vmul.f32 %v3291, %v537
  %v3332 = vmul.f32 %v3292, %v542
  %v3333 = vmul.f32 %v3293, %v547
  %v3334 = vmul.f32 %v3294, %v552
  %v3335 = vmul.f32 %v3295, %v557
  %v3336 = vmul.f32 %v3296, %v562
  %v3337 = vmul.f32 %v3297, %v567
  %v3338 = vmul.f32 %v3298, %v572
  %v3339 = vmul.f32 %v3299, %v577
  %v3340 = vmul.f32 %v3300, %v582
  %v3341 = vmul.f32 %v3301, %v587
  %v3342 = vmul.f32 %v3302, %v592
  %v3343 = vmul.f32 %v3303, %v597
  %v3344 = vmul.f32 %v3304, %v602
  %v3345 = vmul.f32 %v3305, %v607
  %v3346 = vmul.f32 %v3306, %v612
  %v3347 = vmul.f32 %v3307, %v617
  %v3348 = vmul.f32 %v3308, %v622
  %v3349 = vmul.f32 %v3309, %v627
  %v3350 = vmul.f32 %v3310, %v632
  %v3351 = vmul.f32 %v3311, %v637
  %v3352 = vmul.f32 %v3312, %v642
  %v3353 = vmul.f32 %v3313, %v647
  %v3354 = vmul.f32 %v3314, %v652
  %v3355 = vmul.f32 %v3315, %v657
  %v3356 = vmul.f32 %v3316, %v662
  %v3357 = vmul.f32 %v3317, %v667
  %v3358 = vmul.f32 %v3318, %v672
  %v3359 = vmul.f32 %v3319, %v677
  %v3360 = vmul.f32 %v3320, %v682
  %v3361 = vmul.f32 %v3321, %v687
  %v3362 = vmul.f32 %v3322, %v692
  %v3363 = vmul.f32 %v3323, %v697
  %v3364 = vmul.f32 %v3324, %v702
  %v3365 = vpack.c.bf16 %v3326, %v3325
  %v3366 = vpack.c.bf16 %v3328, %v3327
  %v3367 = vpack.c.bf16 %v3330, %v3329
  %v3368 = vpack.c.bf16 %v3332, %v3331
  %v3369 = vpack.c.bf16 %v3334, %v3333
  %v3370 = vpack.c.bf16 %v3336, %v3335
  %v3371 = vpack.c.bf16 %v3338, %v3337
  %v3372 = vpack.c.bf16 %v3340, %v3339
  %v3373 = vpack.c.bf16 %v3342, %v3341
  %v3374 = vpack.c.bf16 %v3344, %v3343
  %v3375 = vpack.c.bf16 %v3346, %v3345
  %v3376 = vpack.c.bf16 %v3348, %v3347
  %v3377 = vpack.c.bf16 %v3350, %v3349
  %v3378 = vpack.c.bf16 %v3352, %v3351
  %v3379 = vpack.c.bf16 %v3354, %v3353
  %v3380 = vpack.c.bf16 %v3356, %v3355
  %v3381 = vpack.c.bf16 %v3358, %v3357
  %v3382 = vpack.c.bf16 %v3360, %v3359
  %v3383 = vpack.c.bf16 %v3362, %v3361
  %v3384 = vpack.c.bf16 %v3364, %v3363
  %v3386 = vshrl.u32 %v3365, 16
  %v3388 = vrot.slane %v3386, 7
  %v3389 = vshll.u32 %v3365, 16
  %v3391 = vor.u32 %v3388, %v3389
  %v3393 = vshrl.u32 %v3366, 16
  %v3395 = vrot.slane %v3393, 7
  %v3396 = vshll.u32 %v3366, 16
  %v3398 = vor.u32 %v3395, %v3396
  %v3399 = vsel %vm904, %v3388, %v3398
  %v3401 = vshrl.u32 %v3367, 16
  %v3403 = vrot.slane %v3401, 7
  %v3404 = vshll.u32 %v3367, 16
  %v3406 = vor.u32 %v3403, %v3404
  %v3407 = vsel %vm904, %v3395, %v3406
  %v3409 = vshrl.u32 %v3368, 16
  %v3411 = vrot.slane %v3409, 7
  %v3412 = vshll.u32 %v3368, 16
  %v3414 = vor.u32 %v3411, %v3412
  %v3415 = vsel %vm904, %v3403, %v3414
  %v3417 = vshrl.u32 %v3369, 16
  %v3419 = vrot.slane %v3417, 7
  %v3420 = vshll.u32 %v3369, 16
  %v3422 = vor.u32 %v3419, %v3420
  %v3423 = vsel %vm904, %v3411, %v3422
  %v3425 = vshrl.u32 %v3370, 16
  %v3427 = vrot.slane %v3425, 7
  %v3428 = vshll.u32 %v3370, 16
  %v3430 = vor.u32 %v3427, %v3428
  %v3431 = vsel %vm904, %v3419, %v3430
  %v3433 = vshrl.u32 %v3371, 16
  %v3435 = vrot.slane %v3433, 7
  %v3436 = vshll.u32 %v3371, 16
  %v3438 = vor.u32 %v3435, %v3436
  %v3439 = vsel %vm904, %v3427, %v3438
  %v3441 = vshrl.u32 %v3372, 16
  %v3443 = vrot.slane %v3441, 7
  %v3444 = vshll.u32 %v3372, 16
  %v3446 = vor.u32 %v3443, %v3444
  %v3447 = vsel %vm904, %v3435, %v3446
  %v3449 = vshrl.u32 %v3373, 16
  %v3451 = vrot.slane %v3449, 7
  %v3452 = vshll.u32 %v3373, 16
  %v3454 = vor.u32 %v3451, %v3452
  %v3455 = vsel %vm904, %v3443, %v3454
  %v3457 = vshrl.u32 %v3374, 16
  %v3459 = vrot.slane %v3457, 7
  %v3460 = vshll.u32 %v3374, 16
  %v3462 = vor.u32 %v3459, %v3460
  %v3463 = vsel %vm904, %v3451, %v3462
  %v3465 = vshrl.u32 %v3375, 16
  %v3467 = vrot.slane %v3465, 7
  %v3468 = vshll.u32 %v3375, 16
  %v3470 = vor.u32 %v3467, %v3468
  %v3471 = vsel %vm904, %v3459, %v3470
  %v3473 = vshrl.u32 %v3376, 16
  %v3475 = vrot.slane %v3473, 7
  %v3476 = vshll.u32 %v3376, 16
  %v3478 = vor.u32 %v3475, %v3476
  %v3479 = vsel %vm904, %v3467, %v3478
  %v3481 = vshrl.u32 %v3377, 16
  %v3483 = vrot.slane %v3481, 7
  %v3484 = vshll.u32 %v3377, 16
  %v3486 = vor.u32 %v3483, %v3484
  %v3487 = vsel %vm904, %v3475, %v3486
  %v3489 = vshrl.u32 %v3378, 16
  %v3491 = vrot.slane %v3489, 7
  %v3492 = vshll.u32 %v3378, 16
  %v3494 = vor.u32 %v3491, %v3492
  %v3495 = vsel %vm904, %v3483, %v3494
  %v3497 = vshrl.u32 %v3379, 16
  %v3499 = vrot.slane %v3497, 7
  %v3500 = vshll.u32 %v3379, 16
  %v3502 = vor.u32 %v3499, %v3500
  %v3503 = vsel %vm904, %v3491, %v3502
  %v3505 = vshrl.u32 %v3380, 16
  %v3507 = vrot.slane %v3505, 7
  %v3508 = vshll.u32 %v3380, 16
  %v3510 = vor.u32 %v3507, %v3508
  %v3511 = vsel %vm904, %v3499, %v3510
  %v3513 = vshrl.u32 %v3381, 16
  %v3515 = vrot.slane %v3513, 7
  %v3516 = vshll.u32 %v3381, 16
  %v3518 = vor.u32 %v3515, %v3516
  %v3519 = vsel %vm904, %v3507, %v3518
  %v3521 = vshrl.u32 %v3382, 16
  %v3523 = vrot.slane %v3521, 7
  %v3524 = vshll.u32 %v3382, 16
  %v3526 = vor.u32 %v3523, %v3524
  %v3527 = vsel %vm904, %v3515, %v3526
  %v3529 = vshrl.u32 %v3383, 16
  %v3531 = vrot.slane %v3529, 7
  %v3532 = vshll.u32 %v3383, 16
  %v3534 = vor.u32 %v3531, %v3532
  %v3535 = vsel %vm904, %v3523, %v3534
  %v3537 = vshrl.u32 %v3384, 16
  %v3539 = vrot.slane %v3537, 7
  %v3540 = vshll.u32 %v3384, 16
  %v3542 = vor.u32 %v3539, %v3540
  %v3543 = vsel %vm904, %v3531, %v3542
  %v3565 = vld [vmem:[#allocation3 + $0x8] sm:$0xff]
  %v3566 = vsel %vm1087, %v3391, %v3565
  %3567 = vst [vmem:[#allocation3 + $0x8] sm:$0xff] %v3566
  %3568 = vst.msk [vmem:[#allocation3 + $0x10] sm:$0xff] %vm1091, %v3399
  %3569 = vst.msk [vmem:[#allocation3 + $0x18] sm:$0xff] %vm1091, %v3407
  %3570 = vst.msk [vmem:[#allocation3 + $0x20] sm:$0xff] %vm1091, %v3415
  %3571 = vst.msk [vmem:[#allocation3 + $0x28] sm:$0xff] %vm1091, %v3423
  %3572 = vst.msk [vmem:[#allocation3 + $0x30] sm:$0xff] %vm1091, %v3431
  %3573 = vst.msk [vmem:[#allocation3 + $0x38] sm:$0xff] %vm1091, %v3439
  %3574 = vst.msk [vmem:[#allocation3 + $0x40] sm:$0xff] %vm1091, %v3447
  %3575 = vst.msk [vmem:[#allocation3 + $0x48] sm:$0xff] %vm1091, %v3455
  %3576 = vst.msk [vmem:[#allocation3 + $0x50] sm:$0xff] %vm1091, %v3463
  %3577 = vst.msk [vmem:[#allocation3 + $0x58] sm:$0xff] %vm1091, %v3471
  %3578 = vst.msk [vmem:[#allocation3 + $0x60] sm:$0xff] %vm1091, %v3479
  %3579 = vst.msk [vmem:[#allocation3 + $0x68] sm:$0xff] %vm1091, %v3487
  %3580 = vst.msk [vmem:[#allocation3 + $0x70] sm:$0xff] %vm1091, %v3495
  %3581 = vst.msk [vmem:[#allocation3 + $0x78] sm:$0xff] %vm1091, %v3503
  %3582 = vst.msk [vmem:[#allocation3 + $0x80] sm:$0xff] %vm1091, %v3511
  %3583 = vst.msk [vmem:[#allocation3 + $0x88] sm:$0xff] %vm1091, %v3519
  %3584 = vst.msk [vmem:[#allocation3 + $0x90] sm:$0xff] %vm1091, %v3527
  %3585 = vst.msk [vmem:[#allocation3 + $0x98] sm:$0xff] %vm1091, %v3535
  %3586 = vst.msk [vmem:[#allocation3 + $0xa0] sm:$0xff] %vm1091, %v3543
  %v3587 = vld [vmem:[#allocation3 + $0xa8] sm:$0x1]
  %v3588 = vsel %vm1112, %v3539, %v3587
  %3589 = vst [vmem:[#allocation3 + $0xa8] sm:$0x1] %v3588
  %3610 = vrot.lane.b32.xlu0 %v3365, 16
  %v3611 = vpop.permute.xlu0 %3610
  %3612 = vrot.lane.b32.xlu0 %v3366, 16
  %v3613 = vpop.permute.xlu0 %3612
  %3614 = vrot.lane.b32.xlu0 %v3367, 16
  %v3615 = vpop.permute.xlu0 %3614
  %3616 = vrot.lane.b32.xlu0 %v3368, 16
  %v3617 = vpop.permute.xlu0 %3616
  %3618 = vrot.lane.b32.xlu0 %v3369, 16
  %v3619 = vpop.permute.xlu0 %3618
  %3620 = vrot.lane.b32.xlu0 %v3370, 16
  %v3621 = vpop.permute.xlu0 %3620
  %3622 = vrot.lane.b32.xlu0 %v3371, 16
  %v3623 = vpop.permute.xlu0 %3622
  %3624 = vrot.lane.b32.xlu0 %v3372, 16
  %v3625 = vpop.permute.xlu0 %3624
  %3626 = vrot.lane.b32.xlu0 %v3373, 16
  %v3627 = vpop.permute.xlu0 %3626
  %3628 = vrot.lane.b32.xlu0 %v3374, 16
  %v3629 = vpop.permute.xlu0 %3628
  %3630 = vrot.lane.b32.xlu0 %v3375, 16
  %v3631 = vpop.permute.xlu0 %3630
  %3632 = vrot.lane.b32.xlu0 %v3376, 16
  %v3633 = vpop.permute.xlu0 %3632
  %3634 = vrot.lane.b32.xlu0 %v3377, 16
  %v3635 = vpop.permute.xlu0 %3634
  %3636 = vrot.lane.b32.xlu0 %v3378, 16
  %v3637 = vpop.permute.xlu0 %3636
  %3638 = vrot.lane.b32.xlu0 %v3379, 16
  %v3639 = vpop.permute.xlu0 %3638
  %3640 = vrot.lane.b32.xlu0 %v3380, 16
  %v3641 = vpop.permute.xlu0 %3640
  %3642 = vrot.lane.b32.xlu0 %v3381, 16
  %v3643 = vpop.permute.xlu0 %3642
  %3644 = vrot.lane.b32.xlu0 %v3382, 16
  %v3645 = vpop.permute.xlu0 %3644
  %3646 = vrot.lane.b32.xlu0 %v3383, 16
  %v3647 = vpop.permute.xlu0 %3646
  %3648 = vrot.lane.b32.xlu0 %v3384, 16
  %v3649 = vpop.permute.xlu0 %3648
  %3670 = vst.msk [vmem:[#allocation3 + $0x8] sm:$0xff] %vm1343, %v3611
  %3671 = vst.msk [vmem:[#allocation3 + $0x10] sm:$0xff] %vm1343, %v3613
  %3672 = vst.msk [vmem:[#allocation3 + $0x18] sm:$0xff] %vm1343, %v3615
  %3673 = vst.msk [vmem:[#allocation3 + $0x20] sm:$0xff] %vm1343, %v3617
  %3674 = vst.msk [vmem:[#allocation3 + $0x28] sm:$0xff] %vm1343, %v3619
  %3675 = vst.msk [vmem:[#allocation3 + $0x30] sm:$0xff] %vm1343, %v3621
  %3676 = vst.msk [vmem:[#allocation3 + $0x38] sm:$0xff] %vm1343, %v3623
  %3677 = vst.msk [vmem:[#allocation3 + $0x40] sm:$0xff] %vm1343, %v3625
  %3678 = vst.msk [vmem:[#allocation3 + $0x48] sm:$0xff] %vm1343, %v3627
  %3679 = vst.msk [vmem:[#allocation3 + $0x50] sm:$0xff] %vm1343, %v3629
  %3680 = vst.msk [vmem:[#allocation3 + $0x58] sm:$0xff] %vm1343, %v3631
  %3681 = vst.msk [vmem:[#allocation3 + $0x60] sm:$0xff] %vm1343, %v3633
  %3682 = vst.msk [vmem:[#allocation3 + $0x68] sm:$0xff] %vm1343, %v3635
  %3683 = vst.msk [vmem:[#allocation3 + $0x70] sm:$0xff] %vm1343, %v3637
  %3684 = vst.msk [vmem:[#allocation3 + $0x78] sm:$0xff] %vm1343, %v3639
  %3685 = vst.msk [vmem:[#allocation3 + $0x80] sm:$0xff] %vm1343, %v3641
  %3686 = vst.msk [vmem:[#allocation3 + $0x88] sm:$0xff] %vm1343, %v3643
  %3687 = vst.msk [vmem:[#allocation3 + $0x90] sm:$0xff] %vm1343, %v3645
  %3688 = vst.msk [vmem:[#allocation3 + $0x98] sm:$0xff] %vm1343, %v3647
  %3689 = vst.msk [vmem:[#allocation3 + $0xa0] sm:$0xff] %vm1343, %v3649
  %v3690 = vrot.slane %v3389, 1
  %v3691 = vor.u32 %v3386, %v3690
  %v3692 = vrot.slane %v3396, 1
  %v3693 = vsel %vm1550, %v3691, %v3692
  %v3694 = vor.u32 %v3393, %v3692
  %v3695 = vrot.slane %v3404, 1
  %v3696 = vsel %vm1550, %v3694, %v3695
  %v3697 = vor.u32 %v3401, %v3695
  %v3698 = vrot.slane %v3412, 1
  %v3699 = vsel %vm1550, %v3697, %v3698
  %v3700 = vor.u32 %v3409, %v3698
  %v3701 = vrot.slane %v3420, 1
  %v3702 = vsel %vm1550, %v3700, %v3701
  %v3703 = vor.u32 %v3417, %v3701
  %v3704 = vrot.slane %v3428, 1
  %v3705 = vsel %vm1550, %v3703, %v3704
  %v3706 = vor.u32 %v3425, %v3704
  %v3707 = vrot.slane %v3436, 1
  %v3708 = vsel %vm1550, %v3706, %v3707
  %v3709 = vor.u32 %v3433, %v3707
  %v3710 = vrot.slane %v3444, 1
  %v3711 = vsel %vm1550, %v3709, %v3710
  %v3712 = vor.u32 %v3441, %v3710
  %v3713 = vrot.slane %v3452, 1
  %v3714 = vsel %vm1550, %v3712, %v3713
  %v3715 = vor.u32 %v3449, %v3713
  %v3716 = vrot.slane %v3460, 1
  %v3717 = vsel %vm1550, %v3715, %v3716
  %v3718 = vor.u32 %v3457, %v3716
  %v3719 = vrot.slane %v3468, 1
  %v3720 = vsel %vm1550, %v3718, %v3719
  %v3721 = vor.u32 %v3465, %v3719
  %v3722 = vrot.slane %v3476, 1
  %v3723 = vsel %vm1550, %v3721, %v3722
  %v3724 = vor.u32 %v3473, %v3722
  %v3725 = vrot.slane %v3484, 1
  %v3726 = vsel %vm1550, %v3724, %v3725
  %v3727 = vor.u32 %v3481, %v3725
  %v3728 = vrot.slane %v3492, 1
  %v3729 = vsel %vm1550, %v3727, %v3728
  %v3730 = vor.u32 %v3489, %v3728
  %v3731 = vrot.slane %v3500, 1
  %v3732 = vsel %vm1550, %v3730, %v3731
  %v3733 = vor.u32 %v3497, %v3731
  %v3734 = vrot.slane %v3508, 1
  %v3735 = vsel %vm1550, %v3733, %v3734
  %v3736 = vor.u32 %v3505, %v3734
  %v3737 = vrot.slane %v3516, 1
  %v3738 = vsel %vm1550, %v3736, %v3737
  %v3739 = vor.u32 %v3513, %v3737
  %v3740 = vrot.slane %v3524, 1
  %v3741 = vsel %vm1550, %v3739, %v3740
  %v3742 = vor.u32 %v3521, %v3740
  %v3743 = vrot.slane %v3532, 1
  %v3744 = vsel %vm1550, %v3742, %v3743
  %v3745 = vor.u32 %v3529, %v3743
  %v3746 = vrot.slane %v3540, 1
  %v3747 = vsel %vm1550, %v3745, %v3746
  %v3748 = vor.u32 %v3537, %v3746
  %3749 = vrot.lane.b32.xlu0 %v3690, 32
  %v3750 = vpop.permute.xlu0 %3749
  %3751 = vrot.lane.b32.xlu0 %v3693, 32
  %v3752 = vpop.permute.xlu0 %3751
  %3753 = vrot.lane.b32.xlu0 %v3696, 32
  %v3754 = vpop.permute.xlu0 %3753
  %3755 = vrot.lane.b32.xlu0 %v3699, 32
  %v3756 = vpop.permute.xlu0 %3755
  %3757 = vrot.lane.b32.xlu0 %v3702, 32
  %v3758 = vpop.permute.xlu0 %3757
  %3759 = vrot.lane.b32.xlu0 %v3705, 32
  %v3760 = vpop.permute.xlu0 %3759
  %3761 = vrot.lane.b32.xlu0 %v3708, 32
  %v3762 = vpop.permute.xlu0 %3761
  %3763 = vrot.lane.b32.xlu0 %v3711, 32
  %v3764 = vpop.permute.xlu0 %3763
  %3765 = vrot.lane.b32.xlu0 %v3714, 32
  %v3766 = vpop.permute.xlu0 %3765
  %3767 = vrot.lane.b32.xlu0 %v3717, 32
  %v3768 = vpop.permute.xlu0 %3767
  %3769 = vrot.lane.b32.xlu0 %v3720, 32
  %v3770 = vpop.permute.xlu0 %3769
  %3771 = vrot.lane.b32.xlu0 %v3723, 32
  %v3772 = vpop.permute.xlu0 %3771
  %3773 = vrot.lane.b32.xlu0 %v3726, 32
  %v3774 = vpop.permute.xlu0 %3773
  %3775 = vrot.lane.b32.xlu0 %v3729, 32
  %v3776 = vpop.permute.xlu0 %3775
  %3777 = vrot.lane.b32.xlu0 %v3732, 32
  %v3778 = vpop.permute.xlu0 %3777
  %3779 = vrot.lane.b32.xlu0 %v3735, 32
  %v3780 = vpop.permute.xlu0 %3779
  %3781 = vrot.lane.b32.xlu0 %v3738, 32
  %v3782 = vpop.permute.xlu0 %3781
  %3783 = vrot.lane.b32.xlu0 %v3741, 32
  %v3784 = vpop.permute.xlu0 %3783
  %3785 = vrot.lane.b32.xlu0 %v3744, 32
  %v3786 = vpop.permute.xlu0 %3785
  %3787 = vrot.lane.b32.xlu0 %v3747, 32
  %v3788 = vpop.permute.xlu0 %3787
  %3789 = vrot.lane.b32.xlu0 %v3748, 32
  %v3790 = vpop.permute.xlu0 %3789
  %vm3812 = vcmask 392455
  %vm3813 = vmand %vm3812, %vm1674
  %v3814 = vld [vmem:[#allocation3] sm:$0x80]
  %v3815 = vsel %vm3813, %v3750, %v3814
  %3816 = vst [vmem:[#allocation3] sm:$0x80] %v3815
  %3817 = vst.msk [vmem:[#allocation3 + $0x8] sm:$0xff] %vm1428, %v3752
  %3818 = vst.msk [vmem:[#allocation3 + $0x10] sm:$0xff] %vm1428, %v3754
  %3819 = vst.msk [vmem:[#allocation3 + $0x18] sm:$0xff] %vm1428, %v3756
  %3820 = vst.msk [vmem:[#allocation3 + $0x20] sm:$0xff] %vm1428, %v3758
  %3821 = vst.msk [vmem:[#allocation3 + $0x28] sm:$0xff] %vm1428, %v3760
  %3822 = vst.msk [vmem:[#allocation3 + $0x30] sm:$0xff] %vm1428, %v3762
  %3823 = vst.msk [vmem:[#allocation3 + $0x38] sm:$0xff] %vm1428, %v3764
  %3824 = vst.msk [vmem:[#allocation3 + $0x40] sm:$0xff] %vm1428, %v3766
  %3825 = vst.msk [vmem:[#allocation3 + $0x48] sm:$0xff] %vm1428, %v3768
  %3826 = vst.msk [vmem:[#allocation3 + $0x50] sm:$0xff] %vm1428, %v3770
  %3827 = vst.msk [vmem:[#allocation3 + $0x58] sm:$0xff] %vm1428, %v3772
  %3828 = vst.msk [vmem:[#allocation3 + $0x60] sm:$0xff] %vm1428, %v3774
  %3829 = vst.msk [vmem:[#allocation3 + $0x68] sm:$0xff] %vm1428, %v3776
  %3830 = vst.msk [vmem:[#allocation3 + $0x70] sm:$0xff] %vm1428, %v3778
  %3831 = vst.msk [vmem:[#allocation3 + $0x78] sm:$0xff] %vm1428, %v3780
  %3832 = vst.msk [vmem:[#allocation3 + $0x80] sm:$0xff] %vm1428, %v3782
  %3833 = vst.msk [vmem:[#allocation3 + $0x88] sm:$0xff] %vm1428, %v3784
  %3834 = vst.msk [vmem:[#allocation3 + $0x90] sm:$0xff] %vm1428, %v3786
  %3835 = vst.msk [vmem:[#allocation3 + $0x98] sm:$0xff] %vm1428, %v3788
  %vm3836 = vcmask 392448
  %vm3837 = vmand %vm3836, %vm1550
  %v3838 = vld [vmem:[#allocation3 + $0xa0] sm:$0xff]
  %v3839 = vsel %vm3837, %v3790, %v3838
  %3840 = vst [vmem:[#allocation3 + $0xa0] sm:$0xff] %v3839
  %v3841 = vld [vmem:[#allocation3] sm:$0xff]
  %v3842 = vld [vmem:[#allocation3 + $0x8] sm:$0xff]
  %v3843 = vld [vmem:[#allocation3 + $0x10] sm:$0xff]
  %v3844 = vld [vmem:[#allocation3 + $0x18] sm:$0xff]
  %v3845 = vld [vmem:[#allocation3 + $0x20] sm:$0xff]
  %v3846 = vld [vmem:[#allocation3 + $0x28] sm:$0xff]
  %v3847 = vld [vmem:[#allocation3 + $0x30] sm:$0xff]
  %v3848 = vld [vmem:[#allocation3 + $0x38] sm:$0xff]
  %v3849 = vld [vmem:[#allocation3 + $0x40] sm:$0xff]
  %v3850 = vld [vmem:[#allocation3 + $0x48] sm:$0xff]
  %v3851 = vld [vmem:[#allocation3 + $0x50] sm:$0xff]
  %v3852 = vld [vmem:[#allocation3 + $0x58] sm:$0xff]
  %v3853 = vld [vmem:[#allocation3 + $0x60] sm:$0xff]
  %v3854 = vld [vmem:[#allocation3 + $0x68] sm:$0xff]
  %v3855 = vld [vmem:[#allocation3 + $0x70] sm:$0xff]
  %v3856 = vld [vmem:[#allocation3 + $0x78] sm:$0xff]
  %v3857 = vld [vmem:[#allocation3 + $0x80] sm:$0xff]
  %v3858 = vld [vmem:[#allocation3 + $0x88] sm:$0xff]
  %v3859 = vld [vmem:[#allocation3 + $0x90] sm:$0xff]
  %v3860 = vld [vmem:[#allocation3 + $0x98] sm:$0xff]
  %v3861 = vld [vmem:[%s7] sm:$0xf]
  %v3862 = vld [vmem:[%s7 + $0x4] sm:$0xf]
  %v3863 = vld [vmem:[%s7 + $0x8] sm:$0xf]
  %v3864 = vld [vmem:[%s7 + $0xc] sm:$0xf]
  %v3865 = vld [vmem:[%s7 + $0x10] sm:$0xf]
  %v3866 = vld [vmem:[%s7 + $0x14] sm:$0xf]
  %v3867 = vld [vmem:[#allocation3 + $0xa0] sm:$0xff]
  %s3868 = scalar_lea.vmem %s7, 24
  %v3869 = vld [vmem:[%s3868] sm:$0xf]
  %v3870 = vld [vmem:[%s3868 + $0x4] sm:$0xf]
  %v3871 = vld [vmem:[%s3868 + $0x8] sm:$0xf]
  %v3872 = vld [vmem:[%s3868 + $0xc] sm:$0xf]
  %v3873 = vld [vmem:[%s3868 + $0x10] sm:$0xf]
  %v3874 = vld [vmem:[%s3868 + $0x14] sm:$0xf]
  %v3881 = vunpack.c.l.b16 %v3869
  %v3882 = vunpack.c.l.b16 %v3870
  %v3883 = vunpack.c.l.b16 %v3871
  %v3884 = vunpack.c.l.b16 %v3872
  %v3885 = vunpack.c.l.b16 %v3873
  %v3886 = vunpack.c.l.b16 %v3874
  %v3887 = vpack.c.b16 %v3882, %v3881
  %v3888 = vpack.c.b16 %v3884, %v3883
  %v3889 = vpack.c.b16 %v3886, %v3885
  %v3894 = vsel %vm49, %v3842, 0
  %v3897 = vsel %vm49, %v3843, 0
  %v3900 = vsel %vm49, %v3844, 0
  %v3903 = vsel %vm49, %v3845, 0
  %v3906 = vsel %vm49, %v3846, 0
  %v3909 = vsel %vm49, %v3847, 0
  %v3912 = vsel %vm49, %v3848, 0
  %v3915 = vsel %vm49, %v3849, 0
  %v3918 = vsel %vm49, %v3850, 0
  %v3921 = vsel %vm49, %v3851, 0
  %v3924 = vsel %vm49, %v3852, 0
  %v3927 = vsel %vm49, %v3853, 0
  %v3930 = vsel %vm49, %v3854, 0
  %v3933 = vsel %vm49, %v3855, 0
  %v3936 = vsel %vm49, %v3856, 0
  %v3939 = vsel %vm49, %v3857, 0
  %v3942 = vsel %vm49, %v3858, 0
  %v3945 = vsel %vm49, %v3859, 0
  %v3948 = vsel %vm49, %v3860, 0
  %v3951 = vsel %vm49, %v3867, 0
  %3953 = vmatprep.subr.bf16.mxu0 0
  %3954 = vmatpush1.bf16.msra.mxu0 %v3887
  %3955 = vmatprep.subr.bf16.mxu0 0
  %3956 = vmatpush1.bf16.msra.mxu0 %v3888
  %3957 = vmatprep.subr.bf16.mxu0 0
  %3958 = vmatpush1.bf16.msra.mxu0 %v3889
  %3959 = vmatprep.subr.bf16.mxu0 0
  %3960 = vmatpush1.bf16.msra.mxu0 0
  %3961 = vmatprep.subr.bf16.mxu0 0
  %3962 = vmatpush1.bf16.msra.mxu0 0
  %3963 = vmatprep.subr.bf16.mxu0 0
  %3964 = vmatpush1.bf16.msra.mxu0 0
  %3965 = vmatprep.subr.bf16.mxu0 0
  %3966 = vmatpush1.bf16.msra.mxu0 0
  %3967 = vmatprep.subr.bf16.mxu0 0
  %3968 = vmatpush1.bf16.msra.mxu0 0
  %3969 = vmatprep.subr.bf16.mxu0 0
  %3970 = vmatpush1.bf16.msra.mxu0 0
  %3971 = vmatprep.subr.bf16.mxu0 0
  %3972 = vmatpush1.bf16.msra.mxu0 0
  %3973 = vmatprep.subr.bf16.mxu0 0
  %3974 = vmatpush1.bf16.msra.mxu0 0
  %3975 = vmatprep.subr.bf16.mxu0 0
  %3976 = vmatpush1.bf16.msra.mxu0 0
  %3977 = vmatprep.subr.bf16.mxu0 0
  %3978 = vmatpush1.bf16.msra.mxu0 0
  %3979 = vmatprep.subr.bf16.mxu0 0
  %3980 = vmatpush1.bf16.msra.mxu0 0
  %3981 = vmatprep.subr.bf16.mxu0 0
  %3982 = vmatpush1.bf16.msra.mxu0 0
  %3983 = vmatprep.subr.bf16.mxu0 0
  %3984 = vmatpush1.bf16.msra.mxu0 0
  %3985 = vmatprep.mubr.bf16.mxu0 0
  %3986 = vmatmul.mubr.bf16.gmra.mrb[0].mxu0 %v3894
  %v3987 = vpop.f32.mrb[0].mxu0
  %v3988 = vadd.f32 0.0, %v3987
  %v3989 = vpop.f32.mrb[0].mxu0
  %v3990 = vpop.f32.mrb[0].mxu0
  %v3991 = vadd.f32 0.0, %v3990
  %v3992 = vpop.f32.mrb[0].mxu0
  %3993 = vmatprep.mubr.bf16.mxu0 0
  %3994 = vmatmul.mubr.bf16.gmra.mrb[0].mxu0 %v3897
  %v3995 = vpop.f32.mrb[0].mxu0
  %v3996 = vadd.f32 0.0, %v3995
  %v3997 = vpop.f32.mrb[0].mxu0
  %v3998 = vpop.f32.mrb[0].mxu0
  %v3999 = vadd.f32 0.0, %v3998
  %v4000 = vpop.f32.mrb[0].mxu0
  %4001 = vmatprep.mubr.bf16.mxu0 0
  %4002 = vmatmul.mubr.bf16.gmra.mrb[0].mxu0 %v3900
  %v4003 = vpop.f32.mrb[0].mxu0
  %v4004 = vadd.f32 0.0, %v4003
  %v4005 = vpop.f32.mrb[0].mxu0
  %v4006 = vpop.f32.mrb[0].mxu0
  %v4007 = vadd.f32 0.0, %v4006
  %v4008 = vpop.f32.mrb[0].mxu0
  %4009 = vmatprep.mubr.bf16.mxu0 0
  %4010 = vmatmul.mubr.bf16.gmra.mrb[0].mxu0 %v3903
  %v4011 = vpop.f32.mrb[0].mxu0
  %v4012 = vadd.f32 0.0, %v4011
  %v4013 = vpop.f32.mrb[0].mxu0
  %v4014 = vpop.f32.mrb[0].mxu0
  %v4015 = vadd.f32 0.0, %v4014
  %v4016 = vpop.f32.mrb[0].mxu0
  %4017 = vmatprep.mubr.bf16.mxu0 0
  %4018 = vmatmul.mubr.bf16.gmra.mrb[0].mxu0 %v3906
  %v4019 = vpop.f32.mrb[0].mxu0
  %v4020 = vadd.f32 0.0, %v4019
  %v4021 = vpop.f32.mrb[0].mxu0
  %v4022 = vpop.f32.mrb[0].mxu0
  %v4023 = vadd.f32 0.0, %v4022
  %v4024 = vpop.f32.mrb[0].mxu0
  %4025 = vmatprep.mubr.bf16.mxu0 0
  %4026 = vmatmul.mubr.bf16.gmra.mrb[0].mxu0 %v3909
  %v4027 = vpop.f32.mrb[0].mxu0
  %v4028 = vadd.f32 0.0, %v4027
  %v4029 = vpop.f32.mrb[0].mxu0
  %v4030 = vpop.f32.mrb[0].mxu0
  %v4031 = vadd.f32 0.0, %v4030
  %v4032 = vpop.f32.mrb[0].mxu0
  %4033 = vmatprep.mubr.bf16.mxu0 0
  %4034 = vmatmul.mubr.bf16.gmra.mrb[0].mxu0 %v3912
  %v4035 = vpop.f32.mrb[0].mxu0
  %v4036 = vadd.f32 0.0, %v4035
  %v4037 = vpop.f32.mrb[0].mxu0
  %v4038 = vpop.f32.mrb[0].mxu0
  %v4039 = vadd.f32 0.0, %v4038
  %v4040 = vpop.f32.mrb[0].mxu0
  %4041 = vmatprep.mubr.bf16.mxu0 0
  %4042 = vmatmul.mubr.bf16.gmra.mrb[0].mxu0 %v3915
  %v4043 = vpop.f32.mrb[0].mxu0
  %v4044 = vadd.f32 0.0, %v4043
  %v4045 = vpop.f32.mrb[0].mxu0
  %v4046 = vpop.f32.mrb[0].mxu0
  %v4047 = vadd.f32 0.0, %v4046
  %v4048 = vpop.f32.mrb[0].mxu0
  %4049 = vmatprep.mubr.bf16.mxu0 0
  %4050 = vmatmul.mubr.bf16.gmra.mrb[0].mxu0 %v3918
  %v4051 = vpop.f32.mrb[0].mxu0
  %v4052 = vadd.f32 0.0, %v4051
  %v4053 = vpop.f32.mrb[0].mxu0
  %v4054 = vpop.f32.mrb[0].mxu0
  %v4055 = vadd.f32 0.0, %v4054
  %v4056 = vpop.f32.mrb[0].mxu0
  %4057 = vmatprep.mubr.bf16.mxu0 0
  %4058 = vmatmul.mubr.bf16.gmra.mrb[0].mxu0 %v3921
  %v4059 = vpop.f32.mrb[0].mxu0
  %v4060 = vadd.f32 0.0, %v4059
  %v4061 = vpop.f32.mrb[0].mxu0
  %v4062 = vpop.f32.mrb[0].mxu0
  %v4063 = vadd.f32 0.0, %v4062
  %v4064 = vpop.f32.mrb[0].mxu0
  %4065 = vmatprep.mubr.bf16.mxu0 0
  %4066 = vmatmul.mubr.bf16.gmra.mrb[0].mxu0 %v3924
  %v4067 = vpop.f32.mrb[0].mxu0
  %v4068 = vadd.f32 0.0, %v4067
  %v4069 = vpop.f32.mrb[0].mxu0
  %v4070 = vpop.f32.mrb[0].mxu0
  %v4071 = vadd.f32 0.0, %v4070
  %v4072 = vpop.f32.mrb[0].mxu0
  %4073 = vmatprep.mubr.bf16.mxu0 0
  %4074 = vmatmul.mubr.bf16.gmra.mrb[0].mxu0 %v3927
  %v4075 = vpop.f32.mrb[0].mxu0
  %v4076 = vadd.f32 0.0, %v4075
  %v4077 = vpop.f32.mrb[0].mxu0
  %v4078 = vpop.f32.mrb[0].mxu0
  %v4079 = vadd.f32 0.0, %v4078
  %v4080 = vpop.f32.mrb[0].mxu0
  %4081 = vmatprep.mubr.bf16.mxu0 0
  %4082 = vmatmul.mubr.bf16.gmra.mrb[0].mxu0 %v3930
  %v4083 = vpop.f32.mrb[0].mxu0
  %v4084 = vadd.f32 0.0, %v4083
  %v4085 = vpop.f32.mrb[0].mxu0
  %v4086 = vpop.f32.mrb[0].mxu0
  %v4087 = vadd.f32 0.0, %v4086
  %v4088 = vpop.f32.mrb[0].mxu0
  %4089 = vmatprep.mubr.bf16.mxu0 0
  %4090 = vmatmul.mubr.bf16.gmra.mrb[0].mxu0 %v3933
  %v4091 = vpop.f32.mrb[0].mxu0
  %v4092 = vadd.f32 0.0, %v4091
  %v4093 = vpop.f32.mrb[0].mxu0
  %v4094 = vpop.f32.mrb[0].mxu0
  %v4095 = vadd.f32 0.0, %v4094
  %v4096 = vpop.f32.mrb[0].mxu0
  %4097 = vmatprep.mubr.bf16.mxu0 0
  %4098 = vmatmul.mubr.bf16.gmra.mrb[0].mxu0 %v3936
  %v4099 = vpop.f32.mrb[0].mxu0
  %v4100 = vadd.f32 0.0, %v4099
  %v4101 = vpop.f32.mrb[0].mxu0
  %v4102 = vpop.f32.mrb[0].mxu0
  %v4103 = vadd.f32 0.0, %v4102
  %v4104 = vpop.f32.mrb[0].mxu0
  %4105 = vmatprep.mubr.bf16.mxu0 0
  %4106 = vmatmul.mubr.bf16.gmra.mrb[0].mxu0 %v3939
  %v4107 = vpop.f32.mrb[0].mxu0
  %v4108 = vadd.f32 0.0, %v4107
  %v4109 = vpop.f32.mrb[0].mxu0
  %v4110 = vpop.f32.mrb[0].mxu0
  %v4111 = vadd.f32 0.0, %v4110
  %v4112 = vpop.f32.mrb[0].mxu0
  %4113 = vmatprep.mubr.bf16.mxu0 0
  %4114 = vmatmul.mubr.bf16.gmra.mrb[0].mxu0 %v3942
  %v4115 = vpop.f32.mrb[0].mxu0
  %v4116 = vadd.f32 0.0, %v4115
  %v4117 = vpop.f32.mrb[0].mxu0
  %v4118 = vpop.f32.mrb[0].mxu0
  %v4119 = vadd.f32 0.0, %v4118
  %v4120 = vpop.f32.mrb[0].mxu0
  %4121 = vmatprep.mubr.bf16.mxu0 0
  %4122 = vmatmul.mubr.bf16.gmra.mrb[0].mxu0 %v3945
  %v4123 = vpop.f32.mrb[0].mxu0
  %v4124 = vadd.f32 0.0, %v4123
  %v4125 = vpop.f32.mrb[0].mxu0
  %v4126 = vpop.f32.mrb[0].mxu0
  %v4127 = vadd.f32 0.0, %v4126
  %v4128 = vpop.f32.mrb[0].mxu0
  %4129 = vmatprep.mubr.bf16.mxu0 0
  %4130 = vmatmul.mubr.bf16.gmra.mrb[0].mxu0 %v3948
  %v4131 = vpop.f32.mrb[0].mxu0
  %v4132 = vadd.f32 0.0, %v4131
  %v4133 = vpop.f32.mrb[0].mxu0
  %v4134 = vpop.f32.mrb[0].mxu0
  %v4135 = vadd.f32 0.0, %v4134
  %v4136 = vpop.f32.mrb[0].mxu0
  %4137 = vmatprep.mubr.bf16.mxu0 0
  %4138 = vmatmul.mubr.bf16.gmra.mrb[0].mxu0 %v3951
  %v4139 = vpop.f32.mrb[0].mxu0
  %v4140 = vadd.f32 0.0, %v4139
  %v4141 = vpop.f32.mrb[0].mxu0
  %v4142 = vpop.f32.mrb[0].mxu0
  %v4143 = vadd.f32 0.0, %v4142
  %v4144 = vpop.f32.mrb[0].mxu0
  %4145 = vdwg.mxu0
  %v4152 = vunpack.c.l.b16 %v3861
  %v4153 = vunpack.c.l.b16 %v3862
  %v4154 = vunpack.c.l.b16 %v3863
  %v4155 = vunpack.c.l.b16 %v3864
  %v4156 = vunpack.c.l.b16 %v3865
  %v4157 = vunpack.c.l.b16 %v3866
  %v4158 = vpack.c.b16 %v4153, %v4152
  %v4159 = vpack.c.b16 %v4155, %v4154
  %v4160 = vpack.c.b16 %v4157, %v4156
  %v4165 = vsel %vm49, %v3841, 0
  %4167 = vmatprep.subr.bf16.mxu0 0
  %4168 = vmatpush1.bf16.msra.mxu0 %v4158
  %4169 = vmatprep.subr.bf16.mxu0 0
  %4170 = vmatpush1.bf16.msra.mxu0 %v4159
  %4171 = vmatprep.subr.bf16.mxu0 0
  %4172 = vmatpush1.bf16.msra.mxu0 %v4160
  %4173 = vmatprep.subr.bf16.mxu0 0
  %4174 = vmatpush1.bf16.msra.mxu0 0
  %4175 = vmatprep.subr.bf16.mxu0 0
  %4176 = vmatpush1.bf16.msra.mxu0 0
  %4177 = vmatprep.subr.bf16.mxu0 0
  %4178 = vmatpush1.bf16.msra.mxu0 0
  %4179 = vmatprep.subr.bf16.mxu0 0
  %4180 = vmatpush1.bf16.msra.mxu0 0
  %4181 = vmatprep.subr.bf16.mxu0 0
  %4182 = vmatpush1.bf16.msra.mxu0 0
  %4183 = vmatprep.subr.bf16.mxu0 0
  %4184 = vmatpush1.bf16.msra.mxu0 0
  %4185 = vmatprep.subr.bf16.mxu0 0
  %4186 = vmatpush1.bf16.msra.mxu0 0
  %4187 = vmatprep.subr.bf16.mxu0 0
  %4188 = vmatpush1.bf16.msra.mxu0 0
  %4189 = vmatprep.subr.bf16.mxu0 0
  %4190 = vmatpush1.bf16.msra.mxu0 0
  %4191 = vmatprep.subr.bf16.mxu0 0
  %4192 = vmatpush1.bf16.msra.mxu0 0
  %4193 = vmatprep.subr.bf16.mxu0 0
  %4194 = vmatpush1.bf16.msra.mxu0 0
  %4195 = vmatprep.subr.bf16.mxu0 0
  %4196 = vmatpush1.bf16.msra.mxu0 0
  %4197 = vmatprep.subr.bf16.mxu0 0
  %4198 = vmatpush1.bf16.msra.mxu0 0
  %4199 = vmatprep.mubr.bf16.mxu0 0
  %4200 = vmatmul.mubr.bf16.gmra.mrb[0].mxu0 %v4165
  %v4201 = vpop.f32.mrb[0].mxu0
  %v4202 = vadd.f32 %v3988, %v4201
  %v4203 = vpop.f32.mrb[0].mxu0
  %v4204 = vpop.f32.mrb[0].mxu0
  %v4205 = vadd.f32 %v3991, %v4204
  %v4206 = vpop.f32.mrb[0].mxu0
  %4207 = vmatprep.mubr.bf16.mxu0 0
  %4208 = vmatmul.mubr.bf16.gmra.mrb[0].mxu0 %v3894
  %v4209 = vpop.f32.mrb[0].mxu0
  %v4210 = vadd.f32 %v3996, %v4209
  %v4211 = vpop.f32.mrb[0].mxu0
  %v4212 = vpop.f32.mrb[0].mxu0
  %v4213 = vadd.f32 %v3999, %v4212
  %v4214 = vpop.f32.mrb[0].mxu0
  %4215 = vmatprep.mubr.bf16.mxu0 0
  %4216 = vmatmul.mubr.bf16.gmra.mrb[0].mxu0 %v3897
  %v4217 = vpop.f32.mrb[0].mxu0
  %v4218 = vadd.f32 %v4004, %v4217
  %v4219 = vpop.f32.mrb[0].mxu0
  %v4220 = vpop.f32.mrb[0].mxu0
  %v4221 = vadd.f32 %v4007, %v4220
  %v4222 = vpop.f32.mrb[0].mxu0
  %4223 = vmatprep.mubr.bf16.mxu0 0
  %4224 = vmatmul.mubr.bf16.gmra.mrb[0].mxu0 %v3900
  %v4225 = vpop.f32.mrb[0].mxu0
  %v4226 = vadd.f32 %v4012, %v4225
  %v4227 = vpop.f32.mrb[0].mxu0
  %v4228 = vpop.f32.mrb[0].mxu0
  %v4229 = vadd.f32 %v4015, %v4228
  %v4230 = vpop.f32.mrb[0].mxu0
  %4231 = vmatprep.mubr.bf16.mxu0 0
  %4232 = vmatmul.mubr.bf16.gmra.mrb[0].mxu0 %v3903
  %v4233 = vpop.f32.mrb[0].mxu0
  %v4234 = vadd.f32 %v4020, %v4233
  %v4235 = vpop.f32.mrb[0].mxu0
  %v4236 = vpop.f32.mrb[0].mxu0
  %v4237 = vadd.f32 %v4023, %v4236
  %v4238 = vpop.f32.mrb[0].mxu0
  %4239 = vmatprep.mubr.bf16.mxu0 0
  %4240 = vmatmul.mubr.bf16.gmra.mrb[0].mxu0 %v3906
  %v4241 = vpop.f32.mrb[0].mxu0
  %v4242 = vadd.f32 %v4028, %v4241
  %v4243 = vpop.f32.mrb[0].mxu0
  %v4244 = vpop.f32.mrb[0].mxu0
  %v4245 = vadd.f32 %v4031, %v4244
  %v4246 = vpop.f32.mrb[0].mxu0
  %4247 = vmatprep.mubr.bf16.mxu0 0
  %4248 = vmatmul.mubr.bf16.gmra.mrb[0].mxu0 %v3909
  %v4249 = vpop.f32.mrb[0].mxu0
  %v4250 = vadd.f32 %v4036, %v4249
  %v4251 = vpop.f32.mrb[0].mxu0
  %v4252 = vpop.f32.mrb[0].mxu0
  %v4253 = vadd.f32 %v4039, %v4252
  %v4254 = vpop.f32.mrb[0].mxu0
  %4255 = vmatprep.mubr.bf16.mxu0 0
  %4256 = vmatmul.mubr.bf16.gmra.mrb[0].mxu0 %v3912
  %v4257 = vpop.f32.mrb[0].mxu0
  %v4258 = vadd.f32 %v4044, %v4257
  %v4259 = vpop.f32.mrb[0].mxu0
  %v4260 = vpop.f32.mrb[0].mxu0
  %v4261 = vadd.f32 %v4047, %v4260
  %v4262 = vpop.f32.mrb[0].mxu0
  %4263 = vmatprep.mubr.bf16.mxu0 0
  %4264 = vmatmul.mubr.bf16.gmra.mrb[0].mxu0 %v3915
  %v4265 = vpop.f32.mrb[0].mxu0
  %v4266 = vadd.f32 %v4052, %v4265
  %v4267 = vpop.f32.mrb[0].mxu0
  %v4268 = vpop.f32.mrb[0].mxu0
  %v4269 = vadd.f32 %v4055, %v4268
  %v4270 = vpop.f32.mrb[0].mxu0
  %4271 = vmatprep.mubr.bf16.mxu0 0
  %4272 = vmatmul.mubr.bf16.gmra.mrb[0].mxu0 %v3918
  %v4273 = vpop.f32.mrb[0].mxu0
  %v4274 = vadd.f32 %v4060, %v4273
  %v4275 = vpop.f32.mrb[0].mxu0
  %v4276 = vpop.f32.mrb[0].mxu0
  %v4277 = vadd.f32 %v4063, %v4276
  %v4278 = vpop.f32.mrb[0].mxu0
  %4279 = vmatprep.mubr.bf16.mxu0 0
  %4280 = vmatmul.mubr.bf16.gmra.mrb[0].mxu0 %v3921
  %v4281 = vpop.f32.mrb[0].mxu0
  %v4282 = vadd.f32 %v4068, %v4281
  %v4283 = vpop.f32.mrb[0].mxu0
  %v4284 = vpop.f32.mrb[0].mxu0
  %v4285 = vadd.f32 %v4071, %v4284
  %v4286 = vpop.f32.mrb[0].mxu0
  %4287 = vmatprep.mubr.bf16.mxu0 0
  %4288 = vmatmul.mubr.bf16.gmra.mrb[0].mxu0 %v3924
  %v4289 = vpop.f32.mrb[0].mxu0
  %v4290 = vadd.f32 %v4076, %v4289
  %v4291 = vpop.f32.mrb[0].mxu0
  %v4292 = vpop.f32.mrb[0].mxu0
  %v4293 = vadd.f32 %v4079, %v4292
  %v4294 = vpop.f32.mrb[0].mxu0
  %4295 = vmatprep.mubr.bf16.mxu0 0
  %4296 = vmatmul.mubr.bf16.gmra.mrb[0].mxu0 %v3927
  %v4297 = vpop.f32.mrb[0].mxu0
  %v4298 = vadd.f32 %v4084, %v4297
  %v4299 = vpop.f32.mrb[0].mxu0
  %v4300 = vpop.f32.mrb[0].mxu0
  %v4301 = vadd.f32 %v4087, %v4300
  %v4302 = vpop.f32.mrb[0].mxu0
  %4303 = vmatprep.mubr.bf16.mxu0 0
  %4304 = vmatmul.mubr.bf16.gmra.mrb[0].mxu0 %v3930
  %v4305 = vpop.f32.mrb[0].mxu0
  %v4306 = vadd.f32 %v4092, %v4305
  %v4307 = vpop.f32.mrb[0].mxu0
  %v4308 = vpop.f32.mrb[0].mxu0
  %v4309 = vadd.f32 %v4095, %v4308
  %v4310 = vpop.f32.mrb[0].mxu0
  %4311 = vmatprep.mubr.bf16.mxu0 0
  %4312 = vmatmul.mubr.bf16.gmra.mrb[0].mxu0 %v3933
  %v4313 = vpop.f32.mrb[0].mxu0
  %v4314 = vadd.f32 %v4100, %v4313
  %v4315 = vpop.f32.mrb[0].mxu0
  %v4316 = vpop.f32.mrb[0].mxu0
  %v4317 = vadd.f32 %v4103, %v4316
  %v4318 = vpop.f32.mrb[0].mxu0
  %4319 = vmatprep.mubr.bf16.mxu0 0
  %4320 = vmatmul.mubr.bf16.gmra.mrb[0].mxu0 %v3936
  %v4321 = vpop.f32.mrb[0].mxu0
  %v4322 = vadd.f32 %v4108, %v4321
  %v4323 = vpop.f32.mrb[0].mxu0
  %v4324 = vpop.f32.mrb[0].mxu0
  %v4325 = vadd.f32 %v4111, %v4324
  %v4326 = vpop.f32.mrb[0].mxu0
  %4327 = vmatprep.mubr.bf16.mxu0 0
  %4328 = vmatmul.mubr.bf16.gmra.mrb[0].mxu0 %v3939
  %v4329 = vpop.f32.mrb[0].mxu0
  %v4330 = vadd.f32 %v4116, %v4329
  %v4331 = vpop.f32.mrb[0].mxu0
  %v4332 = vpop.f32.mrb[0].mxu0
  %v4333 = vadd.f32 %v4119, %v4332
  %v4334 = vpop.f32.mrb[0].mxu0
  %4335 = vmatprep.mubr.bf16.mxu0 0
  %4336 = vmatmul.mubr.bf16.gmra.mrb[0].mxu0 %v3942
  %v4337 = vpop.f32.mrb[0].mxu0
  %v4338 = vadd.f32 %v4124, %v4337
  %v4339 = vpop.f32.mrb[0].mxu0
  %v4340 = vpop.f32.mrb[0].mxu0
  %v4341 = vadd.f32 %v4127, %v4340
  %v4342 = vpop.f32.mrb[0].mxu0
  %4343 = vmatprep.mubr.bf16.mxu0 0
  %4344 = vmatmul.mubr.bf16.gmra.mrb[0].mxu0 %v3945
  %v4345 = vpop.f32.mrb[0].mxu0
  %v4346 = vadd.f32 %v4132, %v4345
  %v4347 = vpop.f32.mrb[0].mxu0
  %v4348 = vpop.f32.mrb[0].mxu0
  %v4349 = vadd.f32 %v4135, %v4348
  %v4350 = vpop.f32.mrb[0].mxu0
  %4351 = vmatprep.mubr.bf16.mxu0 0
  %4352 = vmatmul.mubr.bf16.gmra.mrb[0].mxu0 %v3948
  %v4353 = vpop.f32.mrb[0].mxu0
  %v4354 = vadd.f32 %v4140, %v4353
  %v4355 = vpop.f32.mrb[0].mxu0
  %v4356 = vpop.f32.mrb[0].mxu0
  %v4357 = vadd.f32 %v4143, %v4356
  %v4358 = vpop.f32.mrb[0].mxu0
  %4359 = vdwg.mxu0
  %v4360 = vld [vmem:[#allocation3 + $0x10] sm:$0xff]
  %v4361 = vld [vmem:[#allocation3 + $0x18] sm:$0xff]
  %v4362 = vld [vmem:[#allocation3 + $0x20] sm:$0xff]
  %v4363 = vld [vmem:[#allocation3 + $0x28] sm:$0xff]
  %v4364 = vld [vmem:[#allocation3 + $0x30] sm:$0xff]
  %v4365 = vld [vmem:[#allocation3 + $0x38] sm:$0xff]
  %v4366 = vld [vmem:[#allocation3 + $0x40] sm:$0xff]
  %v4367 = vld [vmem:[#allocation3 + $0x48] sm:$0xff]
  %v4368 = vld [vmem:[#allocation3 + $0x50] sm:$0xff]
  %v4369 = vld [vmem:[#allocation3 + $0x58] sm:$0xff]
  %v4370 = vld [vmem:[#allocation3 + $0x60] sm:$0xff]
  %v4371 = vld [vmem:[#allocation3 + $0x68] sm:$0xff]
  %v4372 = vld [vmem:[#allocation3 + $0x70] sm:$0xff]
  %v4373 = vld [vmem:[#allocation3 + $0x78] sm:$0xff]
  %v4374 = vld [vmem:[#allocation3 + $0x80] sm:$0xff]
  %v4375 = vld [vmem:[#allocation3 + $0x88] sm:$0xff]
  %v4376 = vld [vmem:[#allocation3 + $0x90] sm:$0xff]
  %v4377 = vld [vmem:[#allocation3 + $0x98] sm:$0xff]
  %v4378 = vld [vmem:[#allocation3 + $0xa0] sm:$0xff]
  %v4379 = vld [vmem:[#allocation3 + $0xa8] sm:$0xff]
  %s4380 = scalar_lea.vmem %s7, 48
  %v4381 = vld [vmem:[%s4380] sm:$0xf]
  %v4382 = vld [vmem:[%s4380 + $0x4] sm:$0xf]
  %v4383 = vld [vmem:[%s4380 + $0x8] sm:$0xf]
  %v4384 = vld [vmem:[%s4380 + $0xc] sm:$0xf]
  %v4385 = vld [vmem:[%s4380 + $0x10] sm:$0xf]
  %v4386 = vld [vmem:[%s4380 + $0x14] sm:$0xf]
  %v4393 = vunpack.c.l.b16 %v4381
  %v4394 = vunpack.c.l.b16 %v4382
  %v4395 = vunpack.c.l.b16 %v4383
  %v4396 = vunpack.c.l.b16 %v4384
  %v4397 = vunpack.c.l.b16 %v4385
  %v4398 = vunpack.c.l.b16 %v4386
  %v4399 = vpack.c.b16 %v4394, %v4393
  %v4400 = vpack.c.b16 %v4396, %v4395
  %v4401 = vpack.c.b16 %v4398, %v4397
  %v4406 = vsel %vm49, %v4360, 0
  %v4409 = vsel %vm49, %v4361, 0
  %v4412 = vsel %vm49, %v4362, 0
  %v4415 = vsel %vm49, %v4363, 0
  %v4418 = vsel %vm49, %v4364, 0
  %v4421 = vsel %vm49, %v4365, 0
  %v4424 = vsel %vm49, %v4366, 0
  %v4427 = vsel %vm49, %v4367, 0
  %v4430 = vsel %vm49, %v4368, 0
  %v4433 = vsel %vm49, %v4369, 0
  %v4436 = vsel %vm49, %v4370, 0
  %v4439 = vsel %vm49, %v4371, 0
  %v4442 = vsel %vm49, %v4372, 0
  %v4445 = vsel %vm49, %v4373, 0
  %v4448 = vsel %vm49, %v4374, 0
  %v4451 = vsel %vm49, %v4375, 0
  %v4454 = vsel %vm49, %v4376, 0
  %v4457 = vsel %vm49, %v4377, 0
  %v4460 = vsel %vm49, %v4378, 0
  %v4463 = vsel %vm49, %v4379, 0
  %4465 = vmatprep.subr.bf16.mxu0 0
  %4466 = vmatpush1.bf16.msra.mxu0 %v4399
  %4467 = vmatprep.subr.bf16.mxu0 0
  %4468 = vmatpush1.bf16.msra.mxu0 %v4400
  %4469 = vmatprep.subr.bf16.mxu0 0
  %4470 = vmatpush1.bf16.msra.mxu0 %v4401
  %4471 = vmatprep.subr.bf16.mxu0 0
  %4472 = vmatpush1.bf16.msra.mxu0 0
  %4473 = vmatprep.subr.bf16.mxu0 0
  %4474 = vmatpush1.bf16.msra.mxu0 0
  %4475 = vmatprep.subr.bf16.mxu0 0
  %4476 = vmatpush1.bf16.msra.mxu0 0
  %4477 = vmatprep.subr.bf16.mxu0 0
  %4478 = vmatpush1.bf16.msra.mxu0 0
  %4479 = vmatprep.subr.bf16.mxu0 0
  %4480 = vmatpush1.bf16.msra.mxu0 0
  %4481 = vmatprep.subr.bf16.mxu0 0
  %4482 = vmatpush1.bf16.msra.mxu0 0
  %4483 = vmatprep.subr.bf16.mxu0 0
  %4484 = vmatpush1.bf16.msra.mxu0 0
  %4485 = vmatprep.subr.bf16.mxu0 0
  %4486 = vmatpush1.bf16.msra.mxu0 0
  %4487 = vmatprep.subr.bf16.mxu0 0
  %4488 = vmatpush1.bf16.msra.mxu0 0
  %4489 = vmatprep.subr.bf16.mxu0 0
  %4490 = vmatpush1.bf16.msra.mxu0 0
  %4491 = vmatprep.subr.bf16.mxu0 0
  %4492 = vmatpush1.bf16.msra.mxu0 0
  %4493 = vmatprep.subr.bf16.mxu0 0
  %4494 = vmatpush1.bf16.msra.mxu0 0
  %4495 = vmatprep.subr.bf16.mxu0 0
  %4496 = vmatpush1.bf16.msra.mxu0 0
  %4497 = vmatprep.mubr.bf16.mxu0 0
  %4498 = vmatmul.mubr.bf16.gmra.mrb[0].mxu0 %v4406
  %v4499 = vpop.f32.mrb[0].mxu0
  %v4500 = vadd.f32 0.0, %v4499
  %v4501 = vpop.f32.mrb[0].mxu0
  %v4502 = vpop.f32.mrb[0].mxu0
  %v4503 = vadd.f32 0.0, %v4502
  %v4504 = vpop.f32.mrb[0].mxu0
  %4505 = vmatprep.mubr.bf16.mxu0 0
  %4506 = vmatmul.mubr.bf16.gmra.mrb[0].mxu0 %v4409
  %v4507 = vpop.f32.mrb[0].mxu0
  %v4508 = vadd.f32 0.0, %v4507
  %v4509 = vpop.f32.mrb[0].mxu0
  %v4510 = vpop.f32.mrb[0].mxu0
  %v4511 = vadd.f32 0.0, %v4510
  %v4512 = vpop.f32.mrb[0].mxu0
  %4513 = vmatprep.mubr.bf16.mxu0 0
  %4514 = vmatmul.mubr.bf16.gmra.mrb[0].mxu0 %v4412
  %v4515 = vpop.f32.mrb[0].mxu0
  %v4516 = vadd.f32 0.0, %v4515
  %v4517 = vpop.f32.mrb[0].mxu0
  %v4518 = vpop.f32.mrb[0].mxu0
  %v4519 = vadd.f32 0.0, %v4518
  %v4520 = vpop.f32.mrb[0].mxu0
  %4521 = vmatprep.mubr.bf16.mxu0 0
  %4522 = vmatmul.mubr.bf16.gmra.mrb[0].mxu0 %v4415
  %v4523 = vpop.f32.mrb[0].mxu0
  %v4524 = vadd.f32 0.0, %v4523
  %v4525 = vpop.f32.mrb[0].mxu0
  %v4526 = vpop.f32.mrb[0].mxu0
  %v4527 = vadd.f32 0.0, %v4526
  %v4528 = vpop.f32.mrb[0].mxu0
  %4529 = vmatprep.mubr.bf16.mxu0 0
  %4530 = vmatmul.mubr.bf16.gmra.mrb[0].mxu0 %v4418
  %v4531 = vpop.f32.mrb[0].mxu0
  %v4532 = vadd.f32 0.0, %v4531
  %v4533 = vpop.f32.mrb[0].mxu0
  %v4534 = vpop.f32.mrb[0].mxu0
  %v4535 = vadd.f32 0.0, %v4534
  %v4536 = vpop.f32.mrb[0].mxu0
  %4537 = vmatprep.mubr.bf16.mxu0 0
  %4538 = vmatmul.mubr.bf16.gmra.mrb[0].mxu0 %v4421
  %v4539 = vpop.f32.mrb[0].mxu0
  %v4540 = vadd.f32 0.0, %v4539
  %v4541 = vpop.f32.mrb[0].mxu0
  %v4542 = vpop.f32.mrb[0].mxu0
  %v4543 = vadd.f32 0.0, %v4542
  %v4544 = vpop.f32.mrb[0].mxu0
  %4545 = vmatprep.mubr.bf16.mxu0 0
  %4546 = vmatmul.mubr.bf16.gmra.mrb[0].mxu0 %v4424
  %v4547 = vpop.f32.mrb[0].mxu0
  %v4548 = vadd.f32 0.0, %v4547
  %v4549 = vpop.f32.mrb[0].mxu0
  %v4550 = vpop.f32.mrb[0].mxu0
  %v4551 = vadd.f32 0.0, %v4550
  %v4552 = vpop.f32.mrb[0].mxu0
  %4553 = vmatprep.mubr.bf16.mxu0 0
  %4554 = vmatmul.mubr.bf16.gmra.mrb[0].mxu0 %v4427
  %v4555 = vpop.f32.mrb[0].mxu0
  %v4556 = vadd.f32 0.0, %v4555
  %v4557 = vpop.f32.mrb[0].mxu0
  %v4558 = vpop.f32.mrb[0].mxu0
  %v4559 = vadd.f32 0.0, %v4558
  %v4560 = vpop.f32.mrb[0].mxu0
  %4561 = vmatprep.mubr.bf16.mxu0 0
  %4562 = vmatmul.mubr.bf16.gmra.mrb[0].mxu0 %v4430
  %v4563 = vpop.f32.mrb[0].mxu0
  %v4564 = vadd.f32 0.0, %v4563
  %v4565 = vpop.f32.mrb[0].mxu0
  %v4566 = vpop.f32.mrb[0].mxu0
  %v4567 = vadd.f32 0.0, %v4566
  %v4568 = vpop.f32.mrb[0].mxu0
  %4569 = vmatprep.mubr.bf16.mxu0 0
  %4570 = vmatmul.mubr.bf16.gmra.mrb[0].mxu0 %v4433
  %v4571 = vpop.f32.mrb[0].mxu0
  %v4572 = vadd.f32 0.0, %v4571
  %v4573 = vpop.f32.mrb[0].mxu0
  %v4574 = vpop.f32.mrb[0].mxu0
  %v4575 = vadd.f32 0.0, %v4574
  %v4576 = vpop.f32.mrb[0].mxu0
  %4577 = vmatprep.mubr.bf16.mxu0 0
  %4578 = vmatmul.mubr.bf16.gmra.mrb[0].mxu0 %v4436
  %v4579 = vpop.f32.mrb[0].mxu0
  %v4580 = vadd.f32 0.0, %v4579
  %v4581 = vpop.f32.mrb[0].mxu0
  %v4582 = vpop.f32.mrb[0].mxu0
  %v4583 = vadd.f32 0.0, %v4582
  %v4584 = vpop.f32.mrb[0].mxu0
  %4585 = vmatprep.mubr.bf16.mxu0 0
  %4586 = vmatmul.mubr.bf16.gmra.mrb[0].mxu0 %v4439
  %v4587 = vpop.f32.mrb[0].mxu0
  %v4588 = vadd.f32 0.0, %v4587
  %v4589 = vpop.f32.mrb[0].mxu0
  %v4590 = vpop.f32.mrb[0].mxu0
  %v4591 = vadd.f32 0.0, %v4590
  %v4592 = vpop.f32.mrb[0].mxu0
  %4593 = vmatprep.mubr.bf16.mxu0 0
  %4594 = vmatmul.mubr.bf16.gmra.mrb[0].mxu0 %v4442
  %v4595 = vpop.f32.mrb[0].mxu0
  %v4596 = vadd.f32 0.0, %v4595
  %v4597 = vpop.f32.mrb[0].mxu0
  %v4598 = vpop.f32.mrb[0].mxu0
  %v4599 = vadd.f32 0.0, %v4598
  %v4600 = vpop.f32.mrb[0].mxu0
  %4601 = vmatprep.mubr.bf16.mxu0 0
  %4602 = vmatmul.mubr.bf16.gmra.mrb[0].mxu0 %v4445
  %v4603 = vpop.f32.mrb[0].mxu0
  %v4604 = vadd.f32 0.0, %v4603
  %v4605 = vpop.f32.mrb[0].mxu0
  %v4606 = vpop.f32.mrb[0].mxu0
  %v4607 = vadd.f32 0.0, %v4606
  %v4608 = vpop.f32.mrb[0].mxu0
  %4609 = vmatprep.mubr.bf16.mxu0 0
  %4610 = vmatmul.mubr.bf16.gmra.mrb[0].mxu0 %v4448
  %v4611 = vpop.f32.mrb[0].mxu0
  %v4612 = vadd.f32 0.0, %v4611
  %v4613 = vpop.f32.mrb[0].mxu0
  %v4614 = vpop.f32.mrb[0].mxu0
  %v4615 = vadd.f32 0.0, %v4614
  %v4616 = vpop.f32.mrb[0].mxu0
  %4617 = vmatprep.mubr.bf16.mxu0 0
  %4618 = vmatmul.mubr.bf16.gmra.mrb[0].mxu0 %v4451
  %v4619 = vpop.f32.mrb[0].mxu0
  %v4620 = vadd.f32 0.0, %v4619
  %v4621 = vpop.f32.mrb[0].mxu0
  %v4622 = vpop.f32.mrb[0].mxu0
  %v4623 = vadd.f32 0.0, %v4622
  %v4624 = vpop.f32.mrb[0].mxu0
  %4625 = vmatprep.mubr.bf16.mxu0 0
  %4626 = vmatmul.mubr.bf16.gmra.mrb[0].mxu0 %v4454
  %v4627 = vpop.f32.mrb[0].mxu0
  %v4628 = vadd.f32 0.0, %v4627
  %v4629 = vpop.f32.mrb[0].mxu0
  %v4630 = vpop.f32.mrb[0].mxu0
  %v4631 = vadd.f32 0.0, %v4630
  %v4632 = vpop.f32.mrb[0].mxu0
  %4633 = vmatprep.mubr.bf16.mxu0 0
  %4634 = vmatmul.mubr.bf16.gmra.mrb[0].mxu0 %v4457
  %v4635 = vpop.f32.mrb[0].mxu0
  %v4636 = vadd.f32 0.0, %v4635
  %v4637 = vpop.f32.mrb[0].mxu0
  %v4638 = vpop.f32.mrb[0].mxu0
  %v4639 = vadd.f32 0.0, %v4638
  %v4640 = vpop.f32.mrb[0].mxu0
  %4641 = vmatprep.mubr.bf16.mxu0 0
  %4642 = vmatmul.mubr.bf16.gmra.mrb[0].mxu0 %v4460
  %v4643 = vpop.f32.mrb[0].mxu0
  %v4644 = vadd.f32 0.0, %v4643
  %v4645 = vpop.f32.mrb[0].mxu0
  %v4646 = vpop.f32.mrb[0].mxu0
  %v4647 = vadd.f32 0.0, %v4646
  %v4648 = vpop.f32.mrb[0].mxu0
  %4649 = vmatprep.mubr.bf16.mxu0 0
  %4650 = vmatmul.mubr.bf16.gmra.mrb[0].mxu0 %v4463
  %v4651 = vpop.f32.mrb[0].mxu0
  %v4652 = vadd.f32 0.0, %v4651
  %v4653 = vpop.f32.mrb[0].mxu0
  %v4654 = vpop.f32.mrb[0].mxu0
  %v4655 = vadd.f32 0.0, %v4654
  %v4656 = vpop.f32.mrb[0].mxu0
  %4657 = vdwg.mxu0
  %v4658 = vadd.f32 %v4202, %v4500
  %v4659 = vadd.f32 %v4205, %v4503
  %v4660 = vadd.f32 %v4210, %v4508
  %v4661 = vadd.f32 %v4213, %v4511
  %v4662 = vadd.f32 %v4218, %v4516
  %v4663 = vadd.f32 %v4221, %v4519
  %v4664 = vadd.f32 %v4226, %v4524
  %v4665 = vadd.f32 %v4229, %v4527
  %v4666 = vadd.f32 %v4234, %v4532
  %v4667 = vadd.f32 %v4237, %v4535
  %v4668 = vadd.f32 %v4242, %v4540
  %v4669 = vadd.f32 %v4245, %v4543
  %v4670 = vadd.f32 %v4250, %v4548
  %v4671 = vadd.f32 %v4253, %v4551
  %v4672 = vadd.f32 %v4258, %v4556
  %v4673 = vadd.f32 %v4261, %v4559
  %v4674 = vadd.f32 %v4266, %v4564
  %v4675 = vadd.f32 %v4269, %v4567
  %v4676 = vadd.f32 %v4274, %v4572
  %v4677 = vadd.f32 %v4277, %v4575
  %v4678 = vadd.f32 %v4282, %v4580
  %v4679 = vadd.f32 %v4285, %v4583
  %v4680 = vadd.f32 %v4290, %v4588
  %v4681 = vadd.f32 %v4293, %v4591
  %v4682 = vadd.f32 %v4298, %v4596
  %v4683 = vadd.f32 %v4301, %v4599
  %v4684 = vadd.f32 %v4306, %v4604
  %v4685 = vadd.f32 %v4309, %v4607
  %v4686 = vadd.f32 %v4314, %v4612
  %v4687 = vadd.f32 %v4317, %v4615
  %v4688 = vadd.f32 %v4322, %v4620
  %v4689 = vadd.f32 %v4325, %v4623
  %v4690 = vadd.f32 %v4330, %v4628
  %v4691 = vadd.f32 %v4333, %v4631
  %v4692 = vadd.f32 %v4338, %v4636
  %v4693 = vadd.f32 %v4341, %v4639
  %v4694 = vadd.f32 %v4346, %v4644
  %v4695 = vadd.f32 %v4349, %v4647
  %v4696 = vadd.f32 %v4354, %v4652
  %v4697 = vadd.f32 %v4357, %v4655
  %v4698 = vld [vmem:[%s8] sm:$0x1]
  %v4699 = vld [vmem:[%s9] sm:$0x1]
  %v4700 = vmul.f32 %v4658, %v507
  %v4701 = vmul.f32 %v4659, %v512
  %v4702 = vmul.f32 %v4660, %v517
  %v4703 = vmul.f32 %v4661, %v522
  %v4704 = vmul.f32 %v4662, %v527
  %v4705 = vmul.f32 %v4663, %v532
  %v4706 = vmul.f32 %v4664, %v537
  %v4707 = vmul.f32 %v4665, %v542
  %v4708 = vmul.f32 %v4666, %v547
  %v4709 = vmul.f32 %v4667, %v552
  %v4710 = vmul.f32 %v4668, %v557
  %v4711 = vmul.f32 %v4669, %v562
  %v4712 = vmul.f32 %v4670, %v567
  %v4713 = vmul.f32 %v4671, %v572
  %v4714 = vmul.f32 %v4672, %v577
  %v4715 = vmul.f32 %v4673, %v582
  %v4716 = vmul.f32 %v4674, %v587
  %v4717 = vmul.f32 %v4675, %v592
  %v4718 = vmul.f32 %v4676, %v597
  %v4719 = vmul.f32 %v4677, %v602
  %v4720 = vmul.f32 %v4678, %v607
  %v4721 = vmul.f32 %v4679, %v612
  %v4722 = vmul.f32 %v4680, %v617
  %v4723 = vmul.f32 %v4681, %v622
  %v4724 = vmul.f32 %v4682, %v627
  %v4725 = vmul.f32 %v4683, %v632
  %v4726 = vmul.f32 %v4684, %v637
  %v4727 = vmul.f32 %v4685, %v642
  %v4728 = vmul.f32 %v4686, %v647
  %v4729 = vmul.f32 %v4687, %v652
  %v4730 = vmul.f32 %v4688, %v657
  %v4731 = vmul.f32 %v4689, %v662
  %v4732 = vmul.f32 %v4690, %v667
  %v4733 = vmul.f32 %v4691, %v672
  %v4734 = vmul.f32 %v4692, %v677
  %v4735 = vmul.f32 %v4693, %v682
  %v4736 = vmul.f32 %v4694, %v687
  %v4737 = vmul.f32 %v4695, %v692
  %v4738 = vmul.f32 %v4696, %v697
  %v4739 = vmul.f32 %v4697, %v702
  %v4740 = vsel %vm1091, %v4700, 0.0
  %v4741 = vsel %vm1091, %v4701, 0.0
  %v4742 = vadd.f32 %v4740, %v4741
  %v4743 = vsel %vm1091, %v4702, 0.0
  %v4744 = vadd.f32 %v4742, %v4743
  %v4745 = vsel %vm1091, %v4703, 0.0
  %v4746 = vadd.f32 %v4744, %v4745
  %v4747 = vsel %vm1091, %v4704, 0.0
  %v4748 = vadd.f32 %v4746, %v4747
  %v4749 = vsel %vm1091, %v4705, 0.0
  %v4750 = vadd.f32 %v4748, %v4749
  %v4751 = vsel %vm1091, %v4706, 0.0
  %v4752 = vadd.f32 %v4750, %v4751
  %v4753 = vsel %vm1091, %v4707, 0.0
  %v4754 = vadd.f32 %v4752, %v4753
  %v4755 = vsel %vm1091, %v4708, 0.0
  %v4756 = vadd.f32 %v4754, %v4755
  %v4757 = vsel %vm1091, %v4709, 0.0
  %v4758 = vadd.f32 %v4756, %v4757
  %v4759 = vsel %vm1091, %v4710, 0.0
  %v4760 = vadd.f32 %v4758, %v4759
  %v4761 = vsel %vm1091, %v4711, 0.0
  %v4762 = vadd.f32 %v4760, %v4761
  %v4763 = vsel %vm1091, %v4712, 0.0
  %v4764 = vadd.f32 %v4762, %v4763
  %v4765 = vsel %vm1091, %v4713, 0.0
  %v4766 = vadd.f32 %v4764, %v4765
  %v4767 = vsel %vm1091, %v4714, 0.0
  %v4768 = vadd.f32 %v4766, %v4767
  %v4769 = vsel %vm1091, %v4715, 0.0
  %v4770 = vadd.f32 %v4768, %v4769
  %v4771 = vsel %vm1091, %v4716, 0.0
  %v4772 = vadd.f32 %v4770, %v4771
  %v4773 = vsel %vm1091, %v4717, 0.0
  %v4774 = vadd.f32 %v4772, %v4773
  %v4775 = vsel %vm1091, %v4718, 0.0
  %v4776 = vadd.f32 %v4774, %v4775
  %v4777 = vsel %vm1091, %v4719, 0.0
  %v4778 = vadd.f32 %v4776, %v4777
  %v4779 = vsel %vm1091, %v4720, 0.0
  %v4780 = vadd.f32 %v4778, %v4779
  %v4781 = vsel %vm1091, %v4721, 0.0
  %v4782 = vadd.f32 %v4780, %v4781
  %v4783 = vsel %vm1091, %v4722, 0.0
  %v4784 = vadd.f32 %v4782, %v4783
  %v4785 = vsel %vm1091, %v4723, 0.0
  %v4786 = vadd.f32 %v4784, %v4785
  %v4787 = vsel %vm1091, %v4724, 0.0
  %v4788 = vadd.f32 %v4786, %v4787
  %v4789 = vsel %vm1091, %v4725, 0.0
  %v4790 = vadd.f32 %v4788, %v4789
  %v4791 = vsel %vm1091, %v4726, 0.0
  %v4792 = vadd.f32 %v4790, %v4791
  %v4793 = vsel %vm1091, %v4727, 0.0
  %v4794 = vadd.f32 %v4792, %v4793
  %v4795 = vsel %vm1091, %v4728, 0.0
  %v4796 = vadd.f32 %v4794, %v4795
  %v4797 = vsel %vm1091, %v4729, 0.0
  %v4798 = vadd.f32 %v4796, %v4797
  %v4799 = vsel %vm1091, %v4730, 0.0
  %v4800 = vadd.f32 %v4798, %v4799
  %v4801 = vsel %vm1091, %v4731, 0.0
  %v4802 = vadd.f32 %v4800, %v4801
  %v4803 = vsel %vm1091, %v4732, 0.0
  %v4804 = vadd.f32 %v4802, %v4803
  %v4805 = vsel %vm1091, %v4733, 0.0
  %v4806 = vadd.f32 %v4804, %v4805
  %v4807 = vsel %vm1091, %v4734, 0.0
  %v4808 = vadd.f32 %v4806, %v4807
  %v4809 = vsel %vm1091, %v4735, 0.0
  %v4810 = vadd.f32 %v4808, %v4809
  %v4811 = vsel %vm1091, %v4736, 0.0
  %v4812 = vadd.f32 %v4810, %v4811
  %v4813 = vsel %vm1091, %v4737, 0.0
  %v4814 = vadd.f32 %v4812, %v4813
  %v4815 = vsel %vm1091, %v4738, 0.0
  %v4816 = vadd.f32 %v4814, %v4815
  %v4817 = vsel %vm1091, %v4739, 0.0
  %v4818 = vadd.f32 %v4816, %v4817
  %v4819 = vrot.slane %v4818, 4
  %v4820 = vadd.f32 %v4818, %v4819
  %v4821 = vrot.slane %v4820, 2
  %v4822 = vadd.f32 %v4820, %v4821
  %v4823 = vrot.slane %v4822, 1
  %v4824 = vadd.f32 %v4822, %v4823
  %v4826 = vsel %vm1091, %v4824, 0
  %4828 = vmatprep.subr.mxu0 0.0
  %4829 = vmatpush1.msra.mxu0 %v96
  %4830 = vmatprep.subr.mxu0 0.0
  %4831 = vmatpush1.msra.mxu0 %v97
  %4832 = vmatprep.subr.mxu0 0.0
  %4833 = vmatpush1.msra.mxu0 0.0
  %4834 = vmatprep.subr.mxu0 0.0
  %4835 = vmatpush1.msra.mxu0 0.0
  %4836 = vmatprep.subr.mxu0 0.0
  %4837 = vmatpush1.msra.mxu0 0.0
  %4838 = vmatprep.subr.mxu0 0.0
  %4839 = vmatpush1.msra.mxu0 0.0
  %4840 = vmatprep.subr.mxu0 0.0
  %4841 = vmatpush1.msra.mxu0 0.0
  %4842 = vmatprep.subr.mxu0 0.0
  %4843 = vmatpush1.msra.mxu0 0.0
  %4844 = vmatprep.subr.mxu0 0.0
  %4845 = vmatpush1.msra.mxu0 0.0
  %4846 = vmatprep.subr.mxu0 0.0
  %4847 = vmatpush1.msra.mxu0 0.0
  %4848 = vmatprep.subr.mxu0 0.0
  %4849 = vmatpush1.msra.mxu0 0.0
  %4850 = vmatprep.subr.mxu0 0.0
  %4851 = vmatpush1.msra.mxu0 0.0
  %4852 = vmatprep.subr.mxu0 0.0
  %4853 = vmatpush1.msra.mxu0 0.0
  %4854 = vmatprep.subr.mxu0 0.0
  %4855 = vmatpush1.msra.mxu0 0.0
  %4856 = vmatprep.subr.mxu0 0.0
  %4857 = vmatpush1.msra.mxu0 0.0
  %4858 = vmatprep.subr.mxu0 0.0
  %4859 = vmatpush1.msra.mxu0 0.0
  %4860 = vmatprep.subr.mxu0 0.0
  %4861 = vmatpush1.msra.mxu0 0.0
  %4862 = vmatprep.subr.mxu0 0.0
  %4863 = vmatpush1.msra.mxu0 0.0
  %4864 = vmatprep.subr.mxu0 0.0
  %4865 = vmatpush1.msra.mxu0 0.0
  %4866 = vmatprep.subr.mxu0 0.0
  %4867 = vmatpush1.msra.mxu0 0.0
  %4868 = vmatprep.subr.mxu0 0.0
  %4869 = vmatpush1.msra.mxu0 0.0
  %4870 = vmatprep.subr.mxu0 0.0
  %4871 = vmatpush1.msra.mxu0 0.0
  %4872 = vmatprep.subr.mxu0 0.0
  %4873 = vmatpush1.msra.mxu0 0.0
  %4874 = vmatprep.subr.mxu0 0.0
  %4875 = vmatpush1.msra.mxu0 0.0
  %4876 = vmatprep.subr.mxu0 0.0
  %4877 = vmatpush1.msra.mxu0 0.0
  %4878 = vmatprep.subr.mxu0 0.0
  %4879 = vmatpush1.msra.mxu0 0.0
  %4880 = vmatprep.subr.mxu0 0.0
  %4881 = vmatpush1.msra.mxu0 0.0
  %4882 = vmatprep.subr.mxu0 0.0
  %4883 = vmatpush1.msra.mxu0 0.0
  %4884 = vmatprep.subr.mxu0 0.0
  %4885 = vmatpush1.msra.mxu0 0.0
  %4886 = vmatprep.subr.mxu0 0.0
  %4887 = vmatpush1.msra.mxu0 0.0
  %4888 = vmatprep.subr.mxu0 0.0
  %4889 = vmatpush1.msra.mxu0 0.0
  %4890 = vmatprep.subr.mxu0 0.0
  %4891 = vmatpush1.msra.mxu0 0.0
  %4892 = vmatprep.mubr.f32.mxu0 0.0
  %4893 = vmatmul.mubr.f32.gmra.mrb[0].mxu0 %v4826
  %v4894 = vpop.f32.mrb[0].mxu0
  %v4895 = vadd.f32 0.0, %v4894
  %v4896 = vpop.f32.mrb[0].mxu0
  %4897 = vdwg.mxu0
  %v4898 = vmul.f32 %v4700, %v4700
  %v4899 = vmul.f32 %v4701, %v4701
  %v4900 = vmul.f32 %v4702, %v4702
  %v4901 = vmul.f32 %v4703, %v4703
  %v4902 = vmul.f32 %v4704, %v4704
  %v4903 = vmul.f32 %v4705, %v4705
  %v4904 = vmul.f32 %v4706, %v4706
  %v4905 = vmul.f32 %v4707, %v4707
  %v4906 = vmul.f32 %v4708, %v4708
  %v4907 = vmul.f32 %v4709, %v4709
  %v4908 = vmul.f32 %v4710, %v4710
  %v4909 = vmul.f32 %v4711, %v4711
  %v4910 = vmul.f32 %v4712, %v4712
  %v4911 = vmul.f32 %v4713, %v4713
  %v4912 = vmul.f32 %v4714, %v4714
  %v4913 = vmul.f32 %v4715, %v4715
  %v4914 = vmul.f32 %v4716, %v4716
  %v4915 = vmul.f32 %v4717, %v4717
  %v4916 = vmul.f32 %v4718, %v4718
  %v4917 = vmul.f32 %v4719, %v4719
  %v4918 = vmul.f32 %v4720, %v4720
  %v4919 = vmul.f32 %v4721, %v4721
  %v4920 = vmul.f32 %v4722, %v4722
  %v4921 = vmul.f32 %v4723, %v4723
  %v4922 = vmul.f32 %v4724, %v4724
  %v4923 = vmul.f32 %v4725, %v4725
  %v4924 = vmul.f32 %v4726, %v4726
  %v4925 = vmul.f32 %v4727, %v4727
  %v4926 = vmul.f32 %v4728, %v4728
  %v4927 = vmul.f32 %v4729, %v4729
  %v4928 = vmul.f32 %v4730, %v4730
  %v4929 = vmul.f32 %v4731, %v4731
  %v4930 = vmul.f32 %v4732, %v4732
  %v4931 = vmul.f32 %v4733, %v4733
  %v4932 = vmul.f32 %v4734, %v4734
  %v4933 = vmul.f32 %v4735, %v4735
  %v4934 = vmul.f32 %v4736, %v4736
  %v4935 = vmul.f32 %v4737, %v4737
  %v4936 = vmul.f32 %v4738, %v4738
  %v4937 = vmul.f32 %v4739, %v4739
  %v4938 = vsel %vm1091, %v4898, 0.0
  %v4939 = vsel %vm1091, %v4899, 0.0
  %v4940 = vadd.f32 %v4938, %v4939
  %v4941 = vsel %vm1091, %v4900, 0.0
  %v4942 = vadd.f32 %v4940, %v4941
  %v4943 = vsel %vm1091, %v4901, 0.0
  %v4944 = vadd.f32 %v4942, %v4943
  %v4945 = vsel %vm1091, %v4902, 0.0
  %v4946 = vadd.f32 %v4944, %v4945
  %v4947 = vsel %vm1091, %v4903, 0.0
  %v4948 = vadd.f32 %v4946, %v4947
  %v4949 = vsel %vm1091, %v4904, 0.0
  %v4950 = vadd.f32 %v4948, %v4949
  %v4951 = vsel %vm1091, %v4905, 0.0
  %v4952 = vadd.f32 %v4950, %v4951
  %v4953 = vsel %vm1091, %v4906, 0.0
  %v4954 = vadd.f32 %v4952, %v4953
  %v4955 = vsel %vm1091, %v4907, 0.0
  %v4956 = vadd.f32 %v4954, %v4955
  %v4957 = vsel %vm1091, %v4908, 0.0
  %v4958 = vadd.f32 %v4956, %v4957
  %v4959 = vsel %vm1091, %v4909, 0.0
  %v4960 = vadd.f32 %v4958, %v4959
  %v4961 = vsel %vm1091, %v4910, 0.0
  %v4962 = vadd.f32 %v4960, %v4961
  %v4963 = vsel %vm1091, %v4911, 0.0
  %v4964 = vadd.f32 %v4962, %v4963
  %v4965 = vsel %vm1091, %v4912, 0.0
  %v4966 = vadd.f32 %v4964, %v4965
  %v4967 = vsel %vm1091, %v4913, 0.0
  %v4968 = vadd.f32 %v4966, %v4967
  %v4969 = vsel %vm1091, %v4914, 0.0
  %v4970 = vadd.f32 %v4968, %v4969
  %v4971 = vsel %vm1091, %v4915, 0.0
  %v4972 = vadd.f32 %v4970, %v4971
  %v4973 = vsel %vm1091, %v4916, 0.0
  %v4974 = vadd.f32 %v4972, %v4973
  %v4975 = vsel %vm1091, %v4917, 0.0
  %v4976 = vadd.f32 %v4974, %v4975
  %v4977 = vsel %vm1091, %v4918, 0.0
  %v4978 = vadd.f32 %v4976, %v4977
  %v4979 = vsel %vm1091, %v4919, 0.0
  %v4980 = vadd.f32 %v4978, %v4979
  %v4981 = vsel %vm1091, %v4920, 0.0
  %v4982 = vadd.f32 %v4980, %v4981
  %v4983 = vsel %vm1091, %v4921, 0.0
  %v4984 = vadd.f32 %v4982, %v4983
  %v4985 = vsel %vm1091, %v4922, 0.0
  %v4986 = vadd.f32 %v4984, %v4985
  %v4987 = vsel %vm1091, %v4923, 0.0
  %v4988 = vadd.f32 %v4986, %v4987
  %v4989 = vsel %vm1091, %v4924, 0.0
  %v4990 = vadd.f32 %v4988, %v4989
  %v4991 = vsel %vm1091, %v4925, 0.0
  %v4992 = vadd.f32 %v4990, %v4991
  %v4993 = vsel %vm1091, %v4926, 0.0
  %v4994 = vadd.f32 %v4992, %v4993
  %v4995 = vsel %vm1091, %v4927, 0.0
  %v4996 = vadd.f32 %v4994, %v4995
  %v4997 = vsel %vm1091, %v4928, 0.0
  %v4998 = vadd.f32 %v4996, %v4997
  %v4999 = vsel %vm1091, %v4929, 0.0
  %v5000 = vadd.f32 %v4998, %v4999
  %v5001 = vsel %vm1091, %v4930, 0.0
  %v5002 = vadd.f32 %v5000, %v5001
  %v5003 = vsel %vm1091, %v4931, 0.0
  %v5004 = vadd.f32 %v5002, %v5003
  %v5005 = vsel %vm1091, %v4932, 0.0
  %v5006 = vadd.f32 %v5004, %v5005
  %v5007 = vsel %vm1091, %v4933, 0.0
  %v5008 = vadd.f32 %v5006, %v5007
  %v5009 = vsel %vm1091, %v4934, 0.0
  %v5010 = vadd.f32 %v5008, %v5009
  %v5011 = vsel %vm1091, %v4935, 0.0
  %v5012 = vadd.f32 %v5010, %v5011
  %v5013 = vsel %vm1091, %v4936, 0.0
  %v5014 = vadd.f32 %v5012, %v5013
  %v5015 = vsel %vm1091, %v4937, 0.0
  %v5016 = vadd.f32 %v5014, %v5015
  %v5017 = vrot.slane %v5016, 4
  %v5018 = vadd.f32 %v5016, %v5017
  %v5019 = vrot.slane %v5018, 2
  %v5020 = vadd.f32 %v5018, %v5019
  %v5021 = vrot.slane %v5020, 1
  %v5022 = vadd.f32 %v5020, %v5021
  %v5024 = vsel %vm1091, %v5022, 0
  %5026 = vmatprep.subr.mxu0 0.0
  %5027 = vmatpush1.msra.mxu0 %v96
  %5028 = vmatprep.subr.mxu0 0.0
  %5029 = vmatpush1.msra.mxu0 %v97
  %5030 = vmatprep.subr.mxu0 0.0
  %5031 = vmatpush1.msra.mxu0 0.0
  %5032 = vmatprep.subr.mxu0 0.0
  %5033 = vmatpush1.msra.mxu0 0.0
  %5034 = vmatprep.subr.mxu0 0.0
  %5035 = vmatpush1.msra.mxu0 0.0
  %5036 = vmatprep.subr.mxu0 0.0
  %5037 = vmatpush1.msra.mxu0 0.0
  %5038 = vmatprep.subr.mxu0 0.0
  %5039 = vmatpush1.msra.mxu0 0.0
  %5040 = vmatprep.subr.mxu0 0.0
  %5041 = vmatpush1.msra.mxu0 0.0
  %5042 = vmatprep.subr.mxu0 0.0
  %5043 = vmatpush1.msra.mxu0 0.0
  %5044 = vmatprep.subr.mxu0 0.0
  %5045 = vmatpush1.msra.mxu0 0.0
  %5046 = vmatprep.subr.mxu0 0.0
  %5047 = vmatpush1.msra.mxu0 0.0
  %5048 = vmatprep.subr.mxu0 0.0
  %5049 = vmatpush1.msra.mxu0 0.0
  %5050 = vmatprep.subr.mxu0 0.0
  %5051 = vmatpush1.msra.mxu0 0.0
  %5052 = vmatprep.subr.mxu0 0.0
  %5053 = vmatpush1.msra.mxu0 0.0
  %5054 = vmatprep.subr.mxu0 0.0
  %5055 = vmatpush1.msra.mxu0 0.0
  %5056 = vmatprep.subr.mxu0 0.0
  %5057 = vmatpush1.msra.mxu0 0.0
  %5058 = vmatprep.subr.mxu0 0.0
  %5059 = vmatpush1.msra.mxu0 0.0
  %5060 = vmatprep.subr.mxu0 0.0
  %5061 = vmatpush1.msra.mxu0 0.0
  %5062 = vmatprep.subr.mxu0 0.0
  %5063 = vmatpush1.msra.mxu0 0.0
  %5064 = vmatprep.subr.mxu0 0.0
  %5065 = vmatpush1.msra.mxu0 0.0
  %5066 = vmatprep.subr.mxu0 0.0
  %5067 = vmatpush1.msra.mxu0 0.0
  %5068 = vmatprep.subr.mxu0 0.0
  %5069 = vmatpush1.msra.mxu0 0.0
  %5070 = vmatprep.subr.mxu0 0.0
  %5071 = vmatpush1.msra.mxu0 0.0
  %5072 = vmatprep.subr.mxu0 0.0
  %5073 = vmatpush1.msra.mxu0 0.0
  %5074 = vmatprep.subr.mxu0 0.0
  %5075 = vmatpush1.msra.mxu0 0.0
  %5076 = vmatprep.subr.mxu0 0.0
  %5077 = vmatpush1.msra.mxu0 0.0
  %5078 = vmatprep.subr.mxu0 0.0
  %5079 = vmatpush1.msra.mxu0 0.0
  %5080 = vmatprep.subr.mxu0 0.0
  %5081 = vmatpush1.msra.mxu0 0.0
  %5082 = vmatprep.subr.mxu0 0.0
  %5083 = vmatpush1.msra.mxu0 0.0
  %5084 = vmatprep.subr.mxu0 0.0
  %5085 = vmatpush1.msra.mxu0 0.0
  %5086 = vmatprep.subr.mxu0 0.0
  %5087 = vmatpush1.msra.mxu0 0.0
  %5088 = vmatprep.subr.mxu0 0.0
  %5089 = vmatpush1.msra.mxu0 0.0
  %5090 = vmatprep.mubr.f32.mxu0 0.0
  %5091 = vmatmul.mubr.f32.gmra.mrb[0].mxu0 %v5024
  %v5092 = vpop.f32.mrb[0].mxu0
  %v5093 = vadd.f32 0.0, %v5092
  %v5094 = vpop.f32.mrb[0].mxu0
  %5095 = vdwg.mxu0
  %v5096 = vmul.f32 %v4895, 0.001953125
  %v5097 = vmul.f32 %v5093, 0.001953125
  %v5098 = vmul.f32 %v5096, %v5096
  %v5099 = vsub.f32 %v5097, %v5098
  %v5100 = vmax.f32 %v5099, 0.0
  %v5101 = vadd.f32 %v5100, 1e-05
  %v5102 = vrsqrt.pop %v5101
  %v5103 = vmul.f32 %v4698, %v5102
  %v5104 = vmul.f32 %v5096, %v5103
  %v5105 = vsub.f32 %v4699, %v5104
  %v5107 = vlaneseq
  %v5108 = vshrl.u32 %v5107, 7
  %v5109 = vsub.s32 0, %v5108
  %v5110 = vrot.slane %v5103, %v5109
  %v5112 = vmul.f32 %v4658, %v5110
  %v5113 = vmul.f32 %v4659, %v5110
  %v5114 = vmul.f32 %v4660, %v5110
  %v5115 = vmul.f32 %v4661, %v5110
  %v5116 = vmul.f32 %v4662, %v5110
  %v5117 = vmul.f32 %v4663, %v5110
  %v5118 = vmul.f32 %v4664, %v5110
  %v5119 = vmul.f32 %v4665, %v5110
  %v5120 = vmul.f32 %v4666, %v5110
  %v5121 = vmul.f32 %v4667, %v5110
  %v5122 = vmul.f32 %v4668, %v5110
  %v5123 = vmul.f32 %v4669, %v5110
  %v5124 = vmul.f32 %v4670, %v5110
  %v5125 = vmul.f32 %v4671, %v5110
  %v5126 = vmul.f32 %v4672, %v5110
  %v5127 = vmul.f32 %v4673, %v5110
  %v5128 = vmul.f32 %v4674, %v5110
  %v5129 = vmul.f32 %v4675, %v5110
  %v5130 = vmul.f32 %v4676, %v5110
  %v5131 = vmul.f32 %v4677, %v5110
  %v5132 = vmul.f32 %v4678, %v5110
  %v5133 = vmul.f32 %v4679, %v5110
  %v5134 = vmul.f32 %v4680, %v5110
  %v5135 = vmul.f32 %v4681, %v5110
  %v5136 = vmul.f32 %v4682, %v5110
  %v5137 = vmul.f32 %v4683, %v5110
  %v5138 = vmul.f32 %v4684, %v5110
  %v5139 = vmul.f32 %v4685, %v5110
  %v5140 = vmul.f32 %v4686, %v5110
  %v5141 = vmul.f32 %v4687, %v5110
  %v5142 = vmul.f32 %v4688, %v5110
  %v5143 = vmul.f32 %v4689, %v5110
  %v5144 = vmul.f32 %v4690, %v5110
  %v5145 = vmul.f32 %v4691, %v5110
  %v5146 = vmul.f32 %v4692, %v5110
  %v5147 = vmul.f32 %v4693, %v5110
  %v5148 = vmul.f32 %v4694, %v5110
  %v5149 = vmul.f32 %v4695, %v5110
  %v5150 = vmul.f32 %v4696, %v5110
  %v5151 = vmul.f32 %v4697, %v5110
  %v5153 = vlaneseq
  %v5154 = vshrl.u32 %v5153, 7
  %v5155 = vsub.s32 0, %v5154
  %v5156 = vrot.slane %v5105, %v5155
  %v5158 = vadd.f32 %v5112, %v5156
  %v5159 = vadd.f32 %v5113, %v5156
  %v5160 = vadd.f32 %v5114, %v5156
  %v5161 = vadd.f32 %v5115, %v5156
  %v5162 = vadd.f32 %v5116, %v5156
  %v5163 = vadd.f32 %v5117, %v5156
  %v5164 = vadd.f32 %v5118, %v5156
  %v5165 = vadd.f32 %v5119, %v5156
  %v5166 = vadd.f32 %v5120, %v5156
  %v5167 = vadd.f32 %v5121, %v5156
  %v5168 = vadd.f32 %v5122, %v5156
  %v5169 = vadd.f32 %v5123, %v5156
  %v5170 = vadd.f32 %v5124, %v5156
  %v5171 = vadd.f32 %v5125, %v5156
  %v5172 = vadd.f32 %v5126, %v5156
  %v5173 = vadd.f32 %v5127, %v5156
  %v5174 = vadd.f32 %v5128, %v5156
  %v5175 = vadd.f32 %v5129, %v5156
  %v5176 = vadd.f32 %v5130, %v5156
  %v5177 = vadd.f32 %v5131, %v5156
  %v5178 = vadd.f32 %v5132, %v5156
  %v5179 = vadd.f32 %v5133, %v5156
  %v5180 = vadd.f32 %v5134, %v5156
  %v5181 = vadd.f32 %v5135, %v5156
  %v5182 = vadd.f32 %v5136, %v5156
  %v5183 = vadd.f32 %v5137, %v5156
  %v5184 = vadd.f32 %v5138, %v5156
  %v5185 = vadd.f32 %v5139, %v5156
  %v5186 = vadd.f32 %v5140, %v5156
  %v5187 = vadd.f32 %v5141, %v5156
  %v5188 = vadd.f32 %v5142, %v5156
  %v5189 = vadd.f32 %v5143, %v5156
  %v5190 = vadd.f32 %v5144, %v5156
  %v5191 = vadd.f32 %v5145, %v5156
  %v5192 = vadd.f32 %v5146, %v5156
  %v5193 = vadd.f32 %v5147, %v5156
  %v5194 = vadd.f32 %v5148, %v5156
  %v5195 = vadd.f32 %v5149, %v5156
  %v5196 = vadd.f32 %v5150, %v5156
  %v5197 = vadd.f32 %v5151, %v5156
  %v5198 = vmax.f32 %v5158, 0.0
  %v5199 = vmax.f32 %v5159, 0.0
  %v5200 = vmax.f32 %v5160, 0.0
  %v5201 = vmax.f32 %v5161, 0.0
  %v5202 = vmax.f32 %v5162, 0.0
  %v5203 = vmax.f32 %v5163, 0.0
  %v5204 = vmax.f32 %v5164, 0.0
  %v5205 = vmax.f32 %v5165, 0.0
  %v5206 = vmax.f32 %v5166, 0.0
  %v5207 = vmax.f32 %v5167, 0.0
  %v5208 = vmax.f32 %v5168, 0.0
  %v5209 = vmax.f32 %v5169, 0.0
  %v5210 = vmax.f32 %v5170, 0.0
  %v5211 = vmax.f32 %v5171, 0.0
  %v5212 = vmax.f32 %v5172, 0.0
  %v5213 = vmax.f32 %v5173, 0.0
  %v5214 = vmax.f32 %v5174, 0.0
  %v5215 = vmax.f32 %v5175, 0.0
  %v5216 = vmax.f32 %v5176, 0.0
  %v5217 = vmax.f32 %v5177, 0.0
  %v5218 = vmax.f32 %v5178, 0.0
  %v5219 = vmax.f32 %v5179, 0.0
  %v5220 = vmax.f32 %v5180, 0.0
  %v5221 = vmax.f32 %v5181, 0.0
  %v5222 = vmax.f32 %v5182, 0.0
  %v5223 = vmax.f32 %v5183, 0.0
  %v5224 = vmax.f32 %v5184, 0.0
  %v5225 = vmax.f32 %v5185, 0.0
  %v5226 = vmax.f32 %v5186, 0.0
  %v5227 = vmax.f32 %v5187, 0.0
  %v5228 = vmax.f32 %v5188, 0.0
  %v5229 = vmax.f32 %v5189, 0.0
  %v5230 = vmax.f32 %v5190, 0.0
  %v5231 = vmax.f32 %v5191, 0.0
  %v5232 = vmax.f32 %v5192, 0.0
  %v5233 = vmax.f32 %v5193, 0.0
  %v5234 = vmax.f32 %v5194, 0.0
  %v5235 = vmax.f32 %v5195, 0.0
  %v5236 = vmax.f32 %v5196, 0.0
  %v5237 = vmax.f32 %v5197, 0.0
  %5238 = vst.msk [vmem:[%s12] sm:$0xff] %vm1091, %v5198
  %5239 = vst.msk [vmem:[%s12 + $0x8] sm:$0xff] %vm1091, %v5199
  %5240 = vst.msk [vmem:[%s12 + $0x10] sm:$0xff] %vm1091, %v5200
  %5241 = vst.msk [vmem:[%s12 + $0x18] sm:$0xff] %vm1091, %v5201
  %5242 = vst.msk [vmem:[%s12 + $0x20] sm:$0xff] %vm1091, %v5202
  %5243 = vst.msk [vmem:[%s12 + $0x28] sm:$0xff] %vm1091, %v5203
  %5244 = vst.msk [vmem:[%s12 + $0x30] sm:$0xff] %vm1091, %v5204
  %5245 = vst.msk [vmem:[%s12 + $0x38] sm:$0xff] %vm1091, %v5205
  %5246 = vst.msk [vmem:[%s12 + $0x40] sm:$0xff] %vm1091, %v5206
  %5247 = vst.msk [vmem:[%s12 + $0x48] sm:$0xff] %vm1091, %v5207
  %5248 = vst.msk [vmem:[%s12 + $0x50] sm:$0xff] %vm1091, %v5208
  %5249 = vst.msk [vmem:[%s12 + $0x58] sm:$0xff] %vm1091, %v5209
  %5250 = vst.msk [vmem:[%s12 + $0x60] sm:$0xff] %vm1091, %v5210
  %5251 = vst.msk [vmem:[%s12 + $0x68] sm:$0xff] %vm1091, %v5211
  %5252 = vst.msk [vmem:[%s12 + $0x70] sm:$0xff] %vm1091, %v5212
  %5253 = vst.msk [vmem:[%s12 + $0x78] sm:$0xff] %vm1091, %v5213
  %5254 = vst.msk [vmem:[%s12 + $0x80] sm:$0xff] %vm1091, %v5214
  %5255 = vst.msk [vmem:[%s12 + $0x88] sm:$0xff] %vm1091, %v5215
  %5256 = vst.msk [vmem:[%s12 + $0x90] sm:$0xff] %vm1091, %v5216
  %5257 = vst.msk [vmem:[%s12 + $0x98] sm:$0xff] %vm1091, %v5217
  %5258 = vst.msk [vmem:[%s12 + $0xa0] sm:$0xff] %vm1091, %v5218
  %5259 = vst.msk [vmem:[%s12 + $0xa8] sm:$0xff] %vm1091, %v5219
  %5260 = vst.msk [vmem:[%s12 + $0xb0] sm:$0xff] %vm1091, %v5220
  %5261 = vst.msk [vmem:[%s12 + $0xb8] sm:$0xff] %vm1091, %v5221
  %5262 = vst.msk [vmem:[%s12 + $0xc0] sm:$0xff] %vm1091, %v5222
  %5263 = vst.msk [vmem:[%s12 + $0xc8] sm:$0xff] %vm1091, %v5223
  %5264 = vst.msk [vmem:[%s12 + $0xd0] sm:$0xff] %vm1091, %v5224
  %5265 = vst.msk [vmem:[%s12 + $0xd8] sm:$0xff] %vm1091, %v5225
  %5266 = vst.msk [vmem:[%s12 + $0xe0] sm:$0xff] %vm1091, %v5226
  %5267 = vst.msk [vmem:[%s12 + $0xe8] sm:$0xff] %vm1091, %v5227
  %5268 = vst.msk [vmem:[%s12 + $0xf0] sm:$0xff] %vm1091, %v5228
  %5269 = vst.msk [vmem:[%s12 + $0xf8] sm:$0xff] %vm1091, %v5229
  %5270 = vst.msk [vmem:[%s12 + $0x100] sm:$0xff] %vm1091, %v5230
  %5271 = vst.msk [vmem:[%s12 + $0x108] sm:$0xff] %vm1091, %v5231
  %5272 = vst.msk [vmem:[%s12 + $0x110] sm:$0xff] %vm1091, %v5232
  %5273 = vst.msk [vmem:[%s12 + $0x118] sm:$0xff] %vm1091, %v5233
  %5274 = vst.msk [vmem:[%s12 + $0x120] sm:$0xff] %vm1091, %v5234
  %5275 = vst.msk [vmem:[%s12 + $0x128] sm:$0xff] %vm1091, %v5235
  %5276 = vst.msk [vmem:[%s12 + $0x130] sm:$0xff] %vm1091, %v5236
  %5277 = vst.msk [vmem:[%s12 + $0x138] sm:$0xff] %vm1091, %v5237
  // Predicated region
  $region50: #{_lambda_.3} parent=0 // pred_check
    _
  $region51: #{_lambda_.3} parent=0 // pred_check_branch
    %5279 = sbr.rel (0) target = $region53
  $region52: #{_lambda_.3} parent=0 // pred_region
    _
  $region53: #{_lambda_.3} parent=0 // pred_fallthru
    _
  // Predicated region
  $region54: #{_lambda_.3} parent=0 // pred_check
    _
  $region55: #{_lambda_.3} parent=0 // pred_check_branch
    %5281 = sbr.rel (0) target = $region57
  $region56: #{_lambda_.3} parent=0 // pred_region
    _
  $region57: #{_lambda_.3} parent=0 // pred_fallthru
    _

</llo_original>
